<compile_context>
chip_gen: v7x
topology: tpu7x:2x2x1
jax: 0.10.0
libtpu: 0.0.40
codegen_flags: <defaults>
</compile_context>

<pallas_src>
import jax
import jax.numpy as jnp
from jax import lax
from jax.experimental import pallas as pl
from jax.experimental.pallas import tpu as pltpu

BN_EPS = 1e-5

_COMPILER_PARAMS = pltpu.CompilerParams(
    dimension_semantics=("parallel",),
    vmem_limit_bytes=64 * 1024 * 1024,
)


# ----------------------------------------------------------------------------
# In-kernel helpers (traced inside Pallas bodies)
# ----------------------------------------------------------------------------
def _im2col_3x3(xp, H, W):
    """xp: (H+2, W+2, C) padded tile -> (H*W, 9*C) patch matrix.

    Column order is (kh, kw, c) row-major, matching w.reshape(9*C, Cout) for
    HWIO weights of shape (3, 3, C, Cout).
    """
    C = xp.shape[-1]
    cols = []
    for kh in range(3):
        for kw in range(3):
            cols.append(xp[kh:kh + H, kw:kw + W, :].reshape(H * W, C))
    return jnp.concatenate(cols, axis=-1)


def _maxpool_3x3(xp, H, W):
    """xp: (H+2, W+2, C) padded with a large negative value -> (H, W, C)."""
    m = xp[0:H, 0:W, :]
    for kh in range(3):
        for kw in range(3):
            if kh == 0 and kw == 0:
                continue
            m = jnp.maximum(m, xp[kh:kh + H, kw:kw + W, :])
    return m


# ----------------------------------------------------------------------------
# Kernel 1: 1x1 conv (+ folded BN affine) + ReLU  == tiled matmul over channels
# ----------------------------------------------------------------------------
def _conv1x1_bn_relu_kernel(x_ref, w_ref, b_ref, o_ref):
    acc = jnp.dot(x_ref[...], w_ref[...], preferred_element_type=jnp.float32)
    o_ref[...] = jnp.maximum(acc + b_ref[...], 0.0).astype(o_ref.dtype)


def conv1x1_bn_relu(x_nhwc, w_eff, b_eff, *, tile_m=512):
    N, H, W, Cin = x_nhwc.shape
    Cout = w_eff.shape[-1]
    M = N * H * W
    if M <= tile_m:
        tile_m = M                     # single full-extent block (always legal)
    x2d = x_nhwc.reshape(M, Cin)
    b2d = b_eff.reshape(1, Cout)
    out = pl.pallas_call(
        _conv1x1_bn_relu_kernel,
        out_shape=jax.ShapeDtypeStruct((M, Cout), x_nhwc.dtype),
        grid_spec=pltpu.PrefetchScalarGridSpec(
            num_scalar_prefetch=0,
            grid=(pl.cdiv(M, tile_m),),
            in_specs=[
                pl.BlockSpec((tile_m, Cin), lambda i: (i, 0)),
                pl.BlockSpec((Cin, Cout), lambda i: (0, 0)),
                pl.BlockSpec((1, Cout), lambda i: (0, 0)),
            ],
            out_specs=pl.BlockSpec((tile_m, Cout), lambda i: (i, 0)),
        ),
        compiler_params=_COMPILER_PARAMS,
    )(x2d, w_eff, b2d)
    return out.reshape(N, H, W, Cout)


# ----------------------------------------------------------------------------
# Kernel 2: 3x3 conv, stride 1, pad 1 (+ folded BN) + ReLU
#           single K=9*Cin matmul on an in-kernel im2col patch matrix
# ----------------------------------------------------------------------------
def _conv3x3_bn_relu_kernel(xp_ref, w_ref, b_ref, o_ref):
    H, W, Cout = o_ref.shape[1], o_ref.shape[2], o_ref.shape[3]
    patches = _im2col_3x3(xp_ref[0], H, W)                 # (H*W, 9*Cin)
    acc = jnp.dot(patches, w_ref[...], preferred_element_type=jnp.float32)
    acc = jnp.maximum(acc + b_ref[...], 0.0)
    o_ref[0] = acc.reshape(H, W, Cout).astype(o_ref.dtype)


def conv3x3_bn_relu(x_nhwc, w_eff, b_eff):
    N, H, W, Cin = x_nhwc.shape
    Cout = w_eff.shape[-1]
    xp = jnp.pad(x_nhwc, ((0, 0), (1, 1), (1, 1), (0, 0)))
    w2d = w_eff.reshape(9 * Cin, Cout)
    b2d = b_eff.reshape(1, Cout)
    return pl.pallas_call(
        _conv3x3_bn_relu_kernel,
        out_shape=jax.ShapeDtypeStruct((N, H, W, Cout), x_nhwc.dtype),
        grid_spec=pltpu.PrefetchScalarGridSpec(
            num_scalar_prefetch=0,
            grid=(N,),
            in_specs=[
                pl.BlockSpec((1, H + 2, W + 2, Cin), lambda n: (n, 0, 0, 0)),
                pl.BlockSpec((9 * Cin, Cout), lambda n: (0, 0)),
                pl.BlockSpec((1, Cout), lambda n: (0, 0)),
            ],
            out_specs=pl.BlockSpec((1, H, W, Cout), lambda n: (n, 0, 0, 0)),
        ),
        compiler_params=_COMPILER_PARAMS,
    )(xp, w2d, b2d)


# ----------------------------------------------------------------------------
# Kernel 3: fused Inception "tail" — computes all four branch outputs and
#           writes one lane-dense (H*W, C_total) block per image (no concat).
#   branch 1: 1x1(x)            branch 2: 3x3(t2)
#   branch 3: 3x3(t3)           branch 4: maxpool3x3(x) -> 1x1
# ----------------------------------------------------------------------------
def _inception_tail_kernel(xp_ref, t2p_ref, t3p_ref,
                           w1_ref, w2_ref, w3_ref, w4_ref, b_ref, o_ref):
    H = xp_ref.shape[1] - 2
    W = xp_ref.shape[2] - 2
    xp = xp_ref[0]

    # Branch 1: 1x1 conv on the (un-padded) center of x.
    x_c = xp[1:H + 1, 1:W + 1, :].reshape(H * W, xp.shape[-1])
    o1 = jnp.dot(x_c, w1_ref[...], preferred_element_type=jnp.float32)

    # Branch 2: 3x3 conv on t2, single K=9*Cr3 matmul.
    o2 = jnp.dot(_im2col_3x3(t2p_ref[0], H, W), w2_ref[...],
                 preferred_element_type=jnp.float32)

    # Branch 3: final 3x3 conv on t3.
    o3 = jnp.dot(_im2col_3x3(t3p_ref[0], H, W), w3_ref[...],
                 preferred_element_type=jnp.float32)

    # Branch 4: 3x3 max-pool (stride 1, pad 1) then 1x1 conv.
    m = _maxpool_3x3(xp, H, W).reshape(H * W, xp.shape[-1])
    o4 = jnp.dot(m, w4_ref[...], preferred_element_type=jnp.float32)

    out = jnp.concatenate([o1, o2, o3, o4], axis=-1) + b_ref[...]
    o_ref[...] = jnp.maximum(out, 0.0).astype(o_ref.dtype)


def inception_tail(x_nhwc, t2_nhwc, t3_nhwc, p1, p2, p3, p4):
    N, H, W, Cin = x_nhwc.shape
    (w1, b1), (w2, b2), (w3, b3), (w4, b4) = p1, p2, p3, p4
    cr3, c5 = t2_nhwc.shape[-1], t3_nhwc.shape[-1]
    c1, c33, c55, cpool = w1.shape[-1], w2.shape[-1], w3.shape[-1], w4.shape[-1]
    ctot = c1 + c33 + c55 + cpool

    neg = float(jnp.finfo(x_nhwc.dtype).min)   # pad value for the max-pool halo
    xp = jnp.pad(x_nhwc, ((0, 0), (1, 1), (1, 1), (0, 0)), constant_values=neg)
    t2p = jnp.pad(t2_nhwc, ((0, 0), (1, 1), (1, 1), (0, 0)))
    t3p = jnp.pad(t3_nhwc, ((0, 0), (1, 1), (1, 1), (0, 0)))

    w2f = w2.reshape(9 * cr3, c33)
    w3f = w3.reshape(9 * c5, c55)
    b_cat = jnp.concatenate([b1, b2, b3, b4]).reshape(1, ctot)

    out2d = pl.pallas_call(
        _inception_tail_kernel,
        out_shape=jax.ShapeDtypeStruct((N * H * W, ctot), x_nhwc.dtype),
        grid_spec=pltpu.PrefetchScalarGridSpec(
            num_scalar_prefetch=0,
            grid=(N,),
            in_specs=[
                pl.BlockSpec((1, H + 2, W + 2, Cin), lambda n: (n, 0, 0, 0)),
                pl.BlockSpec((1, H + 2, W + 2, cr3), lambda n: (n, 0, 0, 0)),
                pl.BlockSpec((1, H + 2, W + 2, c5), lambda n: (n, 0, 0, 0)),
                pl.BlockSpec((Cin, c1), lambda n: (0, 0)),
                pl.BlockSpec((9 * cr3, c33), lambda n: (0, 0)),
                pl.BlockSpec((9 * c5, c55), lambda n: (0, 0)),
                pl.BlockSpec((Cin, cpool), lambda n: (0, 0)),
                pl.BlockSpec((1, ctot), lambda n: (0, 0)),
            ],
            out_specs=pl.BlockSpec((H * W, ctot), lambda n: (n, 0)),
        ),
        compiler_params=_COMPILER_PARAMS,
    )(xp, t2p, t3p, w1, w2f, w3f, w4, b_cat)
    return out2d.reshape(N, H, W, ctot)


# ----------------------------------------------------------------------------
# Parameter setup (deterministic, synthetic) — BasicConv2d = Conv + BN + ReLU
# ----------------------------------------------------------------------------
def _fold_bn(w, b, gamma, beta, mean, var):
    scale = gamma / jnp.sqrt(var + BN_EPS)          # (Cout,)
    shift = beta - mean * scale                     # (Cout,)
    return w * scale, b * scale + shift             # scale along last (Cout) axis


def init_basic_conv(key, ksize, cin, cout):
    kw_, kb, kg, kbt, km, kv = jax.random.split(key, 6)
    fan_in = float(cin * ksize * ksize)
    shape = (cin, cout) if ksize == 1 else (ksize, ksize, cin, cout)
    w = jax.random.normal(kw_, shape, jnp.float32) / jnp.sqrt(fan_in)
    b = 0.1 * jax.random.normal(kb, (cout,), jnp.float32)
    gamma = 1.0 + 0.1 * jax.random.normal(kg, (cout,), jnp.float32)
    beta = 0.1 * jax.random.normal(kbt, (cout,), jnp.float32)
    mean = 0.1 * jax.random.normal(km, (cout,), jnp.float32)
    var = 1.0 + 0.1 * jnp.abs(jax.random.normal(kv, (cout,), jnp.float32))
    return _fold_bn(w, b, gamma, beta, mean, var)


def init_inception(key, in_ch, cfg):
    ks = jax.random.split(key, 7)
    return {
        "b1": init_basic_conv(ks[0], 1, in_ch, cfg["1x1"]),
        "b2_reduce": init_basic_conv(ks[1], 1, in_ch, cfg["r3x3"]),
        "b2_3x3": init_basic_conv(ks[2], 3, cfg["r3x3"], cfg["3x3"]),
        "b3_reduce": init_basic_conv(ks[3], 1, in_ch, cfg["r5x5"]),
        "b3_3x3_a": init_basic_conv(ks[4], 3, cfg["r5x5"], cfg["5x5"]),
        "b3_3x3_b": init_basic_conv(ks[5], 3, cfg["5x5"], cfg["5x5"]),
        "b4_1x1": init_basic_conv(ks[6], 1, in_ch, cfg["pool"]),
    }


# ----------------------------------------------------------------------------
# Inception forward (matches torch module: 4 branches, concat over channels)
# ----------------------------------------------------------------------------
@jax.jit
def inception_forward(x_nchw, params):
    x = jnp.transpose(x_nchw, (0, 2, 3, 1))                       # NCHW -> NHWC

    # Both 1x1 "reduce" convs (branch 2 & 3) fused into one matmul over x.
    w_r3, b_r3 = params["b2_reduce"]
    w_r5, b_r5 = params["b3_reduce"]
    t = conv1x1_bn_relu(x,
                        jnp.concatenate([w_r3, w_r5], axis=1),
                        jnp.concatenate([b_r3, b_r5], axis=0))
    r3 = w_r3.shape[1]
    t2 = t[..., :r3]
    t3 = conv3x3_bn_relu(t[..., r3:], *params["b3_3x3_a"])

    # Fused tail: branch-1 1x1, branch-2/3 final 3x3, branch-4 pool+1x1,
    # written lane-dense directly into the concatenated output layout.
    out = inception_tail(x, t2, t3, params["b1"], params["b2_3x3"],
                         params["b3_3x3_b"], params["b4_1x1"])
    return jnp.transpose(out, (0, 3, 1, 2))                       # NHWC -> NCHW


# ----------------------------------------------------------------------------
# Pure-JAX reference (lax conv / reduce_window) for a correctness check
# ----------------------------------------------------------------------------
def _ref_conv(x, w_eff, b_eff, ksize, pad):
    if ksize == 1:
        w4 = w_eff.reshape(1, 1, *w_eff.shape)
    else:
        w4 = w_eff
    y = lax.conv_general_dilated(
        x, w4, window_strides=(1, 1), padding=[(pad, pad), (pad, pad)],
        dimension_numbers=("NHWC", "HWIO", "NHWC"))
    return jnp.maximum(y + b_eff, 0.0)


def _ref_maxpool(x):
    return lax.reduce_window(
        x, -jnp.inf, lax.max, (1, 3, 3, 1), (1, 1, 1, 1),
        padding=[(0, 0), (1, 1), (1, 1), (0, 0)])


def inception_reference(x_nchw, params):
    x = jnp.transpose(x_nchw, (0, 2, 3, 1))
    o1 = _ref_conv(x, *params["b1"], 1, 0)
    o2 = _ref_conv(_ref_conv(x, *params["b2_reduce"], 1, 0), *params["b2_3x3"], 3, 1)
    t3 = _ref_conv(x, *params["b3_reduce"], 1, 0)
    t3 = _ref_conv(t3, *params["b3_3x3_a"], 3, 1)
    o3 = _ref_conv(t3, *params["b3_3x3_b"], 3, 1)
    o4 = _ref_conv(_ref_maxpool(x), *params["b4_1x1"], 1, 0)
    return jnp.transpose(jnp.concatenate([o1, o2, o3, o4], axis=-1), (0, 3, 1, 2))


# ----------------------------------------------------------------------------
if __name__ == "__main__":
    key = jax.random.PRNGKey(0)
    k_x, k_p = jax.random.split(key)

    # small shapes: batch=2, inCH=4, spatial=16x16
    N, IN_CH, HW = 2, 4, 16
    cfg = {"1x1": 8, "r3x3": 4, "3x3": 8, "r5x5": 4, "5x5": 8, "pool": 8}

    x = jax.random.normal(k_x, (N, IN_CH, HW, HW), jnp.float32)   # NCHW, like PyTorch
    params = init_inception(k_p, IN_CH, cfg)

    out = inception_forward(x, params)
    out = jax.block_until_ready(out)

    expected_c = cfg["1x1"] + cfg["3x3"] + cfg["5x5"] + cfg["pool"]
    assert out.shape == (N, expected_c, HW, HW), out.shape

    ref = jax.block_until_ready(inception_reference(x, params))
    assert jnp.allclose(out, ref, rtol=2e-3, atol=2e-3), float(jnp.abs(out - ref).max())

    print("KERNEL_OK")
</pallas_src>

<mosaic_0001>
module attributes {stable_mosaic.version = 11 : i64} {
  func.func @_conv1x1_bn_relu_kernel(%arg0: i32, %arg1: memref<512x4xf32, #tpu.memory_space<vmem>>, %arg2: memref<4x8xf32, #tpu.memory_space<vmem>>, %arg3: memref<1x8xf32, #tpu.memory_space<vmem>>, %arg4: memref<512x8xf32, #tpu.memory_space<vmem>>) attributes {dimension_semantics = [#tpu.dimension_semantics<parallel>], iteration_bounds = array<i64: 1>, scalar_prefetch = 0 : i64, scratch_operands = 0 : i64, tpu.core_type = #tpu.core_type<tc>, window_params = [{transform_indices = @transform_0, window_bounds = array<i64: 512, 4>}, {pipeline_mode = #tpu.pipeline_mode<synchronous>, transform_indices = @transform_1, window_bounds = array<i64: 4, 8>}, {pipeline_mode = #tpu.pipeline_mode<synchronous>, transform_indices = @transform_2, window_bounds = array<i64: 1, 8>}, {transform_indices = @transform_3, window_bounds = array<i64: 512, 8>}]} {
    %c0 = arith.constant 0 : index
    %c0_0 = arith.constant 0 : index
    %0 = vector.load %arg1[%c0, %c0_0] : memref<512x4xf32, #tpu.memory_space<vmem>>, vector<512x4xf32>
    %c0_1 = arith.constant 0 : index
    %c0_2 = arith.constant 0 : index
    %1 = vector.load %arg2[%c0_1, %c0_2] : memref<4x8xf32, #tpu.memory_space<vmem>>, vector<4x8xf32>
    %cst = arith.constant dense<0.000000e+00> : vector<512x8xf32>
    %2 = tpu.matmul %0, %1, %cst {dimension_numbers = #tpu.dot_dimension_numbers<[1], [0], [0], [1], [0, 0, 1, 1], [], []>} : vector<512x4xf32>, vector<4x8xf32>, vector<512x8xf32> -> vector<512x8xf32>
    %c0_3 = arith.constant 0 : index
    %c0_4 = arith.constant 0 : index
    %3 = vector.load %arg3[%c0_3, %c0_4] : memref<1x8xf32, #tpu.memory_space<vmem>>, vector<1x8xf32>
    %4 = vector.broadcast %3 : vector<1x8xf32> to vector<512x8xf32>
    %5 = arith.addf %2, %4 : vector<512x8xf32>
    %cst_5 = arith.constant 0.000000e+00 : f32
    %6 = vector.broadcast %cst_5 : f32 to vector<512x8xf32>
    %7 = arith.maximumf %5, %6 : vector<512x8xf32>
    %c0_6 = arith.constant 0 : index
    %c0_7 = arith.constant 0 : index
    %8 = vector.load %arg4[%c0_6, %c0_7] : memref<512x8xf32, #tpu.memory_space<vmem>>, vector<512x8xf32>
    tpu.vector_store %arg4[%c0_6, %c0_7], %7 {strides = array<i32>} : memref<512x8xf32, #tpu.memory_space<vmem>>, vector<512x8xf32>,
    return
  }
  func.func @transform_0(%arg0: i32) -> (i32, i32) {
    %c0_i32 = arith.constant 0 : i32
    %c0_i32_0 = arith.constant 0 : i32
    return %arg0, %c0_i32 : i32, i32
  }
  func.func @transform_1(%arg0: i32) -> (i32, i32) {
    %c0_i32 = arith.constant 0 : i32
    %c0_i32_0 = arith.constant 0 : i32
    %c0_i32_1 = arith.constant 0 : i32
    return %c0_i32, %c0_i32_0 : i32, i32
  }
  func.func @transform_2(%arg0: i32) -> (i32, i32) {
    %c0_i32 = arith.constant 0 : i32
    %c0_i32_0 = arith.constant 0 : i32
    %c0_i32_1 = arith.constant 0 : i32
    return %c0_i32, %c0_i32_0 : i32, i32
  }
  func.func @transform_3(%arg0: i32) -> (i32, i32) {
    %c0_i32 = arith.constant 0 : i32
    %c0_i32_0 = arith.constant 0 : i32
    return %arg0, %c0_i32 : i32, i32
  }
}

module attributes {stable_mosaic.version = 11 : i64} {
  func.func @_conv3x3_bn_relu_kernel(%arg0: i32, %arg1: memref<1x18x18x4xf32, #tpu.memory_space<vmem>>, %arg2: memref<36x8xf32, #tpu.memory_space<vmem>>, %arg3: memref<1x8xf32, #tpu.memory_space<vmem>>, %arg4: memref<1x16x16x8xf32, #tpu.memory_space<vmem>>) attributes {dimension_semantics = [#tpu.dimension_semantics<parallel>], iteration_bounds = array<i64: 2>, scalar_prefetch = 0 : i64, scratch_operands = 0 : i64, tpu.core_type = #tpu.core_type<tc>, window_params = [{transform_indices = @transform_0, window_bounds = array<i64: 1, 18, 18, 4>}, {pipeline_mode = #tpu.pipeline_mode<synchronous>, transform_indices = @transform_1, window_bounds = array<i64: 36, 8>}, {pipeline_mode = #tpu.pipeline_mode<synchronous>, transform_indices = @transform_2, window_bounds = array<i64: 1, 8>}, {transform_indices = @transform_3, window_bounds = array<i64: 1, 16, 16, 8>}]} {
    %c0 = arith.constant 0 : index
    %c0_0 = arith.constant 0 : index
    %c0_1 = arith.constant 0 : index
    %c0_2 = arith.constant 0 : index
    %0 = vector.load %arg1[%c0, %c0_0, %c0_1, %c0_2] : memref<1x18x18x4xf32, #tpu.memory_space<vmem>>, vector<1x18x18x4xf32>
    %1 = vector.shape_cast %0 : vector<1x18x18x4xf32> to vector<18x18x4xf32>
    %2 = vector.extract_strided_slice %1 {offsets = [0, 0, 0], sizes = [16, 16, 4], strides = [1, 1, 1]} : vector<18x18x4xf32> to vector<16x16x4xf32>
    %3 = vector.shape_cast %2 : vector<16x16x4xf32> to vector<256x4xf32>
    %4 = vector.extract_strided_slice %1 {offsets = [0, 1, 0], sizes = [16, 16, 4], strides = [1, 1, 1]} : vector<18x18x4xf32> to vector<16x16x4xf32>
    %5 = vector.shape_cast %4 : vector<16x16x4xf32> to vector<256x4xf32>
    %6 = vector.extract_strided_slice %1 {offsets = [0, 2, 0], sizes = [16, 16, 4], strides = [1, 1, 1]} : vector<18x18x4xf32> to vector<16x16x4xf32>
    %7 = vector.shape_cast %6 : vector<16x16x4xf32> to vector<256x4xf32>
    %8 = vector.extract_strided_slice %1 {offsets = [1, 0, 0], sizes = [16, 16, 4], strides = [1, 1, 1]} : vector<18x18x4xf32> to vector<16x16x4xf32>
    %9 = vector.shape_cast %8 : vector<16x16x4xf32> to vector<256x4xf32>
    %10 = vector.extract_strided_slice %1 {offsets = [1, 1, 0], sizes = [16, 16, 4], strides = [1, 1, 1]} : vector<18x18x4xf32> to vector<16x16x4xf32>
    %11 = vector.shape_cast %10 : vector<16x16x4xf32> to vector<256x4xf32>
    %12 = vector.extract_strided_slice %1 {offsets = [1, 2, 0], sizes = [16, 16, 4], strides = [1, 1, 1]} : vector<18x18x4xf32> to vector<16x16x4xf32>
    %13 = vector.shape_cast %12 : vector<16x16x4xf32> to vector<256x4xf32>
    %14 = vector.extract_strided_slice %1 {offsets = [2, 0, 0], sizes = [16, 16, 4], strides = [1, 1, 1]} : vector<18x18x4xf32> to vector<16x16x4xf32>
    %15 = vector.shape_cast %14 : vector<16x16x4xf32> to vector<256x4xf32>
    %16 = vector.extract_strided_slice %1 {offsets = [2, 1, 0], sizes = [16, 16, 4], strides = [1, 1, 1]} : vector<18x18x4xf32> to vector<16x16x4xf32>
    %17 = vector.shape_cast %16 : vector<16x16x4xf32> to vector<256x4xf32>
    %18 = vector.extract_strided_slice %1 {offsets = [2, 2, 0], sizes = [16, 16, 4], strides = [1, 1, 1]} : vector<18x18x4xf32> to vector<16x16x4xf32>
    %19 = vector.shape_cast %18 : vector<16x16x4xf32> to vector<256x4xf32>
    %20 = tpu.concatenate %3, %5, %7, %9, %11, %13, %15, %17, %19 in 1 : vector<256x4xf32>, vector<256x4xf32>, vector<256x4xf32>, vector<256x4xf32>, vector<256x4xf32>, vector<256x4xf32>, vector<256x4xf32>, vector<256x4xf32>, vector<256x4xf32> -> vector<256x36xf32>
    %c0_3 = arith.constant 0 : index
    %c0_4 = arith.constant 0 : index
    %21 = vector.load %arg2[%c0_3, %c0_4] : memref<36x8xf32, #tpu.memory_space<vmem>>, vector<36x8xf32>
    %cst = arith.constant dense<0.000000e+00> : vector<256x8xf32>
    %22 = tpu.matmul %20, %21, %cst {dimension_numbers = #tpu.dot_dimension_numbers<[1], [0], [0], [1], [0, 0, 1, 1], [], []>} : vector<256x36xf32>, vector<36x8xf32>, vector<256x8xf32> -> vector<256x8xf32>
    %c0_5 = arith.constant 0 : index
    %c0_6 = arith.constant 0 : index
    %23 = vector.load %arg3[%c0_5, %c0_6] : memref<1x8xf32, #tpu.memory_space<vmem>>, vector<1x8xf32>
    %24 = vector.broadcast %23 : vector<1x8xf32> to vector<256x8xf32>
    %25 = arith.addf %22, %24 : vector<256x8xf32>
    %cst_7 = arith.constant 0.000000e+00 : f32
    %26 = vector.broadcast %cst_7 : f32 to vector<256x8xf32>
    %27 = arith.maximumf %25, %26 : vector<256x8xf32>
    %28 = vector.shape_cast %27 : vector<256x8xf32> to vector<16x16x8xf32>
    %c0_8 = arith.constant 0 : index
    %c0_9 = arith.constant 0 : index
    %c0_10 = arith.constant 0 : index
    %c0_11 = arith.constant 0 : index
    %29 = vector.load %arg4[%c0_8, %c0_9, %c0_10, %c0_11] : memref<1x16x16x8xf32, #tpu.memory_space<vmem>>, vector<1x16x16x8xf32>
    %30 = vector.shape_cast %29 : vector<1x16x16x8xf32> to vector<16x16x8xf32>
    %31 = vector.shape_cast %28 : vector<16x16x8xf32> to vector<1x16x16x8xf32>
    tpu.vector_store %arg4[%c0_8, %c0_9, %c0_10, %c0_11], %31 {strides = array<i32>} : memref<1x16x16x8xf32, #tpu.memory_space<vmem>>, vector<1x16x16x8xf32>,
    return
  }
  func.func @transform_0(%arg0: i32) -> (i32, i32, i32, i32) {
    %c0_i32 = arith.constant 0 : i32
    %c0_i32_0 = arith.constant 0 : i32
    %c0_i32_1 = arith.constant 0 : i32
    %c0_i32_2 = arith.constant 0 : i32
    return %arg0, %c0_i32, %c0_i32_0, %c0_i32_1 : i32, i32, i32, i32
  }
  func.func @transform_1(%arg0: i32) -> (i32, i32) {
    %c0_i32 = arith.constant 0 : i32
    %c0_i32_0 = arith.constant 0 : i32
    %c0_i32_1 = arith.constant 0 : i32
    return %c0_i32, %c0_i32_0 : i32, i32
  }
  func.func @transform_2(%arg0: i32) -> (i32, i32) {
    %c0_i32 = arith.constant 0 : i32
    %c0_i32_0 = arith.constant 0 : i32
    %c0_i32_1 = arith.constant 0 : i32
    return %c0_i32, %c0_i32_0 : i32, i32
  }
  func.func @transform_3(%arg0: i32) -> (i32, i32, i32, i32) {
    %c0_i32 = arith.constant 0 : i32
    %c0_i32_0 = arith.constant 0 : i32
    %c0_i32_1 = arith.constant 0 : i32
    %c0_i32_2 = arith.constant 0 : i32
    return %arg0, %c0_i32, %c0_i32_0, %c0_i32_1 : i32, i32, i32, i32
  }
}

module attributes {stable_mosaic.version = 11 : i64} {
  func.func @_inception_tail_kernel(%arg0: i32, %arg1: memref<1x18x18x4xf32, #tpu.memory_space<vmem>>, %arg2: memref<1x18x18x4xf32, #tpu.memory_space<vmem>>, %arg3: memref<1x18x18x8xf32, #tpu.memory_space<vmem>>, %arg4: memref<4x8xf32, #tpu.memory_space<vmem>>, %arg5: memref<36x8xf32, #tpu.memory_space<vmem>>, %arg6: memref<72x8xf32, #tpu.memory_space<vmem>>, %arg7: memref<4x8xf32, #tpu.memory_space<vmem>>, %arg8: memref<1x32xf32, #tpu.memory_space<vmem>>, %arg9: memref<256x32xf32, #tpu.memory_space<vmem>>) attributes {dimension_semantics = [#tpu.dimension_semantics<parallel>], iteration_bounds = array<i64: 2>, scalar_prefetch = 0 : i64, scratch_operands = 0 : i64, tpu.core_type = #tpu.core_type<tc>, window_params = [{transform_indices = @transform_0, window_bounds = array<i64: 1, 18, 18, 4>}, {transform_indices = @transform_1, window_bounds = array<i64: 1, 18, 18, 4>}, {transform_indices = @transform_2, window_bounds = array<i64: 1, 18, 18, 8>}, {pipeline_mode = #tpu.pipeline_mode<synchronous>, transform_indices = @transform_3, window_bounds = array<i64: 4, 8>}, {pipeline_mode = #tpu.pipeline_mode<synchronous>, transform_indices = @transform_4, window_bounds = array<i64: 36, 8>}, {pipeline_mode = #tpu.pipeline_mode<synchronous>, transform_indices = @transform_5, window_bounds = array<i64: 72, 8>}, {pipeline_mode = #tpu.pipeline_mode<synchronous>, transform_indices = @transform_6, window_bounds = array<i64: 4, 8>}, {pipeline_mode = #tpu.pipeline_mode<synchronous>, transform_indices = @transform_7, window_bounds = array<i64: 1, 32>}, {transform_indices = @transform_8, window_bounds = array<i64: 256, 32>}]} {
    %c0 = arith.constant 0 : index
    %c0_0 = arith.constant 0 : index
    %c0_1 = arith.constant 0 : index
    %c0_2 = arith.constant 0 : index
    %0 = vector.load %arg1[%c0, %c0_0, %c0_1, %c0_2] : memref<1x18x18x4xf32, #tpu.memory_space<vmem>>, vector<1x18x18x4xf32>
    %1 = vector.shape_cast %0 : vector<1x18x18x4xf32> to vector<18x18x4xf32>
    %2 = vector.extract_strided_slice %1 {offsets = [1, 1, 0], sizes = [16, 16, 4], strides = [1, 1, 1]} : vector<18x18x4xf32> to vector<16x16x4xf32>
    %3 = vector.shape_cast %2 : vector<16x16x4xf32> to vector<256x4xf32>
    %c0_3 = arith.constant 0 : index
    %c0_4 = arith.constant 0 : index
    %4 = vector.load %arg4[%c0_3, %c0_4] : memref<4x8xf32, #tpu.memory_space<vmem>>, vector<4x8xf32>
    %cst = arith.constant dense<0.000000e+00> : vector<256x8xf32>
    %5 = tpu.matmul %3, %4, %cst {dimension_numbers = #tpu.dot_dimension_numbers<[1], [0], [0], [1], [0, 0, 1, 1], [], []>} : vector<256x4xf32>, vector<4x8xf32>, vector<256x8xf32> -> vector<256x8xf32>
    %c0_5 = arith.constant 0 : index
    %c0_6 = arith.constant 0 : index
    %c0_7 = arith.constant 0 : index
    %c0_8 = arith.constant 0 : index
    %6 = vector.load %arg2[%c0_5, %c0_6, %c0_7, %c0_8] : memref<1x18x18x4xf32, #tpu.memory_space<vmem>>, vector<1x18x18x4xf32>
    %7 = vector.shape_cast %6 : vector<1x18x18x4xf32> to vector<18x18x4xf32>
    %8 = vector.extract_strided_slice %7 {offsets = [0, 0, 0], sizes = [16, 16, 4], strides = [1, 1, 1]} : vector<18x18x4xf32> to vector<16x16x4xf32>
    %9 = vector.shape_cast %8 : vector<16x16x4xf32> to vector<256x4xf32>
    %10 = vector.extract_strided_slice %7 {offsets = [0, 1, 0], sizes = [16, 16, 4], strides = [1, 1, 1]} : vector<18x18x4xf32> to vector<16x16x4xf32>
    %11 = vector.shape_cast %10 : vector<16x16x4xf32> to vector<256x4xf32>
    %12 = vector.extract_strided_slice %7 {offsets = [0, 2, 0], sizes = [16, 16, 4], strides = [1, 1, 1]} : vector<18x18x4xf32> to vector<16x16x4xf32>
    %13 = vector.shape_cast %12 : vector<16x16x4xf32> to vector<256x4xf32>
    %14 = vector.extract_strided_slice %7 {offsets = [1, 0, 0], sizes = [16, 16, 4], strides = [1, 1, 1]} : vector<18x18x4xf32> to vector<16x16x4xf32>
    %15 = vector.shape_cast %14 : vector<16x16x4xf32> to vector<256x4xf32>
    %16 = vector.extract_strided_slice %7 {offsets = [1, 1, 0], sizes = [16, 16, 4], strides = [1, 1, 1]} : vector<18x18x4xf32> to vector<16x16x4xf32>
    %17 = vector.shape_cast %16 : vector<16x16x4xf32> to vector<256x4xf32>
    %18 = vector.extract_strided_slice %7 {offsets = [1, 2, 0], sizes = [16, 16, 4], strides = [1, 1, 1]} : vector<18x18x4xf32> to vector<16x16x4xf32>
    %19 = vector.shape_cast %18 : vector<16x16x4xf32> to vector<256x4xf32>
    %20 = vector.extract_strided_slice %7 {offsets = [2, 0, 0], sizes = [16, 16, 4], strides = [1, 1, 1]} : vector<18x18x4xf32> to vector<16x16x4xf32>
    %21 = vector.shape_cast %20 : vector<16x16x4xf32> to vector<256x4xf32>
    %22 = vector.extract_strided_slice %7 {offsets = [2, 1, 0], sizes = [16, 16, 4], strides = [1, 1, 1]} : vector<18x18x4xf32> to vector<16x16x4xf32>
    %23 = vector.shape_cast %22 : vector<16x16x4xf32> to vector<256x4xf32>
    %24 = vector.extract_strided_slice %7 {offsets = [2, 2, 0], sizes = [16, 16, 4], strides = [1, 1, 1]} : vector<18x18x4xf32> to vector<16x16x4xf32>
    %25 = vector.shape_cast %24 : vector<16x16x4xf32> to vector<256x4xf32>
    %26 = tpu.concatenate %9, %11, %13, %15, %17, %19, %21, %23, %25 in 1 : vector<256x4xf32>, vector<256x4xf32>, vector<256x4xf32>, vector<256x4xf32>, vector<256x4xf32>, vector<256x4xf32>, vector<256x4xf32>, vector<256x4xf32>, vector<256x4xf32> -> vector<256x36xf32>
    %c0_9 = arith.constant 0 : index
    %c0_10 = arith.constant 0 : index
    %27 = vector.load %arg5[%c0_9, %c0_10] : memref<36x8xf32, #tpu.memory_space<vmem>>, vector<36x8xf32>
    %cst_11 = arith.constant dense<0.000000e+00> : vector<256x8xf32>
    %28 = tpu.matmul %26, %27, %cst_11 {dimension_numbers = #tpu.dot_dimension_numbers<[1], [0], [0], [1], [0, 0, 1, 1], [], []>} : vector<256x36xf32>, vector<36x8xf32>, vector<256x8xf32> -> vector<256x8xf32>
    %c0_12 = arith.constant 0 : index
    %c0_13 = arith.constant 0 : index
    %c0_14 = arith.constant 0 : index
    %c0_15 = arith.constant 0 : index
    %29 = vector.load %arg3[%c0_12, %c0_13, %c0_14, %c0_15] : memref<1x18x18x8xf32, #tpu.memory_space<vmem>>, vector<1x18x18x8xf32>
    %30 = vector.shape_cast %29 : vector<1x18x18x8xf32> to vector<18x18x8xf32>
    %31 = vector.extract_strided_slice %30 {offsets = [0, 0, 0], sizes = [16, 16, 8], strides = [1, 1, 1]} : vector<18x18x8xf32> to vector<16x16x8xf32>
    %32 = vector.shape_cast %31 : vector<16x16x8xf32> to vector<256x8xf32>
    %33 = vector.extract_strided_slice %30 {offsets = [0, 1, 0], sizes = [16, 16, 8], strides = [1, 1, 1]} : vector<18x18x8xf32> to vector<16x16x8xf32>
    %34 = vector.shape_cast %33 : vector<16x16x8xf32> to vector<256x8xf32>
    %35 = vector.extract_strided_slice %30 {offsets = [0, 2, 0], sizes = [16, 16, 8], strides = [1, 1, 1]} : vector<18x18x8xf32> to vector<16x16x8xf32>
    %36 = vector.shape_cast %35 : vector<16x16x8xf32> to vector<256x8xf32>
    %37 = vector.extract_strided_slice %30 {offsets = [1, 0, 0], sizes = [16, 16, 8], strides = [1, 1, 1]} : vector<18x18x8xf32> to vector<16x16x8xf32>
    %38 = vector.shape_cast %37 : vector<16x16x8xf32> to vector<256x8xf32>
    %39 = vector.extract_strided_slice %30 {offsets = [1, 1, 0], sizes = [16, 16, 8], strides = [1, 1, 1]} : vector<18x18x8xf32> to vector<16x16x8xf32>
    %40 = vector.shape_cast %39 : vector<16x16x8xf32> to vector<256x8xf32>
    %41 = vector.extract_strided_slice %30 {offsets = [1, 2, 0], sizes = [16, 16, 8], strides = [1, 1, 1]} : vector<18x18x8xf32> to vector<16x16x8xf32>
    %42 = vector.shape_cast %41 : vector<16x16x8xf32> to vector<256x8xf32>
    %43 = vector.extract_strided_slice %30 {offsets = [2, 0, 0], sizes = [16, 16, 8], strides = [1, 1, 1]} : vector<18x18x8xf32> to vector<16x16x8xf32>
    %44 = vector.shape_cast %43 : vector<16x16x8xf32> to vector<256x8xf32>
    %45 = vector.extract_strided_slice %30 {offsets = [2, 1, 0], sizes = [16, 16, 8], strides = [1, 1, 1]} : vector<18x18x8xf32> to vector<16x16x8xf32>
    %46 = vector.shape_cast %45 : vector<16x16x8xf32> to vector<256x8xf32>
    %47 = vector.extract_strided_slice %30 {offsets = [2, 2, 0], sizes = [16, 16, 8], strides = [1, 1, 1]} : vector<18x18x8xf32> to vector<16x16x8xf32>
    %48 = vector.shape_cast %47 : vector<16x16x8xf32> to vector<256x8xf32>
    %49 = tpu.concatenate %32, %34, %36, %38, %40, %42, %44, %46, %48 in 1 : vector<256x8xf32>, vector<256x8xf32>, vector<256x8xf32>, vector<256x8xf32>, vector<256x8xf32>, vector<256x8xf32>, vector<256x8xf32>, vector<256x8xf32>, vector<256x8xf32> -> vector<256x72xf32>
    %c0_16 = arith.constant 0 : index
    %c0_17 = arith.constant 0 : index
    %50 = vector.load %arg6[%c0_16, %c0_17] : memref<72x8xf32, #tpu.memory_space<vmem>>, vector<72x8xf32>
    %cst_18 = arith.constant dense<0.000000e+00> : vector<256x8xf32>
    %51 = tpu.matmul %49, %50, %cst_18 {dimension_numbers = #tpu.dot_dimension_numbers<[1], [0], [0], [1], [0, 0, 1, 1], [], []>} : vector<256x72xf32>, vector<72x8xf32>, vector<256x8xf32> -> vector<256x8xf32>
    %52 = vector.extract_strided_slice %1 {offsets = [0, 0, 0], sizes = [16, 16, 4], strides = [1, 1, 1]} : vector<18x18x4xf32> to vector<16x16x4xf32>
    %53 = vector.extract_strided_slice %1 {offsets = [0, 1, 0], sizes = [16, 16, 4], strides = [1, 1, 1]} : vector<18x18x4xf32> to vector<16x16x4xf32>
    %54 = arith.maximumf %52, %53 : vector<16x16x4xf32>
    %55 = vector.extract_strided_slice %1 {offsets = [0, 2, 0], sizes = [16, 16, 4], strides = [1, 1, 1]} : vector<18x18x4xf32> to vector<16x16x4xf32>
    %56 = arith.maximumf %54, %55 : vector<16x16x4xf32>
    %57 = vector.extract_strided_slice %1 {offsets = [1, 0, 0], sizes = [16, 16, 4], strides = [1, 1, 1]} : vector<18x18x4xf32> to vector<16x16x4xf32>
    %58 = arith.maximumf %56, %57 : vector<16x16x4xf32>
    %59 = vector.extract_strided_slice %1 {offsets = [1, 1, 0], sizes = [16, 16, 4], strides = [1, 1, 1]} : vector<18x18x4xf32> to vector<16x16x4xf32>
    %60 = arith.maximumf %58, %59 : vector<16x16x4xf32>
    %61 = vector.extract_strided_slice %1 {offsets = [1, 2, 0], sizes = [16, 16, 4], strides = [1, 1, 1]} : vector<18x18x4xf32> to vector<16x16x4xf32>
    %62 = arith.maximumf %60, %61 : vector<16x16x4xf32>
    %63 = vector.extract_strided_slice %1 {offsets = [2, 0, 0], sizes = [16, 16, 4], strides = [1, 1, 1]} : vector<18x18x4xf32> to vector<16x16x4xf32>
    %64 = arith.maximumf %62, %63 : vector<16x16x4xf32>
    %65 = vector.extract_strided_slice %1 {offsets = [2, 1, 0], sizes = [16, 16, 4], strides = [1, 1, 1]} : vector<18x18x4xf32> to vector<16x16x4xf32>
    %66 = arith.maximumf %64, %65 : vector<16x16x4xf32>
    %67 = vector.extract_strided_slice %1 {offsets = [2, 2, 0], sizes = [16, 16, 4], strides = [1, 1, 1]} : vector<18x18x4xf32> to vector<16x16x4xf32>
    %68 = arith.maximumf %66, %67 : vector<16x16x4xf32>
    %69 = vector.shape_cast %68 : vector<16x16x4xf32> to vector<256x4xf32>
    %c0_19 = arith.constant 0 : index
    %c0_20 = arith.constant 0 : index
    %70 = vector.load %arg7[%c0_19, %c0_20] : memref<4x8xf32, #tpu.memory_space<vmem>>, vector<4x8xf32>
    %cst_21 = arith.constant dense<0.000000e+00> : vector<256x8xf32>
    %71 = tpu.matmul %69, %70, %cst_21 {dimension_numbers = #tpu.dot_dimension_numbers<[1], [0], [0], [1], [0, 0, 1, 1], [], []>} : vector<256x4xf32>, vector<4x8xf32>, vector<256x8xf32> -> vector<256x8xf32>
    %72 = tpu.concatenate %5, %28, %51, %71 in 1 : vector<256x8xf32>, vector<256x8xf32>, vector<256x8xf32>, vector<256x8xf32> -> vector<256x32xf32>
    %c0_22 = arith.constant 0 : index
    %c0_23 = arith.constant 0 : index
    %73 = vector.load %arg8[%c0_22, %c0_23] : memref<1x32xf32, #tpu.memory_space<vmem>>, vector<1x32xf32>
    %74 = vector.broadcast %73 : vector<1x32xf32> to vector<256x32xf32>
    %75 = arith.addf %72, %74 : vector<256x32xf32>
    %cst_24 = arith.constant 0.000000e+00 : f32
    %76 = vector.broadcast %cst_24 : f32 to vector<256x32xf32>
    %77 = arith.maximumf %75, %76 : vector<256x32xf32>
    %c0_25 = arith.constant 0 : index
    %c0_26 = arith.constant 0 : index
    %78 = vector.load %arg9[%c0_25, %c0_26] : memref<256x32xf32, #tpu.memory_space<vmem>>, vector<256x32xf32>
    tpu.vector_store %arg9[%c0_25, %c0_26], %77 {strides = array<i32>} : memref<256x32xf32, #tpu.memory_space<vmem>>, vector<256x32xf32>,
    return
  }
  func.func @transform_0(%arg0: i32) -> (i32, i32, i32, i32) {
    %c0_i32 = arith.constant 0 : i32
    %c0_i32_0 = arith.constant 0 : i32
    %c0_i32_1 = arith.constant 0 : i32
    %c0_i32_2 = arith.constant 0 : i32
    return %arg0, %c0_i32, %c0_i32_0, %c0_i32_1 : i32, i32, i32, i32
  }
  func.func @transform_1(%arg0: i32) -> (i32, i32, i32, i32) {
    %c0_i32 = arith.constant 0 : i32
    %c0_i32_0 = arith.constant 0 : i32
    %c0_i32_1 = arith.constant 0 : i32
    %c0_i32_2 = arith.constant 0 : i32
    return %arg0, %c0_i32, %c0_i32_0, %c0_i32_1 : i32, i32, i32, i32
  }
  func.func @transform_2(%arg0: i32) -> (i32, i32, i32, i32) {
    %c0_i32 = arith.constant 0 : i32
    %c0_i32_0 = arith.constant 0 : i32
    %c0_i32_1 = arith.constant 0 : i32
    %c0_i32_2 = arith.constant 0 : i32
    return %arg0, %c0_i32, %c0_i32_0, %c0_i32_1 : i32, i32, i32, i32
  }
  func.func @transform_3(%arg0: i32) -> (i32, i32) {
    %c0_i32 = arith.constant 0 : i32
    %c0_i32_0 = arith.constant 0 : i32
    %c0_i32_1 = arith.constant 0 : i32
    return %c0_i32, %c0_i32_0 : i32, i32
  }
  func.func @transform_4(%arg0: i32) -> (i32, i32) {
    %c0_i32 = arith.constant 0 : i32
    %c0_i32_0 = arith.constant 0 : i32
    %c0_i32_1 = arith.constant 0 : i32
    return %c0_i32, %c0_i32_0 : i32, i32
  }
  func.func @transform_5(%arg0: i32) -> (i32, i32) {
    %c0_i32 = arith.constant 0 : i32
    %c0_i32_0 = arith.constant 0 : i32
    %c0_i32_1 = arith.constant 0 : i32
    return %c0_i32, %c0_i32_0 : i32, i32
  }
  func.func @transform_6(%arg0: i32) -> (i32, i32) {
    %c0_i32 = arith.constant 0 : i32
    %c0_i32_0 = arith.constant 0 : i32
    %c0_i32_1 = arith.constant 0 : i32
    return %c0_i32, %c0_i32_0 : i32, i32
  }
  func.func @transform_7(%arg0: i32) -> (i32, i32) {
    %c0_i32 = arith.constant 0 : i32
    %c0_i32_0 = arith.constant 0 : i32
    %c0_i32_1 = arith.constant 0 : i32
    return %c0_i32, %c0_i32_0 : i32, i32
  }
  func.func @transform_8(%arg0: i32) -> (i32, i32) {
    %c0_i32 = arith.constant 0 : i32
    %c0_i32_0 = arith.constant 0 : i32
    return %arg0, %c0_i32 : i32, i32
  }
}

</mosaic_0001>

<llo_original>
// kernel: inception_forward.3
$region0: #{inception_forward.3}
  #allocation0 [shape = 'u32[]', space=smem, size = 0x4, offset = 0x4, fixed_abs, tag = 'smem constant byte address 0x4 - core index']
  #allocation1 [shape = 'u32[144,128]{1,0:T(1,128)}', space=vmem, size = 0x12000, scoped, tag = 'internal scratch']
  %s0 = inlined_call_operand.hbm [shape: f32[512,4], index: 0, kind: input, shape index: {}]
  %s1 = inlined_call_operand.hbm [shape: f32[4,8], index: 1, kind: input, shape index: {}]
  %s2 = inlined_call_operand.hbm [shape: f32[1,8], index: 2, kind: input, shape index: {}]
  %s3 = inlined_call_operand.hbm [shape: f32[512,8], index: 3, kind: output, shape index: {}]
  %s4 = sld [smem:[#allocation0]]
  $region34: #{inception_forward.3} parent=0
    _
  %s6 = ssub.s32 1, %s4
  %s7 = scalar_select 0, %s6, %s4
  $region1: #{inception_forward.3} parent=0
    #allocation2 [shape = 'u8[262144]{0}', space=vmem, size = 0x40000, scoped, tag = 'input window, operand 0, single buffered']
    #allocation3 [shape = 's32[1]{0}', space=sflag, size = 0x4, scoped, tag = 'scoped memory for inception_forward.3']
    #allocation4 [shape = 's32[1]{0}', space=sflag, size = 0x4, scoped, tag = 'scoped memory for inception_forward.3']
    #allocation5 [shape = 'u8[2048]{0}', space=vmem, size = 0x800, scoped, tag = 'input window, operand 1, single buffered']
    #allocation6 [shape = 's32[1]{0}', space=sflag, size = 0x4, scoped, tag = 'scoped memory for inception_forward.3']
    #allocation7 [shape = 'u8[512]{0}', space=vmem, size = 0x400, scoped, tag = 'input window, operand 2, single buffered']
    #allocation8 [shape = 'u8[262144]{0}', space=vmem, size = 0x40000, scoped, tag = 'output window, operand 0, single buffered']
    %8 = vsyncpa [#allocation3], 0
    %9 = vsyncpa [#allocation6], 0
    %10 = vsyncpa [#allocation4], 0
    // Predicated region
    $region2: #{inception_forward.3} parent=1 // pred_check
      _
    $region3: #{inception_forward.3} parent=1 // pred_check_branch
      %12 = sbr.rel (0) target = $region5
    $region4: #{inception_forward.3} parent=1 // pred_region
      %s14 = ssub.s32 8192, 8192
      %15 = vsyncadd [#allocation3], %s14
      %s16 = sshll.u32 [#allocation2], 4
      %s17 = int_to_ptr.vmem [resolvable:$true] %s16
      %22 = dma.hbm_to_vmem [thread:$0]  %s0, 8192, %s17, [#allocation3], 128, 128, 8
    $region5: #{inception_forward.3} parent=1 // pred_fallthru
      _
    // Predicated region
    $region6: #{inception_forward.3} parent=1 // pred_check
      _
    $region7: #{inception_forward.3} parent=1 // pred_check_branch
      %24 = sbr.rel (0) target = $region9
    $region8: #{inception_forward.3} parent=1 // pred_region
      %s26 = ssub.s32 64, 64
      %27 = vsyncadd [#allocation6], %s26
      %s29 = sshll.u32 [#allocation5], 4
      %s30 = int_to_ptr.vmem [resolvable:$true] %s29
      %32 = dma.hbm_to_vmem [thread:$0]  %s1, 64, %s30, [#allocation6]
    $region9: #{inception_forward.3} parent=1 // pred_fallthru
      _
    // Predicated region
    $region10: #{inception_forward.3} parent=1 // pred_check
      _
    $region11: #{inception_forward.3} parent=1 // pred_check_branch
      %34 = sbr.rel (0) target = $region13
    $region12: #{inception_forward.3} parent=1 // pred_region
      %s36 = ssub.s32 16, 16
      %37 = vsyncadd [#allocation6], %s36
      %s39 = sshll.u32 [#allocation7], 4
      %s40 = int_to_ptr.vmem [resolvable:$true] %s39
      %42 = dma.hbm_to_vmem [thread:$0]  %s2, 16, %s40, [#allocation6]
    $region13: #{inception_forward.3} parent=1 // pred_fallthru
      _
    // Predicated region
    $region14: #{inception_forward.3} parent=1 // pred_check
      _
    $region15: #{inception_forward.3} parent=1 // pred_check_branch
      %44 = sbr.rel (0) target = $region17
    $region16: #{inception_forward.3} parent=1 // pred_region
      %45 = dma.done [#allocation3], 8192
    $region17: #{inception_forward.3} parent=1 // pred_fallthru
      _
    // Predicated region
    $region18: #{inception_forward.3} parent=1 // pred_check
      _
    $region19: #{inception_forward.3} parent=1 // pred_check_branch
      %47 = sbr.rel (0) target = $region21
    $region20: #{inception_forward.3} parent=1 // pred_region
      %48 = dma.done [#allocation6], 64
    $region21: #{inception_forward.3} parent=1 // pred_fallthru
      _
    // Predicated region
    $region22: #{inception_forward.3} parent=1 // pred_check
      _
    $region23: #{inception_forward.3} parent=1 // pred_check_branch
      %50 = sbr.rel (0) target = $region25
    $region24: #{inception_forward.3} parent=1 // pred_region
      %51 = dma.done [#allocation6], 16
    $region25: #{inception_forward.3} parent=1 // pred_fallthru
      _
    %v52 = vld [vmem:[#allocation2] sm:$0xff]
    %v53 = vld [vmem:[#allocation2 + $0x8] sm:$0xff]
    %v54 = vld [vmem:[#allocation2 + $0x10] sm:$0xff]
    %v55 = vld [vmem:[#allocation2 + $0x18] sm:$0xff]
    %v56 = vld [vmem:[#allocation2 + $0x20] sm:$0xff]
    %v57 = vld [vmem:[#allocation2 + $0x28] sm:$0xff]
    %v58 = vld [vmem:[#allocation2 + $0x30] sm:$0xff]
    %v59 = vld [vmem:[#allocation2 + $0x38] sm:$0xff]
    %v60 = vld [vmem:[#allocation2 + $0x40] sm:$0xff]
    %v61 = vld [vmem:[#allocation2 + $0x48] sm:$0xff]
    %v62 = vld [vmem:[#allocation2 + $0x50] sm:$0xff]
    %v63 = vld [vmem:[#allocation2 + $0x58] sm:$0xff]
    %v64 = vld [vmem:[#allocation2 + $0x60] sm:$0xff]
    %v65 = vld [vmem:[#allocation2 + $0x68] sm:$0xff]
    %v66 = vld [vmem:[#allocation2 + $0x70] sm:$0xff]
    %v67 = vld [vmem:[#allocation2 + $0x78] sm:$0xff]
    %v68 = vld [vmem:[#allocation2 + $0x80] sm:$0xff]
    %v69 = vld [vmem:[#allocation2 + $0x88] sm:$0xff]
    %v70 = vld [vmem:[#allocation2 + $0x90] sm:$0xff]
    %v71 = vld [vmem:[#allocation2 + $0x98] sm:$0xff]
    %v72 = vld [vmem:[#allocation2 + $0xa0] sm:$0xff]
    %v73 = vld [vmem:[#allocation2 + $0xa8] sm:$0xff]
    %v74 = vld [vmem:[#allocation2 + $0xb0] sm:$0xff]
    %v75 = vld [vmem:[#allocation2 + $0xb8] sm:$0xff]
    %v76 = vld [vmem:[#allocation2 + $0xc0] sm:$0xff]
    %v77 = vld [vmem:[#allocation2 + $0xc8] sm:$0xff]
    %v78 = vld [vmem:[#allocation2 + $0xd0] sm:$0xff]
    %v79 = vld [vmem:[#allocation2 + $0xd8] sm:$0xff]
    %v80 = vld [vmem:[#allocation2 + $0xe0] sm:$0xff]
    %v81 = vld [vmem:[#allocation2 + $0xe8] sm:$0xff]
    %v82 = vld [vmem:[#allocation2 + $0xf0] sm:$0xff]
    %v83 = vld [vmem:[#allocation2 + $0xf8] sm:$0xff]
    %v84 = vld [vmem:[#allocation2 + $0x100] sm:$0xff]
    %v85 = vld [vmem:[#allocation2 + $0x108] sm:$0xff]
    %v86 = vld [vmem:[#allocation2 + $0x110] sm:$0xff]
    %v87 = vld [vmem:[#allocation2 + $0x118] sm:$0xff]
    %v88 = vld [vmem:[#allocation2 + $0x120] sm:$0xff]
    %v89 = vld [vmem:[#allocation2 + $0x128] sm:$0xff]
    %v90 = vld [vmem:[#allocation2 + $0x130] sm:$0xff]
    %v91 = vld [vmem:[#allocation2 + $0x138] sm:$0xff]
    %v92 = vld [vmem:[#allocation2 + $0x140] sm:$0xff]
    %v93 = vld [vmem:[#allocation2 + $0x148] sm:$0xff]
    %v94 = vld [vmem:[#allocation2 + $0x150] sm:$0xff]
    %v95 = vld [vmem:[#allocation2 + $0x158] sm:$0xff]
    %v96 = vld [vmem:[#allocation2 + $0x160] sm:$0xff]
    %v97 = vld [vmem:[#allocation2 + $0x168] sm:$0xff]
    %v98 = vld [vmem:[#allocation2 + $0x170] sm:$0xff]
    %v99 = vld [vmem:[#allocation2 + $0x178] sm:$0xff]
    %v100 = vld [vmem:[#allocation2 + $0x180] sm:$0xff]
    %v101 = vld [vmem:[#allocation2 + $0x188] sm:$0xff]
    %v102 = vld [vmem:[#allocation2 + $0x190] sm:$0xff]
    %v103 = vld [vmem:[#allocation2 + $0x198] sm:$0xff]
    %v104 = vld [vmem:[#allocation2 + $0x1a0] sm:$0xff]
    %v105 = vld [vmem:[#allocation2 + $0x1a8] sm:$0xff]
    %v106 = vld [vmem:[#allocation2 + $0x1b0] sm:$0xff]
    %v107 = vld [vmem:[#allocation2 + $0x1b8] sm:$0xff]
    %v108 = vld [vmem:[#allocation2 + $0x1c0] sm:$0xff]
    %v109 = vld [vmem:[#allocation2 + $0x1c8] sm:$0xff]
    %v110 = vld [vmem:[#allocation2 + $0x1d0] sm:$0xff]
    %v111 = vld [vmem:[#allocation2 + $0x1d8] sm:$0xff]
    %v112 = vld [vmem:[#allocation2 + $0x1e0] sm:$0xff]
    %v113 = vld [vmem:[#allocation2 + $0x1e8] sm:$0xff]
    %v114 = vld [vmem:[#allocation2 + $0x1f0] sm:$0xff]
    %v115 = vld [vmem:[#allocation2 + $0x1f8] sm:$0xff]
    %v116 = vld [vmem:[#allocation5] sm:$0xf]
    %v117 = vld [vmem:[#allocation7] sm:$0x1]
    %v119 = vlaneseq
    %v120 = vshrl.u32 %v119, 7
    %v121 = vsub.s32 0, %v120
    %v122 = vrot.slane %v117, %v121
    %vm124 = vcmask 31744
    %v126 = vsel %vm124, %v52, 0
    %v129 = vsel %vm124, %v53, 0
    %v132 = vsel %vm124, %v54, 0
    %v135 = vsel %vm124, %v55, 0
    %v138 = vsel %vm124, %v56, 0
    %v141 = vsel %vm124, %v57, 0
    %v144 = vsel %vm124, %v58, 0
    %v147 = vsel %vm124, %v59, 0
    %v150 = vsel %vm124, %v60, 0
    %v153 = vsel %vm124, %v61, 0
    %v156 = vsel %vm124, %v62, 0
    %v159 = vsel %vm124, %v63, 0
    %v162 = vsel %vm124, %v64, 0
    %v165 = vsel %vm124, %v65, 0
    %v168 = vsel %vm124, %v66, 0
    %v171 = vsel %vm124, %v67, 0
    %v174 = vsel %vm124, %v68, 0
    %v177 = vsel %vm124, %v69, 0
    %v180 = vsel %vm124, %v70, 0
    %v183 = vsel %vm124, %v71, 0
    %v186 = vsel %vm124, %v72, 0
    %v189 = vsel %vm124, %v73, 0
    %v192 = vsel %vm124, %v74, 0
    %v195 = vsel %vm124, %v75, 0
    %v198 = vsel %vm124, %v76, 0
    %v201 = vsel %vm124, %v77, 0
    %v204 = vsel %vm124, %v78, 0
    %v207 = vsel %vm124, %v79, 0
    %v210 = vsel %vm124, %v80, 0
    %v213 = vsel %vm124, %v81, 0
    %v216 = vsel %vm124, %v82, 0
    %v219 = vsel %vm124, %v83, 0
    %v222 = vsel %vm124, %v84, 0
    %v225 = vsel %vm124, %v85, 0
    %v228 = vsel %vm124, %v86, 0
    %v231 = vsel %vm124, %v87, 0
    %v234 = vsel %vm124, %v88, 0
    %v237 = vsel %vm124, %v89, 0
    %v240 = vsel %vm124, %v90, 0
    %v243 = vsel %vm124, %v91, 0
    %v246 = vsel %vm124, %v92, 0
    %v249 = vsel %vm124, %v93, 0
    %v252 = vsel %vm124, %v94, 0
    %v255 = vsel %vm124, %v95, 0
    %v258 = vsel %vm124, %v96, 0
    %v261 = vsel %vm124, %v97, 0
    %v264 = vsel %vm124, %v98, 0
    %v267 = vsel %vm124, %v99, 0
    %v270 = vsel %vm124, %v100, 0
    %v273 = vsel %vm124, %v101, 0
    %v276 = vsel %vm124, %v102, 0
    %v279 = vsel %vm124, %v103, 0
    %v282 = vsel %vm124, %v104, 0
    %v285 = vsel %vm124, %v105, 0
    %v288 = vsel %vm124, %v106, 0
    %v291 = vsel %vm124, %v107, 0
    %v294 = vsel %vm124, %v108, 0
    %v297 = vsel %vm124, %v109, 0
    %v300 = vsel %vm124, %v110, 0
    %v303 = vsel %vm124, %v111, 0
    %v306 = vsel %vm124, %v112, 0
    %v309 = vsel %vm124, %v113, 0
    %v312 = vsel %vm124, %v114, 0
    %v315 = vsel %vm124, %v115, 0
    %vm317 = vcmask 1043456
    %v319 = vsel %vm317, %v116, 0
    %321 = vmatprep.subr.mxu0 0.0
    %322 = vmatpush1.msra.mxu0 %v319
    %323 = vmatprep.subr.mxu0 0.0
    %324 = vmatpush1.msra.mxu0 0.0
    %325 = vmatprep.subr.mxu0 0.0
    %326 = vmatpush1.msra.mxu0 0.0
    %327 = vmatprep.subr.mxu0 0.0
    %328 = vmatpush1.msra.mxu0 0.0
    %329 = vmatprep.subr.mxu0 0.0
    %330 = vmatpush1.msra.mxu0 0.0
    %331 = vmatprep.subr.mxu0 0.0
    %332 = vmatpush1.msra.mxu0 0.0
    %333 = vmatprep.subr.mxu0 0.0
    %334 = vmatpush1.msra.mxu0 0.0
    %335 = vmatprep.subr.mxu0 0.0
    %336 = vmatpush1.msra.mxu0 0.0
    %337 = vmatprep.subr.mxu0 0.0
    %338 = vmatpush1.msra.mxu0 0.0
    %339 = vmatprep.subr.mxu0 0.0
    %340 = vmatpush1.msra.mxu0 0.0
    %341 = vmatprep.subr.mxu0 0.0
    %342 = vmatpush1.msra.mxu0 0.0
    %343 = vmatprep.subr.mxu0 0.0
    %344 = vmatpush1.msra.mxu0 0.0
    %345 = vmatprep.subr.mxu0 0.0
    %346 = vmatpush1.msra.mxu0 0.0
    %347 = vmatprep.subr.mxu0 0.0
    %348 = vmatpush1.msra.mxu0 0.0
    %349 = vmatprep.subr.mxu0 0.0
    %350 = vmatpush1.msra.mxu0 0.0
    %351 = vmatprep.subr.mxu0 0.0
    %352 = vmatpush1.msra.mxu0 0.0
    %353 = vmatprep.subr.mxu0 0.0
    %354 = vmatpush1.msra.mxu0 0.0
    %355 = vmatprep.subr.mxu0 0.0
    %356 = vmatpush1.msra.mxu0 0.0
    %357 = vmatprep.subr.mxu0 0.0
    %358 = vmatpush1.msra.mxu0 0.0
    %359 = vmatprep.subr.mxu0 0.0
    %360 = vmatpush1.msra.mxu0 0.0
    %361 = vmatprep.subr.mxu0 0.0
    %362 = vmatpush1.msra.mxu0 0.0
    %363 = vmatprep.subr.mxu0 0.0
    %364 = vmatpush1.msra.mxu0 0.0
    %365 = vmatprep.subr.mxu0 0.0
    %366 = vmatpush1.msra.mxu0 0.0
    %367 = vmatprep.subr.mxu0 0.0
    %368 = vmatpush1.msra.mxu0 0.0
    %369 = vmatprep.subr.mxu0 0.0
    %370 = vmatpush1.msra.mxu0 0.0
    %371 = vmatprep.subr.mxu0 0.0
    %372 = vmatpush1.msra.mxu0 0.0
    %373 = vmatprep.subr.mxu0 0.0
    %374 = vmatpush1.msra.mxu0 0.0
    %375 = vmatprep.subr.mxu0 0.0
    %376 = vmatpush1.msra.mxu0 0.0
    %377 = vmatprep.subr.mxu0 0.0
    %378 = vmatpush1.msra.mxu0 0.0
    %379 = vmatprep.subr.mxu0 0.0
    %380 = vmatpush1.msra.mxu0 0.0
    %381 = vmatprep.subr.mxu0 0.0
    %382 = vmatpush1.msra.mxu0 0.0
    %383 = vmatprep.subr.mxu0 0.0
    %384 = vmatpush1.msra.mxu0 0.0
    %385 = vmatprep.mubr.f32.mxu0 0.0
    %386 = vmatmul.mubr.f32.gmra.mrb[0].mxu0 %v126
    %v387 = vpop.f32.mrb[0].mxu0
    %v388 = vadd.f32 %v122, %v387
    %v389 = vpop.f32.mrb[0].mxu0
    %390 = vmatprep.mubr.f32.mxu0 0.0
    %391 = vmatmul.mubr.f32.gmra.mrb[0].mxu0 %v129
    %v392 = vpop.f32.mrb[0].mxu0
    %v393 = vadd.f32 %v122, %v392
    %v394 = vpop.f32.mrb[0].mxu0
    %395 = vmatprep.mubr.f32.mxu0 0.0
    %396 = vmatmul.mubr.f32.gmra.mrb[0].mxu0 %v132
    %v397 = vpop.f32.mrb[0].mxu0
    %v398 = vadd.f32 %v122, %v397
    %v399 = vpop.f32.mrb[0].mxu0
    %400 = vmatprep.mubr.f32.mxu0 0.0
    %401 = vmatmul.mubr.f32.gmra.mrb[0].mxu0 %v135
    %v402 = vpop.f32.mrb[0].mxu0
    %v403 = vadd.f32 %v122, %v402
    %v404 = vpop.f32.mrb[0].mxu0
    %405 = vmatprep.mubr.f32.mxu0 0.0
    %406 = vmatmul.mubr.f32.gmra.mrb[0].mxu0 %v138
    %v407 = vpop.f32.mrb[0].mxu0
    %v408 = vadd.f32 %v122, %v407
    %v409 = vpop.f32.mrb[0].mxu0
    %410 = vmatprep.mubr.f32.mxu0 0.0
    %411 = vmatmul.mubr.f32.gmra.mrb[0].mxu0 %v141
    %v412 = vpop.f32.mrb[0].mxu0
    %v413 = vadd.f32 %v122, %v412
    %v414 = vpop.f32.mrb[0].mxu0
    %415 = vmatprep.mubr.f32.mxu0 0.0
    %416 = vmatmul.mubr.f32.gmra.mrb[0].mxu0 %v144
    %v417 = vpop.f32.mrb[0].mxu0
    %v418 = vadd.f32 %v122, %v417
    %v419 = vpop.f32.mrb[0].mxu0
    %420 = vmatprep.mubr.f32.mxu0 0.0
    %421 = vmatmul.mubr.f32.gmra.mrb[0].mxu0 %v147
    %v422 = vpop.f32.mrb[0].mxu0
    %v423 = vadd.f32 %v122, %v422
    %v424 = vpop.f32.mrb[0].mxu0
    %425 = vmatprep.mubr.f32.mxu0 0.0
    %426 = vmatmul.mubr.f32.gmra.mrb[0].mxu0 %v150
    %v427 = vpop.f32.mrb[0].mxu0
    %v428 = vadd.f32 %v122, %v427
    %v429 = vpop.f32.mrb[0].mxu0
    %430 = vmatprep.mubr.f32.mxu0 0.0
    %431 = vmatmul.mubr.f32.gmra.mrb[0].mxu0 %v153
    %v432 = vpop.f32.mrb[0].mxu0
    %v433 = vadd.f32 %v122, %v432
    %v434 = vpop.f32.mrb[0].mxu0
    %435 = vmatprep.mubr.f32.mxu0 0.0
    %436 = vmatmul.mubr.f32.gmra.mrb[0].mxu0 %v156
    %v437 = vpop.f32.mrb[0].mxu0
    %v438 = vadd.f32 %v122, %v437
    %v439 = vpop.f32.mrb[0].mxu0
    %440 = vmatprep.mubr.f32.mxu0 0.0
    %441 = vmatmul.mubr.f32.gmra.mrb[0].mxu0 %v159
    %v442 = vpop.f32.mrb[0].mxu0
    %v443 = vadd.f32 %v122, %v442
    %v444 = vpop.f32.mrb[0].mxu0
    %445 = vmatprep.mubr.f32.mxu0 0.0
    %446 = vmatmul.mubr.f32.gmra.mrb[0].mxu0 %v162
    %v447 = vpop.f32.mrb[0].mxu0
    %v448 = vadd.f32 %v122, %v447
    %v449 = vpop.f32.mrb[0].mxu0
    %450 = vmatprep.mubr.f32.mxu0 0.0
    %451 = vmatmul.mubr.f32.gmra.mrb[0].mxu0 %v165
    %v452 = vpop.f32.mrb[0].mxu0
    %v453 = vadd.f32 %v122, %v452
    %v454 = vpop.f32.mrb[0].mxu0
    %455 = vmatprep.mubr.f32.mxu0 0.0
    %456 = vmatmul.mubr.f32.gmra.mrb[0].mxu0 %v168
    %v457 = vpop.f32.mrb[0].mxu0
    %v458 = vadd.f32 %v122, %v457
    %v459 = vpop.f32.mrb[0].mxu0
    %460 = vmatprep.mubr.f32.mxu0 0.0
    %461 = vmatmul.mubr.f32.gmra.mrb[0].mxu0 %v171
    %v462 = vpop.f32.mrb[0].mxu0
    %v463 = vadd.f32 %v122, %v462
    %v464 = vpop.f32.mrb[0].mxu0
    %465 = vmatprep.mubr.f32.mxu0 0.0
    %466 = vmatmul.mubr.f32.gmra.mrb[0].mxu0 %v174
    %v467 = vpop.f32.mrb[0].mxu0
    %v468 = vadd.f32 %v122, %v467
    %v469 = vpop.f32.mrb[0].mxu0
    %470 = vmatprep.mubr.f32.mxu0 0.0
    %471 = vmatmul.mubr.f32.gmra.mrb[0].mxu0 %v177
    %v472 = vpop.f32.mrb[0].mxu0
    %v473 = vadd.f32 %v122, %v472
    %v474 = vpop.f32.mrb[0].mxu0
    %475 = vmatprep.mubr.f32.mxu0 0.0
    %476 = vmatmul.mubr.f32.gmra.mrb[0].mxu0 %v180
    %v477 = vpop.f32.mrb[0].mxu0
    %v478 = vadd.f32 %v122, %v477
    %v479 = vpop.f32.mrb[0].mxu0
    %480 = vmatprep.mubr.f32.mxu0 0.0
    %481 = vmatmul.mubr.f32.gmra.mrb[0].mxu0 %v183
    %v482 = vpop.f32.mrb[0].mxu0
    %v483 = vadd.f32 %v122, %v482
    %v484 = vpop.f32.mrb[0].mxu0
    %485 = vmatprep.mubr.f32.mxu0 0.0
    %486 = vmatmul.mubr.f32.gmra.mrb[0].mxu0 %v186
    %v487 = vpop.f32.mrb[0].mxu0
    %v488 = vadd.f32 %v122, %v487
    %v489 = vpop.f32.mrb[0].mxu0
    %490 = vmatprep.mubr.f32.mxu0 0.0
    %491 = vmatmul.mubr.f32.gmra.mrb[0].mxu0 %v189
    %v492 = vpop.f32.mrb[0].mxu0
    %v493 = vadd.f32 %v122, %v492
    %v494 = vpop.f32.mrb[0].mxu0
    %495 = vmatprep.mubr.f32.mxu0 0.0
    %496 = vmatmul.mubr.f32.gmra.mrb[0].mxu0 %v192
    %v497 = vpop.f32.mrb[0].mxu0
    %v498 = vadd.f32 %v122, %v497
    %v499 = vpop.f32.mrb[0].mxu0
    %500 = vmatprep.mubr.f32.mxu0 0.0
    %501 = vmatmul.mubr.f32.gmra.mrb[0].mxu0 %v195
    %v502 = vpop.f32.mrb[0].mxu0
    %v503 = vadd.f32 %v122, %v502
    %v504 = vpop.f32.mrb[0].mxu0
    %505 = vmatprep.mubr.f32.mxu0 0.0
    %506 = vmatmul.mubr.f32.gmra.mrb[0].mxu0 %v198
    %v507 = vpop.f32.mrb[0].mxu0
    %v508 = vadd.f32 %v122, %v507
    %v509 = vpop.f32.mrb[0].mxu0
    %510 = vmatprep.mubr.f32.mxu0 0.0
    %511 = vmatmul.mubr.f32.gmra.mrb[0].mxu0 %v201
    %v512 = vpop.f32.mrb[0].mxu0
    %v513 = vadd.f32 %v122, %v512
    %v514 = vpop.f32.mrb[0].mxu0
    %515 = vmatprep.mubr.f32.mxu0 0.0
    %516 = vmatmul.mubr.f32.gmra.mrb[0].mxu0 %v204
    %v517 = vpop.f32.mrb[0].mxu0
    %v518 = vadd.f32 %v122, %v517
    %v519 = vpop.f32.mrb[0].mxu0
    %520 = vmatprep.mubr.f32.mxu0 0.0
    %521 = vmatmul.mubr.f32.gmra.mrb[0].mxu0 %v207
    %v522 = vpop.f32.mrb[0].mxu0
    %v523 = vadd.f32 %v122, %v522
    %v524 = vpop.f32.mrb[0].mxu0
    %525 = vmatprep.mubr.f32.mxu0 0.0
    %526 = vmatmul.mubr.f32.gmra.mrb[0].mxu0 %v210
    %v527 = vpop.f32.mrb[0].mxu0
    %v528 = vadd.f32 %v122, %v527
    %v529 = vpop.f32.mrb[0].mxu0
    %530 = vmatprep.mubr.f32.mxu0 0.0
    %531 = vmatmul.mubr.f32.gmra.mrb[0].mxu0 %v213
    %v532 = vpop.f32.mrb[0].mxu0
    %v533 = vadd.f32 %v122, %v532
    %v534 = vpop.f32.mrb[0].mxu0
    %535 = vmatprep.mubr.f32.mxu0 0.0
    %536 = vmatmul.mubr.f32.gmra.mrb[0].mxu0 %v216
    %v537 = vpop.f32.mrb[0].mxu0
    %v538 = vadd.f32 %v122, %v537
    %v539 = vpop.f32.mrb[0].mxu0
    %540 = vmatprep.mubr.f32.mxu0 0.0
    %541 = vmatmul.mubr.f32.gmra.mrb[0].mxu0 %v219
    %v542 = vpop.f32.mrb[0].mxu0
    %v543 = vadd.f32 %v122, %v542
    %v544 = vpop.f32.mrb[0].mxu0
    %545 = vmatprep.mubr.f32.mxu0 0.0
    %546 = vmatmul.mubr.f32.gmra.mrb[0].mxu0 %v222
    %v547 = vpop.f32.mrb[0].mxu0
    %v548 = vadd.f32 %v122, %v547
    %v549 = vpop.f32.mrb[0].mxu0
    %550 = vmatprep.mubr.f32.mxu0 0.0
    %551 = vmatmul.mubr.f32.gmra.mrb[0].mxu0 %v225
    %v552 = vpop.f32.mrb[0].mxu0
    %v553 = vadd.f32 %v122, %v552
    %v554 = vpop.f32.mrb[0].mxu0
    %555 = vmatprep.mubr.f32.mxu0 0.0
    %556 = vmatmul.mubr.f32.gmra.mrb[0].mxu0 %v228
    %v557 = vpop.f32.mrb[0].mxu0
    %v558 = vadd.f32 %v122, %v557
    %v559 = vpop.f32.mrb[0].mxu0
    %560 = vmatprep.mubr.f32.mxu0 0.0
    %561 = vmatmul.mubr.f32.gmra.mrb[0].mxu0 %v231
    %v562 = vpop.f32.mrb[0].mxu0
    %v563 = vadd.f32 %v122, %v562
    %v564 = vpop.f32.mrb[0].mxu0
    %565 = vmatprep.mubr.f32.mxu0 0.0
    %566 = vmatmul.mubr.f32.gmra.mrb[0].mxu0 %v234
    %v567 = vpop.f32.mrb[0].mxu0
    %v568 = vadd.f32 %v122, %v567
    %v569 = vpop.f32.mrb[0].mxu0
    %570 = vmatprep.mubr.f32.mxu0 0.0
    %571 = vmatmul.mubr.f32.gmra.mrb[0].mxu0 %v237
    %v572 = vpop.f32.mrb[0].mxu0
    %v573 = vadd.f32 %v122, %v572
    %v574 = vpop.f32.mrb[0].mxu0
    %575 = vmatprep.mubr.f32.mxu0 0.0
    %576 = vmatmul.mubr.f32.gmra.mrb[0].mxu0 %v240
    %v577 = vpop.f32.mrb[0].mxu0
    %v578 = vadd.f32 %v122, %v577
    %v579 = vpop.f32.mrb[0].mxu0
    %580 = vmatprep.mubr.f32.mxu0 0.0
    %581 = vmatmul.mubr.f32.gmra.mrb[0].mxu0 %v243
    %v582 = vpop.f32.mrb[0].mxu0
    %v583 = vadd.f32 %v122, %v582
    %v584 = vpop.f32.mrb[0].mxu0
    %585 = vmatprep.mubr.f32.mxu0 0.0
    %586 = vmatmul.mubr.f32.gmra.mrb[0].mxu0 %v246
    %v587 = vpop.f32.mrb[0].mxu0
    %v588 = vadd.f32 %v122, %v587
    %v589 = vpop.f32.mrb[0].mxu0
    %590 = vmatprep.mubr.f32.mxu0 0.0
    %591 = vmatmul.mubr.f32.gmra.mrb[0].mxu0 %v249
    %v592 = vpop.f32.mrb[0].mxu0
    %v593 = vadd.f32 %v122, %v592
    %v594 = vpop.f32.mrb[0].mxu0
    %595 = vmatprep.mubr.f32.mxu0 0.0
    %596 = vmatmul.mubr.f32.gmra.mrb[0].mxu0 %v252
    %v597 = vpop.f32.mrb[0].mxu0
    %v598 = vadd.f32 %v122, %v597
    %v599 = vpop.f32.mrb[0].mxu0
    %600 = vmatprep.mubr.f32.mxu0 0.0
    %601 = vmatmul.mubr.f32.gmra.mrb[0].mxu0 %v255
    %v602 = vpop.f32.mrb[0].mxu0
    %v603 = vadd.f32 %v122, %v602
    %v604 = vpop.f32.mrb[0].mxu0
    %605 = vmatprep.mubr.f32.mxu0 0.0
    %606 = vmatmul.mubr.f32.gmra.mrb[0].mxu0 %v258
    %v607 = vpop.f32.mrb[0].mxu0
    %v608 = vadd.f32 %v122, %v607
    %v609 = vpop.f32.mrb[0].mxu0
    %610 = vmatprep.mubr.f32.mxu0 0.0
    %611 = vmatmul.mubr.f32.gmra.mrb[0].mxu0 %v261
    %v612 = vpop.f32.mrb[0].mxu0
    %v613 = vadd.f32 %v122, %v612
    %v614 = vpop.f32.mrb[0].mxu0
    %615 = vmatprep.mubr.f32.mxu0 0.0
    %616 = vmatmul.mubr.f32.gmra.mrb[0].mxu0 %v264
    %v617 = vpop.f32.mrb[0].mxu0
    %v618 = vadd.f32 %v122, %v617
    %v619 = vpop.f32.mrb[0].mxu0
    %620 = vmatprep.mubr.f32.mxu0 0.0
    %621 = vmatmul.mubr.f32.gmra.mrb[0].mxu0 %v267
    %v622 = vpop.f32.mrb[0].mxu0
    %v623 = vadd.f32 %v122, %v622
    %v624 = vpop.f32.mrb[0].mxu0
    %625 = vmatprep.mubr.f32.mxu0 0.0
    %626 = vmatmul.mubr.f32.gmra.mrb[0].mxu0 %v270
    %v627 = vpop.f32.mrb[0].mxu0
    %v628 = vadd.f32 %v122, %v627
    %v629 = vpop.f32.mrb[0].mxu0
    %630 = vmatprep.mubr.f32.mxu0 0.0
    %631 = vmatmul.mubr.f32.gmra.mrb[0].mxu0 %v273
    %v632 = vpop.f32.mrb[0].mxu0
    %v633 = vadd.f32 %v122, %v632
    %v634 = vpop.f32.mrb[0].mxu0
    %635 = vmatprep.mubr.f32.mxu0 0.0
    %636 = vmatmul.mubr.f32.gmra.mrb[0].mxu0 %v276
    %v637 = vpop.f32.mrb[0].mxu0
    %v638 = vadd.f32 %v122, %v637
    %v639 = vpop.f32.mrb[0].mxu0
    %640 = vmatprep.mubr.f32.mxu0 0.0
    %641 = vmatmul.mubr.f32.gmra.mrb[0].mxu0 %v279
    %v642 = vpop.f32.mrb[0].mxu0
    %v643 = vadd.f32 %v122, %v642
    %v644 = vpop.f32.mrb[0].mxu0
    %645 = vmatprep.mubr.f32.mxu0 0.0
    %646 = vmatmul.mubr.f32.gmra.mrb[0].mxu0 %v282
    %v647 = vpop.f32.mrb[0].mxu0
    %v648 = vadd.f32 %v122, %v647
    %v649 = vpop.f32.mrb[0].mxu0
    %650 = vmatprep.mubr.f32.mxu0 0.0
    %651 = vmatmul.mubr.f32.gmra.mrb[0].mxu0 %v285
    %v652 = vpop.f32.mrb[0].mxu0
    %v653 = vadd.f32 %v122, %v652
    %v654 = vpop.f32.mrb[0].mxu0
    %655 = vmatprep.mubr.f32.mxu0 0.0
    %656 = vmatmul.mubr.f32.gmra.mrb[0].mxu0 %v288
    %v657 = vpop.f32.mrb[0].mxu0
    %v658 = vadd.f32 %v122, %v657
    %v659 = vpop.f32.mrb[0].mxu0
    %660 = vmatprep.mubr.f32.mxu0 0.0
    %661 = vmatmul.mubr.f32.gmra.mrb[0].mxu0 %v291
    %v662 = vpop.f32.mrb[0].mxu0
    %v663 = vadd.f32 %v122, %v662
    %v664 = vpop.f32.mrb[0].mxu0
    %665 = vmatprep.mubr.f32.mxu0 0.0
    %666 = vmatmul.mubr.f32.gmra.mrb[0].mxu0 %v294
    %v667 = vpop.f32.mrb[0].mxu0
    %v668 = vadd.f32 %v122, %v667
    %v669 = vpop.f32.mrb[0].mxu0
    %670 = vmatprep.mubr.f32.mxu0 0.0
    %671 = vmatmul.mubr.f32.gmra.mrb[0].mxu0 %v297
    %v672 = vpop.f32.mrb[0].mxu0
    %v673 = vadd.f32 %v122, %v672
    %v674 = vpop.f32.mrb[0].mxu0
    %675 = vmatprep.mubr.f32.mxu0 0.0
    %676 = vmatmul.mubr.f32.gmra.mrb[0].mxu0 %v300
    %v677 = vpop.f32.mrb[0].mxu0
    %v678 = vadd.f32 %v122, %v677
    %v679 = vpop.f32.mrb[0].mxu0
    %680 = vmatprep.mubr.f32.mxu0 0.0
    %681 = vmatmul.mubr.f32.gmra.mrb[0].mxu0 %v303
    %v682 = vpop.f32.mrb[0].mxu0
    %v683 = vadd.f32 %v122, %v682
    %v684 = vpop.f32.mrb[0].mxu0
    %685 = vmatprep.mubr.f32.mxu0 0.0
    %686 = vmatmul.mubr.f32.gmra.mrb[0].mxu0 %v306
    %v687 = vpop.f32.mrb[0].mxu0
    %v688 = vadd.f32 %v122, %v687
    %v689 = vpop.f32.mrb[0].mxu0
    %690 = vmatprep.mubr.f32.mxu0 0.0
    %691 = vmatmul.mubr.f32.gmra.mrb[0].mxu0 %v309
    %v692 = vpop.f32.mrb[0].mxu0
    %v693 = vadd.f32 %v122, %v692
    %v694 = vpop.f32.mrb[0].mxu0
    %695 = vmatprep.mubr.f32.mxu0 0.0
    %696 = vmatmul.mubr.f32.gmra.mrb[0].mxu0 %v312
    %v697 = vpop.f32.mrb[0].mxu0
    %v698 = vadd.f32 %v122, %v697
    %v699 = vpop.f32.mrb[0].mxu0
    %700 = vmatprep.mubr.f32.mxu0 0.0
    %701 = vmatmul.mubr.f32.gmra.mrb[0].mxu0 %v315
    %v702 = vpop.f32.mrb[0].mxu0
    %v703 = vadd.f32 %v122, %v702
    %v704 = vpop.f32.mrb[0].mxu0
    %705 = vdwg.mxu0
    %v706 = vmax.f32 %v388, 0.0
    %v707 = vmax.f32 %v393, 0.0
    %v708 = vmax.f32 %v398, 0.0
    %v709 = vmax.f32 %v403, 0.0
    %v710 = vmax.f32 %v408, 0.0
    %v711 = vmax.f32 %v413, 0.0
    %v712 = vmax.f32 %v418, 0.0
    %v713 = vmax.f32 %v423, 0.0
    %v714 = vmax.f32 %v428, 0.0
    %v715 = vmax.f32 %v433, 0.0
    %v716 = vmax.f32 %v438, 0.0
    %v717 = vmax.f32 %v443, 0.0
    %v718 = vmax.f32 %v448, 0.0
    %v719 = vmax.f32 %v453, 0.0
    %v720 = vmax.f32 %v458, 0.0
    %v721 = vmax.f32 %v463, 0.0
    %v722 = vmax.f32 %v468, 0.0
    %v723 = vmax.f32 %v473, 0.0
    %v724 = vmax.f32 %v478, 0.0
    %v725 = vmax.f32 %v483, 0.0
    %v726 = vmax.f32 %v488, 0.0
    %v727 = vmax.f32 %v493, 0.0
    %v728 = vmax.f32 %v498, 0.0
    %v729 = vmax.f32 %v503, 0.0
    %v730 = vmax.f32 %v508, 0.0
    %v731 = vmax.f32 %v513, 0.0
    %v732 = vmax.f32 %v518, 0.0
    %v733 = vmax.f32 %v523, 0.0
    %v734 = vmax.f32 %v528, 0.0
    %v735 = vmax.f32 %v533, 0.0
    %v736 = vmax.f32 %v538, 0.0
    %v737 = vmax.f32 %v543, 0.0
    %v738 = vmax.f32 %v548, 0.0
    %v739 = vmax.f32 %v553, 0.0
    %v740 = vmax.f32 %v558, 0.0
    %v741 = vmax.f32 %v563, 0.0
    %v742 = vmax.f32 %v568, 0.0
    %v743 = vmax.f32 %v573, 0.0
    %v744 = vmax.f32 %v578, 0.0
    %v745 = vmax.f32 %v583, 0.0
    %v746 = vmax.f32 %v588, 0.0
    %v747 = vmax.f32 %v593, 0.0
    %v748 = vmax.f32 %v598, 0.0
    %v749 = vmax.f32 %v603, 0.0
    %v750 = vmax.f32 %v608, 0.0
    %v751 = vmax.f32 %v613, 0.0
    %v752 = vmax.f32 %v618, 0.0
    %v753 = vmax.f32 %v623, 0.0
    %v754 = vmax.f32 %v628, 0.0
    %v755 = vmax.f32 %v633, 0.0
    %v756 = vmax.f32 %v638, 0.0
    %v757 = vmax.f32 %v643, 0.0
    %v758 = vmax.f32 %v648, 0.0
    %v759 = vmax.f32 %v653, 0.0
    %v760 = vmax.f32 %v658, 0.0
    %v761 = vmax.f32 %v663, 0.0
    %v762 = vmax.f32 %v668, 0.0
    %v763 = vmax.f32 %v673, 0.0
    %v764 = vmax.f32 %v678, 0.0
    %v765 = vmax.f32 %v683, 0.0
    %v766 = vmax.f32 %v688, 0.0
    %v767 = vmax.f32 %v693, 0.0
    %v768 = vmax.f32 %v698, 0.0
    %v769 = vmax.f32 %v703, 0.0
    %vm770 = vcmask 64512
    %771 = vst.msk [vmem:[#allocation8] sm:$0xff] %vm770, %v706
    %772 = vst.msk [vmem:[#allocation8 + $0x8] sm:$0xff] %vm770, %v707
    %773 = vst.msk [vmem:[#allocation8 + $0x10] sm:$0xff] %vm770, %v708
    %774 = vst.msk [vmem:[#allocation8 + $0x18] sm:$0xff] %vm770, %v709
    %775 = vst.msk [vmem:[#allocation8 + $0x20] sm:$0xff] %vm770, %v710
    %776 = vst.msk [vmem:[#allocation8 + $0x28] sm:$0xff] %vm770, %v711
    %777 = vst.msk [vmem:[#allocation8 + $0x30] sm:$0xff] %vm770, %v712
    %778 = vst.msk [vmem:[#allocation8 + $0x38] sm:$0xff] %vm770, %v713
    %779 = vst.msk [vmem:[#allocation8 + $0x40] sm:$0xff] %vm770, %v714
    %780 = vst.msk [vmem:[#allocation8 + $0x48] sm:$0xff] %vm770, %v715
    %781 = vst.msk [vmem:[#allocation8 + $0x50] sm:$0xff] %vm770, %v716
    %782 = vst.msk [vmem:[#allocation8 + $0x58] sm:$0xff] %vm770, %v717
    %783 = vst.msk [vmem:[#allocation8 + $0x60] sm:$0xff] %vm770, %v718
    %784 = vst.msk [vmem:[#allocation8 + $0x68] sm:$0xff] %vm770, %v719
    %785 = vst.msk [vmem:[#allocation8 + $0x70] sm:$0xff] %vm770, %v720
    %786 = vst.msk [vmem:[#allocation8 + $0x78] sm:$0xff] %vm770, %v721
    %787 = vst.msk [vmem:[#allocation8 + $0x80] sm:$0xff] %vm770, %v722
    %788 = vst.msk [vmem:[#allocation8 + $0x88] sm:$0xff] %vm770, %v723
    %789 = vst.msk [vmem:[#allocation8 + $0x90] sm:$0xff] %vm770, %v724
    %790 = vst.msk [vmem:[#allocation8 + $0x98] sm:$0xff] %vm770, %v725
    %791 = vst.msk [vmem:[#allocation8 + $0xa0] sm:$0xff] %vm770, %v726
    %792 = vst.msk [vmem:[#allocation8 + $0xa8] sm:$0xff] %vm770, %v727
    %793 = vst.msk [vmem:[#allocation8 + $0xb0] sm:$0xff] %vm770, %v728
    %794 = vst.msk [vmem:[#allocation8 + $0xb8] sm:$0xff] %vm770, %v729
    %795 = vst.msk [vmem:[#allocation8 + $0xc0] sm:$0xff] %vm770, %v730
    %796 = vst.msk [vmem:[#allocation8 + $0xc8] sm:$0xff] %vm770, %v731
    %797 = vst.msk [vmem:[#allocation8 + $0xd0] sm:$0xff] %vm770, %v732
    %798 = vst.msk [vmem:[#allocation8 + $0xd8] sm:$0xff] %vm770, %v733
    %799 = vst.msk [vmem:[#allocation8 + $0xe0] sm:$0xff] %vm770, %v734
    %800 = vst.msk [vmem:[#allocation8 + $0xe8] sm:$0xff] %vm770, %v735
    %801 = vst.msk [vmem:[#allocation8 + $0xf0] sm:$0xff] %vm770, %v736
    %802 = vst.msk [vmem:[#allocation8 + $0xf8] sm:$0xff] %vm770, %v737
    %803 = vst.msk [vmem:[#allocation8 + $0x100] sm:$0xff] %vm770, %v738
    %804 = vst.msk [vmem:[#allocation8 + $0x108] sm:$0xff] %vm770, %v739
    %805 = vst.msk [vmem:[#allocation8 + $0x110] sm:$0xff] %vm770, %v740
    %806 = vst.msk [vmem:[#allocation8 + $0x118] sm:$0xff] %vm770, %v741
    %807 = vst.msk [vmem:[#allocation8 + $0x120] sm:$0xff] %vm770, %v742
    %808 = vst.msk [vmem:[#allocation8 + $0x128] sm:$0xff] %vm770, %v743
    %809 = vst.msk [vmem:[#allocation8 + $0x130] sm:$0xff] %vm770, %v744
    %810 = vst.msk [vmem:[#allocation8 + $0x138] sm:$0xff] %vm770, %v745
    %811 = vst.msk [vmem:[#allocation8 + $0x140] sm:$0xff] %vm770, %v746
    %812 = vst.msk [vmem:[#allocation8 + $0x148] sm:$0xff] %vm770, %v747
    %813 = vst.msk [vmem:[#allocation8 + $0x150] sm:$0xff] %vm770, %v748
    %814 = vst.msk [vmem:[#allocation8 + $0x158] sm:$0xff] %vm770, %v749
    %815 = vst.msk [vmem:[#allocation8 + $0x160] sm:$0xff] %vm770, %v750
    %816 = vst.msk [vmem:[#allocation8 + $0x168] sm:$0xff] %vm770, %v751
    %817 = vst.msk [vmem:[#allocation8 + $0x170] sm:$0xff] %vm770, %v752
    %818 = vst.msk [vmem:[#allocation8 + $0x178] sm:$0xff] %vm770, %v753
    %819 = vst.msk [vmem:[#allocation8 + $0x180] sm:$0xff] %vm770, %v754
    %820 = vst.msk [vmem:[#allocation8 + $0x188] sm:$0xff] %vm770, %v755
    %821 = vst.msk [vmem:[#allocation8 + $0x190] sm:$0xff] %vm770, %v756
    %822 = vst.msk [vmem:[#allocation8 + $0x198] sm:$0xff] %vm770, %v757
    %823 = vst.msk [vmem:[#allocation8 + $0x1a0] sm:$0xff] %vm770, %v758
    %824 = vst.msk [vmem:[#allocation8 + $0x1a8] sm:$0xff] %vm770, %v759
    %825 = vst.msk [vmem:[#allocation8 + $0x1b0] sm:$0xff] %vm770, %v760
    %826 = vst.msk [vmem:[#allocation8 + $0x1b8] sm:$0xff] %vm770, %v761
    %827 = vst.msk [vmem:[#allocation8 + $0x1c0] sm:$0xff] %vm770, %v762
    %828 = vst.msk [vmem:[#allocation8 + $0x1c8] sm:$0xff] %vm770, %v763
    %829 = vst.msk [vmem:[#allocation8 + $0x1d0] sm:$0xff] %vm770, %v764
    %830 = vst.msk [vmem:[#allocation8 + $0x1d8] sm:$0xff] %vm770, %v765
    %831 = vst.msk [vmem:[#allocation8 + $0x1e0] sm:$0xff] %vm770, %v766
    %832 = vst.msk [vmem:[#allocation8 + $0x1e8] sm:$0xff] %vm770, %v767
    %833 = vst.msk [vmem:[#allocation8 + $0x1f0] sm:$0xff] %vm770, %v768
    %834 = vst.msk [vmem:[#allocation8 + $0x1f8] sm:$0xff] %vm770, %v769
    // Predicated region
    $region26: #{inception_forward.3} parent=1 // pred_check
      _
    $region27: #{inception_forward.3} parent=1 // pred_check_branch
      %836 = sbr.rel (0) target = $region29
    $region28: #{inception_forward.3} parent=1 // pred_region
      %s838 = ssub.s32 8192, 8192
      %839 = vsyncadd [#allocation4], %s838
      %s840 = sshll.u32 [#allocation8], 4
      %s841 = int_to_ptr.vmem [resolvable:$true] %s840
      %846 = dma.vmem_to_hbm [thread:$0]  %s841, 8192, %s3, [#allocation4], 128, 128, 8
    $region29: #{inception_forward.3} parent=1 // pred_fallthru
      _
    // Predicated region
    $region30: #{inception_forward.3} parent=1 // pred_check
      _
    $region31: #{inception_forward.3} parent=1 // pred_check_branch
      %848 = sbr.rel (0) target = $region33
    $region32: #{inception_forward.3} parent=1 // pred_region
      %849 = dma.done [#allocation4], 8192
    $region33: #{inception_forward.3} parent=1 // pred_fallthru
      _
    %850 = vsyncpa [#allocation3], 1
    %851 = vsyncpa [#allocation6], 1
    %852 = vsyncpa [#allocation4], 1

// kernel: inception_forward.4
$region0: #{inception_forward.4}
  #allocation0 [shape = 'u32[]', space=smem, size = 0x4, offset = 0x4, fixed_abs, tag = 'smem constant byte address 0x4 - core index']
  #allocation1 [shape = 'u32[144,128]{1,0:T(1,128)}', space=vmem, size = 0x12000, scoped, tag = 'internal scratch']
  %s0 = inlined_call_operand.hbm [shape: f32[2,18,18,4], index: 0, kind: input, shape index: {}]
  %s1 = inlined_call_operand.hbm [shape: f32[36,8], index: 1, kind: input, shape index: {}]
  %s2 = inlined_call_operand.hbm [shape: f32[1,8], index: 2, kind: input, shape index: {}]
  %s3 = inlined_call_operand.hbm [shape: f32[2,16,16,8], index: 3, kind: output, shape index: {}]
  %s4 = sld [smem:[#allocation0]]
  $region57: #{inception_forward.4} parent=0
    _
  %s6 = ssub.s32 1, %s4
  %s7 = scalar_select 0, %s6, %s4
  $region1: #{inception_forward.4} parent=0
    #allocation2 [shape = 'u8[442368]{0}', space=vmem, size = 0x6c000, scoped, tag = 'input window, operand 0']
    #allocation3 [shape = 's32[2]{0}', space=sflag, size = 0x8, scoped, tag = 'scoped memory for inception_forward.4']
    #allocation4 [shape = 's32[2]{0}', space=sflag, size = 0x8, scoped, tag = 'scoped memory for inception_forward.4']
    #allocation5 [shape = 'u8[20480]{0}', space=vmem, size = 0x5000, scoped, tag = 'input window, operand 1, single buffered']
    #allocation6 [shape = 's32[1]{0}', space=sflag, size = 0x4, scoped, tag = 'scoped memory for inception_forward.4']
    #allocation7 [shape = 'u8[512]{0}', space=vmem, size = 0x400, scoped, tag = 'input window, operand 2, single buffered']
    #allocation8 [shape = 'u8[262144]{0}', space=vmem, size = 0x40000, scoped, tag = 'output window, operand 0']
    %8 = vsyncpa [#allocation3], 0
    %s9 = scalar_lea.sflag [#allocation3], 1
    %10 = vsyncpa %s9, 0
    %11 = vsyncpa [#allocation6], 0
    %12 = vsyncpa [#allocation4], 0
    %s13 = scalar_lea.sflag [#allocation4], 1
    %14 = vsyncpa %s13, 0
    loop: start=0, step=1, limit=4
    $region2: #{inception_forward.4} parent=1 // loop_pre_header
      _
    $region3: #{inception_forward.4} parent=1 // loop_header
      %s16 = sphi 0, %s20
      %p17 = scmp.ge.s32.totalorder %s16, 4
      %s26 = sphi 0, %s28
      %s29 = sphi 0, %s26
      %s30 = sphi 0, %s29
      %s46 = sphi 0, %s30
      %s50 = sphi 0, %s50
      %s52 = sphi 0, %s50
      %s53 = sphi 0, %s52
      %s67 = sphi 0, %s53
      %s71 = sphi 0, %s71
      %s73 = sphi 0, %s71
      %s74 = sphi 0, %s73
      %s88 = sphi 0, %s74
      %s94 = sphi 0, %s96
      %s97 = sphi 0, %s94
      %s98 = sphi 0, %s97
      %s114 = sphi 0, %s98
    $region4: #{inception_forward.4} parent=1 // loop_header_branch
      %19 = sbr.rel (%p17) target = $region8
    $region5: #{inception_forward.4} parent=1 // loop_body
      %s21 = ssub.s32 %s16, 1
      %s22 = ssub.s32 %s16, 2
      %s23 = sadd.s32 %s16, 1
      %s24 = ssub.s32 %s16, %s23
      %p25 = scmp.eq.s32.totalorder %s24, 0
      %s27 = sadd.s32 %s26, 1
      %s28 = scalar_select %p25, %s26, %s27
      %p31 = pneg %p25
      %p32 = scmp.eq.s32.totalorder %s16, 1
      %p33 = por %p31, %p32
      %p34 = scmp.ne.s32.totalorder %s26, %s29
      %p35 = scmp.eq.s32.totalorder %s16, 0
      %p36 = por %p34, %p35
      %p37 = scmp.ne.s32.totalorder %s26, %s29
      %p38 = scmp.eq.s32.totalorder %s21, 1
      %p39 = por %p37, %p38
      %p40 = scmp.ne.s32.totalorder %s29, %s30
      %p41 = scmp.eq.s32.totalorder %s21, 0
      %p42 = por %p40, %p41
      %p43 = scmp.ne.s32.totalorder %s29, %s30
      %p44 = scmp.eq.s32.totalorder %s22, 1
      %p45 = por %p43, %p44
      %p47 = scmp.ne.s32.totalorder %s30, %s46
      %p48 = scmp.eq.s32.totalorder %s22, 0
      %p49 = por %p47, %p48
      %s51 = sadd.s32 %s50, 1
      %p54 = scmp.eq.s32.totalorder %s16, 1
      %p55 = scmp.ne.s32.totalorder %s50, %s52
      %p56 = scmp.eq.s32.totalorder %s16, 0
      %p57 = por %p55, %p56
      %p58 = scmp.ne.s32.totalorder %s50, %s52
      %p59 = scmp.eq.s32.totalorder %s21, 1
      %p60 = por %p58, %p59
      %p61 = scmp.ne.s32.totalorder %s52, %s53
      %p62 = scmp.eq.s32.totalorder %s21, 0
      %p63 = por %p61, %p62
      %p64 = scmp.ne.s32.totalorder %s52, %s53
      %p65 = scmp.eq.s32.totalorder %s22, 1
      %p66 = por %p64, %p65
      %p68 = scmp.ne.s32.totalorder %s53, %s67
      %p69 = scmp.eq.s32.totalorder %s22, 0
      %p70 = por %p68, %p69
      %s72 = sadd.s32 %s71, 1
      %p75 = scmp.eq.s32.totalorder %s16, 1
      %p76 = scmp.ne.s32.totalorder %s71, %s73
      %p77 = scmp.eq.s32.totalorder %s16, 0
      %p78 = por %p76, %p77
      %p79 = scmp.ne.s32.totalorder %s71, %s73
      %p80 = scmp.eq.s32.totalorder %s21, 1
      %p81 = por %p79, %p80
      %p82 = scmp.ne.s32.totalorder %s73, %s74
      %p83 = scmp.eq.s32.totalorder %s21, 0
      %p84 = por %p82, %p83
      %p85 = scmp.ne.s32.totalorder %s73, %s74
      %p86 = scmp.eq.s32.totalorder %s22, 1
      %p87 = por %p85, %p86
      %p89 = scmp.ne.s32.totalorder %s74, %s88
      %p90 = scmp.eq.s32.totalorder %s22, 0
      %p91 = por %p89, %p90
      %s92 = ssub.s32 %s16, %s23
      %p93 = scmp.eq.s32.totalorder %s92, 0
      %s95 = sadd.s32 %s94, 1
      %s96 = scalar_select %p93, %s94, %s95
      %p99 = pneg %p93
      %p100 = scmp.eq.s32.totalorder %s16, 1
      %p101 = por %p99, %p100
      %p102 = scmp.ne.s32.totalorder %s94, %s97
      %p103 = scmp.eq.s32.totalorder %s16, 0
      %p104 = por %p102, %p103
      %p105 = scmp.ne.s32.totalorder %s94, %s97
      %p106 = scmp.eq.s32.totalorder %s21, 1
      %p107 = por %p105, %p106
      %p108 = scmp.ne.s32.totalorder %s97, %s98
      %p109 = scmp.eq.s32.totalorder %s21, 0
      %p110 = por %p108, %p109
      %p111 = scmp.ne.s32.totalorder %s97, %s98
      %p112 = scmp.eq.s32.totalorder %s22, 1
      %p113 = por %p111, %p112
      %p115 = scmp.ne.s32.totalorder %s98, %s114
      %p116 = scmp.eq.s32.totalorder %s22, 0
      %p117 = por %p115, %p116
      %p118 = scmp.le.s32.totalorder 1, %s16
      %p119 = scmp.lt.s32.totalorder %s16, 3
      %p120 = pnand %p118, %p119
      %p121 = pneg %p120
      // Predicated region
      $region9: #{inception_forward.4} parent=5 // pred_check
        _
      $region10: #{inception_forward.4} parent=5 // pred_check_branch
        %123 = sbr.rel (%p120) target = $region12
      $region11: #{inception_forward.4} parent=5 // pred_region
        %s124 = ssub.s32 %s16, 1
        // Predicated region
        $region13: #{inception_forward.4} parent=11 // pred_check
          %p125 = pneg %p63
        $region14: #{inception_forward.4} parent=11 // pred_check_branch
          %127 = sbr.rel (%p125) target = $region16
        $region15: #{inception_forward.4} parent=11 // pred_region
          %s129 = ssub.s32 640, 640
          %130 = vsyncadd [#allocation6], %s129
          %s131 = sshll.u32 [#allocation5], 4
          %s132 = int_to_ptr.vmem [resolvable:$true] %s131
          %137 = dma.hbm_to_vmem [thread:$0]  %s1, 640, %s132, [#allocation6], 128, 128, 8
        $region16: #{inception_forward.4} parent=11 // pred_fallthru
          _
        // Predicated region
        $region17: #{inception_forward.4} parent=11 // pred_check
          %p138 = pneg %p84
        $region18: #{inception_forward.4} parent=11 // pred_check_branch
          %140 = sbr.rel (%p138) target = $region20
        $region19: #{inception_forward.4} parent=11 // pred_region
          %s142 = ssub.s32 16, 16
          %143 = vsyncadd [#allocation6], %s142
          %s145 = sshll.u32 [#allocation7], 4
          %s146 = int_to_ptr.vmem [resolvable:$true] %s145
          %148 = dma.hbm_to_vmem [thread:$0]  %s2, 16, %s146, [#allocation6]
        $region20: #{inception_forward.4} parent=11 // pred_fallthru
          _
      $region12: #{inception_forward.4} parent=5 // pred_fallthru
        _
      %p149 = scmp.lt.s32.totalorder %s16, 2
      // Predicated region
      $region21: #{inception_forward.4} parent=5 // pred_check
        %p150 = pneg %p149
      $region22: #{inception_forward.4} parent=5 // pred_check_branch
        %152 = sbr.rel (%p150) target = $region24
      $region23: #{inception_forward.4} parent=5 // pred_region
        // Predicated region
        $region25: #{inception_forward.4} parent=23 // pred_check
          %p153 = pneg %p36
        $region26: #{inception_forward.4} parent=23 // pred_check_branch
          %155 = sbr.rel (%p153) target = $region28
        $region27: #{inception_forward.4} parent=23 // pred_region
          %s156 = sand.u32 %s26, 1
          %s157 = scalar_lea.sflag [#allocation3], %s156
          %s158 = sand.u32 %s26, 1
          %s159 = smul.addr %s158, 432
          %s160 = scalar_lea.vmem [#allocation2], %s159
          %s162 = ssub.s32 6912, 6912
          %163 = vsyncadd %s157, %s162
          %s164 = smul.addr %s16, 54
          %s165 = smul.addr %s164, 128
          %s166 = scalar_lea.hbm %s0, %s165
          %s167 = sshll.u32 %s160, 4
          %s168 = int_to_ptr.vmem [resolvable:$true] %s167
          %173 = dma.hbm_to_vmem [thread:$0]  %s166, 6912, %s168, %s157, 128, 128, 8
        $region28: #{inception_forward.4} parent=23 // pred_fallthru
          _
      $region24: #{inception_forward.4} parent=5 // pred_fallthru
        _
      %p174 = scmp.le.s32.totalorder 1, %s16
      %p175 = scmp.lt.s32.totalorder %s16, 3
      %p176 = pnand %p174, %p175
      %p177 = pneg %p176
      // Predicated region
      $region29: #{inception_forward.4} parent=5 // pred_check
        _
      $region30: #{inception_forward.4} parent=5 // pred_check_branch
        %179 = sbr.rel (%p176) target = $region32
      $region31: #{inception_forward.4} parent=5 // pred_region
        %s180 = ssub.s32 %s16, 1
        %s181 = sand.u32 %s29, 1
        %s182 = scalar_lea.sflag [#allocation3], %s181
        %s183 = sand.u32 %s29, 1
        %s184 = smul.addr %s183, 432
        %s185 = scalar_lea.vmem [#allocation2], %s184
        // Predicated region
        $region33: #{inception_forward.4} parent=31 // pred_check
          %p186 = pneg %p42
        $region34: #{inception_forward.4} parent=31 // pred_check_branch
          %188 = sbr.rel (%p186) target = $region36
        $region35: #{inception_forward.4} parent=31 // pred_region
          %189 = dma.done %s182, 6912
        $region36: #{inception_forward.4} parent=31 // pred_fallthru
          _
        // Predicated region
        $region37: #{inception_forward.4} parent=31 // pred_check
          %p190 = pneg %p63
        $region38: #{inception_forward.4} parent=31 // pred_check_branch
          %192 = sbr.rel (%p190) target = $region40
        $region39: #{inception_forward.4} parent=31 // pred_region
          %193 = dma.done [#allocation6], 640
        $region40: #{inception_forward.4} parent=31 // pred_fallthru
          _
        // Predicated region
        $region41: #{inception_forward.4} parent=31 // pred_check
          %p194 = pneg %p84
        $region42: #{inception_forward.4} parent=31 // pred_check_branch
          %196 = sbr.rel (%p194) target = $region44
        $region43: #{inception_forward.4} parent=31 // pred_region
          %197 = dma.done [#allocation6], 16
        $region44: #{inception_forward.4} parent=31 // pred_fallthru
          _
        %s198 = sand.u32 %s29, 1
        %s199 = scalar_lea.sflag [#allocation3], %s198
        %s200 = sand.u32 %s29, 1
        %s201 = smul.addr %s200, 432
        %s202 = scalar_lea.vmem [#allocation2], %s201
        %p203 = pneg %p42
        %p204 = pneg %p39
        %p205 = pneg %p63
        %p206 = pneg %p60
        %p207 = pneg %p84
        %p208 = pneg %p81
        %p209 = pneg %p110
        %p210 = pneg %p107
        %s211 = sand.u32 %s97, 1
        %s212 = scalar_lea.sflag [#allocation4], %s211
        %s213 = sand.u32 %s97, 1
        %s214 = smul.addr %s213, 256
        %s215 = scalar_lea.vmem [#allocation8], %s214
        %v216 = vld [vmem:[%s185] sm:$0xff]
        %v217 = vld [vmem:[%s185 + $0x8] sm:$0xff]
        %v218 = vld [vmem:[%s185 + $0x10] sm:$0x3]
        %v219 = vld [vmem:[%s185 + $0x18] sm:$0xff]
        %v220 = vld [vmem:[%s185 + $0x20] sm:$0xff]
        %v221 = vld [vmem:[%s185 + $0x28] sm:$0x3]
        %v222 = vld [vmem:[%s185 + $0x30] sm:$0xff]
        %v223 = vld [vmem:[%s185 + $0x38] sm:$0xff]
        %v224 = vld [vmem:[%s185 + $0x40] sm:$0x3]
        %v225 = vld [vmem:[%s185 + $0x48] sm:$0xff]
        %v226 = vld [vmem:[%s185 + $0x50] sm:$0xff]
        %v227 = vld [vmem:[%s185 + $0x58] sm:$0x3]
        %v228 = vld [vmem:[%s185 + $0x60] sm:$0xff]
        %v229 = vld [vmem:[%s185 + $0x68] sm:$0xff]
        %v230 = vld [vmem:[%s185 + $0x70] sm:$0x3]
        %v231 = vld [vmem:[%s185 + $0x78] sm:$0xff]
        %v232 = vld [vmem:[%s185 + $0x80] sm:$0xff]
        %v233 = vld [vmem:[%s185 + $0x88] sm:$0x3]
        %v234 = vld [vmem:[%s185 + $0x90] sm:$0xff]
        %v235 = vld [vmem:[%s185 + $0x98] sm:$0xff]
        %v236 = vld [vmem:[%s185 + $0xa0] sm:$0x3]
        %v237 = vld [vmem:[%s185 + $0xa8] sm:$0xff]
        %v238 = vld [vmem:[%s185 + $0xb0] sm:$0xff]
        %v239 = vld [vmem:[%s185 + $0xb8] sm:$0x3]
        %v240 = vld [vmem:[%s185 + $0xc0] sm:$0xff]
        %v241 = vld [vmem:[%s185 + $0xc8] sm:$0xff]
        %v242 = vld [vmem:[%s185 + $0xd0] sm:$0x3]
        %v243 = vld [vmem:[%s185 + $0xd8] sm:$0xff]
        %v244 = vld [vmem:[%s185 + $0xe0] sm:$0xff]
        %v245 = vld [vmem:[%s185 + $0xe8] sm:$0x3]
        %v246 = vld [vmem:[%s185 + $0xf0] sm:$0xff]
        %v247 = vld [vmem:[%s185 + $0xf8] sm:$0xff]
        %v248 = vld [vmem:[%s185 + $0x100] sm:$0x3]
        %v249 = vld [vmem:[%s185 + $0x108] sm:$0xff]
        %v250 = vld [vmem:[%s185 + $0x110] sm:$0xff]
        %v251 = vld [vmem:[%s185 + $0x118] sm:$0x3]
        %v252 = vld [vmem:[%s185 + $0x120] sm:$0xff]
        %v253 = vld [vmem:[%s185 + $0x128] sm:$0xff]
        %v254 = vld [vmem:[%s185 + $0x130] sm:$0x3]
        %v255 = vld [vmem:[%s185 + $0x138] sm:$0xff]
        %v256 = vld [vmem:[%s185 + $0x140] sm:$0xff]
        %v257 = vld [vmem:[%s185 + $0x148] sm:$0x3]
        %v258 = vld [vmem:[%s185 + $0x150] sm:$0xff]
        %v259 = vld [vmem:[%s185 + $0x158] sm:$0xff]
        %v260 = vld [vmem:[%s185 + $0x160] sm:$0x3]
        %v261 = vld [vmem:[%s185 + $0x168] sm:$0xff]
        %v262 = vld [vmem:[%s185 + $0x170] sm:$0xff]
        %v263 = vld [vmem:[%s185 + $0x178] sm:$0x3]
        %v264 = vld [vmem:[%s185 + $0x180] sm:$0xff]
        %v265 = vld [vmem:[%s185 + $0x188] sm:$0xff]
        %v266 = vld [vmem:[%s185 + $0x190] sm:$0x3]
        %v267 = vld [vmem:[%s185 + $0x198] sm:$0xff]
        %v268 = vld [vmem:[%s185 + $0x1a0] sm:$0xff]
        %v269 = vld [vmem:[%s185 + $0x1a8] sm:$0x3]
        %vm318 = vcmask 1046528
        %v319 = vrot.slane %v216, 1
        %v320 = vrot.slane %v217, 1
        %v321 = vsel %vm318, %v319, %v320
        %v322 = vrot.slane %v218, 1
        %v323 = vsel %vm318, %v320, %v322
        %v324 = vrot.slane %v219, 1
        %v325 = vrot.slane %v220, 1
        %v326 = vsel %vm318, %v324, %v325
        %v327 = vrot.slane %v221, 1
        %v328 = vsel %vm318, %v325, %v327
        %v329 = vrot.slane %v222, 1
        %v330 = vrot.slane %v223, 1
        %v331 = vsel %vm318, %v329, %v330
        %v332 = vrot.slane %v224, 1
        %v333 = vsel %vm318, %v330, %v332
        %v334 = vrot.slane %v225, 1
        %v335 = vrot.slane %v226, 1
        %v336 = vsel %vm318, %v334, %v335
        %v337 = vrot.slane %v227, 1
        %v338 = vsel %vm318, %v335, %v337
        %v339 = vrot.slane %v228, 1
        %v340 = vrot.slane %v229, 1
        %v341 = vsel %vm318, %v339, %v340
        %v342 = vrot.slane %v230, 1
        %v343 = vsel %vm318, %v340, %v342
        %v344 = vrot.slane %v231, 1
        %v345 = vrot.slane %v232, 1
        %v346 = vsel %vm318, %v344, %v345
        %v347 = vrot.slane %v233, 1
        %v348 = vsel %vm318, %v345, %v347
        %v349 = vrot.slane %v234, 1
        %v350 = vrot.slane %v235, 1
        %v351 = vsel %vm318, %v349, %v350
        %v352 = vrot.slane %v236, 1
        %v353 = vsel %vm318, %v350, %v352
        %v354 = vrot.slane %v237, 1
        %v355 = vrot.slane %v238, 1
        %v356 = vsel %vm318, %v354, %v355
        %v357 = vrot.slane %v239, 1
        %v358 = vsel %vm318, %v355, %v357
        %v359 = vrot.slane %v240, 1
        %v360 = vrot.slane %v241, 1
        %v361 = vsel %vm318, %v359, %v360
        %v362 = vrot.slane %v242, 1
        %v363 = vsel %vm318, %v360, %v362
        %v364 = vrot.slane %v243, 1
        %v365 = vrot.slane %v244, 1
        %v366 = vsel %vm318, %v364, %v365
        %v367 = vrot.slane %v245, 1
        %v368 = vsel %vm318, %v365, %v367
        %v369 = vrot.slane %v246, 1
        %v370 = vrot.slane %v247, 1
        %v371 = vsel %vm318, %v369, %v370
        %v372 = vrot.slane %v248, 1
        %v373 = vsel %vm318, %v370, %v372
        %v374 = vrot.slane %v249, 1
        %v375 = vrot.slane %v250, 1
        %v376 = vsel %vm318, %v374, %v375
        %v377 = vrot.slane %v251, 1
        %v378 = vsel %vm318, %v375, %v377
        %v379 = vrot.slane %v252, 1
        %v380 = vrot.slane %v253, 1
        %v381 = vsel %vm318, %v379, %v380
        %v382 = vrot.slane %v254, 1
        %v383 = vsel %vm318, %v380, %v382
        %v384 = vrot.slane %v255, 1
        %v385 = vrot.slane %v256, 1
        %v386 = vsel %vm318, %v384, %v385
        %v387 = vrot.slane %v257, 1
        %v388 = vsel %vm318, %v385, %v387
        %v389 = vrot.slane %v258, 1
        %v390 = vrot.slane %v259, 1
        %v391 = vsel %vm318, %v389, %v390
        %v392 = vrot.slane %v260, 1
        %v393 = vsel %vm318, %v390, %v392
        %v394 = vrot.slane %v261, 1
        %v395 = vrot.slane %v262, 1
        %v396 = vsel %vm318, %v394, %v395
        %v397 = vrot.slane %v263, 1
        %v398 = vsel %vm318, %v395, %v397
        %vm399 = vcmask 1045504
        %v400 = vrot.slane %v216, 2
        %v401 = vrot.slane %v217, 2
        %v402 = vsel %vm399, %v400, %v401
        %v403 = vrot.slane %v218, 2
        %v404 = vsel %vm399, %v401, %v403
        %v405 = vrot.slane %v219, 2
        %v406 = vrot.slane %v220, 2
        %v407 = vsel %vm399, %v405, %v406
        %v408 = vrot.slane %v221, 2
        %v409 = vsel %vm399, %v406, %v408
        %v410 = vrot.slane %v222, 2
        %v411 = vrot.slane %v223, 2
        %v412 = vsel %vm399, %v410, %v411
        %v413 = vrot.slane %v224, 2
        %v414 = vsel %vm399, %v411, %v413
        %v415 = vrot.slane %v225, 2
        %v416 = vrot.slane %v226, 2
        %v417 = vsel %vm399, %v415, %v416
        %v418 = vrot.slane %v227, 2
        %v419 = vsel %vm399, %v416, %v418
        %v420 = vrot.slane %v228, 2
        %v421 = vrot.slane %v229, 2
        %v422 = vsel %vm399, %v420, %v421
        %v423 = vrot.slane %v230, 2
        %v424 = vsel %vm399, %v421, %v423
        %v425 = vrot.slane %v231, 2
        %v426 = vrot.slane %v232, 2
        %v427 = vsel %vm399, %v425, %v426
        %v428 = vrot.slane %v233, 2
        %v429 = vsel %vm399, %v426, %v428
        %v430 = vrot.slane %v234, 2
        %v431 = vrot.slane %v235, 2
        %v432 = vsel %vm399, %v430, %v431
        %v433 = vrot.slane %v236, 2
        %v434 = vsel %vm399, %v431, %v433
        %v435 = vrot.slane %v237, 2
        %v436 = vrot.slane %v238, 2
        %v437 = vsel %vm399, %v435, %v436
        %v438 = vrot.slane %v239, 2
        %v439 = vsel %vm399, %v436, %v438
        %v440 = vrot.slane %v240, 2
        %v441 = vrot.slane %v241, 2
        %v442 = vsel %vm399, %v440, %v441
        %v443 = vrot.slane %v242, 2
        %v444 = vsel %vm399, %v441, %v443
        %v445 = vrot.slane %v243, 2
        %v446 = vrot.slane %v244, 2
        %v447 = vsel %vm399, %v445, %v446
        %v448 = vrot.slane %v245, 2
        %v449 = vsel %vm399, %v446, %v448
        %v450 = vrot.slane %v246, 2
        %v451 = vrot.slane %v247, 2
        %v452 = vsel %vm399, %v450, %v451
        %v453 = vrot.slane %v248, 2
        %v454 = vsel %vm399, %v451, %v453
        %v455 = vrot.slane %v249, 2
        %v456 = vrot.slane %v250, 2
        %v457 = vsel %vm399, %v455, %v456
        %v458 = vrot.slane %v251, 2
        %v459 = vsel %vm399, %v456, %v458
        %v460 = vrot.slane %v252, 2
        %v461 = vrot.slane %v253, 2
        %v462 = vsel %vm399, %v460, %v461
        %v463 = vrot.slane %v254, 2
        %v464 = vsel %vm399, %v461, %v463
        %v465 = vrot.slane %v255, 2
        %v466 = vrot.slane %v256, 2
        %v467 = vsel %vm399, %v465, %v466
        %v468 = vrot.slane %v257, 2
        %v469 = vsel %vm399, %v466, %v468
        %v470 = vrot.slane %v258, 2
        %v471 = vrot.slane %v259, 2
        %v472 = vsel %vm399, %v470, %v471
        %v473 = vrot.slane %v260, 2
        %v474 = vsel %vm399, %v471, %v473
        %v475 = vrot.slane %v261, 2
        %v476 = vrot.slane %v262, 2
        %v477 = vsel %vm399, %v475, %v476
        %v478 = vrot.slane %v263, 2
        %v479 = vsel %vm399, %v476, %v478
        %v483 = vrot.slane %v264, 1
        %v484 = vrot.slane %v265, 1
        %v485 = vsel %vm318, %v483, %v484
        %v486 = vrot.slane %v266, 1
        %v487 = vsel %vm318, %v484, %v486
        %v488 = vrot.slane %v264, 2
        %v489 = vrot.slane %v265, 2
        %v490 = vsel %vm399, %v488, %v489
        %v491 = vrot.slane %v266, 2
        %v492 = vsel %vm399, %v489, %v491
        %v496 = vrot.slane %v267, 1
        %v497 = vrot.slane %v268, 1
        %v498 = vsel %vm318, %v496, %v497
        %v499 = vrot.slane %v269, 1
        %v500 = vsel %vm318, %v497, %v499
        %v501 = vrot.slane %v267, 2
        %v502 = vrot.slane %v268, 2
        %v503 = vsel %vm399, %v501, %v502
        %v504 = vrot.slane %v269, 2
        %v505 = vsel %vm399, %v502, %v504
        %506 = vrot.lane.b32.xlu0 %v321, 4
        %v507 = vpop.permute.xlu0 %506
        %508 = vrot.lane.b32.xlu0 %v323, 4
        %v509 = vpop.permute.xlu0 %508
        %510 = vrot.lane.b32.xlu0 %v326, 4
        %v511 = vpop.permute.xlu0 %510
        %512 = vrot.lane.b32.xlu0 %v328, 4
        %v513 = vpop.permute.xlu0 %512
        %514 = vrot.lane.b32.xlu0 %v331, 4
        %v515 = vpop.permute.xlu0 %514
        %516 = vrot.lane.b32.xlu0 %v333, 4
        %v517 = vpop.permute.xlu0 %516
        %518 = vrot.lane.b32.xlu0 %v336, 4
        %v519 = vpop.permute.xlu0 %518
        %520 = vrot.lane.b32.xlu0 %v338, 4
        %v521 = vpop.permute.xlu0 %520
        %522 = vrot.lane.b32.xlu0 %v341, 4
        %v523 = vpop.permute.xlu0 %522
        %524 = vrot.lane.b32.xlu0 %v343, 4
        %v525 = vpop.permute.xlu0 %524
        %526 = vrot.lane.b32.xlu0 %v346, 4
        %v527 = vpop.permute.xlu0 %526
        %528 = vrot.lane.b32.xlu0 %v348, 4
        %v529 = vpop.permute.xlu0 %528
        %530 = vrot.lane.b32.xlu0 %v351, 4
        %v531 = vpop.permute.xlu0 %530
        %532 = vrot.lane.b32.xlu0 %v353, 4
        %v533 = vpop.permute.xlu0 %532
        %534 = vrot.lane.b32.xlu0 %v356, 4
        %v535 = vpop.permute.xlu0 %534
        %536 = vrot.lane.b32.xlu0 %v358, 4
        %v537 = vpop.permute.xlu0 %536
        %538 = vrot.lane.b32.xlu0 %v361, 4
        %v539 = vpop.permute.xlu0 %538
        %540 = vrot.lane.b32.xlu0 %v363, 4
        %v541 = vpop.permute.xlu0 %540
        %542 = vrot.lane.b32.xlu0 %v366, 4
        %v543 = vpop.permute.xlu0 %542
        %544 = vrot.lane.b32.xlu0 %v368, 4
        %v545 = vpop.permute.xlu0 %544
        %546 = vrot.lane.b32.xlu0 %v371, 4
        %v547 = vpop.permute.xlu0 %546
        %548 = vrot.lane.b32.xlu0 %v373, 4
        %v549 = vpop.permute.xlu0 %548
        %550 = vrot.lane.b32.xlu0 %v376, 4
        %v551 = vpop.permute.xlu0 %550
        %552 = vrot.lane.b32.xlu0 %v378, 4
        %v553 = vpop.permute.xlu0 %552
        %554 = vrot.lane.b32.xlu0 %v381, 4
        %v555 = vpop.permute.xlu0 %554
        %556 = vrot.lane.b32.xlu0 %v383, 4
        %v557 = vpop.permute.xlu0 %556
        %558 = vrot.lane.b32.xlu0 %v386, 4
        %v559 = vpop.permute.xlu0 %558
        %560 = vrot.lane.b32.xlu0 %v388, 4
        %v561 = vpop.permute.xlu0 %560
        %562 = vrot.lane.b32.xlu0 %v391, 4
        %v563 = vpop.permute.xlu0 %562
        %564 = vrot.lane.b32.xlu0 %v393, 4
        %v565 = vpop.permute.xlu0 %564
        %566 = vrot.lane.b32.xlu0 %v396, 4
        %v567 = vpop.permute.xlu0 %566
        %568 = vrot.lane.b32.xlu0 %v398, 4
        %v569 = vpop.permute.xlu0 %568
        %602 = vrot.lane.b32.xlu0 %v402, 8
        %v603 = vpop.permute.xlu0 %602
        %604 = vrot.lane.b32.xlu0 %v404, 8
        %v605 = vpop.permute.xlu0 %604
        %606 = vrot.lane.b32.xlu0 %v407, 8
        %v607 = vpop.permute.xlu0 %606
        %608 = vrot.lane.b32.xlu0 %v409, 8
        %v609 = vpop.permute.xlu0 %608
        %610 = vrot.lane.b32.xlu0 %v412, 8
        %v611 = vpop.permute.xlu0 %610
        %612 = vrot.lane.b32.xlu0 %v414, 8
        %v613 = vpop.permute.xlu0 %612
        %614 = vrot.lane.b32.xlu0 %v417, 8
        %v615 = vpop.permute.xlu0 %614
        %616 = vrot.lane.b32.xlu0 %v419, 8
        %v617 = vpop.permute.xlu0 %616
        %618 = vrot.lane.b32.xlu0 %v422, 8
        %v619 = vpop.permute.xlu0 %618
        %620 = vrot.lane.b32.xlu0 %v424, 8
        %v621 = vpop.permute.xlu0 %620
        %622 = vrot.lane.b32.xlu0 %v427, 8
        %v623 = vpop.permute.xlu0 %622
        %624 = vrot.lane.b32.xlu0 %v429, 8
        %v625 = vpop.permute.xlu0 %624
        %626 = vrot.lane.b32.xlu0 %v432, 8
        %v627 = vpop.permute.xlu0 %626
        %628 = vrot.lane.b32.xlu0 %v434, 8
        %v629 = vpop.permute.xlu0 %628
        %630 = vrot.lane.b32.xlu0 %v437, 8
        %v631 = vpop.permute.xlu0 %630
        %632 = vrot.lane.b32.xlu0 %v439, 8
        %v633 = vpop.permute.xlu0 %632
        %634 = vrot.lane.b32.xlu0 %v442, 8
        %v635 = vpop.permute.xlu0 %634
        %636 = vrot.lane.b32.xlu0 %v444, 8
        %v637 = vpop.permute.xlu0 %636
        %638 = vrot.lane.b32.xlu0 %v447, 8
        %v639 = vpop.permute.xlu0 %638
        %640 = vrot.lane.b32.xlu0 %v449, 8
        %v641 = vpop.permute.xlu0 %640
        %642 = vrot.lane.b32.xlu0 %v452, 8
        %v643 = vpop.permute.xlu0 %642
        %644 = vrot.lane.b32.xlu0 %v454, 8
        %v645 = vpop.permute.xlu0 %644
        %646 = vrot.lane.b32.xlu0 %v457, 8
        %v647 = vpop.permute.xlu0 %646
        %648 = vrot.lane.b32.xlu0 %v459, 8
        %v649 = vpop.permute.xlu0 %648
        %650 = vrot.lane.b32.xlu0 %v462, 8
        %v651 = vpop.permute.xlu0 %650
        %652 = vrot.lane.b32.xlu0 %v464, 8
        %v653 = vpop.permute.xlu0 %652
        %654 = vrot.lane.b32.xlu0 %v467, 8
        %v655 = vpop.permute.xlu0 %654
        %656 = vrot.lane.b32.xlu0 %v469, 8
        %v657 = vpop.permute.xlu0 %656
        %658 = vrot.lane.b32.xlu0 %v472, 8
        %v659 = vpop.permute.xlu0 %658
        %660 = vrot.lane.b32.xlu0 %v474, 8
        %v661 = vpop.permute.xlu0 %660
        %662 = vrot.lane.b32.xlu0 %v477, 8
        %v663 = vpop.permute.xlu0 %662
        %664 = vrot.lane.b32.xlu0 %v479, 8
        %v665 = vpop.permute.xlu0 %664
        %698 = vrot.lane.b32.xlu0 %v219, 12
        %v699 = vpop.permute.xlu0 %698
        %700 = vrot.lane.b32.xlu0 %v220, 12
        %v701 = vpop.permute.xlu0 %700
        %702 = vrot.lane.b32.xlu0 %v222, 12
        %v703 = vpop.permute.xlu0 %702
        %704 = vrot.lane.b32.xlu0 %v223, 12
        %v705 = vpop.permute.xlu0 %704
        %706 = vrot.lane.b32.xlu0 %v225, 12
        %v707 = vpop.permute.xlu0 %706
        %708 = vrot.lane.b32.xlu0 %v226, 12
        %v709 = vpop.permute.xlu0 %708
        %710 = vrot.lane.b32.xlu0 %v228, 12
        %v711 = vpop.permute.xlu0 %710
        %712 = vrot.lane.b32.xlu0 %v229, 12
        %v713 = vpop.permute.xlu0 %712
        %714 = vrot.lane.b32.xlu0 %v231, 12
        %v715 = vpop.permute.xlu0 %714
        %716 = vrot.lane.b32.xlu0 %v232, 12
        %v717 = vpop.permute.xlu0 %716
        %718 = vrot.lane.b32.xlu0 %v234, 12
        %v719 = vpop.permute.xlu0 %718
        %720 = vrot.lane.b32.xlu0 %v235, 12
        %v721 = vpop.permute.xlu0 %720
        %722 = vrot.lane.b32.xlu0 %v237, 12
        %v723 = vpop.permute.xlu0 %722
        %724 = vrot.lane.b32.xlu0 %v238, 12
        %v725 = vpop.permute.xlu0 %724
        %726 = vrot.lane.b32.xlu0 %v240, 12
        %v727 = vpop.permute.xlu0 %726
        %728 = vrot.lane.b32.xlu0 %v241, 12
        %v729 = vpop.permute.xlu0 %728
        %730 = vrot.lane.b32.xlu0 %v243, 12
        %v731 = vpop.permute.xlu0 %730
        %732 = vrot.lane.b32.xlu0 %v244, 12
        %v733 = vpop.permute.xlu0 %732
        %734 = vrot.lane.b32.xlu0 %v246, 12
        %v735 = vpop.permute.xlu0 %734
        %736 = vrot.lane.b32.xlu0 %v247, 12
        %v737 = vpop.permute.xlu0 %736
        %738 = vrot.lane.b32.xlu0 %v249, 12
        %v739 = vpop.permute.xlu0 %738
        %740 = vrot.lane.b32.xlu0 %v250, 12
        %v741 = vpop.permute.xlu0 %740
        %742 = vrot.lane.b32.xlu0 %v252, 12
        %v743 = vpop.permute.xlu0 %742
        %744 = vrot.lane.b32.xlu0 %v253, 12
        %v745 = vpop.permute.xlu0 %744
        %746 = vrot.lane.b32.xlu0 %v255, 12
        %v747 = vpop.permute.xlu0 %746
        %748 = vrot.lane.b32.xlu0 %v256, 12
        %v749 = vpop.permute.xlu0 %748
        %750 = vrot.lane.b32.xlu0 %v258, 12
        %v751 = vpop.permute.xlu0 %750
        %752 = vrot.lane.b32.xlu0 %v259, 12
        %v753 = vpop.permute.xlu0 %752
        %754 = vrot.lane.b32.xlu0 %v261, 12
        %v755 = vpop.permute.xlu0 %754
        %756 = vrot.lane.b32.xlu0 %v262, 12
        %v757 = vpop.permute.xlu0 %756
        %758 = vrot.lane.b32.xlu0 %v264, 12
        %v759 = vpop.permute.xlu0 %758
        %760 = vrot.lane.b32.xlu0 %v265, 12
        %v761 = vpop.permute.xlu0 %760
        %794 = vrot.lane.b32.xlu0 %v326, 16
        %v795 = vpop.permute.xlu0 %794
        %796 = vrot.lane.b32.xlu0 %v328, 16
        %v797 = vpop.permute.xlu0 %796
        %798 = vrot.lane.b32.xlu0 %v331, 16
        %v799 = vpop.permute.xlu0 %798
        %800 = vrot.lane.b32.xlu0 %v333, 16
        %v801 = vpop.permute.xlu0 %800
        %802 = vrot.lane.b32.xlu0 %v336, 16
        %v803 = vpop.permute.xlu0 %802
        %804 = vrot.lane.b32.xlu0 %v338, 16
        %v805 = vpop.permute.xlu0 %804
        %806 = vrot.lane.b32.xlu0 %v341, 16
        %v807 = vpop.permute.xlu0 %806
        %808 = vrot.lane.b32.xlu0 %v343, 16
        %v809 = vpop.permute.xlu0 %808
        %810 = vrot.lane.b32.xlu0 %v346, 16
        %v811 = vpop.permute.xlu0 %810
        %812 = vrot.lane.b32.xlu0 %v348, 16
        %v813 = vpop.permute.xlu0 %812
        %814 = vrot.lane.b32.xlu0 %v351, 16
        %v815 = vpop.permute.xlu0 %814
        %816 = vrot.lane.b32.xlu0 %v353, 16
        %v817 = vpop.permute.xlu0 %816
        %818 = vrot.lane.b32.xlu0 %v356, 16
        %v819 = vpop.permute.xlu0 %818
        %820 = vrot.lane.b32.xlu0 %v358, 16
        %v821 = vpop.permute.xlu0 %820
        %822 = vrot.lane.b32.xlu0 %v361, 16
        %v823 = vpop.permute.xlu0 %822
        %824 = vrot.lane.b32.xlu0 %v363, 16
        %v825 = vpop.permute.xlu0 %824
        %826 = vrot.lane.b32.xlu0 %v366, 16
        %v827 = vpop.permute.xlu0 %826
        %828 = vrot.lane.b32.xlu0 %v368, 16
        %v829 = vpop.permute.xlu0 %828
        %830 = vrot.lane.b32.xlu0 %v371, 16
        %v831 = vpop.permute.xlu0 %830
        %832 = vrot.lane.b32.xlu0 %v373, 16
        %v833 = vpop.permute.xlu0 %832
        %834 = vrot.lane.b32.xlu0 %v376, 16
        %v835 = vpop.permute.xlu0 %834
        %836 = vrot.lane.b32.xlu0 %v378, 16
        %v837 = vpop.permute.xlu0 %836
        %838 = vrot.lane.b32.xlu0 %v381, 16
        %v839 = vpop.permute.xlu0 %838
        %840 = vrot.lane.b32.xlu0 %v383, 16
        %v841 = vpop.permute.xlu0 %840
        %842 = vrot.lane.b32.xlu0 %v386, 16
        %v843 = vpop.permute.xlu0 %842
        %844 = vrot.lane.b32.xlu0 %v388, 16
        %v845 = vpop.permute.xlu0 %844
        %846 = vrot.lane.b32.xlu0 %v391, 16
        %v847 = vpop.permute.xlu0 %846
        %848 = vrot.lane.b32.xlu0 %v393, 16
        %v849 = vpop.permute.xlu0 %848
        %850 = vrot.lane.b32.xlu0 %v396, 16
        %v851 = vpop.permute.xlu0 %850
        %852 = vrot.lane.b32.xlu0 %v398, 16
        %v853 = vpop.permute.xlu0 %852
        %854 = vrot.lane.b32.xlu0 %v485, 16
        %v855 = vpop.permute.xlu0 %854
        %856 = vrot.lane.b32.xlu0 %v487, 16
        %v857 = vpop.permute.xlu0 %856
        %890 = vrot.lane.b32.xlu0 %v407, 20
        %v891 = vpop.permute.xlu0 %890
        %892 = vrot.lane.b32.xlu0 %v409, 20
        %v893 = vpop.permute.xlu0 %892
        %894 = vrot.lane.b32.xlu0 %v412, 20
        %v895 = vpop.permute.xlu0 %894
        %896 = vrot.lane.b32.xlu0 %v414, 20
        %v897 = vpop.permute.xlu0 %896
        %898 = vrot.lane.b32.xlu0 %v417, 20
        %v899 = vpop.permute.xlu0 %898
        %900 = vrot.lane.b32.xlu0 %v419, 20
        %v901 = vpop.permute.xlu0 %900
        %902 = vrot.lane.b32.xlu0 %v422, 20
        %v903 = vpop.permute.xlu0 %902
        %904 = vrot.lane.b32.xlu0 %v424, 20
        %v905 = vpop.permute.xlu0 %904
        %906 = vrot.lane.b32.xlu0 %v427, 20
        %v907 = vpop.permute.xlu0 %906
        %908 = vrot.lane.b32.xlu0 %v429, 20
        %v909 = vpop.permute.xlu0 %908
        %910 = vrot.lane.b32.xlu0 %v432, 20
        %v911 = vpop.permute.xlu0 %910
        %912 = vrot.lane.b32.xlu0 %v434, 20
        %v913 = vpop.permute.xlu0 %912
        %914 = vrot.lane.b32.xlu0 %v437, 20
        %v915 = vpop.permute.xlu0 %914
        %916 = vrot.lane.b32.xlu0 %v439, 20
        %v917 = vpop.permute.xlu0 %916
        %918 = vrot.lane.b32.xlu0 %v442, 20
        %v919 = vpop.permute.xlu0 %918
        %920 = vrot.lane.b32.xlu0 %v444, 20
        %v921 = vpop.permute.xlu0 %920
        %922 = vrot.lane.b32.xlu0 %v447, 20
        %v923 = vpop.permute.xlu0 %922
        %924 = vrot.lane.b32.xlu0 %v449, 20
        %v925 = vpop.permute.xlu0 %924
        %926 = vrot.lane.b32.xlu0 %v452, 20
        %v927 = vpop.permute.xlu0 %926
        %928 = vrot.lane.b32.xlu0 %v454, 20
        %v929 = vpop.permute.xlu0 %928
        %930 = vrot.lane.b32.xlu0 %v457, 20
        %v931 = vpop.permute.xlu0 %930
        %932 = vrot.lane.b32.xlu0 %v459, 20
        %v933 = vpop.permute.xlu0 %932
        %934 = vrot.lane.b32.xlu0 %v462, 20
        %v935 = vpop.permute.xlu0 %934
        %936 = vrot.lane.b32.xlu0 %v464, 20
        %v937 = vpop.permute.xlu0 %936
        %938 = vrot.lane.b32.xlu0 %v467, 20
        %v939 = vpop.permute.xlu0 %938
        %940 = vrot.lane.b32.xlu0 %v469, 20
        %v941 = vpop.permute.xlu0 %940
        %942 = vrot.lane.b32.xlu0 %v472, 20
        %v943 = vpop.permute.xlu0 %942
        %944 = vrot.lane.b32.xlu0 %v474, 20
        %v945 = vpop.permute.xlu0 %944
        %946 = vrot.lane.b32.xlu0 %v477, 20
        %v947 = vpop.permute.xlu0 %946
        %948 = vrot.lane.b32.xlu0 %v479, 20
        %v949 = vpop.permute.xlu0 %948
        %950 = vrot.lane.b32.xlu0 %v490, 20
        %v951 = vpop.permute.xlu0 %950
        %952 = vrot.lane.b32.xlu0 %v492, 20
        %v953 = vpop.permute.xlu0 %952
        %986 = vrot.lane.b32.xlu0 %v222, 24
        %v987 = vpop.permute.xlu0 %986
        %988 = vrot.lane.b32.xlu0 %v223, 24
        %v989 = vpop.permute.xlu0 %988
        %990 = vrot.lane.b32.xlu0 %v225, 24
        %v991 = vpop.permute.xlu0 %990
        %992 = vrot.lane.b32.xlu0 %v226, 24
        %v993 = vpop.permute.xlu0 %992
        %994 = vrot.lane.b32.xlu0 %v228, 24
        %v995 = vpop.permute.xlu0 %994
        %996 = vrot.lane.b32.xlu0 %v229, 24
        %v997 = vpop.permute.xlu0 %996
        %998 = vrot.lane.b32.xlu0 %v231, 24
        %v999 = vpop.permute.xlu0 %998
        %1000 = vrot.lane.b32.xlu0 %v232, 24
        %v1001 = vpop.permute.xlu0 %1000
        %1002 = vrot.lane.b32.xlu0 %v234, 24
        %v1003 = vpop.permute.xlu0 %1002
        %1004 = vrot.lane.b32.xlu0 %v235, 24
        %v1005 = vpop.permute.xlu0 %1004
        %1006 = vrot.lane.b32.xlu0 %v237, 24
        %v1007 = vpop.permute.xlu0 %1006
        %1008 = vrot.lane.b32.xlu0 %v238, 24
        %v1009 = vpop.permute.xlu0 %1008
        %1010 = vrot.lane.b32.xlu0 %v240, 24
        %v1011 = vpop.permute.xlu0 %1010
        %1012 = vrot.lane.b32.xlu0 %v241, 24
        %v1013 = vpop.permute.xlu0 %1012
        %1014 = vrot.lane.b32.xlu0 %v243, 24
        %v1015 = vpop.permute.xlu0 %1014
        %1016 = vrot.lane.b32.xlu0 %v244, 24
        %v1017 = vpop.permute.xlu0 %1016
        %1018 = vrot.lane.b32.xlu0 %v246, 24
        %v1019 = vpop.permute.xlu0 %1018
        %1020 = vrot.lane.b32.xlu0 %v247, 24
        %v1021 = vpop.permute.xlu0 %1020
        %1022 = vrot.lane.b32.xlu0 %v249, 24
        %v1023 = vpop.permute.xlu0 %1022
        %1024 = vrot.lane.b32.xlu0 %v250, 24
        %v1025 = vpop.permute.xlu0 %1024
        %1026 = vrot.lane.b32.xlu0 %v252, 24
        %v1027 = vpop.permute.xlu0 %1026
        %1028 = vrot.lane.b32.xlu0 %v253, 24
        %v1029 = vpop.permute.xlu0 %1028
        %1030 = vrot.lane.b32.xlu0 %v255, 24
        %v1031 = vpop.permute.xlu0 %1030
        %1032 = vrot.lane.b32.xlu0 %v256, 24
        %v1033 = vpop.permute.xlu0 %1032
        %1034 = vrot.lane.b32.xlu0 %v258, 24
        %v1035 = vpop.permute.xlu0 %1034
        %1036 = vrot.lane.b32.xlu0 %v259, 24
        %v1037 = vpop.permute.xlu0 %1036
        %1038 = vrot.lane.b32.xlu0 %v261, 24
        %v1039 = vpop.permute.xlu0 %1038
        %1040 = vrot.lane.b32.xlu0 %v262, 24
        %v1041 = vpop.permute.xlu0 %1040
        %1042 = vrot.lane.b32.xlu0 %v264, 24
        %v1043 = vpop.permute.xlu0 %1042
        %1044 = vrot.lane.b32.xlu0 %v265, 24
        %v1045 = vpop.permute.xlu0 %1044
        %1046 = vrot.lane.b32.xlu0 %v267, 24
        %v1047 = vpop.permute.xlu0 %1046
        %1048 = vrot.lane.b32.xlu0 %v268, 24
        %v1049 = vpop.permute.xlu0 %1048
        %1082 = vrot.lane.b32.xlu0 %v331, 28
        %v1083 = vpop.permute.xlu0 %1082
        %1084 = vrot.lane.b32.xlu0 %v333, 28
        %v1085 = vpop.permute.xlu0 %1084
        %1086 = vrot.lane.b32.xlu0 %v336, 28
        %v1087 = vpop.permute.xlu0 %1086
        %1088 = vrot.lane.b32.xlu0 %v338, 28
        %v1089 = vpop.permute.xlu0 %1088
        %1090 = vrot.lane.b32.xlu0 %v341, 28
        %v1091 = vpop.permute.xlu0 %1090
        %1092 = vrot.lane.b32.xlu0 %v343, 28
        %v1093 = vpop.permute.xlu0 %1092
        %1094 = vrot.lane.b32.xlu0 %v346, 28
        %v1095 = vpop.permute.xlu0 %1094
        %1096 = vrot.lane.b32.xlu0 %v348, 28
        %v1097 = vpop.permute.xlu0 %1096
        %1098 = vrot.lane.b32.xlu0 %v351, 28
        %v1099 = vpop.permute.xlu0 %1098
        %1100 = vrot.lane.b32.xlu0 %v353, 28
        %v1101 = vpop.permute.xlu0 %1100
        %1102 = vrot.lane.b32.xlu0 %v356, 28
        %v1103 = vpop.permute.xlu0 %1102
        %1104 = vrot.lane.b32.xlu0 %v358, 28
        %v1105 = vpop.permute.xlu0 %1104
        %1106 = vrot.lane.b32.xlu0 %v361, 28
        %v1107 = vpop.permute.xlu0 %1106
        %1108 = vrot.lane.b32.xlu0 %v363, 28
        %v1109 = vpop.permute.xlu0 %1108
        %1110 = vrot.lane.b32.xlu0 %v366, 28
        %v1111 = vpop.permute.xlu0 %1110
        %1112 = vrot.lane.b32.xlu0 %v368, 28
        %v1113 = vpop.permute.xlu0 %1112
        %1114 = vrot.lane.b32.xlu0 %v371, 28
        %v1115 = vpop.permute.xlu0 %1114
        %1116 = vrot.lane.b32.xlu0 %v373, 28
        %v1117 = vpop.permute.xlu0 %1116
        %1118 = vrot.lane.b32.xlu0 %v376, 28
        %v1119 = vpop.permute.xlu0 %1118
        %1120 = vrot.lane.b32.xlu0 %v378, 28
        %v1121 = vpop.permute.xlu0 %1120
        %1122 = vrot.lane.b32.xlu0 %v381, 28
        %v1123 = vpop.permute.xlu0 %1122
        %1124 = vrot.lane.b32.xlu0 %v383, 28
        %v1125 = vpop.permute.xlu0 %1124
        %1126 = vrot.lane.b32.xlu0 %v386, 28
        %v1127 = vpop.permute.xlu0 %1126
        %1128 = vrot.lane.b32.xlu0 %v388, 28
        %v1129 = vpop.permute.xlu0 %1128
        %1130 = vrot.lane.b32.xlu0 %v391, 28
        %v1131 = vpop.permute.xlu0 %1130
        %1132 = vrot.lane.b32.xlu0 %v393, 28
        %v1133 = vpop.permute.xlu0 %1132
        %1134 = vrot.lane.b32.xlu0 %v396, 28
        %v1135 = vpop.permute.xlu0 %1134
        %1136 = vrot.lane.b32.xlu0 %v398, 28
        %v1137 = vpop.permute.xlu0 %1136
        %1138 = vrot.lane.b32.xlu0 %v485, 28
        %v1139 = vpop.permute.xlu0 %1138
        %1140 = vrot.lane.b32.xlu0 %v487, 28
        %v1141 = vpop.permute.xlu0 %1140
        %1142 = vrot.lane.b32.xlu0 %v498, 28
        %v1143 = vpop.permute.xlu0 %1142
        %1144 = vrot.lane.b32.xlu0 %v500, 28
        %v1145 = vpop.permute.xlu0 %1144
        %1178 = vrot.lane.b32.xlu0 %v412, 32
        %v1179 = vpop.permute.xlu0 %1178
        %1180 = vrot.lane.b32.xlu0 %v414, 32
        %v1181 = vpop.permute.xlu0 %1180
        %1182 = vrot.lane.b32.xlu0 %v417, 32
        %v1183 = vpop.permute.xlu0 %1182
        %1184 = vrot.lane.b32.xlu0 %v419, 32
        %v1185 = vpop.permute.xlu0 %1184
        %1186 = vrot.lane.b32.xlu0 %v422, 32
        %v1187 = vpop.permute.xlu0 %1186
        %1188 = vrot.lane.b32.xlu0 %v424, 32
        %v1189 = vpop.permute.xlu0 %1188
        %1190 = vrot.lane.b32.xlu0 %v427, 32
        %v1191 = vpop.permute.xlu0 %1190
        %1192 = vrot.lane.b32.xlu0 %v429, 32
        %v1193 = vpop.permute.xlu0 %1192
        %1194 = vrot.lane.b32.xlu0 %v432, 32
        %v1195 = vpop.permute.xlu0 %1194
        %1196 = vrot.lane.b32.xlu0 %v434, 32
        %v1197 = vpop.permute.xlu0 %1196
        %1198 = vrot.lane.b32.xlu0 %v437, 32
        %v1199 = vpop.permute.xlu0 %1198
        %1200 = vrot.lane.b32.xlu0 %v439, 32
        %v1201 = vpop.permute.xlu0 %1200
        %1202 = vrot.lane.b32.xlu0 %v442, 32
        %v1203 = vpop.permute.xlu0 %1202
        %1204 = vrot.lane.b32.xlu0 %v444, 32
        %v1205 = vpop.permute.xlu0 %1204
        %1206 = vrot.lane.b32.xlu0 %v447, 32
        %v1207 = vpop.permute.xlu0 %1206
        %1208 = vrot.lane.b32.xlu0 %v449, 32
        %v1209 = vpop.permute.xlu0 %1208
        %1210 = vrot.lane.b32.xlu0 %v452, 32
        %v1211 = vpop.permute.xlu0 %1210
        %1212 = vrot.lane.b32.xlu0 %v454, 32
        %v1213 = vpop.permute.xlu0 %1212
        %1214 = vrot.lane.b32.xlu0 %v457, 32
        %v1215 = vpop.permute.xlu0 %1214
        %1216 = vrot.lane.b32.xlu0 %v459, 32
        %v1217 = vpop.permute.xlu0 %1216
        %1218 = vrot.lane.b32.xlu0 %v462, 32
        %v1219 = vpop.permute.xlu0 %1218
        %1220 = vrot.lane.b32.xlu0 %v464, 32
        %v1221 = vpop.permute.xlu0 %1220
        %1222 = vrot.lane.b32.xlu0 %v467, 32
        %v1223 = vpop.permute.xlu0 %1222
        %1224 = vrot.lane.b32.xlu0 %v469, 32
        %v1225 = vpop.permute.xlu0 %1224
        %1226 = vrot.lane.b32.xlu0 %v472, 32
        %v1227 = vpop.permute.xlu0 %1226
        %1228 = vrot.lane.b32.xlu0 %v474, 32
        %v1229 = vpop.permute.xlu0 %1228
        %1230 = vrot.lane.b32.xlu0 %v477, 32
        %v1231 = vpop.permute.xlu0 %1230
        %1232 = vrot.lane.b32.xlu0 %v479, 32
        %v1233 = vpop.permute.xlu0 %1232
        %1234 = vrot.lane.b32.xlu0 %v490, 32
        %v1235 = vpop.permute.xlu0 %1234
        %1236 = vrot.lane.b32.xlu0 %v492, 32
        %v1237 = vpop.permute.xlu0 %1236
        %1238 = vrot.lane.b32.xlu0 %v503, 32
        %v1239 = vpop.permute.xlu0 %1238
        %1240 = vrot.lane.b32.xlu0 %v505, 32
        %v1241 = vpop.permute.xlu0 %1240
        %vm1274 = vcmask 31744
        %v1275 = vsel %vm1274, %v216, %v507
        %v1276 = vsel %vm1274, %v217, %v509
        %v1277 = vsel %vm1274, %v219, %v511
        %v1278 = vsel %vm1274, %v220, %v513
        %v1279 = vsel %vm1274, %v222, %v515
        %v1280 = vsel %vm1274, %v223, %v517
        %v1281 = vsel %vm1274, %v225, %v519
        %v1282 = vsel %vm1274, %v226, %v521
        %v1283 = vsel %vm1274, %v228, %v523
        %v1284 = vsel %vm1274, %v229, %v525
        %v1285 = vsel %vm1274, %v231, %v527
        %v1286 = vsel %vm1274, %v232, %v529
        %v1287 = vsel %vm1274, %v234, %v531
        %v1288 = vsel %vm1274, %v235, %v533
        %v1289 = vsel %vm1274, %v237, %v535
        %v1290 = vsel %vm1274, %v238, %v537
        %v1291 = vsel %vm1274, %v240, %v539
        %v1292 = vsel %vm1274, %v241, %v541
        %v1293 = vsel %vm1274, %v243, %v543
        %v1294 = vsel %vm1274, %v244, %v545
        %v1295 = vsel %vm1274, %v246, %v547
        %v1296 = vsel %vm1274, %v247, %v549
        %v1297 = vsel %vm1274, %v249, %v551
        %v1298 = vsel %vm1274, %v250, %v553
        %v1299 = vsel %vm1274, %v252, %v555
        %v1300 = vsel %vm1274, %v253, %v557
        %v1301 = vsel %vm1274, %v255, %v559
        %v1302 = vsel %vm1274, %v256, %v561
        %v1303 = vsel %vm1274, %v258, %v563
        %v1304 = vsel %vm1274, %v259, %v565
        %v1305 = vsel %vm1274, %v261, %v567
        %v1306 = vsel %vm1274, %v262, %v569
        %vm1307 = vcmask 64512
        %v1308 = vsel %vm1307, %v1275, %v603
        %v1309 = vsel %vm1307, %v1276, %v605
        %v1310 = vsel %vm1307, %v1277, %v607
        %v1311 = vsel %vm1307, %v1278, %v609
        %v1312 = vsel %vm1307, %v1279, %v611
        %v1313 = vsel %vm1307, %v1280, %v613
        %v1314 = vsel %vm1307, %v1281, %v615
        %v1315 = vsel %vm1307, %v1282, %v617
        %v1316 = vsel %vm1307, %v1283, %v619
        %v1317 = vsel %vm1307, %v1284, %v621
        %v1318 = vsel %vm1307, %v1285, %v623
        %v1319 = vsel %vm1307, %v1286, %v625
        %v1320 = vsel %vm1307, %v1287, %v627
        %v1321 = vsel %vm1307, %v1288, %v629
        %v1322 = vsel %vm1307, %v1289, %v631
        %v1323 = vsel %vm1307, %v1290, %v633
        %v1324 = vsel %vm1307, %v1291, %v635
        %v1325 = vsel %vm1307, %v1292, %v637
        %v1326 = vsel %vm1307, %v1293, %v639
        %v1327 = vsel %vm1307, %v1294, %v641
        %v1328 = vsel %vm1307, %v1295, %v643
        %v1329 = vsel %vm1307, %v1296, %v645
        %v1330 = vsel %vm1307, %v1297, %v647
        %v1331 = vsel %vm1307, %v1298, %v649
        %v1332 = vsel %vm1307, %v1299, %v651
        %v1333 = vsel %vm1307, %v1300, %v653
        %v1334 = vsel %vm1307, %v1301, %v655
        %v1335 = vsel %vm1307, %v1302, %v657
        %v1336 = vsel %vm1307, %v1303, %v659
        %v1337 = vsel %vm1307, %v1304, %v661
        %v1338 = vsel %vm1307, %v1305, %v663
        %v1339 = vsel %vm1307, %v1306, %v665
        %vm1340 = vcmask 97280
        %v1341 = vsel %vm1340, %v1308, %v699
        %v1342 = vsel %vm1340, %v1309, %v701
        %v1343 = vsel %vm1340, %v1310, %v703
        %v1344 = vsel %vm1340, %v1311, %v705
        %v1345 = vsel %vm1340, %v1312, %v707
        %v1346 = vsel %vm1340, %v1313, %v709
        %v1347 = vsel %vm1340, %v1314, %v711
        %v1348 = vsel %vm1340, %v1315, %v713
        %v1349 = vsel %vm1340, %v1316, %v715
        %v1350 = vsel %vm1340, %v1317, %v717
        %v1351 = vsel %vm1340, %v1318, %v719
        %v1352 = vsel %vm1340, %v1319, %v721
        %v1353 = vsel %vm1340, %v1320, %v723
        %v1354 = vsel %vm1340, %v1321, %v725
        %v1355 = vsel %vm1340, %v1322, %v727
        %v1356 = vsel %vm1340, %v1323, %v729
        %v1357 = vsel %vm1340, %v1324, %v731
        %v1358 = vsel %vm1340, %v1325, %v733
        %v1359 = vsel %vm1340, %v1326, %v735
        %v1360 = vsel %vm1340, %v1327, %v737
        %v1361 = vsel %vm1340, %v1328, %v739
        %v1362 = vsel %vm1340, %v1329, %v741
        %v1363 = vsel %vm1340, %v1330, %v743
        %v1364 = vsel %vm1340, %v1331, %v745
        %v1365 = vsel %vm1340, %v1332, %v747
        %v1366 = vsel %vm1340, %v1333, %v749
        %v1367 = vsel %vm1340, %v1334, %v751
        %v1368 = vsel %vm1340, %v1335, %v753
        %v1369 = vsel %vm1340, %v1336, %v755
        %v1370 = vsel %vm1340, %v1337, %v757
        %v1371 = vsel %vm1340, %v1338, %v759
        %v1372 = vsel %vm1340, %v1339, %v761
        %vm1373 = vcmask 130048
        %v1374 = vsel %vm1373, %v1341, %v795
        %v1375 = vsel %vm1373, %v1342, %v797
        %v1376 = vsel %vm1373, %v1343, %v799
        %v1377 = vsel %vm1373, %v1344, %v801
        %v1378 = vsel %vm1373, %v1345, %v803
        %v1379 = vsel %vm1373, %v1346, %v805
        %v1380 = vsel %vm1373, %v1347, %v807
        %v1381 = vsel %vm1373, %v1348, %v809
        %v1382 = vsel %vm1373, %v1349, %v811
        %v1383 = vsel %vm1373, %v1350, %v813
        %v1384 = vsel %vm1373, %v1351, %v815
        %v1385 = vsel %vm1373, %v1352, %v817
        %v1386 = vsel %vm1373, %v1353, %v819
        %v1387 = vsel %vm1373, %v1354, %v821
        %v1388 = vsel %vm1373, %v1355, %v823
        %v1389 = vsel %vm1373, %v1356, %v825
        %v1390 = vsel %vm1373, %v1357, %v827
        %v1391 = vsel %vm1373, %v1358, %v829
        %v1392 = vsel %vm1373, %v1359, %v831
        %v1393 = vsel %vm1373, %v1360, %v833
        %v1394 = vsel %vm1373, %v1361, %v835
        %v1395 = vsel %vm1373, %v1362, %v837
        %v1396 = vsel %vm1373, %v1363, %v839
        %v1397 = vsel %vm1373, %v1364, %v841
        %v1398 = vsel %vm1373, %v1365, %v843
        %v1399 = vsel %vm1373, %v1366, %v845
        %v1400 = vsel %vm1373, %v1367, %v847
        %v1401 = vsel %vm1373, %v1368, %v849
        %v1402 = vsel %vm1373, %v1369, %v851
        %v1403 = vsel %vm1373, %v1370, %v853
        %v1404 = vsel %vm1373, %v1371, %v855
        %v1405 = vsel %vm1373, %v1372, %v857
        %vm1406 = vcmask 162816
        %v1407 = vsel %vm1406, %v1374, %v891
        %v1408 = vsel %vm1406, %v1375, %v893
        %v1409 = vsel %vm1406, %v1376, %v895
        %v1410 = vsel %vm1406, %v1377, %v897
        %v1411 = vsel %vm1406, %v1378, %v899
        %v1412 = vsel %vm1406, %v1379, %v901
        %v1413 = vsel %vm1406, %v1380, %v903
        %v1414 = vsel %vm1406, %v1381, %v905
        %v1415 = vsel %vm1406, %v1382, %v907
        %v1416 = vsel %vm1406, %v1383, %v909
        %v1417 = vsel %vm1406, %v1384, %v911
        %v1418 = vsel %vm1406, %v1385, %v913
        %v1419 = vsel %vm1406, %v1386, %v915
        %v1420 = vsel %vm1406, %v1387, %v917
        %v1421 = vsel %vm1406, %v1388, %v919
        %v1422 = vsel %vm1406, %v1389, %v921
        %v1423 = vsel %vm1406, %v1390, %v923
        %v1424 = vsel %vm1406, %v1391, %v925
        %v1425 = vsel %vm1406, %v1392, %v927
        %v1426 = vsel %vm1406, %v1393, %v929
        %v1427 = vsel %vm1406, %v1394, %v931
        %v1428 = vsel %vm1406, %v1395, %v933
        %v1429 = vsel %vm1406, %v1396, %v935
        %v1430 = vsel %vm1406, %v1397, %v937
        %v1431 = vsel %vm1406, %v1398, %v939
        %v1432 = vsel %vm1406, %v1399, %v941
        %v1433 = vsel %vm1406, %v1400, %v943
        %v1434 = vsel %vm1406, %v1401, %v945
        %v1435 = vsel %vm1406, %v1402, %v947
        %v1436 = vsel %vm1406, %v1403, %v949
        %v1437 = vsel %vm1406, %v1404, %v951
        %v1438 = vsel %vm1406, %v1405, %v953
        %vm1439 = vcmask 195584
        %v1440 = vsel %vm1439, %v1407, %v987
        %v1441 = vsel %vm1439, %v1408, %v989
        %v1442 = vsel %vm1439, %v1409, %v991
        %v1443 = vsel %vm1439, %v1410, %v993
        %v1444 = vsel %vm1439, %v1411, %v995
        %v1445 = vsel %vm1439, %v1412, %v997
        %v1446 = vsel %vm1439, %v1413, %v999
        %v1447 = vsel %vm1439, %v1414, %v1001
        %v1448 = vsel %vm1439, %v1415, %v1003
        %v1449 = vsel %vm1439, %v1416, %v1005
        %v1450 = vsel %vm1439, %v1417, %v1007
        %v1451 = vsel %vm1439, %v1418, %v1009
        %v1452 = vsel %vm1439, %v1419, %v1011
        %v1453 = vsel %vm1439, %v1420, %v1013
        %v1454 = vsel %vm1439, %v1421, %v1015
        %v1455 = vsel %vm1439, %v1422, %v1017
        %v1456 = vsel %vm1439, %v1423, %v1019
        %v1457 = vsel %vm1439, %v1424, %v1021
        %v1458 = vsel %vm1439, %v1425, %v1023
        %v1459 = vsel %vm1439, %v1426, %v1025
        %v1460 = vsel %vm1439, %v1427, %v1027
        %v1461 = vsel %vm1439, %v1428, %v1029
        %v1462 = vsel %vm1439, %v1429, %v1031
        %v1463 = vsel %vm1439, %v1430, %v1033
        %v1464 = vsel %vm1439, %v1431, %v1035
        %v1465 = vsel %vm1439, %v1432, %v1037
        %v1466 = vsel %vm1439, %v1433, %v1039
        %v1467 = vsel %vm1439, %v1434, %v1041
        %v1468 = vsel %vm1439, %v1435, %v1043
        %v1469 = vsel %vm1439, %v1436, %v1045
        %v1470 = vsel %vm1439, %v1437, %v1047
        %v1471 = vsel %vm1439, %v1438, %v1049
        %vm1472 = vcmask 228352
        %v1473 = vsel %vm1472, %v1440, %v1083
        %v1474 = vsel %vm1472, %v1441, %v1085
        %v1475 = vsel %vm1472, %v1442, %v1087
        %v1476 = vsel %vm1472, %v1443, %v1089
        %v1477 = vsel %vm1472, %v1444, %v1091
        %v1478 = vsel %vm1472, %v1445, %v1093
        %v1479 = vsel %vm1472, %v1446, %v1095
        %v1480 = vsel %vm1472, %v1447, %v1097
        %v1481 = vsel %vm1472, %v1448, %v1099
        %v1482 = vsel %vm1472, %v1449, %v1101
        %v1483 = vsel %vm1472, %v1450, %v1103
        %v1484 = vsel %vm1472, %v1451, %v1105
        %v1485 = vsel %vm1472, %v1452, %v1107
        %v1486 = vsel %vm1472, %v1453, %v1109
        %v1487 = vsel %vm1472, %v1454, %v1111
        %v1488 = vsel %vm1472, %v1455, %v1113
        %v1489 = vsel %vm1472, %v1456, %v1115
        %v1490 = vsel %vm1472, %v1457, %v1117
        %v1491 = vsel %vm1472, %v1458, %v1119
        %v1492 = vsel %vm1472, %v1459, %v1121
        %v1493 = vsel %vm1472, %v1460, %v1123
        %v1494 = vsel %vm1472, %v1461, %v1125
        %v1495 = vsel %vm1472, %v1462, %v1127
        %v1496 = vsel %vm1472, %v1463, %v1129
        %v1497 = vsel %vm1472, %v1464, %v1131
        %v1498 = vsel %vm1472, %v1465, %v1133
        %v1499 = vsel %vm1472, %v1466, %v1135
        %v1500 = vsel %vm1472, %v1467, %v1137
        %v1501 = vsel %vm1472, %v1468, %v1139
        %v1502 = vsel %vm1472, %v1469, %v1141
        %v1503 = vsel %vm1472, %v1470, %v1143
        %v1504 = vsel %vm1472, %v1471, %v1145
        %vm1505 = vcmask 261120
        %v1506 = vsel %vm1505, %v1473, %v1179
        %v1507 = vsel %vm1505, %v1474, %v1181
        %v1508 = vsel %vm1505, %v1475, %v1183
        %v1509 = vsel %vm1505, %v1476, %v1185
        %v1510 = vsel %vm1505, %v1477, %v1187
        %v1511 = vsel %vm1505, %v1478, %v1189
        %v1512 = vsel %vm1505, %v1479, %v1191
        %v1513 = vsel %vm1505, %v1480, %v1193
        %v1514 = vsel %vm1505, %v1481, %v1195
        %v1515 = vsel %vm1505, %v1482, %v1197
        %v1516 = vsel %vm1505, %v1483, %v1199
        %v1517 = vsel %vm1505, %v1484, %v1201
        %v1518 = vsel %vm1505, %v1485, %v1203
        %v1519 = vsel %vm1505, %v1486, %v1205
        %v1520 = vsel %vm1505, %v1487, %v1207
        %v1521 = vsel %vm1505, %v1488, %v1209
        %v1522 = vsel %vm1505, %v1489, %v1211
        %v1523 = vsel %vm1505, %v1490, %v1213
        %v1524 = vsel %vm1505, %v1491, %v1215
        %v1525 = vsel %vm1505, %v1492, %v1217
        %v1526 = vsel %vm1505, %v1493, %v1219
        %v1527 = vsel %vm1505, %v1494, %v1221
        %v1528 = vsel %vm1505, %v1495, %v1223
        %v1529 = vsel %vm1505, %v1496, %v1225
        %v1530 = vsel %vm1505, %v1497, %v1227
        %v1531 = vsel %vm1505, %v1498, %v1229
        %v1532 = vsel %vm1505, %v1499, %v1231
        %v1533 = vsel %vm1505, %v1500, %v1233
        %v1534 = vsel %vm1505, %v1501, %v1235
        %v1535 = vsel %vm1505, %v1502, %v1237
        %v1536 = vsel %vm1505, %v1503, %v1239
        %v1537 = vsel %vm1505, %v1504, %v1241
        %v1538 = vld [vmem:[#allocation5] sm:$0xff]
        %v1539 = vld [vmem:[#allocation5 + $0x8] sm:$0xff]
        %v1540 = vld [vmem:[#allocation5 + $0x10] sm:$0xff]
        %v1541 = vld [vmem:[#allocation5 + $0x18] sm:$0xff]
        %v1542 = vld [vmem:[#allocation5 + $0x20] sm:$0xf]
        %v1543 = vld [vmem:[#allocation7] sm:$0x1]
        %v1545 = vlaneseq
        %v1546 = vshrl.u32 %v1545, 7
        %v1547 = vsub.s32 0, %v1546
        %v1548 = vrot.slane %v1543, %v1547
        %vm1550 = vcmask 293888
        %v1552 = vsel %vm1550, %v1506, 0
        %v1555 = vsel %vm1550, %v1507, 0
        %v1558 = vsel %vm1550, %v1508, 0
        %v1561 = vsel %vm1550, %v1509, 0
        %v1564 = vsel %vm1550, %v1510, 0
        %v1567 = vsel %vm1550, %v1511, 0
        %v1570 = vsel %vm1550, %v1512, 0
        %v1573 = vsel %vm1550, %v1513, 0
        %v1576 = vsel %vm1550, %v1514, 0
        %v1579 = vsel %vm1550, %v1515, 0
        %v1582 = vsel %vm1550, %v1516, 0
        %v1585 = vsel %vm1550, %v1517, 0
        %v1588 = vsel %vm1550, %v1518, 0
        %v1591 = vsel %vm1550, %v1519, 0
        %v1594 = vsel %vm1550, %v1520, 0
        %v1597 = vsel %vm1550, %v1521, 0
        %v1600 = vsel %vm1550, %v1522, 0
        %v1603 = vsel %vm1550, %v1523, 0
        %v1606 = vsel %vm1550, %v1524, 0
        %v1609 = vsel %vm1550, %v1525, 0
        %v1612 = vsel %vm1550, %v1526, 0
        %v1615 = vsel %vm1550, %v1527, 0
        %v1618 = vsel %vm1550, %v1528, 0
        %v1621 = vsel %vm1550, %v1529, 0
        %v1624 = vsel %vm1550, %v1530, 0
        %v1627 = vsel %vm1550, %v1531, 0
        %v1630 = vsel %vm1550, %v1532, 0
        %v1633 = vsel %vm1550, %v1533, 0
        %v1636 = vsel %vm1550, %v1534, 0
        %v1639 = vsel %vm1550, %v1535, 0
        %v1642 = vsel %vm1550, %v1536, 0
        %v1645 = vsel %vm1550, %v1537, 0
        %vm1647 = vcmask 1043456
        %v1649 = vsel %vm1647, %v1542, 0
        %1651 = vmatprep.subr.mxu0 0.0
        %1652 = vmatpush1.msra.mxu0 %v1538
        %1653 = vmatprep.subr.mxu0 0.0
        %1654 = vmatpush1.msra.mxu0 %v1539
        %1655 = vmatprep.subr.mxu0 0.0
        %1656 = vmatpush1.msra.mxu0 %v1540
        %1657 = vmatprep.subr.mxu0 0.0
        %1658 = vmatpush1.msra.mxu0 %v1541
        %1659 = vmatprep.subr.mxu0 0.0
        %1660 = vmatpush1.msra.mxu0 %v1649
        %1661 = vmatprep.subr.mxu0 0.0
        %1662 = vmatpush1.msra.mxu0 0.0
        %1663 = vmatprep.subr.mxu0 0.0
        %1664 = vmatpush1.msra.mxu0 0.0
        %1665 = vmatprep.subr.mxu0 0.0
        %1666 = vmatpush1.msra.mxu0 0.0
        %1667 = vmatprep.subr.mxu0 0.0
        %1668 = vmatpush1.msra.mxu0 0.0
        %1669 = vmatprep.subr.mxu0 0.0
        %1670 = vmatpush1.msra.mxu0 0.0
        %1671 = vmatprep.subr.mxu0 0.0
        %1672 = vmatpush1.msra.mxu0 0.0
        %1673 = vmatprep.subr.mxu0 0.0
        %1674 = vmatpush1.msra.mxu0 0.0
        %1675 = vmatprep.subr.mxu0 0.0
        %1676 = vmatpush1.msra.mxu0 0.0
        %1677 = vmatprep.subr.mxu0 0.0
        %1678 = vmatpush1.msra.mxu0 0.0
        %1679 = vmatprep.subr.mxu0 0.0
        %1680 = vmatpush1.msra.mxu0 0.0
        %1681 = vmatprep.subr.mxu0 0.0
        %1682 = vmatpush1.msra.mxu0 0.0
        %1683 = vmatprep.subr.mxu0 0.0
        %1684 = vmatpush1.msra.mxu0 0.0
        %1685 = vmatprep.subr.mxu0 0.0
        %1686 = vmatpush1.msra.mxu0 0.0
        %1687 = vmatprep.subr.mxu0 0.0
        %1688 = vmatpush1.msra.mxu0 0.0
        %1689 = vmatprep.subr.mxu0 0.0
        %1690 = vmatpush1.msra.mxu0 0.0
        %1691 = vmatprep.subr.mxu0 0.0
        %1692 = vmatpush1.msra.mxu0 0.0
        %1693 = vmatprep.subr.mxu0 0.0
        %1694 = vmatpush1.msra.mxu0 0.0
        %1695 = vmatprep.subr.mxu0 0.0
        %1696 = vmatpush1.msra.mxu0 0.0
        %1697 = vmatprep.subr.mxu0 0.0
        %1698 = vmatpush1.msra.mxu0 0.0
        %1699 = vmatprep.subr.mxu0 0.0
        %1700 = vmatpush1.msra.mxu0 0.0
        %1701 = vmatprep.subr.mxu0 0.0
        %1702 = vmatpush1.msra.mxu0 0.0
        %1703 = vmatprep.subr.mxu0 0.0
        %1704 = vmatpush1.msra.mxu0 0.0
        %1705 = vmatprep.subr.mxu0 0.0
        %1706 = vmatpush1.msra.mxu0 0.0
        %1707 = vmatprep.subr.mxu0 0.0
        %1708 = vmatpush1.msra.mxu0 0.0
        %1709 = vmatprep.subr.mxu0 0.0
        %1710 = vmatpush1.msra.mxu0 0.0
        %1711 = vmatprep.subr.mxu0 0.0
        %1712 = vmatpush1.msra.mxu0 0.0
        %1713 = vmatprep.subr.mxu0 0.0
        %1714 = vmatpush1.msra.mxu0 0.0
        %1715 = vmatprep.mubr.f32.mxu0 0.0
        %1716 = vmatmul.mubr.f32.gmra.mrb[0].mxu0 %v1552
        %v1717 = vpop.f32.mrb[0].mxu0
        %v1718 = vadd.f32 %v1548, %v1717
        %v1719 = vpop.f32.mrb[0].mxu0
        %1720 = vmatprep.mubr.f32.mxu0 0.0
        %1721 = vmatmul.mubr.f32.gmra.mrb[0].mxu0 %v1555
        %v1722 = vpop.f32.mrb[0].mxu0
        %v1723 = vadd.f32 %v1548, %v1722
        %v1724 = vpop.f32.mrb[0].mxu0
        %1725 = vmatprep.mubr.f32.mxu0 0.0
        %1726 = vmatmul.mubr.f32.gmra.mrb[0].mxu0 %v1558
        %v1727 = vpop.f32.mrb[0].mxu0
        %v1728 = vadd.f32 %v1548, %v1727
        %v1729 = vpop.f32.mrb[0].mxu0
        %1730 = vmatprep.mubr.f32.mxu0 0.0
        %1731 = vmatmul.mubr.f32.gmra.mrb[0].mxu0 %v1561
        %v1732 = vpop.f32.mrb[0].mxu0
        %v1733 = vadd.f32 %v1548, %v1732
        %v1734 = vpop.f32.mrb[0].mxu0
        %1735 = vmatprep.mubr.f32.mxu0 0.0
        %1736 = vmatmul.mubr.f32.gmra.mrb[0].mxu0 %v1564
        %v1737 = vpop.f32.mrb[0].mxu0
        %v1738 = vadd.f32 %v1548, %v1737
        %v1739 = vpop.f32.mrb[0].mxu0
        %1740 = vmatprep.mubr.f32.mxu0 0.0
        %1741 = vmatmul.mubr.f32.gmra.mrb[0].mxu0 %v1567
        %v1742 = vpop.f32.mrb[0].mxu0
        %v1743 = vadd.f32 %v1548, %v1742
        %v1744 = vpop.f32.mrb[0].mxu0
        %1745 = vmatprep.mubr.f32.mxu0 0.0
        %1746 = vmatmul.mubr.f32.gmra.mrb[0].mxu0 %v1570
        %v1747 = vpop.f32.mrb[0].mxu0
        %v1748 = vadd.f32 %v1548, %v1747
        %v1749 = vpop.f32.mrb[0].mxu0
        %1750 = vmatprep.mubr.f32.mxu0 0.0
        %1751 = vmatmul.mubr.f32.gmra.mrb[0].mxu0 %v1573
        %v1752 = vpop.f32.mrb[0].mxu0
        %v1753 = vadd.f32 %v1548, %v1752
        %v1754 = vpop.f32.mrb[0].mxu0
        %1755 = vmatprep.mubr.f32.mxu0 0.0
        %1756 = vmatmul.mubr.f32.gmra.mrb[0].mxu0 %v1576
        %v1757 = vpop.f32.mrb[0].mxu0
        %v1758 = vadd.f32 %v1548, %v1757
        %v1759 = vpop.f32.mrb[0].mxu0
        %1760 = vmatprep.mubr.f32.mxu0 0.0
        %1761 = vmatmul.mubr.f32.gmra.mrb[0].mxu0 %v1579
        %v1762 = vpop.f32.mrb[0].mxu0
        %v1763 = vadd.f32 %v1548, %v1762
        %v1764 = vpop.f32.mrb[0].mxu0
        %1765 = vmatprep.mubr.f32.mxu0 0.0
        %1766 = vmatmul.mubr.f32.gmra.mrb[0].mxu0 %v1582
        %v1767 = vpop.f32.mrb[0].mxu0
        %v1768 = vadd.f32 %v1548, %v1767
        %v1769 = vpop.f32.mrb[0].mxu0
        %1770 = vmatprep.mubr.f32.mxu0 0.0
        %1771 = vmatmul.mubr.f32.gmra.mrb[0].mxu0 %v1585
        %v1772 = vpop.f32.mrb[0].mxu0
        %v1773 = vadd.f32 %v1548, %v1772
        %v1774 = vpop.f32.mrb[0].mxu0
        %1775 = vmatprep.mubr.f32.mxu0 0.0
        %1776 = vmatmul.mubr.f32.gmra.mrb[0].mxu0 %v1588
        %v1777 = vpop.f32.mrb[0].mxu0
        %v1778 = vadd.f32 %v1548, %v1777
        %v1779 = vpop.f32.mrb[0].mxu0
        %1780 = vmatprep.mubr.f32.mxu0 0.0
        %1781 = vmatmul.mubr.f32.gmra.mrb[0].mxu0 %v1591
        %v1782 = vpop.f32.mrb[0].mxu0
        %v1783 = vadd.f32 %v1548, %v1782
        %v1784 = vpop.f32.mrb[0].mxu0
        %1785 = vmatprep.mubr.f32.mxu0 0.0
        %1786 = vmatmul.mubr.f32.gmra.mrb[0].mxu0 %v1594
        %v1787 = vpop.f32.mrb[0].mxu0
        %v1788 = vadd.f32 %v1548, %v1787
        %v1789 = vpop.f32.mrb[0].mxu0
        %1790 = vmatprep.mubr.f32.mxu0 0.0
        %1791 = vmatmul.mubr.f32.gmra.mrb[0].mxu0 %v1597
        %v1792 = vpop.f32.mrb[0].mxu0
        %v1793 = vadd.f32 %v1548, %v1792
        %v1794 = vpop.f32.mrb[0].mxu0
        %1795 = vmatprep.mubr.f32.mxu0 0.0
        %1796 = vmatmul.mubr.f32.gmra.mrb[0].mxu0 %v1600
        %v1797 = vpop.f32.mrb[0].mxu0
        %v1798 = vadd.f32 %v1548, %v1797
        %v1799 = vpop.f32.mrb[0].mxu0
        %1800 = vmatprep.mubr.f32.mxu0 0.0
        %1801 = vmatmul.mubr.f32.gmra.mrb[0].mxu0 %v1603
        %v1802 = vpop.f32.mrb[0].mxu0
        %v1803 = vadd.f32 %v1548, %v1802
        %v1804 = vpop.f32.mrb[0].mxu0
        %1805 = vmatprep.mubr.f32.mxu0 0.0
        %1806 = vmatmul.mubr.f32.gmra.mrb[0].mxu0 %v1606
        %v1807 = vpop.f32.mrb[0].mxu0
        %v1808 = vadd.f32 %v1548, %v1807
        %v1809 = vpop.f32.mrb[0].mxu0
        %1810 = vmatprep.mubr.f32.mxu0 0.0
        %1811 = vmatmul.mubr.f32.gmra.mrb[0].mxu0 %v1609
        %v1812 = vpop.f32.mrb[0].mxu0
        %v1813 = vadd.f32 %v1548, %v1812
        %v1814 = vpop.f32.mrb[0].mxu0
        %1815 = vmatprep.mubr.f32.mxu0 0.0
        %1816 = vmatmul.mubr.f32.gmra.mrb[0].mxu0 %v1612
        %v1817 = vpop.f32.mrb[0].mxu0
        %v1818 = vadd.f32 %v1548, %v1817
        %v1819 = vpop.f32.mrb[0].mxu0
        %1820 = vmatprep.mubr.f32.mxu0 0.0
        %1821 = vmatmul.mubr.f32.gmra.mrb[0].mxu0 %v1615
        %v1822 = vpop.f32.mrb[0].mxu0
        %v1823 = vadd.f32 %v1548, %v1822
        %v1824 = vpop.f32.mrb[0].mxu0
        %1825 = vmatprep.mubr.f32.mxu0 0.0
        %1826 = vmatmul.mubr.f32.gmra.mrb[0].mxu0 %v1618
        %v1827 = vpop.f32.mrb[0].mxu0
        %v1828 = vadd.f32 %v1548, %v1827
        %v1829 = vpop.f32.mrb[0].mxu0
        %1830 = vmatprep.mubr.f32.mxu0 0.0
        %1831 = vmatmul.mubr.f32.gmra.mrb[0].mxu0 %v1621
        %v1832 = vpop.f32.mrb[0].mxu0
        %v1833 = vadd.f32 %v1548, %v1832
        %v1834 = vpop.f32.mrb[0].mxu0
        %1835 = vmatprep.mubr.f32.mxu0 0.0
        %1836 = vmatmul.mubr.f32.gmra.mrb[0].mxu0 %v1624
        %v1837 = vpop.f32.mrb[0].mxu0
        %v1838 = vadd.f32 %v1548, %v1837
        %v1839 = vpop.f32.mrb[0].mxu0
        %1840 = vmatprep.mubr.f32.mxu0 0.0
        %1841 = vmatmul.mubr.f32.gmra.mrb[0].mxu0 %v1627
        %v1842 = vpop.f32.mrb[0].mxu0
        %v1843 = vadd.f32 %v1548, %v1842
        %v1844 = vpop.f32.mrb[0].mxu0
        %1845 = vmatprep.mubr.f32.mxu0 0.0
        %1846 = vmatmul.mubr.f32.gmra.mrb[0].mxu0 %v1630
        %v1847 = vpop.f32.mrb[0].mxu0
        %v1848 = vadd.f32 %v1548, %v1847
        %v1849 = vpop.f32.mrb[0].mxu0
        %1850 = vmatprep.mubr.f32.mxu0 0.0
        %1851 = vmatmul.mubr.f32.gmra.mrb[0].mxu0 %v1633
        %v1852 = vpop.f32.mrb[0].mxu0
        %v1853 = vadd.f32 %v1548, %v1852
        %v1854 = vpop.f32.mrb[0].mxu0
        %1855 = vmatprep.mubr.f32.mxu0 0.0
        %1856 = vmatmul.mubr.f32.gmra.mrb[0].mxu0 %v1636
        %v1857 = vpop.f32.mrb[0].mxu0
        %v1858 = vadd.f32 %v1548, %v1857
        %v1859 = vpop.f32.mrb[0].mxu0
        %1860 = vmatprep.mubr.f32.mxu0 0.0
        %1861 = vmatmul.mubr.f32.gmra.mrb[0].mxu0 %v1639
        %v1862 = vpop.f32.mrb[0].mxu0
        %v1863 = vadd.f32 %v1548, %v1862
        %v1864 = vpop.f32.mrb[0].mxu0
        %1865 = vmatprep.mubr.f32.mxu0 0.0
        %1866 = vmatmul.mubr.f32.gmra.mrb[0].mxu0 %v1642
        %v1867 = vpop.f32.mrb[0].mxu0
        %v1868 = vadd.f32 %v1548, %v1867
        %v1869 = vpop.f32.mrb[0].mxu0
        %1870 = vmatprep.mubr.f32.mxu0 0.0
        %1871 = vmatmul.mubr.f32.gmra.mrb[0].mxu0 %v1645
        %v1872 = vpop.f32.mrb[0].mxu0
        %v1873 = vadd.f32 %v1548, %v1872
        %v1874 = vpop.f32.mrb[0].mxu0
        %1875 = vdwg.mxu0
        %v1876 = vmax.f32 %v1718, 0.0
        %v1877 = vmax.f32 %v1723, 0.0
        %v1878 = vmax.f32 %v1728, 0.0
        %v1879 = vmax.f32 %v1733, 0.0
        %v1880 = vmax.f32 %v1738, 0.0
        %v1881 = vmax.f32 %v1743, 0.0
        %v1882 = vmax.f32 %v1748, 0.0
        %v1883 = vmax.f32 %v1753, 0.0
        %v1884 = vmax.f32 %v1758, 0.0
        %v1885 = vmax.f32 %v1763, 0.0
        %v1886 = vmax.f32 %v1768, 0.0
        %v1887 = vmax.f32 %v1773, 0.0
        %v1888 = vmax.f32 %v1778, 0.0
        %v1889 = vmax.f32 %v1783, 0.0
        %v1890 = vmax.f32 %v1788, 0.0
        %v1891 = vmax.f32 %v1793, 0.0
        %v1892 = vmax.f32 %v1798, 0.0
        %v1893 = vmax.f32 %v1803, 0.0
        %v1894 = vmax.f32 %v1808, 0.0
        %v1895 = vmax.f32 %v1813, 0.0
        %v1896 = vmax.f32 %v1818, 0.0
        %v1897 = vmax.f32 %v1823, 0.0
        %v1898 = vmax.f32 %v1828, 0.0
        %v1899 = vmax.f32 %v1833, 0.0
        %v1900 = vmax.f32 %v1838, 0.0
        %v1901 = vmax.f32 %v1843, 0.0
        %v1902 = vmax.f32 %v1848, 0.0
        %v1903 = vmax.f32 %v1853, 0.0
        %v1904 = vmax.f32 %v1858, 0.0
        %v1905 = vmax.f32 %v1863, 0.0
        %v1906 = vmax.f32 %v1868, 0.0
        %v1907 = vmax.f32 %v1873, 0.0
        %1908 = vst.msk [vmem:[%s215] sm:$0xff] %vm1307, %v1876
        %1909 = vst.msk [vmem:[%s215 + $0x8] sm:$0xff] %vm1307, %v1877
        %1910 = vst.msk [vmem:[%s215 + $0x10] sm:$0xff] %vm1307, %v1878
        %1911 = vst.msk [vmem:[%s215 + $0x18] sm:$0xff] %vm1307, %v1879
        %1912 = vst.msk [vmem:[%s215 + $0x20] sm:$0xff] %vm1307, %v1880
        %1913 = vst.msk [vmem:[%s215 + $0x28] sm:$0xff] %vm1307, %v1881
        %1914 = vst.msk [vmem:[%s215 + $0x30] sm:$0xff] %vm1307, %v1882
        %1915 = vst.msk [vmem:[%s215 + $0x38] sm:$0xff] %vm1307, %v1883
        %1916 = vst.msk [vmem:[%s215 + $0x40] sm:$0xff] %vm1307, %v1884
        %1917 = vst.msk [vmem:[%s215 + $0x48] sm:$0xff] %vm1307, %v1885
        %1918 = vst.msk [vmem:[%s215 + $0x50] sm:$0xff] %vm1307, %v1886
        %1919 = vst.msk [vmem:[%s215 + $0x58] sm:$0xff] %vm1307, %v1887
        %1920 = vst.msk [vmem:[%s215 + $0x60] sm:$0xff] %vm1307, %v1888
        %1921 = vst.msk [vmem:[%s215 + $0x68] sm:$0xff] %vm1307, %v1889
        %1922 = vst.msk [vmem:[%s215 + $0x70] sm:$0xff] %vm1307, %v1890
        %1923 = vst.msk [vmem:[%s215 + $0x78] sm:$0xff] %vm1307, %v1891
        %1924 = vst.msk [vmem:[%s215 + $0x80] sm:$0xff] %vm1307, %v1892
        %1925 = vst.msk [vmem:[%s215 + $0x88] sm:$0xff] %vm1307, %v1893
        %1926 = vst.msk [vmem:[%s215 + $0x90] sm:$0xff] %vm1307, %v1894
        %1927 = vst.msk [vmem:[%s215 + $0x98] sm:$0xff] %vm1307, %v1895
        %1928 = vst.msk [vmem:[%s215 + $0xa0] sm:$0xff] %vm1307, %v1896
        %1929 = vst.msk [vmem:[%s215 + $0xa8] sm:$0xff] %vm1307, %v1897
        %1930 = vst.msk [vmem:[%s215 + $0xb0] sm:$0xff] %vm1307, %v1898
        %1931 = vst.msk [vmem:[%s215 + $0xb8] sm:$0xff] %vm1307, %v1899
        %1932 = vst.msk [vmem:[%s215 + $0xc0] sm:$0xff] %vm1307, %v1900
        %1933 = vst.msk [vmem:[%s215 + $0xc8] sm:$0xff] %vm1307, %v1901
        %1934 = vst.msk [vmem:[%s215 + $0xd0] sm:$0xff] %vm1307, %v1902
        %1935 = vst.msk [vmem:[%s215 + $0xd8] sm:$0xff] %vm1307, %v1903
        %1936 = vst.msk [vmem:[%s215 + $0xe0] sm:$0xff] %vm1307, %v1904
        %1937 = vst.msk [vmem:[%s215 + $0xe8] sm:$0xff] %vm1307, %v1905
        %1938 = vst.msk [vmem:[%s215 + $0xf0] sm:$0xff] %vm1307, %v1906
        %1939 = vst.msk [vmem:[%s215 + $0xf8] sm:$0xff] %vm1307, %v1907
        %s1940 = sand.u32 %s97, 1
        %s1941 = scalar_lea.sflag [#allocation4], %s1940
        %s1942 = sand.u32 %s97, 1
        %s1943 = smul.addr %s1942, 256
        %s1944 = scalar_lea.vmem [#allocation8], %s1943
        // Predicated region
        $region45: #{inception_forward.4} parent=31 // pred_check
          %p1945 = pneg %p107
        $region46: #{inception_forward.4} parent=31 // pred_check_branch
          %1947 = sbr.rel (%p1945) target = $region48
        $region47: #{inception_forward.4} parent=31 // pred_region
          %s1949 = ssub.s32 4096, 4096
          %1950 = vsyncadd %s1941, %s1949
          %s1951 = smul.addr %s21, 32
          %s1952 = smul.addr %s1951, 128
          %s1953 = scalar_lea.hbm %s3, %s1952
          %s1954 = sshll.u32 %s1944, 4
          %s1955 = int_to_ptr.vmem [resolvable:$true] %s1954
          %1960 = dma.vmem_to_hbm [thread:$0]  %s1955, 4096, %s1953, %s1941, 128, 128, 8
        $region48: #{inception_forward.4} parent=31 // pred_fallthru
          _
      $region32: #{inception_forward.4} parent=5 // pred_fallthru
        _
      %p1961 = scmp.le.s32.totalorder 2, %s16
      // Predicated region
      $region49: #{inception_forward.4} parent=5 // pred_check
        %p1962 = pneg %p1961
      $region50: #{inception_forward.4} parent=5 // pred_check_branch
        %1964 = sbr.rel (%p1962) target = $region52
      $region51: #{inception_forward.4} parent=5 // pred_region
        %s1965 = ssub.s32 %s16, 2
        // Predicated region
        $region53: #{inception_forward.4} parent=51 // pred_check
          %p1966 = pneg %p113
        $region54: #{inception_forward.4} parent=51 // pred_check_branch
          %1968 = sbr.rel (%p1966) target = $region56
        $region55: #{inception_forward.4} parent=51 // pred_region
          %s1969 = sand.u32 %s98, 1
          %s1970 = scalar_lea.sflag [#allocation4], %s1969
          %s1971 = sand.u32 %s98, 1
          %s1972 = smul.addr %s1971, 256
          %s1973 = scalar_lea.vmem [#allocation8], %s1972
          %1974 = dma.done %s1970, 4096
        $region56: #{inception_forward.4} parent=51 // pred_fallthru
          _
      $region52: #{inception_forward.4} parent=5 // pred_fallthru
        _
    $region6: #{inception_forward.4} parent=1 // loop_footer
      %s20 = sadd.s32 1, %s16
    $region7: #{inception_forward.4} parent=1 // loop_footer_branch
      %15 = sbr.rel target = $region3
    $region8: #{inception_forward.4} parent=1 // loop_exit
      _
    %1975 = vsyncpa [#allocation3], 1
    %s1976 = scalar_lea.sflag [#allocation3], 1
    %1977 = vsyncpa %s1976, 1
    %1978 = vsyncpa [#allocation6], 1
    %1979 = vsyncpa [#allocation4], 1
    %s1980 = scalar_lea.sflag [#allocation4], 1
    %1981 = vsyncpa %s1980, 1

// kernel: inception_forward.5
$region0: #{inception_forward.5}
  #allocation0 [shape = 'u32[]', space=smem, size = 0x4, offset = 0x4, fixed_abs, tag = 'smem constant byte address 0x4 - core index']
  #allocation1 [shape = 'u32[144,128]{1,0:T(1,128)}', space=vmem, size = 0x12000, scoped, tag = 'internal scratch']
  %s0 = inlined_call_operand.hbm [shape: f32[2,18,18,4], index: 0, kind: input, shape index: {}]
  %s1 = inlined_call_operand.hbm [shape: f32[2,18,18,4], index: 1, kind: input, shape index: {}]
  %s2 = inlined_call_operand.hbm [shape: f32[2,18,18,8], index: 2, kind: input, shape index: {}]
  %s3 = inlined_call_operand.hbm [shape: f32[4,8], index: 3, kind: input, shape index: {}]
  %s4 = inlined_call_operand.hbm [shape: f32[36,8], index: 4, kind: input, shape index: {}]
  %s5 = inlined_call_operand.hbm [shape: f32[72,8], index: 5, kind: input, shape index: {}]
  %s6 = inlined_call_operand.hbm [shape: f32[4,8], index: 6, kind: input, shape index: {}]
  %s7 = inlined_call_operand.hbm [shape: f32[1,32], index: 7, kind: input, shape index: {}]
  %s8 = inlined_call_operand.hbm [shape: f32[512,32], index: 8, kind: output, shape index: {}]
  %s9 = sld [smem:[#allocation0]]
  $region97: #{inception_forward.5} parent=0
    _
  %s11 = ssub.s32 1, %s9
  %s12 = scalar_select 0, %s11, %s9
  $region1: #{inception_forward.5} parent=0
    #allocation2 [shape = 'u8[442368]{0}', space=vmem, size = 0x6c000, scoped, tag = 'input window, operand 0']
    #allocation3 [shape = 's32[2]{0}', space=sflag, size = 0x8, scoped, tag = 'scoped memory for inception_forward.5']
    #allocation4 [shape = 's32[2]{0}', space=sflag, size = 0x8, scoped, tag = 'scoped memory for inception_forward.5']
    #allocation5 [shape = 'u8[442368]{0}', space=vmem, size = 0x6c000, scoped, tag = 'input window, operand 1']
    #allocation6 [shape = 's32[2]{0}', space=sflag, size = 0x8, scoped, tag = 'scoped memory for inception_forward.5']
    #allocation7 [shape = 'u8[442368]{0}', space=vmem, size = 0x6c000, scoped, tag = 'input window, operand 2']
    #allocation8 [shape = 'u8[2048]{0}', space=vmem, size = 0x800, scoped, tag = 'input window, operand 3, single buffered']
    #allocation9 [shape = 's32[1]{0}', space=sflag, size = 0x4, scoped, tag = 'scoped memory for inception_forward.5']
    #allocation10 [shape = 'u8[20480]{0}', space=vmem, size = 0x5000, scoped, tag = 'input window, operand 4, single buffered']
    #allocation11 [shape = 'u8[36864]{0}', space=vmem, size = 0x9000, scoped, tag = 'input window, operand 5, single buffered']
    #allocation12 [shape = 's32[1]{0}', space=sflag, size = 0x4, scoped, tag = 'scoped memory for inception_forward.5']
    #allocation13 [shape = 'u8[2048]{0}', space=vmem, size = 0x800, scoped, tag = 'input window, operand 6, single buffered']
    #allocation14 [shape = 'u8[512]{0}', space=vmem, size = 0x400, scoped, tag = 'input window, operand 7, single buffered']
    #allocation15 [shape = 's32[1]{0}', space=sflag, size = 0x4, scoped, tag = 'scoped memory for inception_forward.5']
    #allocation16 [shape = 'u8[262144]{0}', space=vmem, size = 0x40000, scoped, tag = 'output window, operand 0']
    %13 = vsyncpa [#allocation3], 0
    %s14 = scalar_lea.sflag [#allocation3], 1
    %15 = vsyncpa %s14, 0
    %16 = vsyncpa [#allocation6], 0
    %s17 = scalar_lea.sflag [#allocation6], 1
    %18 = vsyncpa %s17, 0
    %19 = vsyncpa [#allocation9], 0
    %20 = vsyncpa [#allocation12], 0
    %21 = vsyncpa [#allocation15], 0
    %22 = vsyncpa [#allocation4], 0
    %s23 = scalar_lea.sflag [#allocation4], 1
    %24 = vsyncpa %s23, 0
    loop: start=0, step=1, limit=4
    $region2: #{inception_forward.5} parent=1 // loop_pre_header
      _
    $region3: #{inception_forward.5} parent=1 // loop_header
      %s26 = sphi 0, %s30
      %p27 = scmp.ge.s32.totalorder %s26, 4
      %s36 = sphi 0, %s38
      %s39 = sphi 0, %s36
      %s40 = sphi 0, %s39
      %s56 = sphi 0, %s40
      %s62 = sphi 0, %s64
      %s65 = sphi 0, %s62
      %s66 = sphi 0, %s65
      %s82 = sphi 0, %s66
      %s88 = sphi 0, %s90
      %s91 = sphi 0, %s88
      %s92 = sphi 0, %s91
      %s108 = sphi 0, %s92
      %s112 = sphi 0, %s112
      %s114 = sphi 0, %s112
      %s115 = sphi 0, %s114
      %s129 = sphi 0, %s115
      %s133 = sphi 0, %s133
      %s135 = sphi 0, %s133
      %s136 = sphi 0, %s135
      %s150 = sphi 0, %s136
      %s154 = sphi 0, %s154
      %s156 = sphi 0, %s154
      %s157 = sphi 0, %s156
      %s171 = sphi 0, %s157
      %s175 = sphi 0, %s175
      %s177 = sphi 0, %s175
      %s178 = sphi 0, %s177
      %s192 = sphi 0, %s178
      %s196 = sphi 0, %s196
      %s198 = sphi 0, %s196
      %s199 = sphi 0, %s198
      %s213 = sphi 0, %s199
      %s219 = sphi 0, %s221
      %s222 = sphi 0, %s219
      %s223 = sphi 0, %s222
      %s239 = sphi 0, %s223
    $region4: #{inception_forward.5} parent=1 // loop_header_branch
      %29 = sbr.rel (%p27) target = $region8
    $region5: #{inception_forward.5} parent=1 // loop_body
      %s31 = ssub.s32 %s26, 1
      %s32 = ssub.s32 %s26, 2
      %s33 = sadd.s32 %s26, 1
      %s34 = ssub.s32 %s26, %s33
      %p35 = scmp.eq.s32.totalorder %s34, 0
      %s37 = sadd.s32 %s36, 1
      %s38 = scalar_select %p35, %s36, %s37
      %p41 = pneg %p35
      %p42 = scmp.eq.s32.totalorder %s26, 1
      %p43 = por %p41, %p42
      %p44 = scmp.ne.s32.totalorder %s36, %s39
      %p45 = scmp.eq.s32.totalorder %s26, 0
      %p46 = por %p44, %p45
      %p47 = scmp.ne.s32.totalorder %s36, %s39
      %p48 = scmp.eq.s32.totalorder %s31, 1
      %p49 = por %p47, %p48
      %p50 = scmp.ne.s32.totalorder %s39, %s40
      %p51 = scmp.eq.s32.totalorder %s31, 0
      %p52 = por %p50, %p51
      %p53 = scmp.ne.s32.totalorder %s39, %s40
      %p54 = scmp.eq.s32.totalorder %s32, 1
      %p55 = por %p53, %p54
      %p57 = scmp.ne.s32.totalorder %s40, %s56
      %p58 = scmp.eq.s32.totalorder %s32, 0
      %p59 = por %p57, %p58
      %s60 = ssub.s32 %s26, %s33
      %p61 = scmp.eq.s32.totalorder %s60, 0
      %s63 = sadd.s32 %s62, 1
      %s64 = scalar_select %p61, %s62, %s63
      %p67 = pneg %p61
      %p68 = scmp.eq.s32.totalorder %s26, 1
      %p69 = por %p67, %p68
      %p70 = scmp.ne.s32.totalorder %s62, %s65
      %p71 = scmp.eq.s32.totalorder %s26, 0
      %p72 = por %p70, %p71
      %p73 = scmp.ne.s32.totalorder %s62, %s65
      %p74 = scmp.eq.s32.totalorder %s31, 1
      %p75 = por %p73, %p74
      %p76 = scmp.ne.s32.totalorder %s65, %s66
      %p77 = scmp.eq.s32.totalorder %s31, 0
      %p78 = por %p76, %p77
      %p79 = scmp.ne.s32.totalorder %s65, %s66
      %p80 = scmp.eq.s32.totalorder %s32, 1
      %p81 = por %p79, %p80
      %p83 = scmp.ne.s32.totalorder %s66, %s82
      %p84 = scmp.eq.s32.totalorder %s32, 0
      %p85 = por %p83, %p84
      %s86 = ssub.s32 %s26, %s33
      %p87 = scmp.eq.s32.totalorder %s86, 0
      %s89 = sadd.s32 %s88, 1
      %s90 = scalar_select %p87, %s88, %s89
      %p93 = pneg %p87
      %p94 = scmp.eq.s32.totalorder %s26, 1
      %p95 = por %p93, %p94
      %p96 = scmp.ne.s32.totalorder %s88, %s91
      %p97 = scmp.eq.s32.totalorder %s26, 0
      %p98 = por %p96, %p97
      %p99 = scmp.ne.s32.totalorder %s88, %s91
      %p100 = scmp.eq.s32.totalorder %s31, 1
      %p101 = por %p99, %p100
      %p102 = scmp.ne.s32.totalorder %s91, %s92
      %p103 = scmp.eq.s32.totalorder %s31, 0
      %p104 = por %p102, %p103
      %p105 = scmp.ne.s32.totalorder %s91, %s92
      %p106 = scmp.eq.s32.totalorder %s32, 1
      %p107 = por %p105, %p106
      %p109 = scmp.ne.s32.totalorder %s92, %s108
      %p110 = scmp.eq.s32.totalorder %s32, 0
      %p111 = por %p109, %p110
      %s113 = sadd.s32 %s112, 1
      %p116 = scmp.eq.s32.totalorder %s26, 1
      %p117 = scmp.ne.s32.totalorder %s112, %s114
      %p118 = scmp.eq.s32.totalorder %s26, 0
      %p119 = por %p117, %p118
      %p120 = scmp.ne.s32.totalorder %s112, %s114
      %p121 = scmp.eq.s32.totalorder %s31, 1
      %p122 = por %p120, %p121
      %p123 = scmp.ne.s32.totalorder %s114, %s115
      %p124 = scmp.eq.s32.totalorder %s31, 0
      %p125 = por %p123, %p124
      %p126 = scmp.ne.s32.totalorder %s114, %s115
      %p127 = scmp.eq.s32.totalorder %s32, 1
      %p128 = por %p126, %p127
      %p130 = scmp.ne.s32.totalorder %s115, %s129
      %p131 = scmp.eq.s32.totalorder %s32, 0
      %p132 = por %p130, %p131
      %s134 = sadd.s32 %s133, 1
      %p137 = scmp.eq.s32.totalorder %s26, 1
      %p138 = scmp.ne.s32.totalorder %s133, %s135
      %p139 = scmp.eq.s32.totalorder %s26, 0
      %p140 = por %p138, %p139
      %p141 = scmp.ne.s32.totalorder %s133, %s135
      %p142 = scmp.eq.s32.totalorder %s31, 1
      %p143 = por %p141, %p142
      %p144 = scmp.ne.s32.totalorder %s135, %s136
      %p145 = scmp.eq.s32.totalorder %s31, 0
      %p146 = por %p144, %p145
      %p147 = scmp.ne.s32.totalorder %s135, %s136
      %p148 = scmp.eq.s32.totalorder %s32, 1
      %p149 = por %p147, %p148
      %p151 = scmp.ne.s32.totalorder %s136, %s150
      %p152 = scmp.eq.s32.totalorder %s32, 0
      %p153 = por %p151, %p152
      %s155 = sadd.s32 %s154, 1
      %p158 = scmp.eq.s32.totalorder %s26, 1
      %p159 = scmp.ne.s32.totalorder %s154, %s156
      %p160 = scmp.eq.s32.totalorder %s26, 0
      %p161 = por %p159, %p160
      %p162 = scmp.ne.s32.totalorder %s154, %s156
      %p163 = scmp.eq.s32.totalorder %s31, 1
      %p164 = por %p162, %p163
      %p165 = scmp.ne.s32.totalorder %s156, %s157
      %p166 = scmp.eq.s32.totalorder %s31, 0
      %p167 = por %p165, %p166
      %p168 = scmp.ne.s32.totalorder %s156, %s157
      %p169 = scmp.eq.s32.totalorder %s32, 1
      %p170 = por %p168, %p169
      %p172 = scmp.ne.s32.totalorder %s157, %s171
      %p173 = scmp.eq.s32.totalorder %s32, 0
      %p174 = por %p172, %p173
      %s176 = sadd.s32 %s175, 1
      %p179 = scmp.eq.s32.totalorder %s26, 1
      %p180 = scmp.ne.s32.totalorder %s175, %s177
      %p181 = scmp.eq.s32.totalorder %s26, 0
      %p182 = por %p180, %p181
      %p183 = scmp.ne.s32.totalorder %s175, %s177
      %p184 = scmp.eq.s32.totalorder %s31, 1
      %p185 = por %p183, %p184
      %p186 = scmp.ne.s32.totalorder %s177, %s178
      %p187 = scmp.eq.s32.totalorder %s31, 0
      %p188 = por %p186, %p187
      %p189 = scmp.ne.s32.totalorder %s177, %s178
      %p190 = scmp.eq.s32.totalorder %s32, 1
      %p191 = por %p189, %p190
      %p193 = scmp.ne.s32.totalorder %s178, %s192
      %p194 = scmp.eq.s32.totalorder %s32, 0
      %p195 = por %p193, %p194
      %s197 = sadd.s32 %s196, 1
      %p200 = scmp.eq.s32.totalorder %s26, 1
      %p201 = scmp.ne.s32.totalorder %s196, %s198
      %p202 = scmp.eq.s32.totalorder %s26, 0
      %p203 = por %p201, %p202
      %p204 = scmp.ne.s32.totalorder %s196, %s198
      %p205 = scmp.eq.s32.totalorder %s31, 1
      %p206 = por %p204, %p205
      %p207 = scmp.ne.s32.totalorder %s198, %s199
      %p208 = scmp.eq.s32.totalorder %s31, 0
      %p209 = por %p207, %p208
      %p210 = scmp.ne.s32.totalorder %s198, %s199
      %p211 = scmp.eq.s32.totalorder %s32, 1
      %p212 = por %p210, %p211
      %p214 = scmp.ne.s32.totalorder %s199, %s213
      %p215 = scmp.eq.s32.totalorder %s32, 0
      %p216 = por %p214, %p215
      %s217 = ssub.s32 %s26, %s33
      %p218 = scmp.eq.s32.totalorder %s217, 0
      %s220 = sadd.s32 %s219, 1
      %s221 = scalar_select %p218, %s219, %s220
      %p224 = pneg %p218
      %p225 = scmp.eq.s32.totalorder %s26, 1
      %p226 = por %p224, %p225
      %p227 = scmp.ne.s32.totalorder %s219, %s222
      %p228 = scmp.eq.s32.totalorder %s26, 0
      %p229 = por %p227, %p228
      %p230 = scmp.ne.s32.totalorder %s219, %s222
      %p231 = scmp.eq.s32.totalorder %s31, 1
      %p232 = por %p230, %p231
      %p233 = scmp.ne.s32.totalorder %s222, %s223
      %p234 = scmp.eq.s32.totalorder %s31, 0
      %p235 = por %p233, %p234
      %p236 = scmp.ne.s32.totalorder %s222, %s223
      %p237 = scmp.eq.s32.totalorder %s32, 1
      %p238 = por %p236, %p237
      %p240 = scmp.ne.s32.totalorder %s223, %s239
      %p241 = scmp.eq.s32.totalorder %s32, 0
      %p242 = por %p240, %p241
      %p243 = scmp.le.s32.totalorder 1, %s26
      %p244 = scmp.lt.s32.totalorder %s26, 3
      %p245 = pnand %p243, %p244
      %p246 = pneg %p245
      // Predicated region
      $region9: #{inception_forward.5} parent=5 // pred_check
        _
      $region10: #{inception_forward.5} parent=5 // pred_check_branch
        %248 = sbr.rel (%p245) target = $region12
      $region11: #{inception_forward.5} parent=5 // pred_region
        %s249 = ssub.s32 %s26, 1
        // Predicated region
        $region13: #{inception_forward.5} parent=11 // pred_check
          %p250 = pneg %p125
        $region14: #{inception_forward.5} parent=11 // pred_check_branch
          %252 = sbr.rel (%p250) target = $region16
        $region15: #{inception_forward.5} parent=11 // pred_region
          %s254 = ssub.s32 64, 64
          %255 = vsyncadd [#allocation9], %s254
          %s257 = sshll.u32 [#allocation8], 4
          %s258 = int_to_ptr.vmem [resolvable:$true] %s257
          %260 = dma.hbm_to_vmem [thread:$0]  %s3, 64, %s258, [#allocation9]
        $region16: #{inception_forward.5} parent=11 // pred_fallthru
          _
        // Predicated region
        $region17: #{inception_forward.5} parent=11 // pred_check
          %p261 = pneg %p146
        $region18: #{inception_forward.5} parent=11 // pred_check_branch
          %263 = sbr.rel (%p261) target = $region20
        $region19: #{inception_forward.5} parent=11 // pred_region
          %s265 = ssub.s32 640, 640
          %266 = vsyncadd [#allocation9], %s265
          %s267 = sshll.u32 [#allocation10], 4
          %s268 = int_to_ptr.vmem [resolvable:$true] %s267
          %273 = dma.hbm_to_vmem [thread:$0]  %s4, 640, %s268, [#allocation9], 128, 128, 8
        $region20: #{inception_forward.5} parent=11 // pred_fallthru
          _
        // Predicated region
        $region21: #{inception_forward.5} parent=11 // pred_check
          %p274 = pneg %p167
        $region22: #{inception_forward.5} parent=11 // pred_check_branch
          %276 = sbr.rel (%p274) target = $region24
        $region23: #{inception_forward.5} parent=11 // pred_region
          %s278 = ssub.s32 1152, 1152
          %279 = vsyncadd [#allocation12], %s278
          %s280 = sshll.u32 [#allocation11], 4
          %s281 = int_to_ptr.vmem [resolvable:$true] %s280
          %286 = dma.hbm_to_vmem [thread:$0]  %s5, 1152, %s281, [#allocation12], 128, 128, 8
        $region24: #{inception_forward.5} parent=11 // pred_fallthru
          _
        // Predicated region
        $region25: #{inception_forward.5} parent=11 // pred_check
          %p287 = pneg %p188
        $region26: #{inception_forward.5} parent=11 // pred_check_branch
          %289 = sbr.rel (%p287) target = $region28
        $region27: #{inception_forward.5} parent=11 // pred_region
          %s291 = ssub.s32 64, 64
          %292 = vsyncadd [#allocation12], %s291
          %s294 = sshll.u32 [#allocation13], 4
          %s295 = int_to_ptr.vmem [resolvable:$true] %s294
          %297 = dma.hbm_to_vmem [thread:$0]  %s6, 64, %s295, [#allocation12]
        $region28: #{inception_forward.5} parent=11 // pred_fallthru
          _
        // Predicated region
        $region29: #{inception_forward.5} parent=11 // pred_check
          %p298 = pneg %p209
        $region30: #{inception_forward.5} parent=11 // pred_check_branch
          %300 = sbr.rel (%p298) target = $region32
        $region31: #{inception_forward.5} parent=11 // pred_region
          %s302 = ssub.s32 16, 16
          %303 = vsyncadd [#allocation15], %s302
          %s305 = sshll.u32 [#allocation14], 4
          %s306 = int_to_ptr.vmem [resolvable:$true] %s305
          %308 = dma.hbm_to_vmem [thread:$0]  %s7, 16, %s306, [#allocation15]
        $region32: #{inception_forward.5} parent=11 // pred_fallthru
          _
      $region12: #{inception_forward.5} parent=5 // pred_fallthru
        _
      %p309 = scmp.lt.s32.totalorder %s26, 2
      // Predicated region
      $region33: #{inception_forward.5} parent=5 // pred_check
        %p310 = pneg %p309
      $region34: #{inception_forward.5} parent=5 // pred_check_branch
        %312 = sbr.rel (%p310) target = $region36
      $region35: #{inception_forward.5} parent=5 // pred_region
        // Predicated region
        $region37: #{inception_forward.5} parent=35 // pred_check
          %p313 = pneg %p46
        $region38: #{inception_forward.5} parent=35 // pred_check_branch
          %315 = sbr.rel (%p313) target = $region40
        $region39: #{inception_forward.5} parent=35 // pred_region
          %s316 = sand.u32 %s36, 1
          %s317 = scalar_lea.sflag [#allocation3], %s316
          %s318 = sand.u32 %s36, 1
          %s319 = smul.addr %s318, 432
          %s320 = scalar_lea.vmem [#allocation2], %s319
          %s322 = ssub.s32 6912, 6912
          %323 = vsyncadd %s317, %s322
          %s324 = smul.addr %s26, 54
          %s325 = smul.addr %s324, 128
          %s326 = scalar_lea.hbm %s0, %s325
          %s327 = sshll.u32 %s320, 4
          %s328 = int_to_ptr.vmem [resolvable:$true] %s327
          %333 = dma.hbm_to_vmem [thread:$0]  %s326, 6912, %s328, %s317, 128, 128, 8
        $region40: #{inception_forward.5} parent=35 // pred_fallthru
          _
        // Predicated region
        $region41: #{inception_forward.5} parent=35 // pred_check
          %p334 = pneg %p72
        $region42: #{inception_forward.5} parent=35 // pred_check_branch
          %336 = sbr.rel (%p334) target = $region44
        $region43: #{inception_forward.5} parent=35 // pred_region
          %s337 = sand.u32 %s26, 1
          %s338 = scalar_lea.sflag [#allocation6], %s337
          %s339 = sand.u32 %s62, 1
          %s340 = smul.addr %s339, 432
          %s341 = scalar_lea.vmem [#allocation5], %s340
          %s343 = ssub.s32 6912, 6912
          %344 = vsyncadd %s338, %s343
          %s345 = smul.addr %s26, 54
          %s346 = smul.addr %s345, 128
          %s347 = scalar_lea.hbm %s1, %s346
          %s348 = sshll.u32 %s341, 4
          %s349 = int_to_ptr.vmem [resolvable:$true] %s348
          %354 = dma.hbm_to_vmem [thread:$0]  %s347, 6912, %s349, %s338, 128, 128, 8
        $region44: #{inception_forward.5} parent=35 // pred_fallthru
          _
        // Predicated region
        $region45: #{inception_forward.5} parent=35 // pred_check
          %p355 = pneg %p98
        $region46: #{inception_forward.5} parent=35 // pred_check_branch
          %357 = sbr.rel (%p355) target = $region48
        $region47: #{inception_forward.5} parent=35 // pred_region
          %s358 = sand.u32 %s26, 1
          %s359 = scalar_lea.sflag [#allocation6], %s358
          %s360 = sand.u32 %s88, 1
          %s361 = smul.addr %s360, 432
          %s362 = scalar_lea.vmem [#allocation7], %s361
          %s364 = ssub.s32 6912, 6912
          %365 = vsyncadd %s359, %s364
          %s366 = smul.addr %s26, 54
          %s367 = smul.addr %s366, 128
          %s368 = scalar_lea.hbm %s2, %s367
          %s369 = sshll.u32 %s362, 4
          %s370 = int_to_ptr.vmem [resolvable:$true] %s369
          %375 = dma.hbm_to_vmem [thread:$0]  %s368, 6912, %s370, %s359, 128, 128, 8
        $region48: #{inception_forward.5} parent=35 // pred_fallthru
          _
      $region36: #{inception_forward.5} parent=5 // pred_fallthru
        _
      %p376 = scmp.le.s32.totalorder 1, %s26
      %p377 = scmp.lt.s32.totalorder %s26, 3
      %p378 = pnand %p376, %p377
      %p379 = pneg %p378
      // Predicated region
      $region49: #{inception_forward.5} parent=5 // pred_check
        _
      $region50: #{inception_forward.5} parent=5 // pred_check_branch
        %381 = sbr.rel (%p378) target = $region52
      $region51: #{inception_forward.5} parent=5 // pred_region
        %s382 = ssub.s32 %s26, 1
        %s383 = sand.u32 %s39, 1
        %s384 = scalar_lea.sflag [#allocation3], %s383
        %s385 = sand.u32 %s39, 1
        %s386 = smul.addr %s385, 432
        %s387 = scalar_lea.vmem [#allocation2], %s386
        // Predicated region
        $region53: #{inception_forward.5} parent=51 // pred_check
          %p388 = pneg %p52
        $region54: #{inception_forward.5} parent=51 // pred_check_branch
          %390 = sbr.rel (%p388) target = $region56
        $region55: #{inception_forward.5} parent=51 // pred_region
          %391 = dma.done %s384, 6912
        $region56: #{inception_forward.5} parent=51 // pred_fallthru
          _
        %s392 = sand.u32 %s31, 1
        %s393 = scalar_lea.sflag [#allocation6], %s392
        %s394 = sand.u32 %s65, 1
        %s395 = smul.addr %s394, 432
        %s396 = scalar_lea.vmem [#allocation5], %s395
        // Predicated region
        $region57: #{inception_forward.5} parent=51 // pred_check
          %p397 = pneg %p78
        $region58: #{inception_forward.5} parent=51 // pred_check_branch
          %399 = sbr.rel (%p397) target = $region60
        $region59: #{inception_forward.5} parent=51 // pred_region
          %400 = dma.done %s393, 6912
        $region60: #{inception_forward.5} parent=51 // pred_fallthru
          _
        %s401 = sand.u32 %s31, 1
        %s402 = scalar_lea.sflag [#allocation6], %s401
        %s403 = sand.u32 %s91, 1
        %s404 = smul.addr %s403, 432
        %s405 = scalar_lea.vmem [#allocation7], %s404
        // Predicated region
        $region61: #{inception_forward.5} parent=51 // pred_check
          %p406 = pneg %p104
        $region62: #{inception_forward.5} parent=51 // pred_check_branch
          %408 = sbr.rel (%p406) target = $region64
        $region63: #{inception_forward.5} parent=51 // pred_region
          %409 = dma.done %s402, 6912
        $region64: #{inception_forward.5} parent=51 // pred_fallthru
          _
        // Predicated region
        $region65: #{inception_forward.5} parent=51 // pred_check
          %p410 = pneg %p125
        $region66: #{inception_forward.5} parent=51 // pred_check_branch
          %412 = sbr.rel (%p410) target = $region68
        $region67: #{inception_forward.5} parent=51 // pred_region
          %413 = dma.done [#allocation9], 64
        $region68: #{inception_forward.5} parent=51 // pred_fallthru
          _
        // Predicated region
        $region69: #{inception_forward.5} parent=51 // pred_check
          %p414 = pneg %p146
        $region70: #{inception_forward.5} parent=51 // pred_check_branch
          %416 = sbr.rel (%p414) target = $region72
        $region71: #{inception_forward.5} parent=51 // pred_region
          %417 = dma.done [#allocation9], 640
        $region72: #{inception_forward.5} parent=51 // pred_fallthru
          _
        // Predicated region
        $region73: #{inception_forward.5} parent=51 // pred_check
          %p418 = pneg %p167
        $region74: #{inception_forward.5} parent=51 // pred_check_branch
          %420 = sbr.rel (%p418) target = $region76
        $region75: #{inception_forward.5} parent=51 // pred_region
          %421 = dma.done [#allocation12], 1152
        $region76: #{inception_forward.5} parent=51 // pred_fallthru
          _
        // Predicated region
        $region77: #{inception_forward.5} parent=51 // pred_check
          %p422 = pneg %p188
        $region78: #{inception_forward.5} parent=51 // pred_check_branch
          %424 = sbr.rel (%p422) target = $region80
        $region79: #{inception_forward.5} parent=51 // pred_region
          %425 = dma.done [#allocation12], 64
        $region80: #{inception_forward.5} parent=51 // pred_fallthru
          _
        // Predicated region
        $region81: #{inception_forward.5} parent=51 // pred_check
          %p426 = pneg %p209
        $region82: #{inception_forward.5} parent=51 // pred_check_branch
          %428 = sbr.rel (%p426) target = $region84
        $region83: #{inception_forward.5} parent=51 // pred_region
          %429 = dma.done [#allocation15], 16
        $region84: #{inception_forward.5} parent=51 // pred_fallthru
          _
        %s430 = sand.u32 %s39, 1
        %s431 = scalar_lea.sflag [#allocation3], %s430
        %s432 = sand.u32 %s39, 1
        %s433 = smul.addr %s432, 432
        %s434 = scalar_lea.vmem [#allocation2], %s433
        %p435 = pneg %p52
        %p436 = pneg %p49
        %s437 = sand.u32 %s31, 1
        %s438 = scalar_lea.sflag [#allocation6], %s437
        %s439 = sand.u32 %s65, 1
        %s440 = smul.addr %s439, 432
        %s441 = scalar_lea.vmem [#allocation5], %s440
        %p442 = pneg %p78
        %p443 = pneg %p75
        %s444 = sand.u32 %s31, 1
        %s445 = scalar_lea.sflag [#allocation6], %s444
        %s446 = sand.u32 %s91, 1
        %s447 = smul.addr %s446, 432
        %s448 = scalar_lea.vmem [#allocation7], %s447
        %p449 = pneg %p104
        %p450 = pneg %p101
        %p451 = pneg %p125
        %p452 = pneg %p122
        %p453 = pneg %p146
        %p454 = pneg %p143
        %p455 = pneg %p167
        %p456 = pneg %p164
        %p457 = pneg %p188
        %p458 = pneg %p185
        %p459 = pneg %p209
        %p460 = pneg %p206
        %p461 = pneg %p235
        %p462 = pneg %p232
        %s463 = sand.u32 %s222, 1
        %s464 = scalar_lea.sflag [#allocation4], %s463
        %s465 = sand.u32 %s222, 1
        %s466 = smul.addr %s465, 256
        %s467 = scalar_lea.vmem [#allocation16], %s466
        %s468 = smul.u32 32, %s31
        %v469 = vld [vmem:[%s387] sm:$0xff]
        %v470 = vld [vmem:[%s387 + $0x8] sm:$0xff]
        %v471 = vld [vmem:[%s387 + $0x10] sm:$0x3]
        %v472 = vld [vmem:[%s387 + $0x18] sm:$0xff]
        %v473 = vld [vmem:[%s387 + $0x20] sm:$0xff]
        %v474 = vld [vmem:[%s387 + $0x28] sm:$0x3]
        %v475 = vld [vmem:[%s387 + $0x30] sm:$0xff]
        %v476 = vld [vmem:[%s387 + $0x38] sm:$0xff]
        %v477 = vld [vmem:[%s387 + $0x40] sm:$0x3]
        %v478 = vld [vmem:[%s387 + $0x48] sm:$0xff]
        %v479 = vld [vmem:[%s387 + $0x50] sm:$0xff]
        %v480 = vld [vmem:[%s387 + $0x58] sm:$0x3]
        %v481 = vld [vmem:[%s387 + $0x60] sm:$0xff]
        %v482 = vld [vmem:[%s387 + $0x68] sm:$0xff]
        %v483 = vld [vmem:[%s387 + $0x70] sm:$0x3]
        %v484 = vld [vmem:[%s387 + $0x78] sm:$0xff]
        %v485 = vld [vmem:[%s387 + $0x80] sm:$0xff]
        %v486 = vld [vmem:[%s387 + $0x88] sm:$0x3]
        %v487 = vld [vmem:[%s387 + $0x90] sm:$0xff]
        %v488 = vld [vmem:[%s387 + $0x98] sm:$0xff]
        %v489 = vld [vmem:[%s387 + $0xa0] sm:$0x3]
        %v490 = vld [vmem:[%s387 + $0xa8] sm:$0xff]
        %v491 = vld [vmem:[%s387 + $0xb0] sm:$0xff]
        %v492 = vld [vmem:[%s387 + $0xb8] sm:$0x3]
        %v493 = vld [vmem:[%s387 + $0xc0] sm:$0xff]
        %v494 = vld [vmem:[%s387 + $0xc8] sm:$0xff]
        %v495 = vld [vmem:[%s387 + $0xd0] sm:$0x3]
        %v496 = vld [vmem:[%s387 + $0xd8] sm:$0xff]
        %v497 = vld [vmem:[%s387 + $0xe0] sm:$0xff]
        %v498 = vld [vmem:[%s387 + $0xe8] sm:$0x3]
        %v499 = vld [vmem:[%s387 + $0xf0] sm:$0xff]
        %v500 = vld [vmem:[%s387 + $0xf8] sm:$0xff]
        %v501 = vld [vmem:[%s387 + $0x100] sm:$0x3]
        %v502 = vld [vmem:[%s387 + $0x108] sm:$0xff]
        %v503 = vld [vmem:[%s387 + $0x110] sm:$0xff]
        %v504 = vld [vmem:[%s387 + $0x118] sm:$0x3]
        %v505 = vld [vmem:[%s387 + $0x120] sm:$0xff]
        %v506 = vld [vmem:[%s387 + $0x128] sm:$0xff]
        %v507 = vld [vmem:[%s387 + $0x130] sm:$0x3]
        %v508 = vld [vmem:[%s387 + $0x138] sm:$0xff]
        %v509 = vld [vmem:[%s387 + $0x140] sm:$0xff]
        %v510 = vld [vmem:[%s387 + $0x148] sm:$0x3]
        %v511 = vld [vmem:[%s387 + $0x150] sm:$0xff]
        %v512 = vld [vmem:[%s387 + $0x158] sm:$0xff]
        %v513 = vld [vmem:[%s387 + $0x160] sm:$0x3]
        %v514 = vld [vmem:[%s387 + $0x168] sm:$0xff]
        %v515 = vld [vmem:[%s387 + $0x170] sm:$0xff]
        %v516 = vld [vmem:[%s387 + $0x178] sm:$0x3]
        %v517 = vld [vmem:[%s387 + $0x180] sm:$0xff]
        %v518 = vld [vmem:[%s387 + $0x188] sm:$0xff]
        %v519 = vld [vmem:[%s387 + $0x190] sm:$0x3]
        %v520 = vld [vmem:[%s387 + $0x198] sm:$0xff]
        %v521 = vld [vmem:[%s387 + $0x1a0] sm:$0xff]
        %v522 = vld [vmem:[%s387 + $0x1a8] sm:$0x3]
        %vm571 = vcmask 1046528
        %v572 = vrot.slane %v472, 1
        %v573 = vrot.slane %v473, 1
        %v574 = vsel %vm571, %v572, %v573
        %v575 = vrot.slane %v474, 1
        %v576 = vsel %vm571, %v573, %v575
        %v577 = vrot.slane %v475, 1
        %v578 = vrot.slane %v476, 1
        %v579 = vsel %vm571, %v577, %v578
        %v580 = vrot.slane %v477, 1
        %v581 = vsel %vm571, %v578, %v580
        %v582 = vrot.slane %v478, 1
        %v583 = vrot.slane %v479, 1
        %v584 = vsel %vm571, %v582, %v583
        %v585 = vrot.slane %v480, 1
        %v586 = vsel %vm571, %v583, %v585
        %v587 = vrot.slane %v481, 1
        %v588 = vrot.slane %v482, 1
        %v589 = vsel %vm571, %v587, %v588
        %v590 = vrot.slane %v483, 1
        %v591 = vsel %vm571, %v588, %v590
        %v592 = vrot.slane %v484, 1
        %v593 = vrot.slane %v485, 1
        %v594 = vsel %vm571, %v592, %v593
        %v595 = vrot.slane %v486, 1
        %v596 = vsel %vm571, %v593, %v595
        %v597 = vrot.slane %v487, 1
        %v598 = vrot.slane %v488, 1
        %v599 = vsel %vm571, %v597, %v598
        %v600 = vrot.slane %v489, 1
        %v601 = vsel %vm571, %v598, %v600
        %v602 = vrot.slane %v490, 1
        %v603 = vrot.slane %v491, 1
        %v604 = vsel %vm571, %v602, %v603
        %v605 = vrot.slane %v492, 1
        %v606 = vsel %vm571, %v603, %v605
        %v607 = vrot.slane %v493, 1
        %v608 = vrot.slane %v494, 1
        %v609 = vsel %vm571, %v607, %v608
        %v610 = vrot.slane %v495, 1
        %v611 = vsel %vm571, %v608, %v610
        %v612 = vrot.slane %v496, 1
        %v613 = vrot.slane %v497, 1
        %v614 = vsel %vm571, %v612, %v613
        %v615 = vrot.slane %v498, 1
        %v616 = vsel %vm571, %v613, %v615
        %v617 = vrot.slane %v499, 1
        %v618 = vrot.slane %v500, 1
        %v619 = vsel %vm571, %v617, %v618
        %v620 = vrot.slane %v501, 1
        %v621 = vsel %vm571, %v618, %v620
        %v622 = vrot.slane %v502, 1
        %v623 = vrot.slane %v503, 1
        %v624 = vsel %vm571, %v622, %v623
        %v625 = vrot.slane %v504, 1
        %v626 = vsel %vm571, %v623, %v625
        %v627 = vrot.slane %v505, 1
        %v628 = vrot.slane %v506, 1
        %v629 = vsel %vm571, %v627, %v628
        %v630 = vrot.slane %v507, 1
        %v631 = vsel %vm571, %v628, %v630
        %v632 = vrot.slane %v508, 1
        %v633 = vrot.slane %v509, 1
        %v634 = vsel %vm571, %v632, %v633
        %v635 = vrot.slane %v510, 1
        %v636 = vsel %vm571, %v633, %v635
        %v637 = vrot.slane %v511, 1
        %v638 = vrot.slane %v512, 1
        %v639 = vsel %vm571, %v637, %v638
        %v640 = vrot.slane %v513, 1
        %v641 = vsel %vm571, %v638, %v640
        %v642 = vrot.slane %v514, 1
        %v643 = vrot.slane %v515, 1
        %v644 = vsel %vm571, %v642, %v643
        %v645 = vrot.slane %v516, 1
        %v646 = vsel %vm571, %v643, %v645
        %v647 = vrot.slane %v517, 1
        %v648 = vrot.slane %v518, 1
        %v649 = vsel %vm571, %v647, %v648
        %v650 = vrot.slane %v519, 1
        %v651 = vsel %vm571, %v648, %v650
        %v652 = vld [vmem:[#allocation8] sm:$0xf]
        %vm653 = vcmask 31744
        %v654 = vsel %vm653, %v574, 0
        %v656 = vsel %vm653, %v576, 0
        %v658 = vsel %vm653, %v579, 0
        %v660 = vsel %vm653, %v581, 0
        %v662 = vsel %vm653, %v584, 0
        %v664 = vsel %vm653, %v586, 0
        %v666 = vsel %vm653, %v589, 0
        %v668 = vsel %vm653, %v591, 0
        %v670 = vsel %vm653, %v594, 0
        %v672 = vsel %vm653, %v596, 0
        %v674 = vsel %vm653, %v599, 0
        %v676 = vsel %vm653, %v601, 0
        %v678 = vsel %vm653, %v604, 0
        %v680 = vsel %vm653, %v606, 0
        %v682 = vsel %vm653, %v609, 0
        %v684 = vsel %vm653, %v611, 0
        %v686 = vsel %vm653, %v614, 0
        %v688 = vsel %vm653, %v616, 0
        %v690 = vsel %vm653, %v619, 0
        %v692 = vsel %vm653, %v621, 0
        %v694 = vsel %vm653, %v624, 0
        %v696 = vsel %vm653, %v626, 0
        %v698 = vsel %vm653, %v629, 0
        %v700 = vsel %vm653, %v631, 0
        %v702 = vsel %vm653, %v634, 0
        %v704 = vsel %vm653, %v636, 0
        %v706 = vsel %vm653, %v639, 0
        %v708 = vsel %vm653, %v641, 0
        %v710 = vsel %vm653, %v644, 0
        %v712 = vsel %vm653, %v646, 0
        %v714 = vsel %vm653, %v649, 0
        %v716 = vsel %vm653, %v651, 0
        %vm718 = vcmask 1043456
        %v720 = vsel %vm718, %v652, 0
        %722 = vmatprep.subr.mxu0 0.0
        %723 = vmatpush1.msra.mxu0 %v720
        %724 = vmatprep.subr.mxu0 0.0
        %725 = vmatpush1.msra.mxu0 0.0
        %726 = vmatprep.subr.mxu0 0.0
        %727 = vmatpush1.msra.mxu0 0.0
        %728 = vmatprep.subr.mxu0 0.0
        %729 = vmatpush1.msra.mxu0 0.0
        %730 = vmatprep.subr.mxu0 0.0
        %731 = vmatpush1.msra.mxu0 0.0
        %732 = vmatprep.subr.mxu0 0.0
        %733 = vmatpush1.msra.mxu0 0.0
        %734 = vmatprep.subr.mxu0 0.0
        %735 = vmatpush1.msra.mxu0 0.0
        %736 = vmatprep.subr.mxu0 0.0
        %737 = vmatpush1.msra.mxu0 0.0
        %738 = vmatprep.subr.mxu0 0.0
        %739 = vmatpush1.msra.mxu0 0.0
        %740 = vmatprep.subr.mxu0 0.0
        %741 = vmatpush1.msra.mxu0 0.0
        %742 = vmatprep.subr.mxu0 0.0
        %743 = vmatpush1.msra.mxu0 0.0
        %744 = vmatprep.subr.mxu0 0.0
        %745 = vmatpush1.msra.mxu0 0.0
        %746 = vmatprep.subr.mxu0 0.0
        %747 = vmatpush1.msra.mxu0 0.0
        %748 = vmatprep.subr.mxu0 0.0
        %749 = vmatpush1.msra.mxu0 0.0
        %750 = vmatprep.subr.mxu0 0.0
        %751 = vmatpush1.msra.mxu0 0.0
        %752 = vmatprep.subr.mxu0 0.0
        %753 = vmatpush1.msra.mxu0 0.0
        %754 = vmatprep.subr.mxu0 0.0
        %755 = vmatpush1.msra.mxu0 0.0
        %756 = vmatprep.subr.mxu0 0.0
        %757 = vmatpush1.msra.mxu0 0.0
        %758 = vmatprep.subr.mxu0 0.0
        %759 = vmatpush1.msra.mxu0 0.0
        %760 = vmatprep.subr.mxu0 0.0
        %761 = vmatpush1.msra.mxu0 0.0
        %762 = vmatprep.subr.mxu0 0.0
        %763 = vmatpush1.msra.mxu0 0.0
        %764 = vmatprep.subr.mxu0 0.0
        %765 = vmatpush1.msra.mxu0 0.0
        %766 = vmatprep.subr.mxu0 0.0
        %767 = vmatpush1.msra.mxu0 0.0
        %768 = vmatprep.subr.mxu0 0.0
        %769 = vmatpush1.msra.mxu0 0.0
        %770 = vmatprep.subr.mxu0 0.0
        %771 = vmatpush1.msra.mxu0 0.0
        %772 = vmatprep.subr.mxu0 0.0
        %773 = vmatpush1.msra.mxu0 0.0
        %774 = vmatprep.subr.mxu0 0.0
        %775 = vmatpush1.msra.mxu0 0.0
        %776 = vmatprep.subr.mxu0 0.0
        %777 = vmatpush1.msra.mxu0 0.0
        %778 = vmatprep.subr.mxu0 0.0
        %779 = vmatpush1.msra.mxu0 0.0
        %780 = vmatprep.subr.mxu0 0.0
        %781 = vmatpush1.msra.mxu0 0.0
        %782 = vmatprep.subr.mxu0 0.0
        %783 = vmatpush1.msra.mxu0 0.0
        %784 = vmatprep.subr.mxu0 0.0
        %785 = vmatpush1.msra.mxu0 0.0
        %786 = vmatprep.mubr.f32.mxu0 0.0
        %787 = vmatmul.mubr.f32.gmra.mrb[0].mxu0 %v654
        %v788 = vpop.f32.mrb[0].mxu0
        %v789 = vadd.f32 0.0, %v788
        %v790 = vpop.f32.mrb[0].mxu0
        %791 = vmatprep.mubr.f32.mxu0 0.0
        %792 = vmatmul.mubr.f32.gmra.mrb[0].mxu0 %v656
        %v793 = vpop.f32.mrb[0].mxu0
        %v794 = vadd.f32 0.0, %v793
        %v795 = vpop.f32.mrb[0].mxu0
        %796 = vmatprep.mubr.f32.mxu0 0.0
        %797 = vmatmul.mubr.f32.gmra.mrb[0].mxu0 %v658
        %v798 = vpop.f32.mrb[0].mxu0
        %v799 = vadd.f32 0.0, %v798
        %v800 = vpop.f32.mrb[0].mxu0
        %801 = vmatprep.mubr.f32.mxu0 0.0
        %802 = vmatmul.mubr.f32.gmra.mrb[0].mxu0 %v660
        %v803 = vpop.f32.mrb[0].mxu0
        %v804 = vadd.f32 0.0, %v803
        %v805 = vpop.f32.mrb[0].mxu0
        %806 = vmatprep.mubr.f32.mxu0 0.0
        %807 = vmatmul.mubr.f32.gmra.mrb[0].mxu0 %v662
        %v808 = vpop.f32.mrb[0].mxu0
        %v809 = vadd.f32 0.0, %v808
        %v810 = vpop.f32.mrb[0].mxu0
        %811 = vmatprep.mubr.f32.mxu0 0.0
        %812 = vmatmul.mubr.f32.gmra.mrb[0].mxu0 %v664
        %v813 = vpop.f32.mrb[0].mxu0
        %v814 = vadd.f32 0.0, %v813
        %v815 = vpop.f32.mrb[0].mxu0
        %816 = vmatprep.mubr.f32.mxu0 0.0
        %817 = vmatmul.mubr.f32.gmra.mrb[0].mxu0 %v666
        %v818 = vpop.f32.mrb[0].mxu0
        %v819 = vadd.f32 0.0, %v818
        %v820 = vpop.f32.mrb[0].mxu0
        %821 = vmatprep.mubr.f32.mxu0 0.0
        %822 = vmatmul.mubr.f32.gmra.mrb[0].mxu0 %v668
        %v823 = vpop.f32.mrb[0].mxu0
        %v824 = vadd.f32 0.0, %v823
        %v825 = vpop.f32.mrb[0].mxu0
        %826 = vmatprep.mubr.f32.mxu0 0.0
        %827 = vmatmul.mubr.f32.gmra.mrb[0].mxu0 %v670
        %v828 = vpop.f32.mrb[0].mxu0
        %v829 = vadd.f32 0.0, %v828
        %v830 = vpop.f32.mrb[0].mxu0
        %831 = vmatprep.mubr.f32.mxu0 0.0
        %832 = vmatmul.mubr.f32.gmra.mrb[0].mxu0 %v672
        %v833 = vpop.f32.mrb[0].mxu0
        %v834 = vadd.f32 0.0, %v833
        %v835 = vpop.f32.mrb[0].mxu0
        %836 = vmatprep.mubr.f32.mxu0 0.0
        %837 = vmatmul.mubr.f32.gmra.mrb[0].mxu0 %v674
        %v838 = vpop.f32.mrb[0].mxu0
        %v839 = vadd.f32 0.0, %v838
        %v840 = vpop.f32.mrb[0].mxu0
        %841 = vmatprep.mubr.f32.mxu0 0.0
        %842 = vmatmul.mubr.f32.gmra.mrb[0].mxu0 %v676
        %v843 = vpop.f32.mrb[0].mxu0
        %v844 = vadd.f32 0.0, %v843
        %v845 = vpop.f32.mrb[0].mxu0
        %846 = vmatprep.mubr.f32.mxu0 0.0
        %847 = vmatmul.mubr.f32.gmra.mrb[0].mxu0 %v678
        %v848 = vpop.f32.mrb[0].mxu0
        %v849 = vadd.f32 0.0, %v848
        %v850 = vpop.f32.mrb[0].mxu0
        %851 = vmatprep.mubr.f32.mxu0 0.0
        %852 = vmatmul.mubr.f32.gmra.mrb[0].mxu0 %v680
        %v853 = vpop.f32.mrb[0].mxu0
        %v854 = vadd.f32 0.0, %v853
        %v855 = vpop.f32.mrb[0].mxu0
        %856 = vmatprep.mubr.f32.mxu0 0.0
        %857 = vmatmul.mubr.f32.gmra.mrb[0].mxu0 %v682
        %v858 = vpop.f32.mrb[0].mxu0
        %v859 = vadd.f32 0.0, %v858
        %v860 = vpop.f32.mrb[0].mxu0
        %861 = vmatprep.mubr.f32.mxu0 0.0
        %862 = vmatmul.mubr.f32.gmra.mrb[0].mxu0 %v684
        %v863 = vpop.f32.mrb[0].mxu0
        %v864 = vadd.f32 0.0, %v863
        %v865 = vpop.f32.mrb[0].mxu0
        %866 = vmatprep.mubr.f32.mxu0 0.0
        %867 = vmatmul.mubr.f32.gmra.mrb[0].mxu0 %v686
        %v868 = vpop.f32.mrb[0].mxu0
        %v869 = vadd.f32 0.0, %v868
        %v870 = vpop.f32.mrb[0].mxu0
        %871 = vmatprep.mubr.f32.mxu0 0.0
        %872 = vmatmul.mubr.f32.gmra.mrb[0].mxu0 %v688
        %v873 = vpop.f32.mrb[0].mxu0
        %v874 = vadd.f32 0.0, %v873
        %v875 = vpop.f32.mrb[0].mxu0
        %876 = vmatprep.mubr.f32.mxu0 0.0
        %877 = vmatmul.mubr.f32.gmra.mrb[0].mxu0 %v690
        %v878 = vpop.f32.mrb[0].mxu0
        %v879 = vadd.f32 0.0, %v878
        %v880 = vpop.f32.mrb[0].mxu0
        %881 = vmatprep.mubr.f32.mxu0 0.0
        %882 = vmatmul.mubr.f32.gmra.mrb[0].mxu0 %v692
        %v883 = vpop.f32.mrb[0].mxu0
        %v884 = vadd.f32 0.0, %v883
        %v885 = vpop.f32.mrb[0].mxu0
        %886 = vmatprep.mubr.f32.mxu0 0.0
        %887 = vmatmul.mubr.f32.gmra.mrb[0].mxu0 %v694
        %v888 = vpop.f32.mrb[0].mxu0
        %v889 = vadd.f32 0.0, %v888
        %v890 = vpop.f32.mrb[0].mxu0
        %891 = vmatprep.mubr.f32.mxu0 0.0
        %892 = vmatmul.mubr.f32.gmra.mrb[0].mxu0 %v696
        %v893 = vpop.f32.mrb[0].mxu0
        %v894 = vadd.f32 0.0, %v893
        %v895 = vpop.f32.mrb[0].mxu0
        %896 = vmatprep.mubr.f32.mxu0 0.0
        %897 = vmatmul.mubr.f32.gmra.mrb[0].mxu0 %v698
        %v898 = vpop.f32.mrb[0].mxu0
        %v899 = vadd.f32 0.0, %v898
        %v900 = vpop.f32.mrb[0].mxu0
        %901 = vmatprep.mubr.f32.mxu0 0.0
        %902 = vmatmul.mubr.f32.gmra.mrb[0].mxu0 %v700
        %v903 = vpop.f32.mrb[0].mxu0
        %v904 = vadd.f32 0.0, %v903
        %v905 = vpop.f32.mrb[0].mxu0
        %906 = vmatprep.mubr.f32.mxu0 0.0
        %907 = vmatmul.mubr.f32.gmra.mrb[0].mxu0 %v702
        %v908 = vpop.f32.mrb[0].mxu0
        %v909 = vadd.f32 0.0, %v908
        %v910 = vpop.f32.mrb[0].mxu0
        %911 = vmatprep.mubr.f32.mxu0 0.0
        %912 = vmatmul.mubr.f32.gmra.mrb[0].mxu0 %v704
        %v913 = vpop.f32.mrb[0].mxu0
        %v914 = vadd.f32 0.0, %v913
        %v915 = vpop.f32.mrb[0].mxu0
        %916 = vmatprep.mubr.f32.mxu0 0.0
        %917 = vmatmul.mubr.f32.gmra.mrb[0].mxu0 %v706
        %v918 = vpop.f32.mrb[0].mxu0
        %v919 = vadd.f32 0.0, %v918
        %v920 = vpop.f32.mrb[0].mxu0
        %921 = vmatprep.mubr.f32.mxu0 0.0
        %922 = vmatmul.mubr.f32.gmra.mrb[0].mxu0 %v708
        %v923 = vpop.f32.mrb[0].mxu0
        %v924 = vadd.f32 0.0, %v923
        %v925 = vpop.f32.mrb[0].mxu0
        %926 = vmatprep.mubr.f32.mxu0 0.0
        %927 = vmatmul.mubr.f32.gmra.mrb[0].mxu0 %v710
        %v928 = vpop.f32.mrb[0].mxu0
        %v929 = vadd.f32 0.0, %v928
        %v930 = vpop.f32.mrb[0].mxu0
        %931 = vmatprep.mubr.f32.mxu0 0.0
        %932 = vmatmul.mubr.f32.gmra.mrb[0].mxu0 %v712
        %v933 = vpop.f32.mrb[0].mxu0
        %v934 = vadd.f32 0.0, %v933
        %v935 = vpop.f32.mrb[0].mxu0
        %936 = vmatprep.mubr.f32.mxu0 0.0
        %937 = vmatmul.mubr.f32.gmra.mrb[0].mxu0 %v714
        %v938 = vpop.f32.mrb[0].mxu0
        %v939 = vadd.f32 0.0, %v938
        %v940 = vpop.f32.mrb[0].mxu0
        %941 = vmatprep.mubr.f32.mxu0 0.0
        %942 = vmatmul.mubr.f32.gmra.mrb[0].mxu0 %v716
        %v943 = vpop.f32.mrb[0].mxu0
        %v944 = vadd.f32 0.0, %v943
        %v945 = vpop.f32.mrb[0].mxu0
        %946 = vdwg.mxu0
        %v947 = vld [vmem:[%s396] sm:$0xff]
        %v948 = vld [vmem:[%s396 + $0x8] sm:$0xff]
        %v949 = vld [vmem:[%s396 + $0x10] sm:$0x3]
        %v950 = vld [vmem:[%s396 + $0x18] sm:$0xff]
        %v951 = vld [vmem:[%s396 + $0x20] sm:$0xff]
        %v952 = vld [vmem:[%s396 + $0x28] sm:$0x3]
        %v953 = vld [vmem:[%s396 + $0x30] sm:$0xff]
        %v954 = vld [vmem:[%s396 + $0x38] sm:$0xff]
        %v955 = vld [vmem:[%s396 + $0x40] sm:$0x3]
        %v956 = vld [vmem:[%s396 + $0x48] sm:$0xff]
        %v957 = vld [vmem:[%s396 + $0x50] sm:$0xff]
        %v958 = vld [vmem:[%s396 + $0x58] sm:$0x3]
        %v959 = vld [vmem:[%s396 + $0x60] sm:$0xff]
        %v960 = vld [vmem:[%s396 + $0x68] sm:$0xff]
        %v961 = vld [vmem:[%s396 + $0x70] sm:$0x3]
        %v962 = vld [vmem:[%s396 + $0x78] sm:$0xff]
        %v963 = vld [vmem:[%s396 + $0x80] sm:$0xff]
        %v964 = vld [vmem:[%s396 + $0x88] sm:$0x3]
        %v965 = vld [vmem:[%s396 + $0x90] sm:$0xff]
        %v966 = vld [vmem:[%s396 + $0x98] sm:$0xff]
        %v967 = vld [vmem:[%s396 + $0xa0] sm:$0x3]
        %v968 = vld [vmem:[%s396 + $0xa8] sm:$0xff]
        %v969 = vld [vmem:[%s396 + $0xb0] sm:$0xff]
        %v970 = vld [vmem:[%s396 + $0xb8] sm:$0x3]
        %v971 = vld [vmem:[%s396 + $0xc0] sm:$0xff]
        %v972 = vld [vmem:[%s396 + $0xc8] sm:$0xff]
        %v973 = vld [vmem:[%s396 + $0xd0] sm:$0x3]
        %v974 = vld [vmem:[%s396 + $0xd8] sm:$0xff]
        %v975 = vld [vmem:[%s396 + $0xe0] sm:$0xff]
        %v976 = vld [vmem:[%s396 + $0xe8] sm:$0x3]
        %v977 = vld [vmem:[%s396 + $0xf0] sm:$0xff]
        %v978 = vld [vmem:[%s396 + $0xf8] sm:$0xff]
        %v979 = vld [vmem:[%s396 + $0x100] sm:$0x3]
        %v980 = vld [vmem:[%s396 + $0x108] sm:$0xff]
        %v981 = vld [vmem:[%s396 + $0x110] sm:$0xff]
        %v982 = vld [vmem:[%s396 + $0x118] sm:$0x3]
        %v983 = vld [vmem:[%s396 + $0x120] sm:$0xff]
        %v984 = vld [vmem:[%s396 + $0x128] sm:$0xff]
        %v985 = vld [vmem:[%s396 + $0x130] sm:$0x3]
        %v986 = vld [vmem:[%s396 + $0x138] sm:$0xff]
        %v987 = vld [vmem:[%s396 + $0x140] sm:$0xff]
        %v988 = vld [vmem:[%s396 + $0x148] sm:$0x3]
        %v989 = vld [vmem:[%s396 + $0x150] sm:$0xff]
        %v990 = vld [vmem:[%s396 + $0x158] sm:$0xff]
        %v991 = vld [vmem:[%s396 + $0x160] sm:$0x3]
        %v992 = vld [vmem:[%s396 + $0x168] sm:$0xff]
        %v993 = vld [vmem:[%s396 + $0x170] sm:$0xff]
        %v994 = vld [vmem:[%s396 + $0x178] sm:$0x3]
        %v995 = vld [vmem:[%s396 + $0x180] sm:$0xff]
        %v996 = vld [vmem:[%s396 + $0x188] sm:$0xff]
        %v997 = vld [vmem:[%s396 + $0x190] sm:$0x3]
        %v998 = vld [vmem:[%s396 + $0x198] sm:$0xff]
        %v999 = vld [vmem:[%s396 + $0x1a0] sm:$0xff]
        %v1000 = vld [vmem:[%s396 + $0x1a8] sm:$0x3]
        %v1049 = vrot.slane %v947, 1
        %v1050 = vrot.slane %v948, 1
        %v1051 = vsel %vm571, %v1049, %v1050
        %v1052 = vrot.slane %v949, 1
        %v1053 = vsel %vm571, %v1050, %v1052
        %v1054 = vrot.slane %v950, 1
        %v1055 = vrot.slane %v951, 1
        %v1056 = vsel %vm571, %v1054, %v1055
        %v1057 = vrot.slane %v952, 1
        %v1058 = vsel %vm571, %v1055, %v1057
        %v1059 = vrot.slane %v953, 1
        %v1060 = vrot.slane %v954, 1
        %v1061 = vsel %vm571, %v1059, %v1060
        %v1062 = vrot.slane %v955, 1
        %v1063 = vsel %vm571, %v1060, %v1062
        %v1064 = vrot.slane %v956, 1
        %v1065 = vrot.slane %v957, 1
        %v1066 = vsel %vm571, %v1064, %v1065
        %v1067 = vrot.slane %v958, 1
        %v1068 = vsel %vm571, %v1065, %v1067
        %v1069 = vrot.slane %v959, 1
        %v1070 = vrot.slane %v960, 1
        %v1071 = vsel %vm571, %v1069, %v1070
        %v1072 = vrot.slane %v961, 1
        %v1073 = vsel %vm571, %v1070, %v1072
        %v1074 = vrot.slane %v962, 1
        %v1075 = vrot.slane %v963, 1
        %v1076 = vsel %vm571, %v1074, %v1075
        %v1077 = vrot.slane %v964, 1
        %v1078 = vsel %vm571, %v1075, %v1077
        %v1079 = vrot.slane %v965, 1
        %v1080 = vrot.slane %v966, 1
        %v1081 = vsel %vm571, %v1079, %v1080
        %v1082 = vrot.slane %v967, 1
        %v1083 = vsel %vm571, %v1080, %v1082
        %v1084 = vrot.slane %v968, 1
        %v1085 = vrot.slane %v969, 1
        %v1086 = vsel %vm571, %v1084, %v1085
        %v1087 = vrot.slane %v970, 1
        %v1088 = vsel %vm571, %v1085, %v1087
        %v1089 = vrot.slane %v971, 1
        %v1090 = vrot.slane %v972, 1
        %v1091 = vsel %vm571, %v1089, %v1090
        %v1092 = vrot.slane %v973, 1
        %v1093 = vsel %vm571, %v1090, %v1092
        %v1094 = vrot.slane %v974, 1
        %v1095 = vrot.slane %v975, 1
        %v1096 = vsel %vm571, %v1094, %v1095
        %v1097 = vrot.slane %v976, 1
        %v1098 = vsel %vm571, %v1095, %v1097
        %v1099 = vrot.slane %v977, 1
        %v1100 = vrot.slane %v978, 1
        %v1101 = vsel %vm571, %v1099, %v1100
        %v1102 = vrot.slane %v979, 1
        %v1103 = vsel %vm571, %v1100, %v1102
        %v1104 = vrot.slane %v980, 1
        %v1105 = vrot.slane %v981, 1
        %v1106 = vsel %vm571, %v1104, %v1105
        %v1107 = vrot.slane %v982, 1
        %v1108 = vsel %vm571, %v1105, %v1107
        %v1109 = vrot.slane %v983, 1
        %v1110 = vrot.slane %v984, 1
        %v1111 = vsel %vm571, %v1109, %v1110
        %v1112 = vrot.slane %v985, 1
        %v1113 = vsel %vm571, %v1110, %v1112
        %v1114 = vrot.slane %v986, 1
        %v1115 = vrot.slane %v987, 1
        %v1116 = vsel %vm571, %v1114, %v1115
        %v1117 = vrot.slane %v988, 1
        %v1118 = vsel %vm571, %v1115, %v1117
        %v1119 = vrot.slane %v989, 1
        %v1120 = vrot.slane %v990, 1
        %v1121 = vsel %vm571, %v1119, %v1120
        %v1122 = vrot.slane %v991, 1
        %v1123 = vsel %vm571, %v1120, %v1122
        %v1124 = vrot.slane %v992, 1
        %v1125 = vrot.slane %v993, 1
        %v1126 = vsel %vm571, %v1124, %v1125
        %v1127 = vrot.slane %v994, 1
        %v1128 = vsel %vm571, %v1125, %v1127
        %vm1129 = vcmask 1045504
        %v1130 = vrot.slane %v947, 2
        %v1131 = vrot.slane %v948, 2
        %v1132 = vsel %vm1129, %v1130, %v1131
        %v1133 = vrot.slane %v949, 2
        %v1134 = vsel %vm1129, %v1131, %v1133
        %v1135 = vrot.slane %v950, 2
        %v1136 = vrot.slane %v951, 2
        %v1137 = vsel %vm1129, %v1135, %v1136
        %v1138 = vrot.slane %v952, 2
        %v1139 = vsel %vm1129, %v1136, %v1138
        %v1140 = vrot.slane %v953, 2
        %v1141 = vrot.slane %v954, 2
        %v1142 = vsel %vm1129, %v1140, %v1141
        %v1143 = vrot.slane %v955, 2
        %v1144 = vsel %vm1129, %v1141, %v1143
        %v1145 = vrot.slane %v956, 2
        %v1146 = vrot.slane %v957, 2
        %v1147 = vsel %vm1129, %v1145, %v1146
        %v1148 = vrot.slane %v958, 2
        %v1149 = vsel %vm1129, %v1146, %v1148
        %v1150 = vrot.slane %v959, 2
        %v1151 = vrot.slane %v960, 2
        %v1152 = vsel %vm1129, %v1150, %v1151
        %v1153 = vrot.slane %v961, 2
        %v1154 = vsel %vm1129, %v1151, %v1153
        %v1155 = vrot.slane %v962, 2
        %v1156 = vrot.slane %v963, 2
        %v1157 = vsel %vm1129, %v1155, %v1156
        %v1158 = vrot.slane %v964, 2
        %v1159 = vsel %vm1129, %v1156, %v1158
        %v1160 = vrot.slane %v965, 2
        %v1161 = vrot.slane %v966, 2
        %v1162 = vsel %vm1129, %v1160, %v1161
        %v1163 = vrot.slane %v967, 2
        %v1164 = vsel %vm1129, %v1161, %v1163
        %v1165 = vrot.slane %v968, 2
        %v1166 = vrot.slane %v969, 2
        %v1167 = vsel %vm1129, %v1165, %v1166
        %v1168 = vrot.slane %v970, 2
        %v1169 = vsel %vm1129, %v1166, %v1168
        %v1170 = vrot.slane %v971, 2
        %v1171 = vrot.slane %v972, 2
        %v1172 = vsel %vm1129, %v1170, %v1171
        %v1173 = vrot.slane %v973, 2
        %v1174 = vsel %vm1129, %v1171, %v1173
        %v1175 = vrot.slane %v974, 2
        %v1176 = vrot.slane %v975, 2
        %v1177 = vsel %vm1129, %v1175, %v1176
        %v1178 = vrot.slane %v976, 2
        %v1179 = vsel %vm1129, %v1176, %v1178
        %v1180 = vrot.slane %v977, 2
        %v1181 = vrot.slane %v978, 2
        %v1182 = vsel %vm1129, %v1180, %v1181
        %v1183 = vrot.slane %v979, 2
        %v1184 = vsel %vm1129, %v1181, %v1183
        %v1185 = vrot.slane %v980, 2
        %v1186 = vrot.slane %v981, 2
        %v1187 = vsel %vm1129, %v1185, %v1186
        %v1188 = vrot.slane %v982, 2
        %v1189 = vsel %vm1129, %v1186, %v1188
        %v1190 = vrot.slane %v983, 2
        %v1191 = vrot.slane %v984, 2
        %v1192 = vsel %vm1129, %v1190, %v1191
        %v1193 = vrot.slane %v985, 2
        %v1194 = vsel %vm1129, %v1191, %v1193
        %v1195 = vrot.slane %v986, 2
        %v1196 = vrot.slane %v987, 2
        %v1197 = vsel %vm1129, %v1195, %v1196
        %v1198 = vrot.slane %v988, 2
        %v1199 = vsel %vm1129, %v1196, %v1198
        %v1200 = vrot.slane %v989, 2
        %v1201 = vrot.slane %v990, 2
        %v1202 = vsel %vm1129, %v1200, %v1201
        %v1203 = vrot.slane %v991, 2
        %v1204 = vsel %vm1129, %v1201, %v1203
        %v1205 = vrot.slane %v992, 2
        %v1206 = vrot.slane %v993, 2
        %v1207 = vsel %vm1129, %v1205, %v1206
        %v1208 = vrot.slane %v994, 2
        %v1209 = vsel %vm1129, %v1206, %v1208
        %v1213 = vrot.slane %v995, 1
        %v1214 = vrot.slane %v996, 1
        %v1215 = vsel %vm571, %v1213, %v1214
        %v1216 = vrot.slane %v997, 1
        %v1217 = vsel %vm571, %v1214, %v1216
        %v1218 = vrot.slane %v995, 2
        %v1219 = vrot.slane %v996, 2
        %v1220 = vsel %vm1129, %v1218, %v1219
        %v1221 = vrot.slane %v997, 2
        %v1222 = vsel %vm1129, %v1219, %v1221
        %v1226 = vrot.slane %v998, 1
        %v1227 = vrot.slane %v999, 1
        %v1228 = vsel %vm571, %v1226, %v1227
        %v1229 = vrot.slane %v1000, 1
        %v1230 = vsel %vm571, %v1227, %v1229
        %v1231 = vrot.slane %v998, 2
        %v1232 = vrot.slane %v999, 2
        %v1233 = vsel %vm1129, %v1231, %v1232
        %v1234 = vrot.slane %v1000, 2
        %v1235 = vsel %vm1129, %v1232, %v1234
        %1236 = vrot.lane.b32.xlu0 %v1051, 4
        %v1237 = vpop.permute.xlu0 %1236
        %1238 = vrot.lane.b32.xlu0 %v1053, 4
        %v1239 = vpop.permute.xlu0 %1238
        %1240 = vrot.lane.b32.xlu0 %v1056, 4
        %v1241 = vpop.permute.xlu0 %1240
        %1242 = vrot.lane.b32.xlu0 %v1058, 4
        %v1243 = vpop.permute.xlu0 %1242
        %1244 = vrot.lane.b32.xlu0 %v1061, 4
        %v1245 = vpop.permute.xlu0 %1244
        %1246 = vrot.lane.b32.xlu0 %v1063, 4
        %v1247 = vpop.permute.xlu0 %1246
        %1248 = vrot.lane.b32.xlu0 %v1066, 4
        %v1249 = vpop.permute.xlu0 %1248
        %1250 = vrot.lane.b32.xlu0 %v1068, 4
        %v1251 = vpop.permute.xlu0 %1250
        %1252 = vrot.lane.b32.xlu0 %v1071, 4
        %v1253 = vpop.permute.xlu0 %1252
        %1254 = vrot.lane.b32.xlu0 %v1073, 4
        %v1255 = vpop.permute.xlu0 %1254
        %1256 = vrot.lane.b32.xlu0 %v1076, 4
        %v1257 = vpop.permute.xlu0 %1256
        %1258 = vrot.lane.b32.xlu0 %v1078, 4
        %v1259 = vpop.permute.xlu0 %1258
        %1260 = vrot.lane.b32.xlu0 %v1081, 4
        %v1261 = vpop.permute.xlu0 %1260
        %1262 = vrot.lane.b32.xlu0 %v1083, 4
        %v1263 = vpop.permute.xlu0 %1262
        %1264 = vrot.lane.b32.xlu0 %v1086, 4
        %v1265 = vpop.permute.xlu0 %1264
        %1266 = vrot.lane.b32.xlu0 %v1088, 4
        %v1267 = vpop.permute.xlu0 %1266
        %1268 = vrot.lane.b32.xlu0 %v1091, 4
        %v1269 = vpop.permute.xlu0 %1268
        %1270 = vrot.lane.b32.xlu0 %v1093, 4
        %v1271 = vpop.permute.xlu0 %1270
        %1272 = vrot.lane.b32.xlu0 %v1096, 4
        %v1273 = vpop.permute.xlu0 %1272
        %1274 = vrot.lane.b32.xlu0 %v1098, 4
        %v1275 = vpop.permute.xlu0 %1274
        %1276 = vrot.lane.b32.xlu0 %v1101, 4
        %v1277 = vpop.permute.xlu0 %1276
        %1278 = vrot.lane.b32.xlu0 %v1103, 4
        %v1279 = vpop.permute.xlu0 %1278
        %1280 = vrot.lane.b32.xlu0 %v1106, 4
        %v1281 = vpop.permute.xlu0 %1280
        %1282 = vrot.lane.b32.xlu0 %v1108, 4
        %v1283 = vpop.permute.xlu0 %1282
        %1284 = vrot.lane.b32.xlu0 %v1111, 4
        %v1285 = vpop.permute.xlu0 %1284
        %1286 = vrot.lane.b32.xlu0 %v1113, 4
        %v1287 = vpop.permute.xlu0 %1286
        %1288 = vrot.lane.b32.xlu0 %v1116, 4
        %v1289 = vpop.permute.xlu0 %1288
        %1290 = vrot.lane.b32.xlu0 %v1118, 4
        %v1291 = vpop.permute.xlu0 %1290
        %1292 = vrot.lane.b32.xlu0 %v1121, 4
        %v1293 = vpop.permute.xlu0 %1292
        %1294 = vrot.lane.b32.xlu0 %v1123, 4
        %v1295 = vpop.permute.xlu0 %1294
        %1296 = vrot.lane.b32.xlu0 %v1126, 4
        %v1297 = vpop.permute.xlu0 %1296
        %1298 = vrot.lane.b32.xlu0 %v1128, 4
        %v1299 = vpop.permute.xlu0 %1298
        %1332 = vrot.lane.b32.xlu0 %v1132, 8
        %v1333 = vpop.permute.xlu0 %1332
        %1334 = vrot.lane.b32.xlu0 %v1134, 8
        %v1335 = vpop.permute.xlu0 %1334
        %1336 = vrot.lane.b32.xlu0 %v1137, 8
        %v1337 = vpop.permute.xlu0 %1336
        %1338 = vrot.lane.b32.xlu0 %v1139, 8
        %v1339 = vpop.permute.xlu0 %1338
        %1340 = vrot.lane.b32.xlu0 %v1142, 8
        %v1341 = vpop.permute.xlu0 %1340
        %1342 = vrot.lane.b32.xlu0 %v1144, 8
        %v1343 = vpop.permute.xlu0 %1342
        %1344 = vrot.lane.b32.xlu0 %v1147, 8
        %v1345 = vpop.permute.xlu0 %1344
        %1346 = vrot.lane.b32.xlu0 %v1149, 8
        %v1347 = vpop.permute.xlu0 %1346
        %1348 = vrot.lane.b32.xlu0 %v1152, 8
        %v1349 = vpop.permute.xlu0 %1348
        %1350 = vrot.lane.b32.xlu0 %v1154, 8
        %v1351 = vpop.permute.xlu0 %1350
        %1352 = vrot.lane.b32.xlu0 %v1157, 8
        %v1353 = vpop.permute.xlu0 %1352
        %1354 = vrot.lane.b32.xlu0 %v1159, 8
        %v1355 = vpop.permute.xlu0 %1354
        %1356 = vrot.lane.b32.xlu0 %v1162, 8
        %v1357 = vpop.permute.xlu0 %1356
        %1358 = vrot.lane.b32.xlu0 %v1164, 8
        %v1359 = vpop.permute.xlu0 %1358
        %1360 = vrot.lane.b32.xlu0 %v1167, 8
        %v1361 = vpop.permute.xlu0 %1360
        %1362 = vrot.lane.b32.xlu0 %v1169, 8
        %v1363 = vpop.permute.xlu0 %1362
        %1364 = vrot.lane.b32.xlu0 %v1172, 8
        %v1365 = vpop.permute.xlu0 %1364
        %1366 = vrot.lane.b32.xlu0 %v1174, 8
        %v1367 = vpop.permute.xlu0 %1366
        %1368 = vrot.lane.b32.xlu0 %v1177, 8
        %v1369 = vpop.permute.xlu0 %1368
        %1370 = vrot.lane.b32.xlu0 %v1179, 8
        %v1371 = vpop.permute.xlu0 %1370
        %1372 = vrot.lane.b32.xlu0 %v1182, 8
        %v1373 = vpop.permute.xlu0 %1372
        %1374 = vrot.lane.b32.xlu0 %v1184, 8
        %v1375 = vpop.permute.xlu0 %1374
        %1376 = vrot.lane.b32.xlu0 %v1187, 8
        %v1377 = vpop.permute.xlu0 %1376
        %1378 = vrot.lane.b32.xlu0 %v1189, 8
        %v1379 = vpop.permute.xlu0 %1378
        %1380 = vrot.lane.b32.xlu0 %v1192, 8
        %v1381 = vpop.permute.xlu0 %1380
        %1382 = vrot.lane.b32.xlu0 %v1194, 8
        %v1383 = vpop.permute.xlu0 %1382
        %1384 = vrot.lane.b32.xlu0 %v1197, 8
        %v1385 = vpop.permute.xlu0 %1384
        %1386 = vrot.lane.b32.xlu0 %v1199, 8
        %v1387 = vpop.permute.xlu0 %1386
        %1388 = vrot.lane.b32.xlu0 %v1202, 8
        %v1389 = vpop.permute.xlu0 %1388
        %1390 = vrot.lane.b32.xlu0 %v1204, 8
        %v1391 = vpop.permute.xlu0 %1390
        %1392 = vrot.lane.b32.xlu0 %v1207, 8
        %v1393 = vpop.permute.xlu0 %1392
        %1394 = vrot.lane.b32.xlu0 %v1209, 8
        %v1395 = vpop.permute.xlu0 %1394
        %1428 = vrot.lane.b32.xlu0 %v950, 12
        %v1429 = vpop.permute.xlu0 %1428
        %1430 = vrot.lane.b32.xlu0 %v951, 12
        %v1431 = vpop.permute.xlu0 %1430
        %1432 = vrot.lane.b32.xlu0 %v953, 12
        %v1433 = vpop.permute.xlu0 %1432
        %1434 = vrot.lane.b32.xlu0 %v954, 12
        %v1435 = vpop.permute.xlu0 %1434
        %1436 = vrot.lane.b32.xlu0 %v956, 12
        %v1437 = vpop.permute.xlu0 %1436
        %1438 = vrot.lane.b32.xlu0 %v957, 12
        %v1439 = vpop.permute.xlu0 %1438
        %1440 = vrot.lane.b32.xlu0 %v959, 12
        %v1441 = vpop.permute.xlu0 %1440
        %1442 = vrot.lane.b32.xlu0 %v960, 12
        %v1443 = vpop.permute.xlu0 %1442
        %1444 = vrot.lane.b32.xlu0 %v962, 12
        %v1445 = vpop.permute.xlu0 %1444
        %1446 = vrot.lane.b32.xlu0 %v963, 12
        %v1447 = vpop.permute.xlu0 %1446
        %1448 = vrot.lane.b32.xlu0 %v965, 12
        %v1449 = vpop.permute.xlu0 %1448
        %1450 = vrot.lane.b32.xlu0 %v966, 12
        %v1451 = vpop.permute.xlu0 %1450
        %1452 = vrot.lane.b32.xlu0 %v968, 12
        %v1453 = vpop.permute.xlu0 %1452
        %1454 = vrot.lane.b32.xlu0 %v969, 12
        %v1455 = vpop.permute.xlu0 %1454
        %1456 = vrot.lane.b32.xlu0 %v971, 12
        %v1457 = vpop.permute.xlu0 %1456
        %1458 = vrot.lane.b32.xlu0 %v972, 12
        %v1459 = vpop.permute.xlu0 %1458
        %1460 = vrot.lane.b32.xlu0 %v974, 12
        %v1461 = vpop.permute.xlu0 %1460
        %1462 = vrot.lane.b32.xlu0 %v975, 12
        %v1463 = vpop.permute.xlu0 %1462
        %1464 = vrot.lane.b32.xlu0 %v977, 12
        %v1465 = vpop.permute.xlu0 %1464
        %1466 = vrot.lane.b32.xlu0 %v978, 12
        %v1467 = vpop.permute.xlu0 %1466
        %1468 = vrot.lane.b32.xlu0 %v980, 12
        %v1469 = vpop.permute.xlu0 %1468
        %1470 = vrot.lane.b32.xlu0 %v981, 12
        %v1471 = vpop.permute.xlu0 %1470
        %1472 = vrot.lane.b32.xlu0 %v983, 12
        %v1473 = vpop.permute.xlu0 %1472
        %1474 = vrot.lane.b32.xlu0 %v984, 12
        %v1475 = vpop.permute.xlu0 %1474
        %1476 = vrot.lane.b32.xlu0 %v986, 12
        %v1477 = vpop.permute.xlu0 %1476
        %1478 = vrot.lane.b32.xlu0 %v987, 12
        %v1479 = vpop.permute.xlu0 %1478
        %1480 = vrot.lane.b32.xlu0 %v989, 12
        %v1481 = vpop.permute.xlu0 %1480
        %1482 = vrot.lane.b32.xlu0 %v990, 12
        %v1483 = vpop.permute.xlu0 %1482
        %1484 = vrot.lane.b32.xlu0 %v992, 12
        %v1485 = vpop.permute.xlu0 %1484
        %1486 = vrot.lane.b32.xlu0 %v993, 12
        %v1487 = vpop.permute.xlu0 %1486
        %1488 = vrot.lane.b32.xlu0 %v995, 12
        %v1489 = vpop.permute.xlu0 %1488
        %1490 = vrot.lane.b32.xlu0 %v996, 12
        %v1491 = vpop.permute.xlu0 %1490
        %1524 = vrot.lane.b32.xlu0 %v1056, 16
        %v1525 = vpop.permute.xlu0 %1524
        %1526 = vrot.lane.b32.xlu0 %v1058, 16
        %v1527 = vpop.permute.xlu0 %1526
        %1528 = vrot.lane.b32.xlu0 %v1061, 16
        %v1529 = vpop.permute.xlu0 %1528
        %1530 = vrot.lane.b32.xlu0 %v1063, 16
        %v1531 = vpop.permute.xlu0 %1530
        %1532 = vrot.lane.b32.xlu0 %v1066, 16
        %v1533 = vpop.permute.xlu0 %1532
        %1534 = vrot.lane.b32.xlu0 %v1068, 16
        %v1535 = vpop.permute.xlu0 %1534
        %1536 = vrot.lane.b32.xlu0 %v1071, 16
        %v1537 = vpop.permute.xlu0 %1536
        %1538 = vrot.lane.b32.xlu0 %v1073, 16
        %v1539 = vpop.permute.xlu0 %1538
        %1540 = vrot.lane.b32.xlu0 %v1076, 16
        %v1541 = vpop.permute.xlu0 %1540
        %1542 = vrot.lane.b32.xlu0 %v1078, 16
        %v1543 = vpop.permute.xlu0 %1542
        %1544 = vrot.lane.b32.xlu0 %v1081, 16
        %v1545 = vpop.permute.xlu0 %1544
        %1546 = vrot.lane.b32.xlu0 %v1083, 16
        %v1547 = vpop.permute.xlu0 %1546
        %1548 = vrot.lane.b32.xlu0 %v1086, 16
        %v1549 = vpop.permute.xlu0 %1548
        %1550 = vrot.lane.b32.xlu0 %v1088, 16
        %v1551 = vpop.permute.xlu0 %1550
        %1552 = vrot.lane.b32.xlu0 %v1091, 16
        %v1553 = vpop.permute.xlu0 %1552
        %1554 = vrot.lane.b32.xlu0 %v1093, 16
        %v1555 = vpop.permute.xlu0 %1554
        %1556 = vrot.lane.b32.xlu0 %v1096, 16
        %v1557 = vpop.permute.xlu0 %1556
        %1558 = vrot.lane.b32.xlu0 %v1098, 16
        %v1559 = vpop.permute.xlu0 %1558
        %1560 = vrot.lane.b32.xlu0 %v1101, 16
        %v1561 = vpop.permute.xlu0 %1560
        %1562 = vrot.lane.b32.xlu0 %v1103, 16
        %v1563 = vpop.permute.xlu0 %1562
        %1564 = vrot.lane.b32.xlu0 %v1106, 16
        %v1565 = vpop.permute.xlu0 %1564
        %1566 = vrot.lane.b32.xlu0 %v1108, 16
        %v1567 = vpop.permute.xlu0 %1566
        %1568 = vrot.lane.b32.xlu0 %v1111, 16
        %v1569 = vpop.permute.xlu0 %1568
        %1570 = vrot.lane.b32.xlu0 %v1113, 16
        %v1571 = vpop.permute.xlu0 %1570
        %1572 = vrot.lane.b32.xlu0 %v1116, 16
        %v1573 = vpop.permute.xlu0 %1572
        %1574 = vrot.lane.b32.xlu0 %v1118, 16
        %v1575 = vpop.permute.xlu0 %1574
        %1576 = vrot.lane.b32.xlu0 %v1121, 16
        %v1577 = vpop.permute.xlu0 %1576
        %1578 = vrot.lane.b32.xlu0 %v1123, 16
        %v1579 = vpop.permute.xlu0 %1578
        %1580 = vrot.lane.b32.xlu0 %v1126, 16
        %v1581 = vpop.permute.xlu0 %1580
        %1582 = vrot.lane.b32.xlu0 %v1128, 16
        %v1583 = vpop.permute.xlu0 %1582
        %1584 = vrot.lane.b32.xlu0 %v1215, 16
        %v1585 = vpop.permute.xlu0 %1584
        %1586 = vrot.lane.b32.xlu0 %v1217, 16
        %v1587 = vpop.permute.xlu0 %1586
        %1620 = vrot.lane.b32.xlu0 %v1137, 20
        %v1621 = vpop.permute.xlu0 %1620
        %1622 = vrot.lane.b32.xlu0 %v1139, 20
        %v1623 = vpop.permute.xlu0 %1622
        %1624 = vrot.lane.b32.xlu0 %v1142, 20
        %v1625 = vpop.permute.xlu0 %1624
        %1626 = vrot.lane.b32.xlu0 %v1144, 20
        %v1627 = vpop.permute.xlu0 %1626
        %1628 = vrot.lane.b32.xlu0 %v1147, 20
        %v1629 = vpop.permute.xlu0 %1628
        %1630 = vrot.lane.b32.xlu0 %v1149, 20
        %v1631 = vpop.permute.xlu0 %1630
        %1632 = vrot.lane.b32.xlu0 %v1152, 20
        %v1633 = vpop.permute.xlu0 %1632
        %1634 = vrot.lane.b32.xlu0 %v1154, 20
        %v1635 = vpop.permute.xlu0 %1634
        %1636 = vrot.lane.b32.xlu0 %v1157, 20
        %v1637 = vpop.permute.xlu0 %1636
        %1638 = vrot.lane.b32.xlu0 %v1159, 20
        %v1639 = vpop.permute.xlu0 %1638
        %1640 = vrot.lane.b32.xlu0 %v1162, 20
        %v1641 = vpop.permute.xlu0 %1640
        %1642 = vrot.lane.b32.xlu0 %v1164, 20
        %v1643 = vpop.permute.xlu0 %1642
        %1644 = vrot.lane.b32.xlu0 %v1167, 20
        %v1645 = vpop.permute.xlu0 %1644
        %1646 = vrot.lane.b32.xlu0 %v1169, 20
        %v1647 = vpop.permute.xlu0 %1646
        %1648 = vrot.lane.b32.xlu0 %v1172, 20
        %v1649 = vpop.permute.xlu0 %1648
        %1650 = vrot.lane.b32.xlu0 %v1174, 20
        %v1651 = vpop.permute.xlu0 %1650
        %1652 = vrot.lane.b32.xlu0 %v1177, 20
        %v1653 = vpop.permute.xlu0 %1652
        %1654 = vrot.lane.b32.xlu0 %v1179, 20
        %v1655 = vpop.permute.xlu0 %1654
        %1656 = vrot.lane.b32.xlu0 %v1182, 20
        %v1657 = vpop.permute.xlu0 %1656
        %1658 = vrot.lane.b32.xlu0 %v1184, 20
        %v1659 = vpop.permute.xlu0 %1658
        %1660 = vrot.lane.b32.xlu0 %v1187, 20
        %v1661 = vpop.permute.xlu0 %1660
        %1662 = vrot.lane.b32.xlu0 %v1189, 20
        %v1663 = vpop.permute.xlu0 %1662
        %1664 = vrot.lane.b32.xlu0 %v1192, 20
        %v1665 = vpop.permute.xlu0 %1664
        %1666 = vrot.lane.b32.xlu0 %v1194, 20
        %v1667 = vpop.permute.xlu0 %1666
        %1668 = vrot.lane.b32.xlu0 %v1197, 20
        %v1669 = vpop.permute.xlu0 %1668
        %1670 = vrot.lane.b32.xlu0 %v1199, 20
        %v1671 = vpop.permute.xlu0 %1670
        %1672 = vrot.lane.b32.xlu0 %v1202, 20
        %v1673 = vpop.permute.xlu0 %1672
        %1674 = vrot.lane.b32.xlu0 %v1204, 20
        %v1675 = vpop.permute.xlu0 %1674
        %1676 = vrot.lane.b32.xlu0 %v1207, 20
        %v1677 = vpop.permute.xlu0 %1676
        %1678 = vrot.lane.b32.xlu0 %v1209, 20
        %v1679 = vpop.permute.xlu0 %1678
        %1680 = vrot.lane.b32.xlu0 %v1220, 20
        %v1681 = vpop.permute.xlu0 %1680
        %1682 = vrot.lane.b32.xlu0 %v1222, 20
        %v1683 = vpop.permute.xlu0 %1682
        %1716 = vrot.lane.b32.xlu0 %v953, 24
        %v1717 = vpop.permute.xlu0 %1716
        %1718 = vrot.lane.b32.xlu0 %v954, 24
        %v1719 = vpop.permute.xlu0 %1718
        %1720 = vrot.lane.b32.xlu0 %v956, 24
        %v1721 = vpop.permute.xlu0 %1720
        %1722 = vrot.lane.b32.xlu0 %v957, 24
        %v1723 = vpop.permute.xlu0 %1722
        %1724 = vrot.lane.b32.xlu0 %v959, 24
        %v1725 = vpop.permute.xlu0 %1724
        %1726 = vrot.lane.b32.xlu0 %v960, 24
        %v1727 = vpop.permute.xlu0 %1726
        %1728 = vrot.lane.b32.xlu0 %v962, 24
        %v1729 = vpop.permute.xlu0 %1728
        %1730 = vrot.lane.b32.xlu0 %v963, 24
        %v1731 = vpop.permute.xlu0 %1730
        %1732 = vrot.lane.b32.xlu0 %v965, 24
        %v1733 = vpop.permute.xlu0 %1732
        %1734 = vrot.lane.b32.xlu0 %v966, 24
        %v1735 = vpop.permute.xlu0 %1734
        %1736 = vrot.lane.b32.xlu0 %v968, 24
        %v1737 = vpop.permute.xlu0 %1736
        %1738 = vrot.lane.b32.xlu0 %v969, 24
        %v1739 = vpop.permute.xlu0 %1738
        %1740 = vrot.lane.b32.xlu0 %v971, 24
        %v1741 = vpop.permute.xlu0 %1740
        %1742 = vrot.lane.b32.xlu0 %v972, 24
        %v1743 = vpop.permute.xlu0 %1742
        %1744 = vrot.lane.b32.xlu0 %v974, 24
        %v1745 = vpop.permute.xlu0 %1744
        %1746 = vrot.lane.b32.xlu0 %v975, 24
        %v1747 = vpop.permute.xlu0 %1746
        %1748 = vrot.lane.b32.xlu0 %v977, 24
        %v1749 = vpop.permute.xlu0 %1748
        %1750 = vrot.lane.b32.xlu0 %v978, 24
        %v1751 = vpop.permute.xlu0 %1750
        %1752 = vrot.lane.b32.xlu0 %v980, 24
        %v1753 = vpop.permute.xlu0 %1752
        %1754 = vrot.lane.b32.xlu0 %v981, 24
        %v1755 = vpop.permute.xlu0 %1754
        %1756 = vrot.lane.b32.xlu0 %v983, 24
        %v1757 = vpop.permute.xlu0 %1756
        %1758 = vrot.lane.b32.xlu0 %v984, 24
        %v1759 = vpop.permute.xlu0 %1758
        %1760 = vrot.lane.b32.xlu0 %v986, 24
        %v1761 = vpop.permute.xlu0 %1760
        %1762 = vrot.lane.b32.xlu0 %v987, 24
        %v1763 = vpop.permute.xlu0 %1762
        %1764 = vrot.lane.b32.xlu0 %v989, 24
        %v1765 = vpop.permute.xlu0 %1764
        %1766 = vrot.lane.b32.xlu0 %v990, 24
        %v1767 = vpop.permute.xlu0 %1766
        %1768 = vrot.lane.b32.xlu0 %v992, 24
        %v1769 = vpop.permute.xlu0 %1768
        %1770 = vrot.lane.b32.xlu0 %v993, 24
        %v1771 = vpop.permute.xlu0 %1770
        %1772 = vrot.lane.b32.xlu0 %v995, 24
        %v1773 = vpop.permute.xlu0 %1772
        %1774 = vrot.lane.b32.xlu0 %v996, 24
        %v1775 = vpop.permute.xlu0 %1774
        %1776 = vrot.lane.b32.xlu0 %v998, 24
        %v1777 = vpop.permute.xlu0 %1776
        %1778 = vrot.lane.b32.xlu0 %v999, 24
        %v1779 = vpop.permute.xlu0 %1778
        %1812 = vrot.lane.b32.xlu0 %v1061, 28
        %v1813 = vpop.permute.xlu0 %1812
        %1814 = vrot.lane.b32.xlu0 %v1063, 28
        %v1815 = vpop.permute.xlu0 %1814
        %1816 = vrot.lane.b32.xlu0 %v1066, 28
        %v1817 = vpop.permute.xlu0 %1816
        %1818 = vrot.lane.b32.xlu0 %v1068, 28
        %v1819 = vpop.permute.xlu0 %1818
        %1820 = vrot.lane.b32.xlu0 %v1071, 28
        %v1821 = vpop.permute.xlu0 %1820
        %1822 = vrot.lane.b32.xlu0 %v1073, 28
        %v1823 = vpop.permute.xlu0 %1822
        %1824 = vrot.lane.b32.xlu0 %v1076, 28
        %v1825 = vpop.permute.xlu0 %1824
        %1826 = vrot.lane.b32.xlu0 %v1078, 28
        %v1827 = vpop.permute.xlu0 %1826
        %1828 = vrot.lane.b32.xlu0 %v1081, 28
        %v1829 = vpop.permute.xlu0 %1828
        %1830 = vrot.lane.b32.xlu0 %v1083, 28
        %v1831 = vpop.permute.xlu0 %1830
        %1832 = vrot.lane.b32.xlu0 %v1086, 28
        %v1833 = vpop.permute.xlu0 %1832
        %1834 = vrot.lane.b32.xlu0 %v1088, 28
        %v1835 = vpop.permute.xlu0 %1834
        %1836 = vrot.lane.b32.xlu0 %v1091, 28
        %v1837 = vpop.permute.xlu0 %1836
        %1838 = vrot.lane.b32.xlu0 %v1093, 28
        %v1839 = vpop.permute.xlu0 %1838
        %1840 = vrot.lane.b32.xlu0 %v1096, 28
        %v1841 = vpop.permute.xlu0 %1840
        %1842 = vrot.lane.b32.xlu0 %v1098, 28
        %v1843 = vpop.permute.xlu0 %1842
        %1844 = vrot.lane.b32.xlu0 %v1101, 28
        %v1845 = vpop.permute.xlu0 %1844
        %1846 = vrot.lane.b32.xlu0 %v1103, 28
        %v1847 = vpop.permute.xlu0 %1846
        %1848 = vrot.lane.b32.xlu0 %v1106, 28
        %v1849 = vpop.permute.xlu0 %1848
        %1850 = vrot.lane.b32.xlu0 %v1108, 28
        %v1851 = vpop.permute.xlu0 %1850
        %1852 = vrot.lane.b32.xlu0 %v1111, 28
        %v1853 = vpop.permute.xlu0 %1852
        %1854 = vrot.lane.b32.xlu0 %v1113, 28
        %v1855 = vpop.permute.xlu0 %1854
        %1856 = vrot.lane.b32.xlu0 %v1116, 28
        %v1857 = vpop.permute.xlu0 %1856
        %1858 = vrot.lane.b32.xlu0 %v1118, 28
        %v1859 = vpop.permute.xlu0 %1858
        %1860 = vrot.lane.b32.xlu0 %v1121, 28
        %v1861 = vpop.permute.xlu0 %1860
        %1862 = vrot.lane.b32.xlu0 %v1123, 28
        %v1863 = vpop.permute.xlu0 %1862
        %1864 = vrot.lane.b32.xlu0 %v1126, 28
        %v1865 = vpop.permute.xlu0 %1864
        %1866 = vrot.lane.b32.xlu0 %v1128, 28
        %v1867 = vpop.permute.xlu0 %1866
        %1868 = vrot.lane.b32.xlu0 %v1215, 28
        %v1869 = vpop.permute.xlu0 %1868
        %1870 = vrot.lane.b32.xlu0 %v1217, 28
        %v1871 = vpop.permute.xlu0 %1870
        %1872 = vrot.lane.b32.xlu0 %v1228, 28
        %v1873 = vpop.permute.xlu0 %1872
        %1874 = vrot.lane.b32.xlu0 %v1230, 28
        %v1875 = vpop.permute.xlu0 %1874
        %1908 = vrot.lane.b32.xlu0 %v1142, 32
        %v1909 = vpop.permute.xlu0 %1908
        %1910 = vrot.lane.b32.xlu0 %v1144, 32
        %v1911 = vpop.permute.xlu0 %1910
        %1912 = vrot.lane.b32.xlu0 %v1147, 32
        %v1913 = vpop.permute.xlu0 %1912
        %1914 = vrot.lane.b32.xlu0 %v1149, 32
        %v1915 = vpop.permute.xlu0 %1914
        %1916 = vrot.lane.b32.xlu0 %v1152, 32
        %v1917 = vpop.permute.xlu0 %1916
        %1918 = vrot.lane.b32.xlu0 %v1154, 32
        %v1919 = vpop.permute.xlu0 %1918
        %1920 = vrot.lane.b32.xlu0 %v1157, 32
        %v1921 = vpop.permute.xlu0 %1920
        %1922 = vrot.lane.b32.xlu0 %v1159, 32
        %v1923 = vpop.permute.xlu0 %1922
        %1924 = vrot.lane.b32.xlu0 %v1162, 32
        %v1925 = vpop.permute.xlu0 %1924
        %1926 = vrot.lane.b32.xlu0 %v1164, 32
        %v1927 = vpop.permute.xlu0 %1926
        %1928 = vrot.lane.b32.xlu0 %v1167, 32
        %v1929 = vpop.permute.xlu0 %1928
        %1930 = vrot.lane.b32.xlu0 %v1169, 32
        %v1931 = vpop.permute.xlu0 %1930
        %1932 = vrot.lane.b32.xlu0 %v1172, 32
        %v1933 = vpop.permute.xlu0 %1932
        %1934 = vrot.lane.b32.xlu0 %v1174, 32
        %v1935 = vpop.permute.xlu0 %1934
        %1936 = vrot.lane.b32.xlu0 %v1177, 32
        %v1937 = vpop.permute.xlu0 %1936
        %1938 = vrot.lane.b32.xlu0 %v1179, 32
        %v1939 = vpop.permute.xlu0 %1938
        %1940 = vrot.lane.b32.xlu0 %v1182, 32
        %v1941 = vpop.permute.xlu0 %1940
        %1942 = vrot.lane.b32.xlu0 %v1184, 32
        %v1943 = vpop.permute.xlu0 %1942
        %1944 = vrot.lane.b32.xlu0 %v1187, 32
        %v1945 = vpop.permute.xlu0 %1944
        %1946 = vrot.lane.b32.xlu0 %v1189, 32
        %v1947 = vpop.permute.xlu0 %1946
        %1948 = vrot.lane.b32.xlu0 %v1192, 32
        %v1949 = vpop.permute.xlu0 %1948
        %1950 = vrot.lane.b32.xlu0 %v1194, 32
        %v1951 = vpop.permute.xlu0 %1950
        %1952 = vrot.lane.b32.xlu0 %v1197, 32
        %v1953 = vpop.permute.xlu0 %1952
        %1954 = vrot.lane.b32.xlu0 %v1199, 32
        %v1955 = vpop.permute.xlu0 %1954
        %1956 = vrot.lane.b32.xlu0 %v1202, 32
        %v1957 = vpop.permute.xlu0 %1956
        %1958 = vrot.lane.b32.xlu0 %v1204, 32
        %v1959 = vpop.permute.xlu0 %1958
        %1960 = vrot.lane.b32.xlu0 %v1207, 32
        %v1961 = vpop.permute.xlu0 %1960
        %1962 = vrot.lane.b32.xlu0 %v1209, 32
        %v1963 = vpop.permute.xlu0 %1962
        %1964 = vrot.lane.b32.xlu0 %v1220, 32
        %v1965 = vpop.permute.xlu0 %1964
        %1966 = vrot.lane.b32.xlu0 %v1222, 32
        %v1967 = vpop.permute.xlu0 %1966
        %1968 = vrot.lane.b32.xlu0 %v1233, 32
        %v1969 = vpop.permute.xlu0 %1968
        %1970 = vrot.lane.b32.xlu0 %v1235, 32
        %v1971 = vpop.permute.xlu0 %1970
        %v2004 = vsel %vm653, %v947, %v1237
        %v2005 = vsel %vm653, %v948, %v1239
        %v2006 = vsel %vm653, %v950, %v1241
        %v2007 = vsel %vm653, %v951, %v1243
        %v2008 = vsel %vm653, %v953, %v1245
        %v2009 = vsel %vm653, %v954, %v1247
        %v2010 = vsel %vm653, %v956, %v1249
        %v2011 = vsel %vm653, %v957, %v1251
        %v2012 = vsel %vm653, %v959, %v1253
        %v2013 = vsel %vm653, %v960, %v1255
        %v2014 = vsel %vm653, %v962, %v1257
        %v2015 = vsel %vm653, %v963, %v1259
        %v2016 = vsel %vm653, %v965, %v1261
        %v2017 = vsel %vm653, %v966, %v1263
        %v2018 = vsel %vm653, %v968, %v1265
        %v2019 = vsel %vm653, %v969, %v1267
        %v2020 = vsel %vm653, %v971, %v1269
        %v2021 = vsel %vm653, %v972, %v1271
        %v2022 = vsel %vm653, %v974, %v1273
        %v2023 = vsel %vm653, %v975, %v1275
        %v2024 = vsel %vm653, %v977, %v1277
        %v2025 = vsel %vm653, %v978, %v1279
        %v2026 = vsel %vm653, %v980, %v1281
        %v2027 = vsel %vm653, %v981, %v1283
        %v2028 = vsel %vm653, %v983, %v1285
        %v2029 = vsel %vm653, %v984, %v1287
        %v2030 = vsel %vm653, %v986, %v1289
        %v2031 = vsel %vm653, %v987, %v1291
        %v2032 = vsel %vm653, %v989, %v1293
        %v2033 = vsel %vm653, %v990, %v1295
        %v2034 = vsel %vm653, %v992, %v1297
        %v2035 = vsel %vm653, %v993, %v1299
        %vm2036 = vcmask 64512
        %v2037 = vsel %vm2036, %v2004, %v1333
        %v2038 = vsel %vm2036, %v2005, %v1335
        %v2039 = vsel %vm2036, %v2006, %v1337
        %v2040 = vsel %vm2036, %v2007, %v1339
        %v2041 = vsel %vm2036, %v2008, %v1341
        %v2042 = vsel %vm2036, %v2009, %v1343
        %v2043 = vsel %vm2036, %v2010, %v1345
        %v2044 = vsel %vm2036, %v2011, %v1347
        %v2045 = vsel %vm2036, %v2012, %v1349
        %v2046 = vsel %vm2036, %v2013, %v1351
        %v2047 = vsel %vm2036, %v2014, %v1353
        %v2048 = vsel %vm2036, %v2015, %v1355
        %v2049 = vsel %vm2036, %v2016, %v1357
        %v2050 = vsel %vm2036, %v2017, %v1359
        %v2051 = vsel %vm2036, %v2018, %v1361
        %v2052 = vsel %vm2036, %v2019, %v1363
        %v2053 = vsel %vm2036, %v2020, %v1365
        %v2054 = vsel %vm2036, %v2021, %v1367
        %v2055 = vsel %vm2036, %v2022, %v1369
        %v2056 = vsel %vm2036, %v2023, %v1371
        %v2057 = vsel %vm2036, %v2024, %v1373
        %v2058 = vsel %vm2036, %v2025, %v1375
        %v2059 = vsel %vm2036, %v2026, %v1377
        %v2060 = vsel %vm2036, %v2027, %v1379
        %v2061 = vsel %vm2036, %v2028, %v1381
        %v2062 = vsel %vm2036, %v2029, %v1383
        %v2063 = vsel %vm2036, %v2030, %v1385
        %v2064 = vsel %vm2036, %v2031, %v1387
        %v2065 = vsel %vm2036, %v2032, %v1389
        %v2066 = vsel %vm2036, %v2033, %v1391
        %v2067 = vsel %vm2036, %v2034, %v1393
        %v2068 = vsel %vm2036, %v2035, %v1395
        %vm2069 = vcmask 97280
        %v2070 = vsel %vm2069, %v2037, %v1429
        %v2071 = vsel %vm2069, %v2038, %v1431
        %v2072 = vsel %vm2069, %v2039, %v1433
        %v2073 = vsel %vm2069, %v2040, %v1435
        %v2074 = vsel %vm2069, %v2041, %v1437
        %v2075 = vsel %vm2069, %v2042, %v1439
        %v2076 = vsel %vm2069, %v2043, %v1441
        %v2077 = vsel %vm2069, %v2044, %v1443
        %v2078 = vsel %vm2069, %v2045, %v1445
        %v2079 = vsel %vm2069, %v2046, %v1447
        %v2080 = vsel %vm2069, %v2047, %v1449
        %v2081 = vsel %vm2069, %v2048, %v1451
        %v2082 = vsel %vm2069, %v2049, %v1453
        %v2083 = vsel %vm2069, %v2050, %v1455
        %v2084 = vsel %vm2069, %v2051, %v1457
        %v2085 = vsel %vm2069, %v2052, %v1459
        %v2086 = vsel %vm2069, %v2053, %v1461
        %v2087 = vsel %vm2069, %v2054, %v1463
        %v2088 = vsel %vm2069, %v2055, %v1465
        %v2089 = vsel %vm2069, %v2056, %v1467
        %v2090 = vsel %vm2069, %v2057, %v1469
        %v2091 = vsel %vm2069, %v2058, %v1471
        %v2092 = vsel %vm2069, %v2059, %v1473
        %v2093 = vsel %vm2069, %v2060, %v1475
        %v2094 = vsel %vm2069, %v2061, %v1477
        %v2095 = vsel %vm2069, %v2062, %v1479
        %v2096 = vsel %vm2069, %v2063, %v1481
        %v2097 = vsel %vm2069, %v2064, %v1483
        %v2098 = vsel %vm2069, %v2065, %v1485
        %v2099 = vsel %vm2069, %v2066, %v1487
        %v2100 = vsel %vm2069, %v2067, %v1489
        %v2101 = vsel %vm2069, %v2068, %v1491
        %vm2102 = vcmask 130048
        %v2103 = vsel %vm2102, %v2070, %v1525
        %v2104 = vsel %vm2102, %v2071, %v1527
        %v2105 = vsel %vm2102, %v2072, %v1529
        %v2106 = vsel %vm2102, %v2073, %v1531
        %v2107 = vsel %vm2102, %v2074, %v1533
        %v2108 = vsel %vm2102, %v2075, %v1535
        %v2109 = vsel %vm2102, %v2076, %v1537
        %v2110 = vsel %vm2102, %v2077, %v1539
        %v2111 = vsel %vm2102, %v2078, %v1541
        %v2112 = vsel %vm2102, %v2079, %v1543
        %v2113 = vsel %vm2102, %v2080, %v1545
        %v2114 = vsel %vm2102, %v2081, %v1547
        %v2115 = vsel %vm2102, %v2082, %v1549
        %v2116 = vsel %vm2102, %v2083, %v1551
        %v2117 = vsel %vm2102, %v2084, %v1553
        %v2118 = vsel %vm2102, %v2085, %v1555
        %v2119 = vsel %vm2102, %v2086, %v1557
        %v2120 = vsel %vm2102, %v2087, %v1559
        %v2121 = vsel %vm2102, %v2088, %v1561
        %v2122 = vsel %vm2102, %v2089, %v1563
        %v2123 = vsel %vm2102, %v2090, %v1565
        %v2124 = vsel %vm2102, %v2091, %v1567
        %v2125 = vsel %vm2102, %v2092, %v1569
        %v2126 = vsel %vm2102, %v2093, %v1571
        %v2127 = vsel %vm2102, %v2094, %v1573
        %v2128 = vsel %vm2102, %v2095, %v1575
        %v2129 = vsel %vm2102, %v2096, %v1577
        %v2130 = vsel %vm2102, %v2097, %v1579
        %v2131 = vsel %vm2102, %v2098, %v1581
        %v2132 = vsel %vm2102, %v2099, %v1583
        %v2133 = vsel %vm2102, %v2100, %v1585
        %v2134 = vsel %vm2102, %v2101, %v1587
        %vm2135 = vcmask 162816
        %v2136 = vsel %vm2135, %v2103, %v1621
        %v2137 = vsel %vm2135, %v2104, %v1623
        %v2138 = vsel %vm2135, %v2105, %v1625
        %v2139 = vsel %vm2135, %v2106, %v1627
        %v2140 = vsel %vm2135, %v2107, %v1629
        %v2141 = vsel %vm2135, %v2108, %v1631
        %v2142 = vsel %vm2135, %v2109, %v1633
        %v2143 = vsel %vm2135, %v2110, %v1635
        %v2144 = vsel %vm2135, %v2111, %v1637
        %v2145 = vsel %vm2135, %v2112, %v1639
        %v2146 = vsel %vm2135, %v2113, %v1641
        %v2147 = vsel %vm2135, %v2114, %v1643
        %v2148 = vsel %vm2135, %v2115, %v1645
        %v2149 = vsel %vm2135, %v2116, %v1647
        %v2150 = vsel %vm2135, %v2117, %v1649
        %v2151 = vsel %vm2135, %v2118, %v1651
        %v2152 = vsel %vm2135, %v2119, %v1653
        %v2153 = vsel %vm2135, %v2120, %v1655
        %v2154 = vsel %vm2135, %v2121, %v1657
        %v2155 = vsel %vm2135, %v2122, %v1659
        %v2156 = vsel %vm2135, %v2123, %v1661
        %v2157 = vsel %vm2135, %v2124, %v1663
        %v2158 = vsel %vm2135, %v2125, %v1665
        %v2159 = vsel %vm2135, %v2126, %v1667
        %v2160 = vsel %vm2135, %v2127, %v1669
        %v2161 = vsel %vm2135, %v2128, %v1671
        %v2162 = vsel %vm2135, %v2129, %v1673
        %v2163 = vsel %vm2135, %v2130, %v1675
        %v2164 = vsel %vm2135, %v2131, %v1677
        %v2165 = vsel %vm2135, %v2132, %v1679
        %v2166 = vsel %vm2135, %v2133, %v1681
        %v2167 = vsel %vm2135, %v2134, %v1683
        %vm2168 = vcmask 195584
        %v2169 = vsel %vm2168, %v2136, %v1717
        %v2170 = vsel %vm2168, %v2137, %v1719
        %v2171 = vsel %vm2168, %v2138, %v1721
        %v2172 = vsel %vm2168, %v2139, %v1723
        %v2173 = vsel %vm2168, %v2140, %v1725
        %v2174 = vsel %vm2168, %v2141, %v1727
        %v2175 = vsel %vm2168, %v2142, %v1729
        %v2176 = vsel %vm2168, %v2143, %v1731
        %v2177 = vsel %vm2168, %v2144, %v1733
        %v2178 = vsel %vm2168, %v2145, %v1735
        %v2179 = vsel %vm2168, %v2146, %v1737
        %v2180 = vsel %vm2168, %v2147, %v1739
        %v2181 = vsel %vm2168, %v2148, %v1741
        %v2182 = vsel %vm2168, %v2149, %v1743
        %v2183 = vsel %vm2168, %v2150, %v1745
        %v2184 = vsel %vm2168, %v2151, %v1747
        %v2185 = vsel %vm2168, %v2152, %v1749
        %v2186 = vsel %vm2168, %v2153, %v1751
        %v2187 = vsel %vm2168, %v2154, %v1753
        %v2188 = vsel %vm2168, %v2155, %v1755
        %v2189 = vsel %vm2168, %v2156, %v1757
        %v2190 = vsel %vm2168, %v2157, %v1759
        %v2191 = vsel %vm2168, %v2158, %v1761
        %v2192 = vsel %vm2168, %v2159, %v1763
        %v2193 = vsel %vm2168, %v2160, %v1765
        %v2194 = vsel %vm2168, %v2161, %v1767
        %v2195 = vsel %vm2168, %v2162, %v1769
        %v2196 = vsel %vm2168, %v2163, %v1771
        %v2197 = vsel %vm2168, %v2164, %v1773
        %v2198 = vsel %vm2168, %v2165, %v1775
        %v2199 = vsel %vm2168, %v2166, %v1777
        %v2200 = vsel %vm2168, %v2167, %v1779
        %vm2201 = vcmask 228352
        %v2202 = vsel %vm2201, %v2169, %v1813
        %v2203 = vsel %vm2201, %v2170, %v1815
        %v2204 = vsel %vm2201, %v2171, %v1817
        %v2205 = vsel %vm2201, %v2172, %v1819
        %v2206 = vsel %vm2201, %v2173, %v1821
        %v2207 = vsel %vm2201, %v2174, %v1823
        %v2208 = vsel %vm2201, %v2175, %v1825
        %v2209 = vsel %vm2201, %v2176, %v1827
        %v2210 = vsel %vm2201, %v2177, %v1829
        %v2211 = vsel %vm2201, %v2178, %v1831
        %v2212 = vsel %vm2201, %v2179, %v1833
        %v2213 = vsel %vm2201, %v2180, %v1835
        %v2214 = vsel %vm2201, %v2181, %v1837
        %v2215 = vsel %vm2201, %v2182, %v1839
        %v2216 = vsel %vm2201, %v2183, %v1841
        %v2217 = vsel %vm2201, %v2184, %v1843
        %v2218 = vsel %vm2201, %v2185, %v1845
        %v2219 = vsel %vm2201, %v2186, %v1847
        %v2220 = vsel %vm2201, %v2187, %v1849
        %v2221 = vsel %vm2201, %v2188, %v1851
        %v2222 = vsel %vm2201, %v2189, %v1853
        %v2223 = vsel %vm2201, %v2190, %v1855
        %v2224 = vsel %vm2201, %v2191, %v1857
        %v2225 = vsel %vm2201, %v2192, %v1859
        %v2226 = vsel %vm2201, %v2193, %v1861
        %v2227 = vsel %vm2201, %v2194, %v1863
        %v2228 = vsel %vm2201, %v2195, %v1865
        %v2229 = vsel %vm2201, %v2196, %v1867
        %v2230 = vsel %vm2201, %v2197, %v1869
        %v2231 = vsel %vm2201, %v2198, %v1871
        %v2232 = vsel %vm2201, %v2199, %v1873
        %v2233 = vsel %vm2201, %v2200, %v1875
        %vm2234 = vcmask 261120
        %v2235 = vsel %vm2234, %v2202, %v1909
        %v2236 = vsel %vm2234, %v2203, %v1911
        %v2237 = vsel %vm2234, %v2204, %v1913
        %v2238 = vsel %vm2234, %v2205, %v1915
        %v2239 = vsel %vm2234, %v2206, %v1917
        %v2240 = vsel %vm2234, %v2207, %v1919
        %v2241 = vsel %vm2234, %v2208, %v1921
        %v2242 = vsel %vm2234, %v2209, %v1923
        %v2243 = vsel %vm2234, %v2210, %v1925
        %v2244 = vsel %vm2234, %v2211, %v1927
        %v2245 = vsel %vm2234, %v2212, %v1929
        %v2246 = vsel %vm2234, %v2213, %v1931
        %v2247 = vsel %vm2234, %v2214, %v1933
        %v2248 = vsel %vm2234, %v2215, %v1935
        %v2249 = vsel %vm2234, %v2216, %v1937
        %v2250 = vsel %vm2234, %v2217, %v1939
        %v2251 = vsel %vm2234, %v2218, %v1941
        %v2252 = vsel %vm2234, %v2219, %v1943
        %v2253 = vsel %vm2234, %v2220, %v1945
        %v2254 = vsel %vm2234, %v2221, %v1947
        %v2255 = vsel %vm2234, %v2222, %v1949
        %v2256 = vsel %vm2234, %v2223, %v1951
        %v2257 = vsel %vm2234, %v2224, %v1953
        %v2258 = vsel %vm2234, %v2225, %v1955
        %v2259 = vsel %vm2234, %v2226, %v1957
        %v2260 = vsel %vm2234, %v2227, %v1959
        %v2261 = vsel %vm2234, %v2228, %v1961
        %v2262 = vsel %vm2234, %v2229, %v1963
        %v2263 = vsel %vm2234, %v2230, %v1965
        %v2264 = vsel %vm2234, %v2231, %v1967
        %v2265 = vsel %vm2234, %v2232, %v1969
        %v2266 = vsel %vm2234, %v2233, %v1971
        %v2267 = vld [vmem:[#allocation10] sm:$0xff]
        %v2268 = vld [vmem:[#allocation10 + $0x8] sm:$0xff]
        %v2269 = vld [vmem:[#allocation10 + $0x10] sm:$0xff]
        %v2270 = vld [vmem:[#allocation10 + $0x18] sm:$0xff]
        %v2271 = vld [vmem:[#allocation10 + $0x20] sm:$0xf]
        %vm2272 = vcmask 293888
        %v2274 = vsel %vm2272, %v2235, 0
        %v2277 = vsel %vm2272, %v2236, 0
        %v2280 = vsel %vm2272, %v2237, 0
        %v2283 = vsel %vm2272, %v2238, 0
        %v2286 = vsel %vm2272, %v2239, 0
        %v2289 = vsel %vm2272, %v2240, 0
        %v2292 = vsel %vm2272, %v2241, 0
        %v2295 = vsel %vm2272, %v2242, 0
        %v2298 = vsel %vm2272, %v2243, 0
        %v2301 = vsel %vm2272, %v2244, 0
        %v2304 = vsel %vm2272, %v2245, 0
        %v2307 = vsel %vm2272, %v2246, 0
        %v2310 = vsel %vm2272, %v2247, 0
        %v2313 = vsel %vm2272, %v2248, 0
        %v2316 = vsel %vm2272, %v2249, 0
        %v2319 = vsel %vm2272, %v2250, 0
        %v2322 = vsel %vm2272, %v2251, 0
        %v2325 = vsel %vm2272, %v2252, 0
        %v2328 = vsel %vm2272, %v2253, 0
        %v2331 = vsel %vm2272, %v2254, 0
        %v2334 = vsel %vm2272, %v2255, 0
        %v2337 = vsel %vm2272, %v2256, 0
        %v2340 = vsel %vm2272, %v2257, 0
        %v2343 = vsel %vm2272, %v2258, 0
        %v2346 = vsel %vm2272, %v2259, 0
        %v2349 = vsel %vm2272, %v2260, 0
        %v2352 = vsel %vm2272, %v2261, 0
        %v2355 = vsel %vm2272, %v2262, 0
        %v2358 = vsel %vm2272, %v2263, 0
        %v2361 = vsel %vm2272, %v2264, 0
        %v2364 = vsel %vm2272, %v2265, 0
        %v2367 = vsel %vm2272, %v2266, 0
        %v2370 = vsel %vm718, %v2271, 0
        %2372 = vmatprep.subr.mxu0 0.0
        %2373 = vmatpush1.msra.mxu0 %v2267
        %2374 = vmatprep.subr.mxu0 0.0
        %2375 = vmatpush1.msra.mxu0 %v2268
        %2376 = vmatprep.subr.mxu0 0.0
        %2377 = vmatpush1.msra.mxu0 %v2269
        %2378 = vmatprep.subr.mxu0 0.0
        %2379 = vmatpush1.msra.mxu0 %v2270
        %2380 = vmatprep.subr.mxu0 0.0
        %2381 = vmatpush1.msra.mxu0 %v2370
        %2382 = vmatprep.subr.mxu0 0.0
        %2383 = vmatpush1.msra.mxu0 0.0
        %2384 = vmatprep.subr.mxu0 0.0
        %2385 = vmatpush1.msra.mxu0 0.0
        %2386 = vmatprep.subr.mxu0 0.0
        %2387 = vmatpush1.msra.mxu0 0.0
        %2388 = vmatprep.subr.mxu0 0.0
        %2389 = vmatpush1.msra.mxu0 0.0
        %2390 = vmatprep.subr.mxu0 0.0
        %2391 = vmatpush1.msra.mxu0 0.0
        %2392 = vmatprep.subr.mxu0 0.0
        %2393 = vmatpush1.msra.mxu0 0.0
        %2394 = vmatprep.subr.mxu0 0.0
        %2395 = vmatpush1.msra.mxu0 0.0
        %2396 = vmatprep.subr.mxu0 0.0
        %2397 = vmatpush1.msra.mxu0 0.0
        %2398 = vmatprep.subr.mxu0 0.0
        %2399 = vmatpush1.msra.mxu0 0.0
        %2400 = vmatprep.subr.mxu0 0.0
        %2401 = vmatpush1.msra.mxu0 0.0
        %2402 = vmatprep.subr.mxu0 0.0
        %2403 = vmatpush1.msra.mxu0 0.0
        %2404 = vmatprep.subr.mxu0 0.0
        %2405 = vmatpush1.msra.mxu0 0.0
        %2406 = vmatprep.subr.mxu0 0.0
        %2407 = vmatpush1.msra.mxu0 0.0
        %2408 = vmatprep.subr.mxu0 0.0
        %2409 = vmatpush1.msra.mxu0 0.0
        %2410 = vmatprep.subr.mxu0 0.0
        %2411 = vmatpush1.msra.mxu0 0.0
        %2412 = vmatprep.subr.mxu0 0.0
        %2413 = vmatpush1.msra.mxu0 0.0
        %2414 = vmatprep.subr.mxu0 0.0
        %2415 = vmatpush1.msra.mxu0 0.0
        %2416 = vmatprep.subr.mxu0 0.0
        %2417 = vmatpush1.msra.mxu0 0.0
        %2418 = vmatprep.subr.mxu0 0.0
        %2419 = vmatpush1.msra.mxu0 0.0
        %2420 = vmatprep.subr.mxu0 0.0
        %2421 = vmatpush1.msra.mxu0 0.0
        %2422 = vmatprep.subr.mxu0 0.0
        %2423 = vmatpush1.msra.mxu0 0.0
        %2424 = vmatprep.subr.mxu0 0.0
        %2425 = vmatpush1.msra.mxu0 0.0
        %2426 = vmatprep.subr.mxu0 0.0
        %2427 = vmatpush1.msra.mxu0 0.0
        %2428 = vmatprep.subr.mxu0 0.0
        %2429 = vmatpush1.msra.mxu0 0.0
        %2430 = vmatprep.subr.mxu0 0.0
        %2431 = vmatpush1.msra.mxu0 0.0
        %2432 = vmatprep.subr.mxu0 0.0
        %2433 = vmatpush1.msra.mxu0 0.0
        %2434 = vmatprep.subr.mxu0 0.0
        %2435 = vmatpush1.msra.mxu0 0.0
        %2436 = vmatprep.mubr.f32.mxu0 0.0
        %2437 = vmatmul.mubr.f32.gmra.mrb[0].mxu0 %v2274
        %v2438 = vpop.f32.mrb[0].mxu0
        %v2439 = vadd.f32 0.0, %v2438
        %v2440 = vpop.f32.mrb[0].mxu0
        %2441 = vmatprep.mubr.f32.mxu0 0.0
        %2442 = vmatmul.mubr.f32.gmra.mrb[0].mxu0 %v2277
        %v2443 = vpop.f32.mrb[0].mxu0
        %v2444 = vadd.f32 0.0, %v2443
        %v2445 = vpop.f32.mrb[0].mxu0
        %2446 = vmatprep.mubr.f32.mxu0 0.0
        %2447 = vmatmul.mubr.f32.gmra.mrb[0].mxu0 %v2280
        %v2448 = vpop.f32.mrb[0].mxu0
        %v2449 = vadd.f32 0.0, %v2448
        %v2450 = vpop.f32.mrb[0].mxu0
        %2451 = vmatprep.mubr.f32.mxu0 0.0
        %2452 = vmatmul.mubr.f32.gmra.mrb[0].mxu0 %v2283
        %v2453 = vpop.f32.mrb[0].mxu0
        %v2454 = vadd.f32 0.0, %v2453
        %v2455 = vpop.f32.mrb[0].mxu0
        %2456 = vmatprep.mubr.f32.mxu0 0.0
        %2457 = vmatmul.mubr.f32.gmra.mrb[0].mxu0 %v2286
        %v2458 = vpop.f32.mrb[0].mxu0
        %v2459 = vadd.f32 0.0, %v2458
        %v2460 = vpop.f32.mrb[0].mxu0
        %2461 = vmatprep.mubr.f32.mxu0 0.0
        %2462 = vmatmul.mubr.f32.gmra.mrb[0].mxu0 %v2289
        %v2463 = vpop.f32.mrb[0].mxu0
        %v2464 = vadd.f32 0.0, %v2463
        %v2465 = vpop.f32.mrb[0].mxu0
        %2466 = vmatprep.mubr.f32.mxu0 0.0
        %2467 = vmatmul.mubr.f32.gmra.mrb[0].mxu0 %v2292
        %v2468 = vpop.f32.mrb[0].mxu0
        %v2469 = vadd.f32 0.0, %v2468
        %v2470 = vpop.f32.mrb[0].mxu0
        %2471 = vmatprep.mubr.f32.mxu0 0.0
        %2472 = vmatmul.mubr.f32.gmra.mrb[0].mxu0 %v2295
        %v2473 = vpop.f32.mrb[0].mxu0
        %v2474 = vadd.f32 0.0, %v2473
        %v2475 = vpop.f32.mrb[0].mxu0
        %2476 = vmatprep.mubr.f32.mxu0 0.0
        %2477 = vmatmul.mubr.f32.gmra.mrb[0].mxu0 %v2298
        %v2478 = vpop.f32.mrb[0].mxu0
        %v2479 = vadd.f32 0.0, %v2478
        %v2480 = vpop.f32.mrb[0].mxu0
        %2481 = vmatprep.mubr.f32.mxu0 0.0
        %2482 = vmatmul.mubr.f32.gmra.mrb[0].mxu0 %v2301
        %v2483 = vpop.f32.mrb[0].mxu0
        %v2484 = vadd.f32 0.0, %v2483
        %v2485 = vpop.f32.mrb[0].mxu0
        %2486 = vmatprep.mubr.f32.mxu0 0.0
        %2487 = vmatmul.mubr.f32.gmra.mrb[0].mxu0 %v2304
        %v2488 = vpop.f32.mrb[0].mxu0
        %v2489 = vadd.f32 0.0, %v2488
        %v2490 = vpop.f32.mrb[0].mxu0
        %2491 = vmatprep.mubr.f32.mxu0 0.0
        %2492 = vmatmul.mubr.f32.gmra.mrb[0].mxu0 %v2307
        %v2493 = vpop.f32.mrb[0].mxu0
        %v2494 = vadd.f32 0.0, %v2493
        %v2495 = vpop.f32.mrb[0].mxu0
        %2496 = vmatprep.mubr.f32.mxu0 0.0
        %2497 = vmatmul.mubr.f32.gmra.mrb[0].mxu0 %v2310
        %v2498 = vpop.f32.mrb[0].mxu0
        %v2499 = vadd.f32 0.0, %v2498
        %v2500 = vpop.f32.mrb[0].mxu0
        %2501 = vmatprep.mubr.f32.mxu0 0.0
        %2502 = vmatmul.mubr.f32.gmra.mrb[0].mxu0 %v2313
        %v2503 = vpop.f32.mrb[0].mxu0
        %v2504 = vadd.f32 0.0, %v2503
        %v2505 = vpop.f32.mrb[0].mxu0
        %2506 = vmatprep.mubr.f32.mxu0 0.0
        %2507 = vmatmul.mubr.f32.gmra.mrb[0].mxu0 %v2316
        %v2508 = vpop.f32.mrb[0].mxu0
        %v2509 = vadd.f32 0.0, %v2508
        %v2510 = vpop.f32.mrb[0].mxu0
        %2511 = vmatprep.mubr.f32.mxu0 0.0
        %2512 = vmatmul.mubr.f32.gmra.mrb[0].mxu0 %v2319
        %v2513 = vpop.f32.mrb[0].mxu0
        %v2514 = vadd.f32 0.0, %v2513
        %v2515 = vpop.f32.mrb[0].mxu0
        %2516 = vmatprep.mubr.f32.mxu0 0.0
        %2517 = vmatmul.mubr.f32.gmra.mrb[0].mxu0 %v2322
        %v2518 = vpop.f32.mrb[0].mxu0
        %v2519 = vadd.f32 0.0, %v2518
        %v2520 = vpop.f32.mrb[0].mxu0
        %2521 = vmatprep.mubr.f32.mxu0 0.0
        %2522 = vmatmul.mubr.f32.gmra.mrb[0].mxu0 %v2325
        %v2523 = vpop.f32.mrb[0].mxu0
        %v2524 = vadd.f32 0.0, %v2523
        %v2525 = vpop.f32.mrb[0].mxu0
        %2526 = vmatprep.mubr.f32.mxu0 0.0
        %2527 = vmatmul.mubr.f32.gmra.mrb[0].mxu0 %v2328
        %v2528 = vpop.f32.mrb[0].mxu0
        %v2529 = vadd.f32 0.0, %v2528
        %v2530 = vpop.f32.mrb[0].mxu0
        %2531 = vmatprep.mubr.f32.mxu0 0.0
        %2532 = vmatmul.mubr.f32.gmra.mrb[0].mxu0 %v2331
        %v2533 = vpop.f32.mrb[0].mxu0
        %v2534 = vadd.f32 0.0, %v2533
        %v2535 = vpop.f32.mrb[0].mxu0
        %2536 = vmatprep.mubr.f32.mxu0 0.0
        %2537 = vmatmul.mubr.f32.gmra.mrb[0].mxu0 %v2334
        %v2538 = vpop.f32.mrb[0].mxu0
        %v2539 = vadd.f32 0.0, %v2538
        %v2540 = vpop.f32.mrb[0].mxu0
        %2541 = vmatprep.mubr.f32.mxu0 0.0
        %2542 = vmatmul.mubr.f32.gmra.mrb[0].mxu0 %v2337
        %v2543 = vpop.f32.mrb[0].mxu0
        %v2544 = vadd.f32 0.0, %v2543
        %v2545 = vpop.f32.mrb[0].mxu0
        %2546 = vmatprep.mubr.f32.mxu0 0.0
        %2547 = vmatmul.mubr.f32.gmra.mrb[0].mxu0 %v2340
        %v2548 = vpop.f32.mrb[0].mxu0
        %v2549 = vadd.f32 0.0, %v2548
        %v2550 = vpop.f32.mrb[0].mxu0
        %2551 = vmatprep.mubr.f32.mxu0 0.0
        %2552 = vmatmul.mubr.f32.gmra.mrb[0].mxu0 %v2343
        %v2553 = vpop.f32.mrb[0].mxu0
        %v2554 = vadd.f32 0.0, %v2553
        %v2555 = vpop.f32.mrb[0].mxu0
        %2556 = vmatprep.mubr.f32.mxu0 0.0
        %2557 = vmatmul.mubr.f32.gmra.mrb[0].mxu0 %v2346
        %v2558 = vpop.f32.mrb[0].mxu0
        %v2559 = vadd.f32 0.0, %v2558
        %v2560 = vpop.f32.mrb[0].mxu0
        %2561 = vmatprep.mubr.f32.mxu0 0.0
        %2562 = vmatmul.mubr.f32.gmra.mrb[0].mxu0 %v2349
        %v2563 = vpop.f32.mrb[0].mxu0
        %v2564 = vadd.f32 0.0, %v2563
        %v2565 = vpop.f32.mrb[0].mxu0
        %2566 = vmatprep.mubr.f32.mxu0 0.0
        %2567 = vmatmul.mubr.f32.gmra.mrb[0].mxu0 %v2352
        %v2568 = vpop.f32.mrb[0].mxu0
        %v2569 = vadd.f32 0.0, %v2568
        %v2570 = vpop.f32.mrb[0].mxu0
        %2571 = vmatprep.mubr.f32.mxu0 0.0
        %2572 = vmatmul.mubr.f32.gmra.mrb[0].mxu0 %v2355
        %v2573 = vpop.f32.mrb[0].mxu0
        %v2574 = vadd.f32 0.0, %v2573
        %v2575 = vpop.f32.mrb[0].mxu0
        %2576 = vmatprep.mubr.f32.mxu0 0.0
        %2577 = vmatmul.mubr.f32.gmra.mrb[0].mxu0 %v2358
        %v2578 = vpop.f32.mrb[0].mxu0
        %v2579 = vadd.f32 0.0, %v2578
        %v2580 = vpop.f32.mrb[0].mxu0
        %2581 = vmatprep.mubr.f32.mxu0 0.0
        %2582 = vmatmul.mubr.f32.gmra.mrb[0].mxu0 %v2361
        %v2583 = vpop.f32.mrb[0].mxu0
        %v2584 = vadd.f32 0.0, %v2583
        %v2585 = vpop.f32.mrb[0].mxu0
        %2586 = vmatprep.mubr.f32.mxu0 0.0
        %2587 = vmatmul.mubr.f32.gmra.mrb[0].mxu0 %v2364
        %v2588 = vpop.f32.mrb[0].mxu0
        %v2589 = vadd.f32 0.0, %v2588
        %v2590 = vpop.f32.mrb[0].mxu0
        %2591 = vmatprep.mubr.f32.mxu0 0.0
        %2592 = vmatmul.mubr.f32.gmra.mrb[0].mxu0 %v2367
        %v2593 = vpop.f32.mrb[0].mxu0
        %v2594 = vadd.f32 0.0, %v2593
        %v2595 = vpop.f32.mrb[0].mxu0
        %2596 = vdwg.mxu0
        %v2597 = vld [vmem:[%s405] sm:$0xff]
        %v2598 = vld [vmem:[%s405 + $0x8] sm:$0xff]
        %v2599 = vld [vmem:[%s405 + $0x10] sm:$0x3]
        %v2600 = vld [vmem:[%s405 + $0x18] sm:$0xff]
        %v2601 = vld [vmem:[%s405 + $0x20] sm:$0xff]
        %v2602 = vld [vmem:[%s405 + $0x28] sm:$0x3]
        %v2603 = vld [vmem:[%s405 + $0x30] sm:$0xff]
        %v2604 = vld [vmem:[%s405 + $0x38] sm:$0xff]
        %v2605 = vld [vmem:[%s405 + $0x40] sm:$0x3]
        %v2606 = vld [vmem:[%s405 + $0x48] sm:$0xff]
        %v2607 = vld [vmem:[%s405 + $0x50] sm:$0xff]
        %v2608 = vld [vmem:[%s405 + $0x58] sm:$0x3]
        %v2609 = vld [vmem:[%s405 + $0x60] sm:$0xff]
        %v2610 = vld [vmem:[%s405 + $0x68] sm:$0xff]
        %v2611 = vld [vmem:[%s405 + $0x70] sm:$0x3]
        %v2612 = vld [vmem:[%s405 + $0x78] sm:$0xff]
        %v2613 = vld [vmem:[%s405 + $0x80] sm:$0xff]
        %v2614 = vld [vmem:[%s405 + $0x88] sm:$0x3]
        %v2615 = vld [vmem:[%s405 + $0x90] sm:$0xff]
        %v2616 = vld [vmem:[%s405 + $0x98] sm:$0xff]
        %v2617 = vld [vmem:[%s405 + $0xa0] sm:$0x3]
        %v2618 = vld [vmem:[%s405 + $0xa8] sm:$0xff]
        %v2619 = vld [vmem:[%s405 + $0xb0] sm:$0xff]
        %v2620 = vld [vmem:[%s405 + $0xb8] sm:$0x3]
        %v2621 = vld [vmem:[%s405 + $0xc0] sm:$0xff]
        %v2622 = vld [vmem:[%s405 + $0xc8] sm:$0xff]
        %v2623 = vld [vmem:[%s405 + $0xd0] sm:$0x3]
        %v2624 = vld [vmem:[%s405 + $0xd8] sm:$0xff]
        %v2625 = vld [vmem:[%s405 + $0xe0] sm:$0xff]
        %v2626 = vld [vmem:[%s405 + $0xe8] sm:$0x3]
        %v2627 = vld [vmem:[%s405 + $0xf0] sm:$0xff]
        %v2628 = vld [vmem:[%s405 + $0xf8] sm:$0xff]
        %v2629 = vld [vmem:[%s405 + $0x100] sm:$0x3]
        %v2630 = vld [vmem:[%s405 + $0x108] sm:$0xff]
        %v2631 = vld [vmem:[%s405 + $0x110] sm:$0xff]
        %v2632 = vld [vmem:[%s405 + $0x118] sm:$0x3]
        %v2633 = vld [vmem:[%s405 + $0x120] sm:$0xff]
        %v2634 = vld [vmem:[%s405 + $0x128] sm:$0xff]
        %v2635 = vld [vmem:[%s405 + $0x130] sm:$0x3]
        %v2636 = vld [vmem:[%s405 + $0x138] sm:$0xff]
        %v2637 = vld [vmem:[%s405 + $0x140] sm:$0xff]
        %v2638 = vld [vmem:[%s405 + $0x148] sm:$0x3]
        %v2639 = vld [vmem:[%s405 + $0x150] sm:$0xff]
        %v2640 = vld [vmem:[%s405 + $0x158] sm:$0xff]
        %v2641 = vld [vmem:[%s405 + $0x160] sm:$0x3]
        %v2642 = vld [vmem:[%s405 + $0x168] sm:$0xff]
        %v2643 = vld [vmem:[%s405 + $0x170] sm:$0xff]
        %v2644 = vld [vmem:[%s405 + $0x178] sm:$0x3]
        %v2645 = vld [vmem:[%s405 + $0x180] sm:$0xff]
        %v2646 = vld [vmem:[%s405 + $0x188] sm:$0xff]
        %v2647 = vld [vmem:[%s405 + $0x190] sm:$0x3]
        %v2648 = vld [vmem:[%s405 + $0x198] sm:$0xff]
        %v2649 = vld [vmem:[%s405 + $0x1a0] sm:$0xff]
        %v2650 = vld [vmem:[%s405 + $0x1a8] sm:$0x3]
        %v2699 = vrot.slane %v2597, 1
        %v2700 = vrot.slane %v2598, 1
        %v2701 = vsel %vm571, %v2699, %v2700
        %v2702 = vrot.slane %v2599, 1
        %v2703 = vsel %vm571, %v2700, %v2702
        %v2704 = vrot.slane %v2600, 1
        %v2705 = vrot.slane %v2601, 1
        %v2706 = vsel %vm571, %v2704, %v2705
        %v2707 = vrot.slane %v2602, 1
        %v2708 = vsel %vm571, %v2705, %v2707
        %v2709 = vrot.slane %v2603, 1
        %v2710 = vrot.slane %v2604, 1
        %v2711 = vsel %vm571, %v2709, %v2710
        %v2712 = vrot.slane %v2605, 1
        %v2713 = vsel %vm571, %v2710, %v2712
        %v2714 = vrot.slane %v2606, 1
        %v2715 = vrot.slane %v2607, 1
        %v2716 = vsel %vm571, %v2714, %v2715
        %v2717 = vrot.slane %v2608, 1
        %v2718 = vsel %vm571, %v2715, %v2717
        %v2719 = vrot.slane %v2609, 1
        %v2720 = vrot.slane %v2610, 1
        %v2721 = vsel %vm571, %v2719, %v2720
        %v2722 = vrot.slane %v2611, 1
        %v2723 = vsel %vm571, %v2720, %v2722
        %v2724 = vrot.slane %v2612, 1
        %v2725 = vrot.slane %v2613, 1
        %v2726 = vsel %vm571, %v2724, %v2725
        %v2727 = vrot.slane %v2614, 1
        %v2728 = vsel %vm571, %v2725, %v2727
        %v2729 = vrot.slane %v2615, 1
        %v2730 = vrot.slane %v2616, 1
        %v2731 = vsel %vm571, %v2729, %v2730
        %v2732 = vrot.slane %v2617, 1
        %v2733 = vsel %vm571, %v2730, %v2732
        %v2734 = vrot.slane %v2618, 1
        %v2735 = vrot.slane %v2619, 1
        %v2736 = vsel %vm571, %v2734, %v2735
        %v2737 = vrot.slane %v2620, 1
        %v2738 = vsel %vm571, %v2735, %v2737
        %v2739 = vrot.slane %v2621, 1
        %v2740 = vrot.slane %v2622, 1
        %v2741 = vsel %vm571, %v2739, %v2740
        %v2742 = vrot.slane %v2623, 1
        %v2743 = vsel %vm571, %v2740, %v2742
        %v2744 = vrot.slane %v2624, 1
        %v2745 = vrot.slane %v2625, 1
        %v2746 = vsel %vm571, %v2744, %v2745
        %v2747 = vrot.slane %v2626, 1
        %v2748 = vsel %vm571, %v2745, %v2747
        %v2749 = vrot.slane %v2627, 1
        %v2750 = vrot.slane %v2628, 1
        %v2751 = vsel %vm571, %v2749, %v2750
        %v2752 = vrot.slane %v2629, 1
        %v2753 = vsel %vm571, %v2750, %v2752
        %v2754 = vrot.slane %v2630, 1
        %v2755 = vrot.slane %v2631, 1
        %v2756 = vsel %vm571, %v2754, %v2755
        %v2757 = vrot.slane %v2632, 1
        %v2758 = vsel %vm571, %v2755, %v2757
        %v2759 = vrot.slane %v2633, 1
        %v2760 = vrot.slane %v2634, 1
        %v2761 = vsel %vm571, %v2759, %v2760
        %v2762 = vrot.slane %v2635, 1
        %v2763 = vsel %vm571, %v2760, %v2762
        %v2764 = vrot.slane %v2636, 1
        %v2765 = vrot.slane %v2637, 1
        %v2766 = vsel %vm571, %v2764, %v2765
        %v2767 = vrot.slane %v2638, 1
        %v2768 = vsel %vm571, %v2765, %v2767
        %v2769 = vrot.slane %v2639, 1
        %v2770 = vrot.slane %v2640, 1
        %v2771 = vsel %vm571, %v2769, %v2770
        %v2772 = vrot.slane %v2641, 1
        %v2773 = vsel %vm571, %v2770, %v2772
        %v2774 = vrot.slane %v2642, 1
        %v2775 = vrot.slane %v2643, 1
        %v2776 = vsel %vm571, %v2774, %v2775
        %v2777 = vrot.slane %v2644, 1
        %v2778 = vsel %vm571, %v2775, %v2777
        %v2779 = vrot.slane %v2597, 2
        %v2780 = vrot.slane %v2598, 2
        %v2781 = vsel %vm1129, %v2779, %v2780
        %v2782 = vrot.slane %v2599, 2
        %v2783 = vsel %vm1129, %v2780, %v2782
        %v2784 = vrot.slane %v2600, 2
        %v2785 = vrot.slane %v2601, 2
        %v2786 = vsel %vm1129, %v2784, %v2785
        %v2787 = vrot.slane %v2602, 2
        %v2788 = vsel %vm1129, %v2785, %v2787
        %v2789 = vrot.slane %v2603, 2
        %v2790 = vrot.slane %v2604, 2
        %v2791 = vsel %vm1129, %v2789, %v2790
        %v2792 = vrot.slane %v2605, 2
        %v2793 = vsel %vm1129, %v2790, %v2792
        %v2794 = vrot.slane %v2606, 2
        %v2795 = vrot.slane %v2607, 2
        %v2796 = vsel %vm1129, %v2794, %v2795
        %v2797 = vrot.slane %v2608, 2
        %v2798 = vsel %vm1129, %v2795, %v2797
        %v2799 = vrot.slane %v2609, 2
        %v2800 = vrot.slane %v2610, 2
        %v2801 = vsel %vm1129, %v2799, %v2800
        %v2802 = vrot.slane %v2611, 2
        %v2803 = vsel %vm1129, %v2800, %v2802
        %v2804 = vrot.slane %v2612, 2
        %v2805 = vrot.slane %v2613, 2
        %v2806 = vsel %vm1129, %v2804, %v2805
        %v2807 = vrot.slane %v2614, 2
        %v2808 = vsel %vm1129, %v2805, %v2807
        %v2809 = vrot.slane %v2615, 2
        %v2810 = vrot.slane %v2616, 2
        %v2811 = vsel %vm1129, %v2809, %v2810
        %v2812 = vrot.slane %v2617, 2
        %v2813 = vsel %vm1129, %v2810, %v2812
        %v2814 = vrot.slane %v2618, 2
        %v2815 = vrot.slane %v2619, 2
        %v2816 = vsel %vm1129, %v2814, %v2815
        %v2817 = vrot.slane %v2620, 2
        %v2818 = vsel %vm1129, %v2815, %v2817
        %v2819 = vrot.slane %v2621, 2
        %v2820 = vrot.slane %v2622, 2
        %v2821 = vsel %vm1129, %v2819, %v2820
        %v2822 = vrot.slane %v2623, 2
        %v2823 = vsel %vm1129, %v2820, %v2822
        %v2824 = vrot.slane %v2624, 2
        %v2825 = vrot.slane %v2625, 2
        %v2826 = vsel %vm1129, %v2824, %v2825
        %v2827 = vrot.slane %v2626, 2
        %v2828 = vsel %vm1129, %v2825, %v2827
        %v2829 = vrot.slane %v2627, 2
        %v2830 = vrot.slane %v2628, 2
        %v2831 = vsel %vm1129, %v2829, %v2830
        %v2832 = vrot.slane %v2629, 2
        %v2833 = vsel %vm1129, %v2830, %v2832
        %v2834 = vrot.slane %v2630, 2
        %v2835 = vrot.slane %v2631, 2
        %v2836 = vsel %vm1129, %v2834, %v2835
        %v2837 = vrot.slane %v2632, 2
        %v2838 = vsel %vm1129, %v2835, %v2837
        %v2839 = vrot.slane %v2633, 2
        %v2840 = vrot.slane %v2634, 2
        %v2841 = vsel %vm1129, %v2839, %v2840
        %v2842 = vrot.slane %v2635, 2
        %v2843 = vsel %vm1129, %v2840, %v2842
        %v2844 = vrot.slane %v2636, 2
        %v2845 = vrot.slane %v2637, 2
        %v2846 = vsel %vm1129, %v2844, %v2845
        %v2847 = vrot.slane %v2638, 2
        %v2848 = vsel %vm1129, %v2845, %v2847
        %v2849 = vrot.slane %v2639, 2
        %v2850 = vrot.slane %v2640, 2
        %v2851 = vsel %vm1129, %v2849, %v2850
        %v2852 = vrot.slane %v2641, 2
        %v2853 = vsel %vm1129, %v2850, %v2852
        %v2854 = vrot.slane %v2642, 2
        %v2855 = vrot.slane %v2643, 2
        %v2856 = vsel %vm1129, %v2854, %v2855
        %v2857 = vrot.slane %v2644, 2
        %v2858 = vsel %vm1129, %v2855, %v2857
        %v2862 = vrot.slane %v2645, 1
        %v2863 = vrot.slane %v2646, 1
        %v2864 = vsel %vm571, %v2862, %v2863
        %v2865 = vrot.slane %v2647, 1
        %v2866 = vsel %vm571, %v2863, %v2865
        %v2867 = vrot.slane %v2645, 2
        %v2868 = vrot.slane %v2646, 2
        %v2869 = vsel %vm1129, %v2867, %v2868
        %v2870 = vrot.slane %v2647, 2
        %v2871 = vsel %vm1129, %v2868, %v2870
        %v2875 = vrot.slane %v2648, 1
        %v2876 = vrot.slane %v2649, 1
        %v2877 = vsel %vm571, %v2875, %v2876
        %v2878 = vrot.slane %v2650, 1
        %v2879 = vsel %vm571, %v2876, %v2878
        %v2880 = vrot.slane %v2648, 2
        %v2881 = vrot.slane %v2649, 2
        %v2882 = vsel %vm1129, %v2880, %v2881
        %v2883 = vrot.slane %v2650, 2
        %v2884 = vsel %vm1129, %v2881, %v2883
        %2885 = vrot.lane.b32.xlu0 %v2701, 8
        %v2886 = vpop.permute.xlu0 %2885
        %2887 = vrot.lane.b32.xlu0 %v2703, 8
        %v2888 = vpop.permute.xlu0 %2887
        %2889 = vrot.lane.b32.xlu0 %v2706, 8
        %v2890 = vpop.permute.xlu0 %2889
        %2891 = vrot.lane.b32.xlu0 %v2708, 8
        %v2892 = vpop.permute.xlu0 %2891
        %2893 = vrot.lane.b32.xlu0 %v2711, 8
        %v2894 = vpop.permute.xlu0 %2893
        %2895 = vrot.lane.b32.xlu0 %v2713, 8
        %v2896 = vpop.permute.xlu0 %2895
        %2897 = vrot.lane.b32.xlu0 %v2716, 8
        %v2898 = vpop.permute.xlu0 %2897
        %2899 = vrot.lane.b32.xlu0 %v2718, 8
        %v2900 = vpop.permute.xlu0 %2899
        %2901 = vrot.lane.b32.xlu0 %v2721, 8
        %v2902 = vpop.permute.xlu0 %2901
        %2903 = vrot.lane.b32.xlu0 %v2723, 8
        %v2904 = vpop.permute.xlu0 %2903
        %2905 = vrot.lane.b32.xlu0 %v2726, 8
        %v2906 = vpop.permute.xlu0 %2905
        %2907 = vrot.lane.b32.xlu0 %v2728, 8
        %v2908 = vpop.permute.xlu0 %2907
        %2909 = vrot.lane.b32.xlu0 %v2731, 8
        %v2910 = vpop.permute.xlu0 %2909
        %2911 = vrot.lane.b32.xlu0 %v2733, 8
        %v2912 = vpop.permute.xlu0 %2911
        %2913 = vrot.lane.b32.xlu0 %v2736, 8
        %v2914 = vpop.permute.xlu0 %2913
        %2915 = vrot.lane.b32.xlu0 %v2738, 8
        %v2916 = vpop.permute.xlu0 %2915
        %2917 = vrot.lane.b32.xlu0 %v2741, 8
        %v2918 = vpop.permute.xlu0 %2917
        %2919 = vrot.lane.b32.xlu0 %v2743, 8
        %v2920 = vpop.permute.xlu0 %2919
        %2921 = vrot.lane.b32.xlu0 %v2746, 8
        %v2922 = vpop.permute.xlu0 %2921
        %2923 = vrot.lane.b32.xlu0 %v2748, 8
        %v2924 = vpop.permute.xlu0 %2923
        %2925 = vrot.lane.b32.xlu0 %v2751, 8
        %v2926 = vpop.permute.xlu0 %2925
        %2927 = vrot.lane.b32.xlu0 %v2753, 8
        %v2928 = vpop.permute.xlu0 %2927
        %2929 = vrot.lane.b32.xlu0 %v2756, 8
        %v2930 = vpop.permute.xlu0 %2929
        %2931 = vrot.lane.b32.xlu0 %v2758, 8
        %v2932 = vpop.permute.xlu0 %2931
        %2933 = vrot.lane.b32.xlu0 %v2761, 8
        %v2934 = vpop.permute.xlu0 %2933
        %2935 = vrot.lane.b32.xlu0 %v2763, 8
        %v2936 = vpop.permute.xlu0 %2935
        %2937 = vrot.lane.b32.xlu0 %v2766, 8
        %v2938 = vpop.permute.xlu0 %2937
        %2939 = vrot.lane.b32.xlu0 %v2768, 8
        %v2940 = vpop.permute.xlu0 %2939
        %2941 = vrot.lane.b32.xlu0 %v2771, 8
        %v2942 = vpop.permute.xlu0 %2941
        %2943 = vrot.lane.b32.xlu0 %v2773, 8
        %v2944 = vpop.permute.xlu0 %2943
        %2945 = vrot.lane.b32.xlu0 %v2776, 8
        %v2946 = vpop.permute.xlu0 %2945
        %2947 = vrot.lane.b32.xlu0 %v2778, 8
        %v2948 = vpop.permute.xlu0 %2947
        %2981 = vrot.lane.b32.xlu0 %v2781, 16
        %v2982 = vpop.permute.xlu0 %2981
        %2983 = vrot.lane.b32.xlu0 %v2783, 16
        %v2984 = vpop.permute.xlu0 %2983
        %2985 = vrot.lane.b32.xlu0 %v2786, 16
        %v2986 = vpop.permute.xlu0 %2985
        %2987 = vrot.lane.b32.xlu0 %v2788, 16
        %v2988 = vpop.permute.xlu0 %2987
        %2989 = vrot.lane.b32.xlu0 %v2791, 16
        %v2990 = vpop.permute.xlu0 %2989
        %2991 = vrot.lane.b32.xlu0 %v2793, 16
        %v2992 = vpop.permute.xlu0 %2991
        %2993 = vrot.lane.b32.xlu0 %v2796, 16
        %v2994 = vpop.permute.xlu0 %2993
        %2995 = vrot.lane.b32.xlu0 %v2798, 16
        %v2996 = vpop.permute.xlu0 %2995
        %2997 = vrot.lane.b32.xlu0 %v2801, 16
        %v2998 = vpop.permute.xlu0 %2997
        %2999 = vrot.lane.b32.xlu0 %v2803, 16
        %v3000 = vpop.permute.xlu0 %2999
        %3001 = vrot.lane.b32.xlu0 %v2806, 16
        %v3002 = vpop.permute.xlu0 %3001
        %3003 = vrot.lane.b32.xlu0 %v2808, 16
        %v3004 = vpop.permute.xlu0 %3003
        %3005 = vrot.lane.b32.xlu0 %v2811, 16
        %v3006 = vpop.permute.xlu0 %3005
        %3007 = vrot.lane.b32.xlu0 %v2813, 16
        %v3008 = vpop.permute.xlu0 %3007
        %3009 = vrot.lane.b32.xlu0 %v2816, 16
        %v3010 = vpop.permute.xlu0 %3009
        %3011 = vrot.lane.b32.xlu0 %v2818, 16
        %v3012 = vpop.permute.xlu0 %3011
        %3013 = vrot.lane.b32.xlu0 %v2821, 16
        %v3014 = vpop.permute.xlu0 %3013
        %3015 = vrot.lane.b32.xlu0 %v2823, 16
        %v3016 = vpop.permute.xlu0 %3015
        %3017 = vrot.lane.b32.xlu0 %v2826, 16
        %v3018 = vpop.permute.xlu0 %3017
        %3019 = vrot.lane.b32.xlu0 %v2828, 16
        %v3020 = vpop.permute.xlu0 %3019
        %3021 = vrot.lane.b32.xlu0 %v2831, 16
        %v3022 = vpop.permute.xlu0 %3021
        %3023 = vrot.lane.b32.xlu0 %v2833, 16
        %v3024 = vpop.permute.xlu0 %3023
        %3025 = vrot.lane.b32.xlu0 %v2836, 16
        %v3026 = vpop.permute.xlu0 %3025
        %3027 = vrot.lane.b32.xlu0 %v2838, 16
        %v3028 = vpop.permute.xlu0 %3027
        %3029 = vrot.lane.b32.xlu0 %v2841, 16
        %v3030 = vpop.permute.xlu0 %3029
        %3031 = vrot.lane.b32.xlu0 %v2843, 16
        %v3032 = vpop.permute.xlu0 %3031
        %3033 = vrot.lane.b32.xlu0 %v2846, 16
        %v3034 = vpop.permute.xlu0 %3033
        %3035 = vrot.lane.b32.xlu0 %v2848, 16
        %v3036 = vpop.permute.xlu0 %3035
        %3037 = vrot.lane.b32.xlu0 %v2851, 16
        %v3038 = vpop.permute.xlu0 %3037
        %3039 = vrot.lane.b32.xlu0 %v2853, 16
        %v3040 = vpop.permute.xlu0 %3039
        %3041 = vrot.lane.b32.xlu0 %v2856, 16
        %v3042 = vpop.permute.xlu0 %3041
        %3043 = vrot.lane.b32.xlu0 %v2858, 16
        %v3044 = vpop.permute.xlu0 %3043
        %3077 = vrot.lane.b32.xlu0 %v2600, 24
        %v3078 = vpop.permute.xlu0 %3077
        %3079 = vrot.lane.b32.xlu0 %v2601, 24
        %v3080 = vpop.permute.xlu0 %3079
        %3081 = vrot.lane.b32.xlu0 %v2603, 24
        %v3082 = vpop.permute.xlu0 %3081
        %3083 = vrot.lane.b32.xlu0 %v2604, 24
        %v3084 = vpop.permute.xlu0 %3083
        %3085 = vrot.lane.b32.xlu0 %v2606, 24
        %v3086 = vpop.permute.xlu0 %3085
        %3087 = vrot.lane.b32.xlu0 %v2607, 24
        %v3088 = vpop.permute.xlu0 %3087
        %3089 = vrot.lane.b32.xlu0 %v2609, 24
        %v3090 = vpop.permute.xlu0 %3089
        %3091 = vrot.lane.b32.xlu0 %v2610, 24
        %v3092 = vpop.permute.xlu0 %3091
        %3093 = vrot.lane.b32.xlu0 %v2612, 24
        %v3094 = vpop.permute.xlu0 %3093
        %3095 = vrot.lane.b32.xlu0 %v2613, 24
        %v3096 = vpop.permute.xlu0 %3095
        %3097 = vrot.lane.b32.xlu0 %v2615, 24
        %v3098 = vpop.permute.xlu0 %3097
        %3099 = vrot.lane.b32.xlu0 %v2616, 24
        %v3100 = vpop.permute.xlu0 %3099
        %3101 = vrot.lane.b32.xlu0 %v2618, 24
        %v3102 = vpop.permute.xlu0 %3101
        %3103 = vrot.lane.b32.xlu0 %v2619, 24
        %v3104 = vpop.permute.xlu0 %3103
        %3105 = vrot.lane.b32.xlu0 %v2621, 24
        %v3106 = vpop.permute.xlu0 %3105
        %3107 = vrot.lane.b32.xlu0 %v2622, 24
        %v3108 = vpop.permute.xlu0 %3107
        %3109 = vrot.lane.b32.xlu0 %v2624, 24
        %v3110 = vpop.permute.xlu0 %3109
        %3111 = vrot.lane.b32.xlu0 %v2625, 24
        %v3112 = vpop.permute.xlu0 %3111
        %3113 = vrot.lane.b32.xlu0 %v2627, 24
        %v3114 = vpop.permute.xlu0 %3113
        %3115 = vrot.lane.b32.xlu0 %v2628, 24
        %v3116 = vpop.permute.xlu0 %3115
        %3117 = vrot.lane.b32.xlu0 %v2630, 24
        %v3118 = vpop.permute.xlu0 %3117
        %3119 = vrot.lane.b32.xlu0 %v2631, 24
        %v3120 = vpop.permute.xlu0 %3119
        %3121 = vrot.lane.b32.xlu0 %v2633, 24
        %v3122 = vpop.permute.xlu0 %3121
        %3123 = vrot.lane.b32.xlu0 %v2634, 24
        %v3124 = vpop.permute.xlu0 %3123
        %3125 = vrot.lane.b32.xlu0 %v2636, 24
        %v3126 = vpop.permute.xlu0 %3125
        %3127 = vrot.lane.b32.xlu0 %v2637, 24
        %v3128 = vpop.permute.xlu0 %3127
        %3129 = vrot.lane.b32.xlu0 %v2639, 24
        %v3130 = vpop.permute.xlu0 %3129
        %3131 = vrot.lane.b32.xlu0 %v2640, 24
        %v3132 = vpop.permute.xlu0 %3131
        %3133 = vrot.lane.b32.xlu0 %v2642, 24
        %v3134 = vpop.permute.xlu0 %3133
        %3135 = vrot.lane.b32.xlu0 %v2643, 24
        %v3136 = vpop.permute.xlu0 %3135
        %3137 = vrot.lane.b32.xlu0 %v2645, 24
        %v3138 = vpop.permute.xlu0 %3137
        %3139 = vrot.lane.b32.xlu0 %v2646, 24
        %v3140 = vpop.permute.xlu0 %3139
        %3173 = vrot.lane.b32.xlu0 %v2706, 32
        %v3174 = vpop.permute.xlu0 %3173
        %3175 = vrot.lane.b32.xlu0 %v2708, 32
        %v3176 = vpop.permute.xlu0 %3175
        %3177 = vrot.lane.b32.xlu0 %v2711, 32
        %v3178 = vpop.permute.xlu0 %3177
        %3179 = vrot.lane.b32.xlu0 %v2713, 32
        %v3180 = vpop.permute.xlu0 %3179
        %3181 = vrot.lane.b32.xlu0 %v2716, 32
        %v3182 = vpop.permute.xlu0 %3181
        %3183 = vrot.lane.b32.xlu0 %v2718, 32
        %v3184 = vpop.permute.xlu0 %3183
        %3185 = vrot.lane.b32.xlu0 %v2721, 32
        %v3186 = vpop.permute.xlu0 %3185
        %3187 = vrot.lane.b32.xlu0 %v2723, 32
        %v3188 = vpop.permute.xlu0 %3187
        %3189 = vrot.lane.b32.xlu0 %v2726, 32
        %v3190 = vpop.permute.xlu0 %3189
        %3191 = vrot.lane.b32.xlu0 %v2728, 32
        %v3192 = vpop.permute.xlu0 %3191
        %3193 = vrot.lane.b32.xlu0 %v2731, 32
        %v3194 = vpop.permute.xlu0 %3193
        %3195 = vrot.lane.b32.xlu0 %v2733, 32
        %v3196 = vpop.permute.xlu0 %3195
        %3197 = vrot.lane.b32.xlu0 %v2736, 32
        %v3198 = vpop.permute.xlu0 %3197
        %3199 = vrot.lane.b32.xlu0 %v2738, 32
        %v3200 = vpop.permute.xlu0 %3199
        %3201 = vrot.lane.b32.xlu0 %v2741, 32
        %v3202 = vpop.permute.xlu0 %3201
        %3203 = vrot.lane.b32.xlu0 %v2743, 32
        %v3204 = vpop.permute.xlu0 %3203
        %3205 = vrot.lane.b32.xlu0 %v2746, 32
        %v3206 = vpop.permute.xlu0 %3205
        %3207 = vrot.lane.b32.xlu0 %v2748, 32
        %v3208 = vpop.permute.xlu0 %3207
        %3209 = vrot.lane.b32.xlu0 %v2751, 32
        %v3210 = vpop.permute.xlu0 %3209
        %3211 = vrot.lane.b32.xlu0 %v2753, 32
        %v3212 = vpop.permute.xlu0 %3211
        %3213 = vrot.lane.b32.xlu0 %v2756, 32
        %v3214 = vpop.permute.xlu0 %3213
        %3215 = vrot.lane.b32.xlu0 %v2758, 32
        %v3216 = vpop.permute.xlu0 %3215
        %3217 = vrot.lane.b32.xlu0 %v2761, 32
        %v3218 = vpop.permute.xlu0 %3217
        %3219 = vrot.lane.b32.xlu0 %v2763, 32
        %v3220 = vpop.permute.xlu0 %3219
        %3221 = vrot.lane.b32.xlu0 %v2766, 32
        %v3222 = vpop.permute.xlu0 %3221
        %3223 = vrot.lane.b32.xlu0 %v2768, 32
        %v3224 = vpop.permute.xlu0 %3223
        %3225 = vrot.lane.b32.xlu0 %v2771, 32
        %v3226 = vpop.permute.xlu0 %3225
        %3227 = vrot.lane.b32.xlu0 %v2773, 32
        %v3228 = vpop.permute.xlu0 %3227
        %3229 = vrot.lane.b32.xlu0 %v2776, 32
        %v3230 = vpop.permute.xlu0 %3229
        %3231 = vrot.lane.b32.xlu0 %v2778, 32
        %v3232 = vpop.permute.xlu0 %3231
        %3233 = vrot.lane.b32.xlu0 %v2864, 32
        %v3234 = vpop.permute.xlu0 %3233
        %3235 = vrot.lane.b32.xlu0 %v2866, 32
        %v3236 = vpop.permute.xlu0 %3235
        %3269 = vrot.lane.b32.xlu0 %v2786, 40
        %v3270 = vpop.permute.xlu0 %3269
        %3271 = vrot.lane.b32.xlu0 %v2788, 40
        %v3272 = vpop.permute.xlu0 %3271
        %3273 = vrot.lane.b32.xlu0 %v2791, 40
        %v3274 = vpop.permute.xlu0 %3273
        %3275 = vrot.lane.b32.xlu0 %v2793, 40
        %v3276 = vpop.permute.xlu0 %3275
        %3277 = vrot.lane.b32.xlu0 %v2796, 40
        %v3278 = vpop.permute.xlu0 %3277
        %3279 = vrot.lane.b32.xlu0 %v2798, 40
        %v3280 = vpop.permute.xlu0 %3279
        %3281 = vrot.lane.b32.xlu0 %v2801, 40
        %v3282 = vpop.permute.xlu0 %3281
        %3283 = vrot.lane.b32.xlu0 %v2803, 40
        %v3284 = vpop.permute.xlu0 %3283
        %3285 = vrot.lane.b32.xlu0 %v2806, 40
        %v3286 = vpop.permute.xlu0 %3285
        %3287 = vrot.lane.b32.xlu0 %v2808, 40
        %v3288 = vpop.permute.xlu0 %3287
        %3289 = vrot.lane.b32.xlu0 %v2811, 40
        %v3290 = vpop.permute.xlu0 %3289
        %3291 = vrot.lane.b32.xlu0 %v2813, 40
        %v3292 = vpop.permute.xlu0 %3291
        %3293 = vrot.lane.b32.xlu0 %v2816, 40
        %v3294 = vpop.permute.xlu0 %3293
        %3295 = vrot.lane.b32.xlu0 %v2818, 40
        %v3296 = vpop.permute.xlu0 %3295
        %3297 = vrot.lane.b32.xlu0 %v2821, 40
        %v3298 = vpop.permute.xlu0 %3297
        %3299 = vrot.lane.b32.xlu0 %v2823, 40
        %v3300 = vpop.permute.xlu0 %3299
        %3301 = vrot.lane.b32.xlu0 %v2826, 40
        %v3302 = vpop.permute.xlu0 %3301
        %3303 = vrot.lane.b32.xlu0 %v2828, 40
        %v3304 = vpop.permute.xlu0 %3303
        %3305 = vrot.lane.b32.xlu0 %v2831, 40
        %v3306 = vpop.permute.xlu0 %3305
        %3307 = vrot.lane.b32.xlu0 %v2833, 40
        %v3308 = vpop.permute.xlu0 %3307
        %3309 = vrot.lane.b32.xlu0 %v2836, 40
        %v3310 = vpop.permute.xlu0 %3309
        %3311 = vrot.lane.b32.xlu0 %v2838, 40
        %v3312 = vpop.permute.xlu0 %3311
        %3313 = vrot.lane.b32.xlu0 %v2841, 40
        %v3314 = vpop.permute.xlu0 %3313
        %3315 = vrot.lane.b32.xlu0 %v2843, 40
        %v3316 = vpop.permute.xlu0 %3315
        %3317 = vrot.lane.b32.xlu0 %v2846, 40
        %v3318 = vpop.permute.xlu0 %3317
        %3319 = vrot.lane.b32.xlu0 %v2848, 40
        %v3320 = vpop.permute.xlu0 %3319
        %3321 = vrot.lane.b32.xlu0 %v2851, 40
        %v3322 = vpop.permute.xlu0 %3321
        %3323 = vrot.lane.b32.xlu0 %v2853, 40
        %v3324 = vpop.permute.xlu0 %3323
        %3325 = vrot.lane.b32.xlu0 %v2856, 40
        %v3326 = vpop.permute.xlu0 %3325
        %3327 = vrot.lane.b32.xlu0 %v2858, 40
        %v3328 = vpop.permute.xlu0 %3327
        %3329 = vrot.lane.b32.xlu0 %v2869, 40
        %v3330 = vpop.permute.xlu0 %3329
        %3331 = vrot.lane.b32.xlu0 %v2871, 40
        %v3332 = vpop.permute.xlu0 %3331
        %3365 = vrot.lane.b32.xlu0 %v2603, 48
        %v3366 = vpop.permute.xlu0 %3365
        %3367 = vrot.lane.b32.xlu0 %v2604, 48
        %v3368 = vpop.permute.xlu0 %3367
        %3369 = vrot.lane.b32.xlu0 %v2606, 48
        %v3370 = vpop.permute.xlu0 %3369
        %3371 = vrot.lane.b32.xlu0 %v2607, 48
        %v3372 = vpop.permute.xlu0 %3371
        %3373 = vrot.lane.b32.xlu0 %v2609, 48
        %v3374 = vpop.permute.xlu0 %3373
        %3375 = vrot.lane.b32.xlu0 %v2610, 48
        %v3376 = vpop.permute.xlu0 %3375
        %3377 = vrot.lane.b32.xlu0 %v2612, 48
        %v3378 = vpop.permute.xlu0 %3377
        %3379 = vrot.lane.b32.xlu0 %v2613, 48
        %v3380 = vpop.permute.xlu0 %3379
        %3381 = vrot.lane.b32.xlu0 %v2615, 48
        %v3382 = vpop.permute.xlu0 %3381
        %3383 = vrot.lane.b32.xlu0 %v2616, 48
        %v3384 = vpop.permute.xlu0 %3383
        %3385 = vrot.lane.b32.xlu0 %v2618, 48
        %v3386 = vpop.permute.xlu0 %3385
        %3387 = vrot.lane.b32.xlu0 %v2619, 48
        %v3388 = vpop.permute.xlu0 %3387
        %3389 = vrot.lane.b32.xlu0 %v2621, 48
        %v3390 = vpop.permute.xlu0 %3389
        %3391 = vrot.lane.b32.xlu0 %v2622, 48
        %v3392 = vpop.permute.xlu0 %3391
        %3393 = vrot.lane.b32.xlu0 %v2624, 48
        %v3394 = vpop.permute.xlu0 %3393
        %3395 = vrot.lane.b32.xlu0 %v2625, 48
        %v3396 = vpop.permute.xlu0 %3395
        %3397 = vrot.lane.b32.xlu0 %v2627, 48
        %v3398 = vpop.permute.xlu0 %3397
        %3399 = vrot.lane.b32.xlu0 %v2628, 48
        %v3400 = vpop.permute.xlu0 %3399
        %3401 = vrot.lane.b32.xlu0 %v2630, 48
        %v3402 = vpop.permute.xlu0 %3401
        %3403 = vrot.lane.b32.xlu0 %v2631, 48
        %v3404 = vpop.permute.xlu0 %3403
        %3405 = vrot.lane.b32.xlu0 %v2633, 48
        %v3406 = vpop.permute.xlu0 %3405
        %3407 = vrot.lane.b32.xlu0 %v2634, 48
        %v3408 = vpop.permute.xlu0 %3407
        %3409 = vrot.lane.b32.xlu0 %v2636, 48
        %v3410 = vpop.permute.xlu0 %3409
        %3411 = vrot.lane.b32.xlu0 %v2637, 48
        %v3412 = vpop.permute.xlu0 %3411
        %3413 = vrot.lane.b32.xlu0 %v2639, 48
        %v3414 = vpop.permute.xlu0 %3413
        %3415 = vrot.lane.b32.xlu0 %v2640, 48
        %v3416 = vpop.permute.xlu0 %3415
        %3417 = vrot.lane.b32.xlu0 %v2642, 48
        %v3418 = vpop.permute.xlu0 %3417
        %3419 = vrot.lane.b32.xlu0 %v2643, 48
        %v3420 = vpop.permute.xlu0 %3419
        %3421 = vrot.lane.b32.xlu0 %v2645, 48
        %v3422 = vpop.permute.xlu0 %3421
        %3423 = vrot.lane.b32.xlu0 %v2646, 48
        %v3424 = vpop.permute.xlu0 %3423
        %3425 = vrot.lane.b32.xlu0 %v2648, 48
        %v3426 = vpop.permute.xlu0 %3425
        %3427 = vrot.lane.b32.xlu0 %v2649, 48
        %v3428 = vpop.permute.xlu0 %3427
        %3461 = vrot.lane.b32.xlu0 %v2711, 56
        %v3462 = vpop.permute.xlu0 %3461
        %3463 = vrot.lane.b32.xlu0 %v2713, 56
        %v3464 = vpop.permute.xlu0 %3463
        %3465 = vrot.lane.b32.xlu0 %v2716, 56
        %v3466 = vpop.permute.xlu0 %3465
        %3467 = vrot.lane.b32.xlu0 %v2718, 56
        %v3468 = vpop.permute.xlu0 %3467
        %3469 = vrot.lane.b32.xlu0 %v2721, 56
        %v3470 = vpop.permute.xlu0 %3469
        %3471 = vrot.lane.b32.xlu0 %v2723, 56
        %v3472 = vpop.permute.xlu0 %3471
        %3473 = vrot.lane.b32.xlu0 %v2726, 56
        %v3474 = vpop.permute.xlu0 %3473
        %3475 = vrot.lane.b32.xlu0 %v2728, 56
        %v3476 = vpop.permute.xlu0 %3475
        %3477 = vrot.lane.b32.xlu0 %v2731, 56
        %v3478 = vpop.permute.xlu0 %3477
        %3479 = vrot.lane.b32.xlu0 %v2733, 56
        %v3480 = vpop.permute.xlu0 %3479
        %3481 = vrot.lane.b32.xlu0 %v2736, 56
        %v3482 = vpop.permute.xlu0 %3481
        %3483 = vrot.lane.b32.xlu0 %v2738, 56
        %v3484 = vpop.permute.xlu0 %3483
        %3485 = vrot.lane.b32.xlu0 %v2741, 56
        %v3486 = vpop.permute.xlu0 %3485
        %3487 = vrot.lane.b32.xlu0 %v2743, 56
        %v3488 = vpop.permute.xlu0 %3487
        %3489 = vrot.lane.b32.xlu0 %v2746, 56
        %v3490 = vpop.permute.xlu0 %3489
        %3491 = vrot.lane.b32.xlu0 %v2748, 56
        %v3492 = vpop.permute.xlu0 %3491
        %3493 = vrot.lane.b32.xlu0 %v2751, 56
        %v3494 = vpop.permute.xlu0 %3493
        %3495 = vrot.lane.b32.xlu0 %v2753, 56
        %v3496 = vpop.permute.xlu0 %3495
        %3497 = vrot.lane.b32.xlu0 %v2756, 56
        %v3498 = vpop.permute.xlu0 %3497
        %3499 = vrot.lane.b32.xlu0 %v2758, 56
        %v3500 = vpop.permute.xlu0 %3499
        %3501 = vrot.lane.b32.xlu0 %v2761, 56
        %v3502 = vpop.permute.xlu0 %3501
        %3503 = vrot.lane.b32.xlu0 %v2763, 56
        %v3504 = vpop.permute.xlu0 %3503
        %3505 = vrot.lane.b32.xlu0 %v2766, 56
        %v3506 = vpop.permute.xlu0 %3505
        %3507 = vrot.lane.b32.xlu0 %v2768, 56
        %v3508 = vpop.permute.xlu0 %3507
        %3509 = vrot.lane.b32.xlu0 %v2771, 56
        %v3510 = vpop.permute.xlu0 %3509
        %3511 = vrot.lane.b32.xlu0 %v2773, 56
        %v3512 = vpop.permute.xlu0 %3511
        %3513 = vrot.lane.b32.xlu0 %v2776, 56
        %v3514 = vpop.permute.xlu0 %3513
        %3515 = vrot.lane.b32.xlu0 %v2778, 56
        %v3516 = vpop.permute.xlu0 %3515
        %3517 = vrot.lane.b32.xlu0 %v2864, 56
        %v3518 = vpop.permute.xlu0 %3517
        %3519 = vrot.lane.b32.xlu0 %v2866, 56
        %v3520 = vpop.permute.xlu0 %3519
        %3521 = vrot.lane.b32.xlu0 %v2877, 56
        %v3522 = vpop.permute.xlu0 %3521
        %3523 = vrot.lane.b32.xlu0 %v2879, 56
        %v3524 = vpop.permute.xlu0 %3523
        %3557 = vrot.lane.b32.xlu0 %v2791, 64
        %v3558 = vpop.permute.xlu0 %3557
        %3559 = vrot.lane.b32.xlu0 %v2793, 64
        %v3560 = vpop.permute.xlu0 %3559
        %3561 = vrot.lane.b32.xlu0 %v2796, 64
        %v3562 = vpop.permute.xlu0 %3561
        %3563 = vrot.lane.b32.xlu0 %v2798, 64
        %v3564 = vpop.permute.xlu0 %3563
        %3565 = vrot.lane.b32.xlu0 %v2801, 64
        %v3566 = vpop.permute.xlu0 %3565
        %3567 = vrot.lane.b32.xlu0 %v2803, 64
        %v3568 = vpop.permute.xlu0 %3567
        %3569 = vrot.lane.b32.xlu0 %v2806, 64
        %v3570 = vpop.permute.xlu0 %3569
        %3571 = vrot.lane.b32.xlu0 %v2808, 64
        %v3572 = vpop.permute.xlu0 %3571
        %3573 = vrot.lane.b32.xlu0 %v2811, 64
        %v3574 = vpop.permute.xlu0 %3573
        %3575 = vrot.lane.b32.xlu0 %v2813, 64
        %v3576 = vpop.permute.xlu0 %3575
        %3577 = vrot.lane.b32.xlu0 %v2816, 64
        %v3578 = vpop.permute.xlu0 %3577
        %3579 = vrot.lane.b32.xlu0 %v2818, 64
        %v3580 = vpop.permute.xlu0 %3579
        %3581 = vrot.lane.b32.xlu0 %v2821, 64
        %v3582 = vpop.permute.xlu0 %3581
        %3583 = vrot.lane.b32.xlu0 %v2823, 64
        %v3584 = vpop.permute.xlu0 %3583
        %3585 = vrot.lane.b32.xlu0 %v2826, 64
        %v3586 = vpop.permute.xlu0 %3585
        %3587 = vrot.lane.b32.xlu0 %v2828, 64
        %v3588 = vpop.permute.xlu0 %3587
        %3589 = vrot.lane.b32.xlu0 %v2831, 64
        %v3590 = vpop.permute.xlu0 %3589
        %3591 = vrot.lane.b32.xlu0 %v2833, 64
        %v3592 = vpop.permute.xlu0 %3591
        %3593 = vrot.lane.b32.xlu0 %v2836, 64
        %v3594 = vpop.permute.xlu0 %3593
        %3595 = vrot.lane.b32.xlu0 %v2838, 64
        %v3596 = vpop.permute.xlu0 %3595
        %3597 = vrot.lane.b32.xlu0 %v2841, 64
        %v3598 = vpop.permute.xlu0 %3597
        %3599 = vrot.lane.b32.xlu0 %v2843, 64
        %v3600 = vpop.permute.xlu0 %3599
        %3601 = vrot.lane.b32.xlu0 %v2846, 64
        %v3602 = vpop.permute.xlu0 %3601
        %3603 = vrot.lane.b32.xlu0 %v2848, 64
        %v3604 = vpop.permute.xlu0 %3603
        %3605 = vrot.lane.b32.xlu0 %v2851, 64
        %v3606 = vpop.permute.xlu0 %3605
        %3607 = vrot.lane.b32.xlu0 %v2853, 64
        %v3608 = vpop.permute.xlu0 %3607
        %3609 = vrot.lane.b32.xlu0 %v2856, 64
        %v3610 = vpop.permute.xlu0 %3609
        %3611 = vrot.lane.b32.xlu0 %v2858, 64
        %v3612 = vpop.permute.xlu0 %3611
        %3613 = vrot.lane.b32.xlu0 %v2869, 64
        %v3614 = vpop.permute.xlu0 %3613
        %3615 = vrot.lane.b32.xlu0 %v2871, 64
        %v3616 = vpop.permute.xlu0 %3615
        %3617 = vrot.lane.b32.xlu0 %v2882, 64
        %v3618 = vpop.permute.xlu0 %3617
        %3619 = vrot.lane.b32.xlu0 %v2884, 64
        %v3620 = vpop.permute.xlu0 %3619
        %v3653 = vsel %vm2036, %v2597, %v2886
        %v3654 = vsel %vm2036, %v2598, %v2888
        %v3655 = vsel %vm2036, %v2600, %v2890
        %v3656 = vsel %vm2036, %v2601, %v2892
        %v3657 = vsel %vm2036, %v2603, %v2894
        %v3658 = vsel %vm2036, %v2604, %v2896
        %v3659 = vsel %vm2036, %v2606, %v2898
        %v3660 = vsel %vm2036, %v2607, %v2900
        %v3661 = vsel %vm2036, %v2609, %v2902
        %v3662 = vsel %vm2036, %v2610, %v2904
        %v3663 = vsel %vm2036, %v2612, %v2906
        %v3664 = vsel %vm2036, %v2613, %v2908
        %v3665 = vsel %vm2036, %v2615, %v2910
        %v3666 = vsel %vm2036, %v2616, %v2912
        %v3667 = vsel %vm2036, %v2618, %v2914
        %v3668 = vsel %vm2036, %v2619, %v2916
        %v3669 = vsel %vm2036, %v2621, %v2918
        %v3670 = vsel %vm2036, %v2622, %v2920
        %v3671 = vsel %vm2036, %v2624, %v2922
        %v3672 = vsel %vm2036, %v2625, %v2924
        %v3673 = vsel %vm2036, %v2627, %v2926
        %v3674 = vsel %vm2036, %v2628, %v2928
        %v3675 = vsel %vm2036, %v2630, %v2930
        %v3676 = vsel %vm2036, %v2631, %v2932
        %v3677 = vsel %vm2036, %v2633, %v2934
        %v3678 = vsel %vm2036, %v2634, %v2936
        %v3679 = vsel %vm2036, %v2636, %v2938
        %v3680 = vsel %vm2036, %v2637, %v2940
        %v3681 = vsel %vm2036, %v2639, %v2942
        %v3682 = vsel %vm2036, %v2640, %v2944
        %v3683 = vsel %vm2036, %v2642, %v2946
        %v3684 = vsel %vm2036, %v2643, %v2948
        %v3685 = vsel %vm2102, %v3653, %v2982
        %v3686 = vsel %vm2102, %v3654, %v2984
        %v3687 = vsel %vm2102, %v3655, %v2986
        %v3688 = vsel %vm2102, %v3656, %v2988
        %v3689 = vsel %vm2102, %v3657, %v2990
        %v3690 = vsel %vm2102, %v3658, %v2992
        %v3691 = vsel %vm2102, %v3659, %v2994
        %v3692 = vsel %vm2102, %v3660, %v2996
        %v3693 = vsel %vm2102, %v3661, %v2998
        %v3694 = vsel %vm2102, %v3662, %v3000
        %v3695 = vsel %vm2102, %v3663, %v3002
        %v3696 = vsel %vm2102, %v3664, %v3004
        %v3697 = vsel %vm2102, %v3665, %v3006
        %v3698 = vsel %vm2102, %v3666, %v3008
        %v3699 = vsel %vm2102, %v3667, %v3010
        %v3700 = vsel %vm2102, %v3668, %v3012
        %v3701 = vsel %vm2102, %v3669, %v3014
        %v3702 = vsel %vm2102, %v3670, %v3016
        %v3703 = vsel %vm2102, %v3671, %v3018
        %v3704 = vsel %vm2102, %v3672, %v3020
        %v3705 = vsel %vm2102, %v3673, %v3022
        %v3706 = vsel %vm2102, %v3674, %v3024
        %v3707 = vsel %vm2102, %v3675, %v3026
        %v3708 = vsel %vm2102, %v3676, %v3028
        %v3709 = vsel %vm2102, %v3677, %v3030
        %v3710 = vsel %vm2102, %v3678, %v3032
        %v3711 = vsel %vm2102, %v3679, %v3034
        %v3712 = vsel %vm2102, %v3680, %v3036
        %v3713 = vsel %vm2102, %v3681, %v3038
        %v3714 = vsel %vm2102, %v3682, %v3040
        %v3715 = vsel %vm2102, %v3683, %v3042
        %v3716 = vsel %vm2102, %v3684, %v3044
        %v3717 = vsel %vm2168, %v3685, %v3078
        %v3718 = vsel %vm2168, %v3686, %v3080
        %v3719 = vsel %vm2168, %v3687, %v3082
        %v3720 = vsel %vm2168, %v3688, %v3084
        %v3721 = vsel %vm2168, %v3689, %v3086
        %v3722 = vsel %vm2168, %v3690, %v3088
        %v3723 = vsel %vm2168, %v3691, %v3090
        %v3724 = vsel %vm2168, %v3692, %v3092
        %v3725 = vsel %vm2168, %v3693, %v3094
        %v3726 = vsel %vm2168, %v3694, %v3096
        %v3727 = vsel %vm2168, %v3695, %v3098
        %v3728 = vsel %vm2168, %v3696, %v3100
        %v3729 = vsel %vm2168, %v3697, %v3102
        %v3730 = vsel %vm2168, %v3698, %v3104
        %v3731 = vsel %vm2168, %v3699, %v3106
        %v3732 = vsel %vm2168, %v3700, %v3108
        %v3733 = vsel %vm2168, %v3701, %v3110
        %v3734 = vsel %vm2168, %v3702, %v3112
        %v3735 = vsel %vm2168, %v3703, %v3114
        %v3736 = vsel %vm2168, %v3704, %v3116
        %v3737 = vsel %vm2168, %v3705, %v3118
        %v3738 = vsel %vm2168, %v3706, %v3120
        %v3739 = vsel %vm2168, %v3707, %v3122
        %v3740 = vsel %vm2168, %v3708, %v3124
        %v3741 = vsel %vm2168, %v3709, %v3126
        %v3742 = vsel %vm2168, %v3710, %v3128
        %v3743 = vsel %vm2168, %v3711, %v3130
        %v3744 = vsel %vm2168, %v3712, %v3132
        %v3745 = vsel %vm2168, %v3713, %v3134
        %v3746 = vsel %vm2168, %v3714, %v3136
        %v3747 = vsel %vm2168, %v3715, %v3138
        %v3748 = vsel %vm2168, %v3716, %v3140
        %v3749 = vsel %vm2234, %v3717, %v3174
        %v3750 = vsel %vm2234, %v3718, %v3176
        %v3751 = vsel %vm2234, %v3719, %v3178
        %v3752 = vsel %vm2234, %v3720, %v3180
        %v3753 = vsel %vm2234, %v3721, %v3182
        %v3754 = vsel %vm2234, %v3722, %v3184
        %v3755 = vsel %vm2234, %v3723, %v3186
        %v3756 = vsel %vm2234, %v3724, %v3188
        %v3757 = vsel %vm2234, %v3725, %v3190
        %v3758 = vsel %vm2234, %v3726, %v3192
        %v3759 = vsel %vm2234, %v3727, %v3194
        %v3760 = vsel %vm2234, %v3728, %v3196
        %v3761 = vsel %vm2234, %v3729, %v3198
        %v3762 = vsel %vm2234, %v3730, %v3200
        %v3763 = vsel %vm2234, %v3731, %v3202
        %v3764 = vsel %vm2234, %v3732, %v3204
        %v3765 = vsel %vm2234, %v3733, %v3206
        %v3766 = vsel %vm2234, %v3734, %v3208
        %v3767 = vsel %vm2234, %v3735, %v3210
        %v3768 = vsel %vm2234, %v3736, %v3212
        %v3769 = vsel %vm2234, %v3737, %v3214
        %v3770 = vsel %vm2234, %v3738, %v3216
        %v3771 = vsel %vm2234, %v3739, %v3218
        %v3772 = vsel %vm2234, %v3740, %v3220
        %v3773 = vsel %vm2234, %v3741, %v3222
        %v3774 = vsel %vm2234, %v3742, %v3224
        %v3775 = vsel %vm2234, %v3743, %v3226
        %v3776 = vsel %vm2234, %v3744, %v3228
        %v3777 = vsel %vm2234, %v3745, %v3230
        %v3778 = vsel %vm2234, %v3746, %v3232
        %v3779 = vsel %vm2234, %v3747, %v3234
        %v3780 = vsel %vm2234, %v3748, %v3236
        %vm3781 = vcmask 326656
        %v3782 = vsel %vm3781, %v3749, %v3270
        %v3783 = vsel %vm3781, %v3750, %v3272
        %v3784 = vsel %vm3781, %v3751, %v3274
        %v3785 = vsel %vm3781, %v3752, %v3276
        %v3786 = vsel %vm3781, %v3753, %v3278
        %v3787 = vsel %vm3781, %v3754, %v3280
        %v3788 = vsel %vm3781, %v3755, %v3282
        %v3789 = vsel %vm3781, %v3756, %v3284
        %v3790 = vsel %vm3781, %v3757, %v3286
        %v3791 = vsel %vm3781, %v3758, %v3288
        %v3792 = vsel %vm3781, %v3759, %v3290
        %v3793 = vsel %vm3781, %v3760, %v3292
        %v3794 = vsel %vm3781, %v3761, %v3294
        %v3795 = vsel %vm3781, %v3762, %v3296
        %v3796 = vsel %vm3781, %v3763, %v3298
        %v3797 = vsel %vm3781, %v3764, %v3300
        %v3798 = vsel %vm3781, %v3765, %v3302
        %v3799 = vsel %vm3781, %v3766, %v3304
        %v3800 = vsel %vm3781, %v3767, %v3306
        %v3801 = vsel %vm3781, %v3768, %v3308
        %v3802 = vsel %vm3781, %v3769, %v3310
        %v3803 = vsel %vm3781, %v3770, %v3312
        %v3804 = vsel %vm3781, %v3771, %v3314
        %v3805 = vsel %vm3781, %v3772, %v3316
        %v3806 = vsel %vm3781, %v3773, %v3318
        %v3807 = vsel %vm3781, %v3774, %v3320
        %v3808 = vsel %vm3781, %v3775, %v3322
        %v3809 = vsel %vm3781, %v3776, %v3324
        %v3810 = vsel %vm3781, %v3777, %v3326
        %v3811 = vsel %vm3781, %v3778, %v3328
        %v3812 = vsel %vm3781, %v3779, %v3330
        %v3813 = vsel %vm3781, %v3780, %v3332
        %vm3814 = vcmask 392192
        %v3815 = vsel %vm3814, %v3782, %v3366
        %v3816 = vsel %vm3814, %v3783, %v3368
        %v3817 = vsel %vm3814, %v3784, %v3370
        %v3818 = vsel %vm3814, %v3785, %v3372
        %v3819 = vsel %vm3814, %v3786, %v3374
        %v3820 = vsel %vm3814, %v3787, %v3376
        %v3821 = vsel %vm3814, %v3788, %v3378
        %v3822 = vsel %vm3814, %v3789, %v3380
        %v3823 = vsel %vm3814, %v3790, %v3382
        %v3824 = vsel %vm3814, %v3791, %v3384
        %v3825 = vsel %vm3814, %v3792, %v3386
        %v3826 = vsel %vm3814, %v3793, %v3388
        %v3827 = vsel %vm3814, %v3794, %v3390
        %v3828 = vsel %vm3814, %v3795, %v3392
        %v3829 = vsel %vm3814, %v3796, %v3394
        %v3830 = vsel %vm3814, %v3797, %v3396
        %v3831 = vsel %vm3814, %v3798, %v3398
        %v3832 = vsel %vm3814, %v3799, %v3400
        %v3833 = vsel %vm3814, %v3800, %v3402
        %v3834 = vsel %vm3814, %v3801, %v3404
        %v3835 = vsel %vm3814, %v3802, %v3406
        %v3836 = vsel %vm3814, %v3803, %v3408
        %v3837 = vsel %vm3814, %v3804, %v3410
        %v3838 = vsel %vm3814, %v3805, %v3412
        %v3839 = vsel %vm3814, %v3806, %v3414
        %v3840 = vsel %vm3814, %v3807, %v3416
        %v3841 = vsel %vm3814, %v3808, %v3418
        %v3842 = vsel %vm3814, %v3809, %v3420
        %v3843 = vsel %vm3814, %v3810, %v3422
        %v3844 = vsel %vm3814, %v3811, %v3424
        %v3845 = vsel %vm3814, %v3812, %v3426
        %v3846 = vsel %vm3814, %v3813, %v3428
        %vm3847 = vcmask 457728
        %v3848 = vsel %vm3847, %v3815, %v3462
        %v3849 = vsel %vm3847, %v3816, %v3464
        %v3850 = vsel %vm3847, %v3817, %v3466
        %v3851 = vsel %vm3847, %v3818, %v3468
        %v3852 = vsel %vm3847, %v3819, %v3470
        %v3853 = vsel %vm3847, %v3820, %v3472
        %v3854 = vsel %vm3847, %v3821, %v3474
        %v3855 = vsel %vm3847, %v3822, %v3476
        %v3856 = vsel %vm3847, %v3823, %v3478
        %v3857 = vsel %vm3847, %v3824, %v3480
        %v3858 = vsel %vm3847, %v3825, %v3482
        %v3859 = vsel %vm3847, %v3826, %v3484
        %v3860 = vsel %vm3847, %v3827, %v3486
        %v3861 = vsel %vm3847, %v3828, %v3488
        %v3862 = vsel %vm3847, %v3829, %v3490
        %v3863 = vsel %vm3847, %v3830, %v3492
        %v3864 = vsel %vm3847, %v3831, %v3494
        %v3865 = vsel %vm3847, %v3832, %v3496
        %v3866 = vsel %vm3847, %v3833, %v3498
        %v3867 = vsel %vm3847, %v3834, %v3500
        %v3868 = vsel %vm3847, %v3835, %v3502
        %v3869 = vsel %vm3847, %v3836, %v3504
        %v3870 = vsel %vm3847, %v3837, %v3506
        %v3871 = vsel %vm3847, %v3838, %v3508
        %v3872 = vsel %vm3847, %v3839, %v3510
        %v3873 = vsel %vm3847, %v3840, %v3512
        %v3874 = vsel %vm3847, %v3841, %v3514
        %v3875 = vsel %vm3847, %v3842, %v3516
        %v3876 = vsel %vm3847, %v3843, %v3518
        %v3877 = vsel %vm3847, %v3844, %v3520
        %v3878 = vsel %vm3847, %v3845, %v3522
        %v3879 = vsel %vm3847, %v3846, %v3524
        %vm3880 = vcmask 523264
        %v3881 = vsel %vm3880, %v3848, %v3558
        %v3882 = vsel %vm3880, %v3849, %v3560
        %v3883 = vsel %vm3880, %v3850, %v3562
        %v3884 = vsel %vm3880, %v3851, %v3564
        %v3885 = vsel %vm3880, %v3852, %v3566
        %v3886 = vsel %vm3880, %v3853, %v3568
        %v3887 = vsel %vm3880, %v3854, %v3570
        %v3888 = vsel %vm3880, %v3855, %v3572
        %v3889 = vsel %vm3880, %v3856, %v3574
        %v3890 = vsel %vm3880, %v3857, %v3576
        %v3891 = vsel %vm3880, %v3858, %v3578
        %v3892 = vsel %vm3880, %v3859, %v3580
        %v3893 = vsel %vm3880, %v3860, %v3582
        %v3894 = vsel %vm3880, %v3861, %v3584
        %v3895 = vsel %vm3880, %v3862, %v3586
        %v3896 = vsel %vm3880, %v3863, %v3588
        %v3897 = vsel %vm3880, %v3864, %v3590
        %v3898 = vsel %vm3880, %v3865, %v3592
        %v3899 = vsel %vm3880, %v3866, %v3594
        %v3900 = vsel %vm3880, %v3867, %v3596
        %v3901 = vsel %vm3880, %v3868, %v3598
        %v3902 = vsel %vm3880, %v3869, %v3600
        %v3903 = vsel %vm3880, %v3870, %v3602
        %v3904 = vsel %vm3880, %v3871, %v3604
        %v3905 = vsel %vm3880, %v3872, %v3606
        %v3906 = vsel %vm3880, %v3873, %v3608
        %v3907 = vsel %vm3880, %v3874, %v3610
        %v3908 = vsel %vm3880, %v3875, %v3612
        %v3909 = vsel %vm3880, %v3876, %v3614
        %v3910 = vsel %vm3880, %v3877, %v3616
        %v3911 = vsel %vm3880, %v3878, %v3618
        %v3912 = vsel %vm3880, %v3879, %v3620
        %v3913 = vld [vmem:[#allocation11] sm:$0xff]
        %v3914 = vld [vmem:[#allocation11 + $0x8] sm:$0xff]
        %v3915 = vld [vmem:[#allocation11 + $0x10] sm:$0xff]
        %v3916 = vld [vmem:[#allocation11 + $0x18] sm:$0xff]
        %v3917 = vld [vmem:[#allocation11 + $0x20] sm:$0xff]
        %v3918 = vld [vmem:[#allocation11 + $0x28] sm:$0xff]
        %v3919 = vld [vmem:[#allocation11 + $0x30] sm:$0xff]
        %v3920 = vld [vmem:[#allocation11 + $0x38] sm:$0xff]
        %v3921 = vld [vmem:[#allocation11 + $0x40] sm:$0xff]
        %vm3922 = vcmask 588800
        %v3924 = vsel %vm3922, %v3881, 0
        %v3927 = vsel %vm3922, %v3882, 0
        %v3930 = vsel %vm3922, %v3883, 0
        %v3933 = vsel %vm3922, %v3884, 0
        %v3936 = vsel %vm3922, %v3885, 0
        %v3939 = vsel %vm3922, %v3886, 0
        %v3942 = vsel %vm3922, %v3887, 0
        %v3945 = vsel %vm3922, %v3888, 0
        %v3948 = vsel %vm3922, %v3889, 0
        %v3951 = vsel %vm3922, %v3890, 0
        %v3954 = vsel %vm3922, %v3891, 0
        %v3957 = vsel %vm3922, %v3892, 0
        %v3960 = vsel %vm3922, %v3893, 0
        %v3963 = vsel %vm3922, %v3894, 0
        %v3966 = vsel %vm3922, %v3895, 0
        %v3969 = vsel %vm3922, %v3896, 0
        %v3972 = vsel %vm3922, %v3897, 0
        %v3975 = vsel %vm3922, %v3898, 0
        %v3978 = vsel %vm3922, %v3899, 0
        %v3981 = vsel %vm3922, %v3900, 0
        %v3984 = vsel %vm3922, %v3901, 0
        %v3987 = vsel %vm3922, %v3902, 0
        %v3990 = vsel %vm3922, %v3903, 0
        %v3993 = vsel %vm3922, %v3904, 0
        %v3996 = vsel %vm3922, %v3905, 0
        %v3999 = vsel %vm3922, %v3906, 0
        %v4002 = vsel %vm3922, %v3907, 0
        %v4005 = vsel %vm3922, %v3908, 0
        %v4008 = vsel %vm3922, %v3909, 0
        %v4011 = vsel %vm3922, %v3910, 0
        %v4014 = vsel %vm3922, %v3911, 0
        %v4017 = vsel %vm3922, %v3912, 0
        %4019 = vmatprep.subr.mxu0 0.0
        %4020 = vmatpush1.msra.mxu0 %v3913
        %4021 = vmatprep.subr.mxu0 0.0
        %4022 = vmatpush1.msra.mxu0 %v3914
        %4023 = vmatprep.subr.mxu0 0.0
        %4024 = vmatpush1.msra.mxu0 %v3915
        %4025 = vmatprep.subr.mxu0 0.0
        %4026 = vmatpush1.msra.mxu0 %v3916
        %4027 = vmatprep.subr.mxu0 0.0
        %4028 = vmatpush1.msra.mxu0 %v3917
        %4029 = vmatprep.subr.mxu0 0.0
        %4030 = vmatpush1.msra.mxu0 %v3918
        %4031 = vmatprep.subr.mxu0 0.0
        %4032 = vmatpush1.msra.mxu0 %v3919
        %4033 = vmatprep.subr.mxu0 0.0
        %4034 = vmatpush1.msra.mxu0 %v3920
        %4035 = vmatprep.subr.mxu0 0.0
        %4036 = vmatpush1.msra.mxu0 %v3921
        %4037 = vmatprep.subr.mxu0 0.0
        %4038 = vmatpush1.msra.mxu0 0.0
        %4039 = vmatprep.subr.mxu0 0.0
        %4040 = vmatpush1.msra.mxu0 0.0
        %4041 = vmatprep.subr.mxu0 0.0
        %4042 = vmatpush1.msra.mxu0 0.0
        %4043 = vmatprep.subr.mxu0 0.0
        %4044 = vmatpush1.msra.mxu0 0.0
        %4045 = vmatprep.subr.mxu0 0.0
        %4046 = vmatpush1.msra.mxu0 0.0
        %4047 = vmatprep.subr.mxu0 0.0
        %4048 = vmatpush1.msra.mxu0 0.0
        %4049 = vmatprep.subr.mxu0 0.0
        %4050 = vmatpush1.msra.mxu0 0.0
        %4051 = vmatprep.subr.mxu0 0.0
        %4052 = vmatpush1.msra.mxu0 0.0
        %4053 = vmatprep.subr.mxu0 0.0
        %4054 = vmatpush1.msra.mxu0 0.0
        %4055 = vmatprep.subr.mxu0 0.0
        %4056 = vmatpush1.msra.mxu0 0.0
        %4057 = vmatprep.subr.mxu0 0.0
        %4058 = vmatpush1.msra.mxu0 0.0
        %4059 = vmatprep.subr.mxu0 0.0
        %4060 = vmatpush1.msra.mxu0 0.0
        %4061 = vmatprep.subr.mxu0 0.0
        %4062 = vmatpush1.msra.mxu0 0.0
        %4063 = vmatprep.subr.mxu0 0.0
        %4064 = vmatpush1.msra.mxu0 0.0
        %4065 = vmatprep.subr.mxu0 0.0
        %4066 = vmatpush1.msra.mxu0 0.0
        %4067 = vmatprep.subr.mxu0 0.0
        %4068 = vmatpush1.msra.mxu0 0.0
        %4069 = vmatprep.subr.mxu0 0.0
        %4070 = vmatpush1.msra.mxu0 0.0
        %4071 = vmatprep.subr.mxu0 0.0
        %4072 = vmatpush1.msra.mxu0 0.0
        %4073 = vmatprep.subr.mxu0 0.0
        %4074 = vmatpush1.msra.mxu0 0.0
        %4075 = vmatprep.subr.mxu0 0.0
        %4076 = vmatpush1.msra.mxu0 0.0
        %4077 = vmatprep.subr.mxu0 0.0
        %4078 = vmatpush1.msra.mxu0 0.0
        %4079 = vmatprep.subr.mxu0 0.0
        %4080 = vmatpush1.msra.mxu0 0.0
        %4081 = vmatprep.subr.mxu0 0.0
        %4082 = vmatpush1.msra.mxu0 0.0
        %4083 = vmatprep.mubr.f32.mxu0 0.0
        %4084 = vmatmul.mubr.f32.gmra.mrb[0].mxu0 %v3924
        %v4085 = vpop.f32.mrb[0].mxu0
        %v4086 = vadd.f32 0.0, %v4085
        %v4087 = vpop.f32.mrb[0].mxu0
        %4088 = vmatprep.mubr.f32.mxu0 0.0
        %4089 = vmatmul.mubr.f32.gmra.mrb[0].mxu0 %v3927
        %v4090 = vpop.f32.mrb[0].mxu0
        %v4091 = vadd.f32 0.0, %v4090
        %v4092 = vpop.f32.mrb[0].mxu0
        %4093 = vmatprep.mubr.f32.mxu0 0.0
        %4094 = vmatmul.mubr.f32.gmra.mrb[0].mxu0 %v3930
        %v4095 = vpop.f32.mrb[0].mxu0
        %v4096 = vadd.f32 0.0, %v4095
        %v4097 = vpop.f32.mrb[0].mxu0
        %4098 = vmatprep.mubr.f32.mxu0 0.0
        %4099 = vmatmul.mubr.f32.gmra.mrb[0].mxu0 %v3933
        %v4100 = vpop.f32.mrb[0].mxu0
        %v4101 = vadd.f32 0.0, %v4100
        %v4102 = vpop.f32.mrb[0].mxu0
        %4103 = vmatprep.mubr.f32.mxu0 0.0
        %4104 = vmatmul.mubr.f32.gmra.mrb[0].mxu0 %v3936
        %v4105 = vpop.f32.mrb[0].mxu0
        %v4106 = vadd.f32 0.0, %v4105
        %v4107 = vpop.f32.mrb[0].mxu0
        %4108 = vmatprep.mubr.f32.mxu0 0.0
        %4109 = vmatmul.mubr.f32.gmra.mrb[0].mxu0 %v3939
        %v4110 = vpop.f32.mrb[0].mxu0
        %v4111 = vadd.f32 0.0, %v4110
        %v4112 = vpop.f32.mrb[0].mxu0
        %4113 = vmatprep.mubr.f32.mxu0 0.0
        %4114 = vmatmul.mubr.f32.gmra.mrb[0].mxu0 %v3942
        %v4115 = vpop.f32.mrb[0].mxu0
        %v4116 = vadd.f32 0.0, %v4115
        %v4117 = vpop.f32.mrb[0].mxu0
        %4118 = vmatprep.mubr.f32.mxu0 0.0
        %4119 = vmatmul.mubr.f32.gmra.mrb[0].mxu0 %v3945
        %v4120 = vpop.f32.mrb[0].mxu0
        %v4121 = vadd.f32 0.0, %v4120
        %v4122 = vpop.f32.mrb[0].mxu0
        %4123 = vmatprep.mubr.f32.mxu0 0.0
        %4124 = vmatmul.mubr.f32.gmra.mrb[0].mxu0 %v3948
        %v4125 = vpop.f32.mrb[0].mxu0
        %v4126 = vadd.f32 0.0, %v4125
        %v4127 = vpop.f32.mrb[0].mxu0
        %4128 = vmatprep.mubr.f32.mxu0 0.0
        %4129 = vmatmul.mubr.f32.gmra.mrb[0].mxu0 %v3951
        %v4130 = vpop.f32.mrb[0].mxu0
        %v4131 = vadd.f32 0.0, %v4130
        %v4132 = vpop.f32.mrb[0].mxu0
        %4133 = vmatprep.mubr.f32.mxu0 0.0
        %4134 = vmatmul.mubr.f32.gmra.mrb[0].mxu0 %v3954
        %v4135 = vpop.f32.mrb[0].mxu0
        %v4136 = vadd.f32 0.0, %v4135
        %v4137 = vpop.f32.mrb[0].mxu0
        %4138 = vmatprep.mubr.f32.mxu0 0.0
        %4139 = vmatmul.mubr.f32.gmra.mrb[0].mxu0 %v3957
        %v4140 = vpop.f32.mrb[0].mxu0
        %v4141 = vadd.f32 0.0, %v4140
        %v4142 = vpop.f32.mrb[0].mxu0
        %4143 = vmatprep.mubr.f32.mxu0 0.0
        %4144 = vmatmul.mubr.f32.gmra.mrb[0].mxu0 %v3960
        %v4145 = vpop.f32.mrb[0].mxu0
        %v4146 = vadd.f32 0.0, %v4145
        %v4147 = vpop.f32.mrb[0].mxu0
        %4148 = vmatprep.mubr.f32.mxu0 0.0
        %4149 = vmatmul.mubr.f32.gmra.mrb[0].mxu0 %v3963
        %v4150 = vpop.f32.mrb[0].mxu0
        %v4151 = vadd.f32 0.0, %v4150
        %v4152 = vpop.f32.mrb[0].mxu0
        %4153 = vmatprep.mubr.f32.mxu0 0.0
        %4154 = vmatmul.mubr.f32.gmra.mrb[0].mxu0 %v3966
        %v4155 = vpop.f32.mrb[0].mxu0
        %v4156 = vadd.f32 0.0, %v4155
        %v4157 = vpop.f32.mrb[0].mxu0
        %4158 = vmatprep.mubr.f32.mxu0 0.0
        %4159 = vmatmul.mubr.f32.gmra.mrb[0].mxu0 %v3969
        %v4160 = vpop.f32.mrb[0].mxu0
        %v4161 = vadd.f32 0.0, %v4160
        %v4162 = vpop.f32.mrb[0].mxu0
        %4163 = vmatprep.mubr.f32.mxu0 0.0
        %4164 = vmatmul.mubr.f32.gmra.mrb[0].mxu0 %v3972
        %v4165 = vpop.f32.mrb[0].mxu0
        %v4166 = vadd.f32 0.0, %v4165
        %v4167 = vpop.f32.mrb[0].mxu0
        %4168 = vmatprep.mubr.f32.mxu0 0.0
        %4169 = vmatmul.mubr.f32.gmra.mrb[0].mxu0 %v3975
        %v4170 = vpop.f32.mrb[0].mxu0
        %v4171 = vadd.f32 0.0, %v4170
        %v4172 = vpop.f32.mrb[0].mxu0
        %4173 = vmatprep.mubr.f32.mxu0 0.0
        %4174 = vmatmul.mubr.f32.gmra.mrb[0].mxu0 %v3978
        %v4175 = vpop.f32.mrb[0].mxu0
        %v4176 = vadd.f32 0.0, %v4175
        %v4177 = vpop.f32.mrb[0].mxu0
        %4178 = vmatprep.mubr.f32.mxu0 0.0
        %4179 = vmatmul.mubr.f32.gmra.mrb[0].mxu0 %v3981
        %v4180 = vpop.f32.mrb[0].mxu0
        %v4181 = vadd.f32 0.0, %v4180
        %v4182 = vpop.f32.mrb[0].mxu0
        %4183 = vmatprep.mubr.f32.mxu0 0.0
        %4184 = vmatmul.mubr.f32.gmra.mrb[0].mxu0 %v3984
        %v4185 = vpop.f32.mrb[0].mxu0
        %v4186 = vadd.f32 0.0, %v4185
        %v4187 = vpop.f32.mrb[0].mxu0
        %4188 = vmatprep.mubr.f32.mxu0 0.0
        %4189 = vmatmul.mubr.f32.gmra.mrb[0].mxu0 %v3987
        %v4190 = vpop.f32.mrb[0].mxu0
        %v4191 = vadd.f32 0.0, %v4190
        %v4192 = vpop.f32.mrb[0].mxu0
        %4193 = vmatprep.mubr.f32.mxu0 0.0
        %4194 = vmatmul.mubr.f32.gmra.mrb[0].mxu0 %v3990
        %v4195 = vpop.f32.mrb[0].mxu0
        %v4196 = vadd.f32 0.0, %v4195
        %v4197 = vpop.f32.mrb[0].mxu0
        %4198 = vmatprep.mubr.f32.mxu0 0.0
        %4199 = vmatmul.mubr.f32.gmra.mrb[0].mxu0 %v3993
        %v4200 = vpop.f32.mrb[0].mxu0
        %v4201 = vadd.f32 0.0, %v4200
        %v4202 = vpop.f32.mrb[0].mxu0
        %4203 = vmatprep.mubr.f32.mxu0 0.0
        %4204 = vmatmul.mubr.f32.gmra.mrb[0].mxu0 %v3996
        %v4205 = vpop.f32.mrb[0].mxu0
        %v4206 = vadd.f32 0.0, %v4205
        %v4207 = vpop.f32.mrb[0].mxu0
        %4208 = vmatprep.mubr.f32.mxu0 0.0
        %4209 = vmatmul.mubr.f32.gmra.mrb[0].mxu0 %v3999
        %v4210 = vpop.f32.mrb[0].mxu0
        %v4211 = vadd.f32 0.0, %v4210
        %v4212 = vpop.f32.mrb[0].mxu0
        %4213 = vmatprep.mubr.f32.mxu0 0.0
        %4214 = vmatmul.mubr.f32.gmra.mrb[0].mxu0 %v4002
        %v4215 = vpop.f32.mrb[0].mxu0
        %v4216 = vadd.f32 0.0, %v4215
        %v4217 = vpop.f32.mrb[0].mxu0
        %4218 = vmatprep.mubr.f32.mxu0 0.0
        %4219 = vmatmul.mubr.f32.gmra.mrb[0].mxu0 %v4005
        %v4220 = vpop.f32.mrb[0].mxu0
        %v4221 = vadd.f32 0.0, %v4220
        %v4222 = vpop.f32.mrb[0].mxu0
        %4223 = vmatprep.mubr.f32.mxu0 0.0
        %4224 = vmatmul.mubr.f32.gmra.mrb[0].mxu0 %v4008
        %v4225 = vpop.f32.mrb[0].mxu0
        %v4226 = vadd.f32 0.0, %v4225
        %v4227 = vpop.f32.mrb[0].mxu0
        %4228 = vmatprep.mubr.f32.mxu0 0.0
        %4229 = vmatmul.mubr.f32.gmra.mrb[0].mxu0 %v4011
        %v4230 = vpop.f32.mrb[0].mxu0
        %v4231 = vadd.f32 0.0, %v4230
        %v4232 = vpop.f32.mrb[0].mxu0
        %4233 = vmatprep.mubr.f32.mxu0 0.0
        %4234 = vmatmul.mubr.f32.gmra.mrb[0].mxu0 %v4014
        %v4235 = vpop.f32.mrb[0].mxu0
        %v4236 = vadd.f32 0.0, %v4235
        %v4237 = vpop.f32.mrb[0].mxu0
        %4238 = vmatprep.mubr.f32.mxu0 0.0
        %4239 = vmatmul.mubr.f32.gmra.mrb[0].mxu0 %v4017
        %v4240 = vpop.f32.mrb[0].mxu0
        %v4241 = vadd.f32 0.0, %v4240
        %v4242 = vpop.f32.mrb[0].mxu0
        %4243 = vdwg.mxu0
        %v4247 = vrot.slane %v469, 1
        %v4248 = vrot.slane %v470, 1
        %v4249 = vsel %vm571, %v4247, %v4248
        %v4250 = vrot.slane %v471, 1
        %v4251 = vsel %vm571, %v4248, %v4250
        %v4284 = vmax.f32 %v469, %v4249
        %v4285 = vmax.f32 %v470, %v4251
        %v4286 = vmax.f32 %v472, %v574
        %v4287 = vmax.f32 %v473, %v576
        %v4288 = vmax.f32 %v475, %v579
        %v4289 = vmax.f32 %v476, %v581
        %v4290 = vmax.f32 %v478, %v584
        %v4291 = vmax.f32 %v479, %v586
        %v4292 = vmax.f32 %v481, %v589
        %v4293 = vmax.f32 %v482, %v591
        %v4294 = vmax.f32 %v484, %v594
        %v4295 = vmax.f32 %v485, %v596
        %v4296 = vmax.f32 %v487, %v599
        %v4297 = vmax.f32 %v488, %v601
        %v4298 = vmax.f32 %v490, %v604
        %v4299 = vmax.f32 %v491, %v606
        %v4300 = vmax.f32 %v493, %v609
        %v4301 = vmax.f32 %v494, %v611
        %v4302 = vmax.f32 %v496, %v614
        %v4303 = vmax.f32 %v497, %v616
        %v4304 = vmax.f32 %v499, %v619
        %v4305 = vmax.f32 %v500, %v621
        %v4306 = vmax.f32 %v502, %v624
        %v4307 = vmax.f32 %v503, %v626
        %v4308 = vmax.f32 %v505, %v629
        %v4309 = vmax.f32 %v506, %v631
        %v4310 = vmax.f32 %v508, %v634
        %v4311 = vmax.f32 %v509, %v636
        %v4312 = vmax.f32 %v511, %v639
        %v4313 = vmax.f32 %v512, %v641
        %v4314 = vmax.f32 %v514, %v644
        %v4315 = vmax.f32 %v515, %v646
        %v4316 = vrot.slane %v469, 2
        %v4317 = vrot.slane %v470, 2
        %v4318 = vsel %vm1129, %v4316, %v4317
        %v4319 = vrot.slane %v471, 2
        %v4320 = vsel %vm1129, %v4317, %v4319
        %v4321 = vrot.slane %v472, 2
        %v4322 = vrot.slane %v473, 2
        %v4323 = vsel %vm1129, %v4321, %v4322
        %v4324 = vrot.slane %v474, 2
        %v4325 = vsel %vm1129, %v4322, %v4324
        %v4326 = vrot.slane %v475, 2
        %v4327 = vrot.slane %v476, 2
        %v4328 = vsel %vm1129, %v4326, %v4327
        %v4329 = vrot.slane %v477, 2
        %v4330 = vsel %vm1129, %v4327, %v4329
        %v4331 = vrot.slane %v478, 2
        %v4332 = vrot.slane %v479, 2
        %v4333 = vsel %vm1129, %v4331, %v4332
        %v4334 = vrot.slane %v480, 2
        %v4335 = vsel %vm1129, %v4332, %v4334
        %v4336 = vrot.slane %v481, 2
        %v4337 = vrot.slane %v482, 2
        %v4338 = vsel %vm1129, %v4336, %v4337
        %v4339 = vrot.slane %v483, 2
        %v4340 = vsel %vm1129, %v4337, %v4339
        %v4341 = vrot.slane %v484, 2
        %v4342 = vrot.slane %v485, 2
        %v4343 = vsel %vm1129, %v4341, %v4342
        %v4344 = vrot.slane %v486, 2
        %v4345 = vsel %vm1129, %v4342, %v4344
        %v4346 = vrot.slane %v487, 2
        %v4347 = vrot.slane %v488, 2
        %v4348 = vsel %vm1129, %v4346, %v4347
        %v4349 = vrot.slane %v489, 2
        %v4350 = vsel %vm1129, %v4347, %v4349
        %v4351 = vrot.slane %v490, 2
        %v4352 = vrot.slane %v491, 2
        %v4353 = vsel %vm1129, %v4351, %v4352
        %v4354 = vrot.slane %v492, 2
        %v4355 = vsel %vm1129, %v4352, %v4354
        %v4356 = vrot.slane %v493, 2
        %v4357 = vrot.slane %v494, 2
        %v4358 = vsel %vm1129, %v4356, %v4357
        %v4359 = vrot.slane %v495, 2
        %v4360 = vsel %vm1129, %v4357, %v4359
        %v4361 = vrot.slane %v496, 2
        %v4362 = vrot.slane %v497, 2
        %v4363 = vsel %vm1129, %v4361, %v4362
        %v4364 = vrot.slane %v498, 2
        %v4365 = vsel %vm1129, %v4362, %v4364
        %v4366 = vrot.slane %v499, 2
        %v4367 = vrot.slane %v500, 2
        %v4368 = vsel %vm1129, %v4366, %v4367
        %v4369 = vrot.slane %v501, 2
        %v4370 = vsel %vm1129, %v4367, %v4369
        %v4371 = vrot.slane %v502, 2
        %v4372 = vrot.slane %v503, 2
        %v4373 = vsel %vm1129, %v4371, %v4372
        %v4374 = vrot.slane %v504, 2
        %v4375 = vsel %vm1129, %v4372, %v4374
        %v4376 = vrot.slane %v505, 2
        %v4377 = vrot.slane %v506, 2
        %v4378 = vsel %vm1129, %v4376, %v4377
        %v4379 = vrot.slane %v507, 2
        %v4380 = vsel %vm1129, %v4377, %v4379
        %v4381 = vrot.slane %v508, 2
        %v4382 = vrot.slane %v509, 2
        %v4383 = vsel %vm1129, %v4381, %v4382
        %v4384 = vrot.slane %v510, 2
        %v4385 = vsel %vm1129, %v4382, %v4384
        %v4386 = vrot.slane %v511, 2
        %v4387 = vrot.slane %v512, 2
        %v4388 = vsel %vm1129, %v4386, %v4387
        %v4389 = vrot.slane %v513, 2
        %v4390 = vsel %vm1129, %v4387, %v4389
        %v4391 = vrot.slane %v514, 2
        %v4392 = vrot.slane %v515, 2
        %v4393 = vsel %vm1129, %v4391, %v4392
        %v4394 = vrot.slane %v516, 2
        %v4395 = vsel %vm1129, %v4392, %v4394
        %v4428 = vmax.f32 %v4284, %v4318
        %v4429 = vmax.f32 %v4285, %v4320
        %v4430 = vmax.f32 %v4286, %v4323
        %v4431 = vmax.f32 %v4287, %v4325
        %v4432 = vmax.f32 %v4288, %v4328
        %v4433 = vmax.f32 %v4289, %v4330
        %v4434 = vmax.f32 %v4290, %v4333
        %v4435 = vmax.f32 %v4291, %v4335
        %v4436 = vmax.f32 %v4292, %v4338
        %v4437 = vmax.f32 %v4293, %v4340
        %v4438 = vmax.f32 %v4294, %v4343
        %v4439 = vmax.f32 %v4295, %v4345
        %v4440 = vmax.f32 %v4296, %v4348
        %v4441 = vmax.f32 %v4297, %v4350
        %v4442 = vmax.f32 %v4298, %v4353
        %v4443 = vmax.f32 %v4299, %v4355
        %v4444 = vmax.f32 %v4300, %v4358
        %v4445 = vmax.f32 %v4301, %v4360
        %v4446 = vmax.f32 %v4302, %v4363
        %v4447 = vmax.f32 %v4303, %v4365
        %v4448 = vmax.f32 %v4304, %v4368
        %v4449 = vmax.f32 %v4305, %v4370
        %v4450 = vmax.f32 %v4306, %v4373
        %v4451 = vmax.f32 %v4307, %v4375
        %v4452 = vmax.f32 %v4308, %v4378
        %v4453 = vmax.f32 %v4309, %v4380
        %v4454 = vmax.f32 %v4310, %v4383
        %v4455 = vmax.f32 %v4311, %v4385
        %v4456 = vmax.f32 %v4312, %v4388
        %v4457 = vmax.f32 %v4313, %v4390
        %v4458 = vmax.f32 %v4314, %v4393
        %v4459 = vmax.f32 %v4315, %v4395
        %v4460 = vmax.f32 %v4428, %v472
        %v4461 = vmax.f32 %v4429, %v473
        %v4462 = vmax.f32 %v4430, %v475
        %v4463 = vmax.f32 %v4431, %v476
        %v4464 = vmax.f32 %v4432, %v478
        %v4465 = vmax.f32 %v4433, %v479
        %v4466 = vmax.f32 %v4434, %v481
        %v4467 = vmax.f32 %v4435, %v482
        %v4468 = vmax.f32 %v4436, %v484
        %v4469 = vmax.f32 %v4437, %v485
        %v4470 = vmax.f32 %v4438, %v487
        %v4471 = vmax.f32 %v4439, %v488
        %v4472 = vmax.f32 %v4440, %v490
        %v4473 = vmax.f32 %v4441, %v491
        %v4474 = vmax.f32 %v4442, %v493
        %v4475 = vmax.f32 %v4443, %v494
        %v4476 = vmax.f32 %v4444, %v496
        %v4477 = vmax.f32 %v4445, %v497
        %v4478 = vmax.f32 %v4446, %v499
        %v4479 = vmax.f32 %v4447, %v500
        %v4480 = vmax.f32 %v4448, %v502
        %v4481 = vmax.f32 %v4449, %v503
        %v4482 = vmax.f32 %v4450, %v505
        %v4483 = vmax.f32 %v4451, %v506
        %v4484 = vmax.f32 %v4452, %v508
        %v4485 = vmax.f32 %v4453, %v509
        %v4486 = vmax.f32 %v4454, %v511
        %v4487 = vmax.f32 %v4455, %v512
        %v4488 = vmax.f32 %v4456, %v514
        %v4489 = vmax.f32 %v4457, %v515
        %v4490 = vmax.f32 %v4458, %v517
        %v4491 = vmax.f32 %v4459, %v518
        %v4494 = vmax.f32 %v4460, %v574
        %v4495 = vmax.f32 %v4461, %v576
        %v4496 = vmax.f32 %v4462, %v579
        %v4497 = vmax.f32 %v4463, %v581
        %v4498 = vmax.f32 %v4464, %v584
        %v4499 = vmax.f32 %v4465, %v586
        %v4500 = vmax.f32 %v4466, %v589
        %v4501 = vmax.f32 %v4467, %v591
        %v4502 = vmax.f32 %v4468, %v594
        %v4503 = vmax.f32 %v4469, %v596
        %v4504 = vmax.f32 %v4470, %v599
        %v4505 = vmax.f32 %v4471, %v601
        %v4506 = vmax.f32 %v4472, %v604
        %v4507 = vmax.f32 %v4473, %v606
        %v4508 = vmax.f32 %v4474, %v609
        %v4509 = vmax.f32 %v4475, %v611
        %v4510 = vmax.f32 %v4476, %v614
        %v4511 = vmax.f32 %v4477, %v616
        %v4512 = vmax.f32 %v4478, %v619
        %v4513 = vmax.f32 %v4479, %v621
        %v4514 = vmax.f32 %v4480, %v624
        %v4515 = vmax.f32 %v4481, %v626
        %v4516 = vmax.f32 %v4482, %v629
        %v4517 = vmax.f32 %v4483, %v631
        %v4518 = vmax.f32 %v4484, %v634
        %v4519 = vmax.f32 %v4485, %v636
        %v4520 = vmax.f32 %v4486, %v639
        %v4521 = vmax.f32 %v4487, %v641
        %v4522 = vmax.f32 %v4488, %v644
        %v4523 = vmax.f32 %v4489, %v646
        %v4524 = vmax.f32 %v4490, %v649
        %v4525 = vmax.f32 %v4491, %v651
        %v4526 = vrot.slane %v517, 2
        %v4527 = vrot.slane %v518, 2
        %v4528 = vsel %vm1129, %v4526, %v4527
        %v4529 = vrot.slane %v519, 2
        %v4530 = vsel %vm1129, %v4527, %v4529
        %v4533 = vmax.f32 %v4494, %v4323
        %v4534 = vmax.f32 %v4495, %v4325
        %v4535 = vmax.f32 %v4496, %v4328
        %v4536 = vmax.f32 %v4497, %v4330
        %v4537 = vmax.f32 %v4498, %v4333
        %v4538 = vmax.f32 %v4499, %v4335
        %v4539 = vmax.f32 %v4500, %v4338
        %v4540 = vmax.f32 %v4501, %v4340
        %v4541 = vmax.f32 %v4502, %v4343
        %v4542 = vmax.f32 %v4503, %v4345
        %v4543 = vmax.f32 %v4504, %v4348
        %v4544 = vmax.f32 %v4505, %v4350
        %v4545 = vmax.f32 %v4506, %v4353
        %v4546 = vmax.f32 %v4507, %v4355
        %v4547 = vmax.f32 %v4508, %v4358
        %v4548 = vmax.f32 %v4509, %v4360
        %v4549 = vmax.f32 %v4510, %v4363
        %v4550 = vmax.f32 %v4511, %v4365
        %v4551 = vmax.f32 %v4512, %v4368
        %v4552 = vmax.f32 %v4513, %v4370
        %v4553 = vmax.f32 %v4514, %v4373
        %v4554 = vmax.f32 %v4515, %v4375
        %v4555 = vmax.f32 %v4516, %v4378
        %v4556 = vmax.f32 %v4517, %v4380
        %v4557 = vmax.f32 %v4518, %v4383
        %v4558 = vmax.f32 %v4519, %v4385
        %v4559 = vmax.f32 %v4520, %v4388
        %v4560 = vmax.f32 %v4521, %v4390
        %v4561 = vmax.f32 %v4522, %v4393
        %v4562 = vmax.f32 %v4523, %v4395
        %v4563 = vmax.f32 %v4524, %v4528
        %v4564 = vmax.f32 %v4525, %v4530
        %v4565 = vmax.f32 %v4533, %v475
        %v4566 = vmax.f32 %v4534, %v476
        %v4567 = vmax.f32 %v4535, %v478
        %v4568 = vmax.f32 %v4536, %v479
        %v4569 = vmax.f32 %v4537, %v481
        %v4570 = vmax.f32 %v4538, %v482
        %v4571 = vmax.f32 %v4539, %v484
        %v4572 = vmax.f32 %v4540, %v485
        %v4573 = vmax.f32 %v4541, %v487
        %v4574 = vmax.f32 %v4542, %v488
        %v4575 = vmax.f32 %v4543, %v490
        %v4576 = vmax.f32 %v4544, %v491
        %v4577 = vmax.f32 %v4545, %v493
        %v4578 = vmax.f32 %v4546, %v494
        %v4579 = vmax.f32 %v4547, %v496
        %v4580 = vmax.f32 %v4548, %v497
        %v4581 = vmax.f32 %v4549, %v499
        %v4582 = vmax.f32 %v4550, %v500
        %v4583 = vmax.f32 %v4551, %v502
        %v4584 = vmax.f32 %v4552, %v503
        %v4585 = vmax.f32 %v4553, %v505
        %v4586 = vmax.f32 %v4554, %v506
        %v4587 = vmax.f32 %v4555, %v508
        %v4588 = vmax.f32 %v4556, %v509
        %v4589 = vmax.f32 %v4557, %v511
        %v4590 = vmax.f32 %v4558, %v512
        %v4591 = vmax.f32 %v4559, %v514
        %v4592 = vmax.f32 %v4560, %v515
        %v4593 = vmax.f32 %v4561, %v517
        %v4594 = vmax.f32 %v4562, %v518
        %v4595 = vmax.f32 %v4563, %v520
        %v4596 = vmax.f32 %v4564, %v521
        %v4600 = vrot.slane %v520, 1
        %v4601 = vrot.slane %v521, 1
        %v4602 = vsel %vm571, %v4600, %v4601
        %v4603 = vrot.slane %v522, 1
        %v4604 = vsel %vm571, %v4601, %v4603
        %v4607 = vmax.f32 %v4565, %v579
        %v4608 = vmax.f32 %v4566, %v581
        %v4609 = vmax.f32 %v4567, %v584
        %v4610 = vmax.f32 %v4568, %v586
        %v4611 = vmax.f32 %v4569, %v589
        %v4612 = vmax.f32 %v4570, %v591
        %v4613 = vmax.f32 %v4571, %v594
        %v4614 = vmax.f32 %v4572, %v596
        %v4615 = vmax.f32 %v4573, %v599
        %v4616 = vmax.f32 %v4574, %v601
        %v4617 = vmax.f32 %v4575, %v604
        %v4618 = vmax.f32 %v4576, %v606
        %v4619 = vmax.f32 %v4577, %v609
        %v4620 = vmax.f32 %v4578, %v611
        %v4621 = vmax.f32 %v4579, %v614
        %v4622 = vmax.f32 %v4580, %v616
        %v4623 = vmax.f32 %v4581, %v619
        %v4624 = vmax.f32 %v4582, %v621
        %v4625 = vmax.f32 %v4583, %v624
        %v4626 = vmax.f32 %v4584, %v626
        %v4627 = vmax.f32 %v4585, %v629
        %v4628 = vmax.f32 %v4586, %v631
        %v4629 = vmax.f32 %v4587, %v634
        %v4630 = vmax.f32 %v4588, %v636
        %v4631 = vmax.f32 %v4589, %v639
        %v4632 = vmax.f32 %v4590, %v641
        %v4633 = vmax.f32 %v4591, %v644
        %v4634 = vmax.f32 %v4592, %v646
        %v4635 = vmax.f32 %v4593, %v649
        %v4636 = vmax.f32 %v4594, %v651
        %v4637 = vmax.f32 %v4595, %v4602
        %v4638 = vmax.f32 %v4596, %v4604
        %v4639 = vrot.slane %v520, 2
        %v4640 = vrot.slane %v521, 2
        %v4641 = vsel %vm1129, %v4639, %v4640
        %v4642 = vrot.slane %v522, 2
        %v4643 = vsel %vm1129, %v4640, %v4642
        %v4646 = vmax.f32 %v4607, %v4328
        %v4647 = vmax.f32 %v4608, %v4330
        %v4648 = vmax.f32 %v4609, %v4333
        %v4649 = vmax.f32 %v4610, %v4335
        %v4650 = vmax.f32 %v4611, %v4338
        %v4651 = vmax.f32 %v4612, %v4340
        %v4652 = vmax.f32 %v4613, %v4343
        %v4653 = vmax.f32 %v4614, %v4345
        %v4654 = vmax.f32 %v4615, %v4348
        %v4655 = vmax.f32 %v4616, %v4350
        %v4656 = vmax.f32 %v4617, %v4353
        %v4657 = vmax.f32 %v4618, %v4355
        %v4658 = vmax.f32 %v4619, %v4358
        %v4659 = vmax.f32 %v4620, %v4360
        %v4660 = vmax.f32 %v4621, %v4363
        %v4661 = vmax.f32 %v4622, %v4365
        %v4662 = vmax.f32 %v4623, %v4368
        %v4663 = vmax.f32 %v4624, %v4370
        %v4664 = vmax.f32 %v4625, %v4373
        %v4665 = vmax.f32 %v4626, %v4375
        %v4666 = vmax.f32 %v4627, %v4378
        %v4667 = vmax.f32 %v4628, %v4380
        %v4668 = vmax.f32 %v4629, %v4383
        %v4669 = vmax.f32 %v4630, %v4385
        %v4670 = vmax.f32 %v4631, %v4388
        %v4671 = vmax.f32 %v4632, %v4390
        %v4672 = vmax.f32 %v4633, %v4393
        %v4673 = vmax.f32 %v4634, %v4395
        %v4674 = vmax.f32 %v4635, %v4528
        %v4675 = vmax.f32 %v4636, %v4530
        %v4676 = vmax.f32 %v4637, %v4641
        %v4677 = vmax.f32 %v4638, %v4643
        %v4678 = vld [vmem:[#allocation13] sm:$0xf]
        %v4680 = vsel %vm653, %v4646, 0
        %v4683 = vsel %vm653, %v4647, 0
        %v4686 = vsel %vm653, %v4648, 0
        %v4689 = vsel %vm653, %v4649, 0
        %v4692 = vsel %vm653, %v4650, 0
        %v4695 = vsel %vm653, %v4651, 0
        %v4698 = vsel %vm653, %v4652, 0
        %v4701 = vsel %vm653, %v4653, 0
        %v4704 = vsel %vm653, %v4654, 0
        %v4707 = vsel %vm653, %v4655, 0
        %v4710 = vsel %vm653, %v4656, 0
        %v4713 = vsel %vm653, %v4657, 0
        %v4716 = vsel %vm653, %v4658, 0
        %v4719 = vsel %vm653, %v4659, 0
        %v4722 = vsel %vm653, %v4660, 0
        %v4725 = vsel %vm653, %v4661, 0
        %v4728 = vsel %vm653, %v4662, 0
        %v4731 = vsel %vm653, %v4663, 0
        %v4734 = vsel %vm653, %v4664, 0
        %v4737 = vsel %vm653, %v4665, 0
        %v4740 = vsel %vm653, %v4666, 0
        %v4743 = vsel %vm653, %v4667, 0
        %v4746 = vsel %vm653, %v4668, 0
        %v4749 = vsel %vm653, %v4669, 0
        %v4752 = vsel %vm653, %v4670, 0
        %v4755 = vsel %vm653, %v4671, 0
        %v4758 = vsel %vm653, %v4672, 0
        %v4761 = vsel %vm653, %v4673, 0
        %v4764 = vsel %vm653, %v4674, 0
        %v4767 = vsel %vm653, %v4675, 0
        %v4770 = vsel %vm653, %v4676, 0
        %v4773 = vsel %vm653, %v4677, 0
        %v4776 = vsel %vm718, %v4678, 0
        %4778 = vmatprep.subr.mxu0 0.0
        %4779 = vmatpush1.msra.mxu0 %v4776
        %4780 = vmatprep.subr.mxu0 0.0
        %4781 = vmatpush1.msra.mxu0 0.0
        %4782 = vmatprep.subr.mxu0 0.0
        %4783 = vmatpush1.msra.mxu0 0.0
        %4784 = vmatprep.subr.mxu0 0.0
        %4785 = vmatpush1.msra.mxu0 0.0
        %4786 = vmatprep.subr.mxu0 0.0
        %4787 = vmatpush1.msra.mxu0 0.0
        %4788 = vmatprep.subr.mxu0 0.0
        %4789 = vmatpush1.msra.mxu0 0.0
        %4790 = vmatprep.subr.mxu0 0.0
        %4791 = vmatpush1.msra.mxu0 0.0
        %4792 = vmatprep.subr.mxu0 0.0
        %4793 = vmatpush1.msra.mxu0 0.0
        %4794 = vmatprep.subr.mxu0 0.0
        %4795 = vmatpush1.msra.mxu0 0.0
        %4796 = vmatprep.subr.mxu0 0.0
        %4797 = vmatpush1.msra.mxu0 0.0
        %4798 = vmatprep.subr.mxu0 0.0
        %4799 = vmatpush1.msra.mxu0 0.0
        %4800 = vmatprep.subr.mxu0 0.0
        %4801 = vmatpush1.msra.mxu0 0.0
        %4802 = vmatprep.subr.mxu0 0.0
        %4803 = vmatpush1.msra.mxu0 0.0
        %4804 = vmatprep.subr.mxu0 0.0
        %4805 = vmatpush1.msra.mxu0 0.0
        %4806 = vmatprep.subr.mxu0 0.0
        %4807 = vmatpush1.msra.mxu0 0.0
        %4808 = vmatprep.subr.mxu0 0.0
        %4809 = vmatpush1.msra.mxu0 0.0
        %4810 = vmatprep.subr.mxu0 0.0
        %4811 = vmatpush1.msra.mxu0 0.0
        %4812 = vmatprep.subr.mxu0 0.0
        %4813 = vmatpush1.msra.mxu0 0.0
        %4814 = vmatprep.subr.mxu0 0.0
        %4815 = vmatpush1.msra.mxu0 0.0
        %4816 = vmatprep.subr.mxu0 0.0
        %4817 = vmatpush1.msra.mxu0 0.0
        %4818 = vmatprep.subr.mxu0 0.0
        %4819 = vmatpush1.msra.mxu0 0.0
        %4820 = vmatprep.subr.mxu0 0.0
        %4821 = vmatpush1.msra.mxu0 0.0
        %4822 = vmatprep.subr.mxu0 0.0
        %4823 = vmatpush1.msra.mxu0 0.0
        %4824 = vmatprep.subr.mxu0 0.0
        %4825 = vmatpush1.msra.mxu0 0.0
        %4826 = vmatprep.subr.mxu0 0.0
        %4827 = vmatpush1.msra.mxu0 0.0
        %4828 = vmatprep.subr.mxu0 0.0
        %4829 = vmatpush1.msra.mxu0 0.0
        %4830 = vmatprep.subr.mxu0 0.0
        %4831 = vmatpush1.msra.mxu0 0.0
        %4832 = vmatprep.subr.mxu0 0.0
        %4833 = vmatpush1.msra.mxu0 0.0
        %4834 = vmatprep.subr.mxu0 0.0
        %4835 = vmatpush1.msra.mxu0 0.0
        %4836 = vmatprep.subr.mxu0 0.0
        %4837 = vmatpush1.msra.mxu0 0.0
        %4838 = vmatprep.subr.mxu0 0.0
        %4839 = vmatpush1.msra.mxu0 0.0
        %4840 = vmatprep.subr.mxu0 0.0
        %4841 = vmatpush1.msra.mxu0 0.0
        %4842 = vmatprep.mubr.f32.mxu0 0.0
        %4843 = vmatmul.mubr.f32.gmra.mrb[0].mxu0 %v4680
        %v4844 = vpop.f32.mrb[0].mxu0
        %v4845 = vadd.f32 0.0, %v4844
        %v4846 = vpop.f32.mrb[0].mxu0
        %4847 = vmatprep.mubr.f32.mxu0 0.0
        %4848 = vmatmul.mubr.f32.gmra.mrb[0].mxu0 %v4683
        %v4849 = vpop.f32.mrb[0].mxu0
        %v4850 = vadd.f32 0.0, %v4849
        %v4851 = vpop.f32.mrb[0].mxu0
        %4852 = vmatprep.mubr.f32.mxu0 0.0
        %4853 = vmatmul.mubr.f32.gmra.mrb[0].mxu0 %v4686
        %v4854 = vpop.f32.mrb[0].mxu0
        %v4855 = vadd.f32 0.0, %v4854
        %v4856 = vpop.f32.mrb[0].mxu0
        %4857 = vmatprep.mubr.f32.mxu0 0.0
        %4858 = vmatmul.mubr.f32.gmra.mrb[0].mxu0 %v4689
        %v4859 = vpop.f32.mrb[0].mxu0
        %v4860 = vadd.f32 0.0, %v4859
        %v4861 = vpop.f32.mrb[0].mxu0
        %4862 = vmatprep.mubr.f32.mxu0 0.0
        %4863 = vmatmul.mubr.f32.gmra.mrb[0].mxu0 %v4692
        %v4864 = vpop.f32.mrb[0].mxu0
        %v4865 = vadd.f32 0.0, %v4864
        %v4866 = vpop.f32.mrb[0].mxu0
        %4867 = vmatprep.mubr.f32.mxu0 0.0
        %4868 = vmatmul.mubr.f32.gmra.mrb[0].mxu0 %v4695
        %v4869 = vpop.f32.mrb[0].mxu0
        %v4870 = vadd.f32 0.0, %v4869
        %v4871 = vpop.f32.mrb[0].mxu0
        %4872 = vmatprep.mubr.f32.mxu0 0.0
        %4873 = vmatmul.mubr.f32.gmra.mrb[0].mxu0 %v4698
        %v4874 = vpop.f32.mrb[0].mxu0
        %v4875 = vadd.f32 0.0, %v4874
        %v4876 = vpop.f32.mrb[0].mxu0
        %4877 = vmatprep.mubr.f32.mxu0 0.0
        %4878 = vmatmul.mubr.f32.gmra.mrb[0].mxu0 %v4701
        %v4879 = vpop.f32.mrb[0].mxu0
        %v4880 = vadd.f32 0.0, %v4879
        %v4881 = vpop.f32.mrb[0].mxu0
        %4882 = vmatprep.mubr.f32.mxu0 0.0
        %4883 = vmatmul.mubr.f32.gmra.mrb[0].mxu0 %v4704
        %v4884 = vpop.f32.mrb[0].mxu0
        %v4885 = vadd.f32 0.0, %v4884
        %v4886 = vpop.f32.mrb[0].mxu0
        %4887 = vmatprep.mubr.f32.mxu0 0.0
        %4888 = vmatmul.mubr.f32.gmra.mrb[0].mxu0 %v4707
        %v4889 = vpop.f32.mrb[0].mxu0
        %v4890 = vadd.f32 0.0, %v4889
        %v4891 = vpop.f32.mrb[0].mxu0
        %4892 = vmatprep.mubr.f32.mxu0 0.0
        %4893 = vmatmul.mubr.f32.gmra.mrb[0].mxu0 %v4710
        %v4894 = vpop.f32.mrb[0].mxu0
        %v4895 = vadd.f32 0.0, %v4894
        %v4896 = vpop.f32.mrb[0].mxu0
        %4897 = vmatprep.mubr.f32.mxu0 0.0
        %4898 = vmatmul.mubr.f32.gmra.mrb[0].mxu0 %v4713
        %v4899 = vpop.f32.mrb[0].mxu0
        %v4900 = vadd.f32 0.0, %v4899
        %v4901 = vpop.f32.mrb[0].mxu0
        %4902 = vmatprep.mubr.f32.mxu0 0.0
        %4903 = vmatmul.mubr.f32.gmra.mrb[0].mxu0 %v4716
        %v4904 = vpop.f32.mrb[0].mxu0
        %v4905 = vadd.f32 0.0, %v4904
        %v4906 = vpop.f32.mrb[0].mxu0
        %4907 = vmatprep.mubr.f32.mxu0 0.0
        %4908 = vmatmul.mubr.f32.gmra.mrb[0].mxu0 %v4719
        %v4909 = vpop.f32.mrb[0].mxu0
        %v4910 = vadd.f32 0.0, %v4909
        %v4911 = vpop.f32.mrb[0].mxu0
        %4912 = vmatprep.mubr.f32.mxu0 0.0
        %4913 = vmatmul.mubr.f32.gmra.mrb[0].mxu0 %v4722
        %v4914 = vpop.f32.mrb[0].mxu0
        %v4915 = vadd.f32 0.0, %v4914
        %v4916 = vpop.f32.mrb[0].mxu0
        %4917 = vmatprep.mubr.f32.mxu0 0.0
        %4918 = vmatmul.mubr.f32.gmra.mrb[0].mxu0 %v4725
        %v4919 = vpop.f32.mrb[0].mxu0
        %v4920 = vadd.f32 0.0, %v4919
        %v4921 = vpop.f32.mrb[0].mxu0
        %4922 = vmatprep.mubr.f32.mxu0 0.0
        %4923 = vmatmul.mubr.f32.gmra.mrb[0].mxu0 %v4728
        %v4924 = vpop.f32.mrb[0].mxu0
        %v4925 = vadd.f32 0.0, %v4924
        %v4926 = vpop.f32.mrb[0].mxu0
        %4927 = vmatprep.mubr.f32.mxu0 0.0
        %4928 = vmatmul.mubr.f32.gmra.mrb[0].mxu0 %v4731
        %v4929 = vpop.f32.mrb[0].mxu0
        %v4930 = vadd.f32 0.0, %v4929
        %v4931 = vpop.f32.mrb[0].mxu0
        %4932 = vmatprep.mubr.f32.mxu0 0.0
        %4933 = vmatmul.mubr.f32.gmra.mrb[0].mxu0 %v4734
        %v4934 = vpop.f32.mrb[0].mxu0
        %v4935 = vadd.f32 0.0, %v4934
        %v4936 = vpop.f32.mrb[0].mxu0
        %4937 = vmatprep.mubr.f32.mxu0 0.0
        %4938 = vmatmul.mubr.f32.gmra.mrb[0].mxu0 %v4737
        %v4939 = vpop.f32.mrb[0].mxu0
        %v4940 = vadd.f32 0.0, %v4939
        %v4941 = vpop.f32.mrb[0].mxu0
        %4942 = vmatprep.mubr.f32.mxu0 0.0
        %4943 = vmatmul.mubr.f32.gmra.mrb[0].mxu0 %v4740
        %v4944 = vpop.f32.mrb[0].mxu0
        %v4945 = vadd.f32 0.0, %v4944
        %v4946 = vpop.f32.mrb[0].mxu0
        %4947 = vmatprep.mubr.f32.mxu0 0.0
        %4948 = vmatmul.mubr.f32.gmra.mrb[0].mxu0 %v4743
        %v4949 = vpop.f32.mrb[0].mxu0
        %v4950 = vadd.f32 0.0, %v4949
        %v4951 = vpop.f32.mrb[0].mxu0
        %4952 = vmatprep.mubr.f32.mxu0 0.0
        %4953 = vmatmul.mubr.f32.gmra.mrb[0].mxu0 %v4746
        %v4954 = vpop.f32.mrb[0].mxu0
        %v4955 = vadd.f32 0.0, %v4954
        %v4956 = vpop.f32.mrb[0].mxu0
        %4957 = vmatprep.mubr.f32.mxu0 0.0
        %4958 = vmatmul.mubr.f32.gmra.mrb[0].mxu0 %v4749
        %v4959 = vpop.f32.mrb[0].mxu0
        %v4960 = vadd.f32 0.0, %v4959
        %v4961 = vpop.f32.mrb[0].mxu0
        %4962 = vmatprep.mubr.f32.mxu0 0.0
        %4963 = vmatmul.mubr.f32.gmra.mrb[0].mxu0 %v4752
        %v4964 = vpop.f32.mrb[0].mxu0
        %v4965 = vadd.f32 0.0, %v4964
        %v4966 = vpop.f32.mrb[0].mxu0
        %4967 = vmatprep.mubr.f32.mxu0 0.0
        %4968 = vmatmul.mubr.f32.gmra.mrb[0].mxu0 %v4755
        %v4969 = vpop.f32.mrb[0].mxu0
        %v4970 = vadd.f32 0.0, %v4969
        %v4971 = vpop.f32.mrb[0].mxu0
        %4972 = vmatprep.mubr.f32.mxu0 0.0
        %4973 = vmatmul.mubr.f32.gmra.mrb[0].mxu0 %v4758
        %v4974 = vpop.f32.mrb[0].mxu0
        %v4975 = vadd.f32 0.0, %v4974
        %v4976 = vpop.f32.mrb[0].mxu0
        %4977 = vmatprep.mubr.f32.mxu0 0.0
        %4978 = vmatmul.mubr.f32.gmra.mrb[0].mxu0 %v4761
        %v4979 = vpop.f32.mrb[0].mxu0
        %v4980 = vadd.f32 0.0, %v4979
        %v4981 = vpop.f32.mrb[0].mxu0
        %4982 = vmatprep.mubr.f32.mxu0 0.0
        %4983 = vmatmul.mubr.f32.gmra.mrb[0].mxu0 %v4764
        %v4984 = vpop.f32.mrb[0].mxu0
        %v4985 = vadd.f32 0.0, %v4984
        %v4986 = vpop.f32.mrb[0].mxu0
        %4987 = vmatprep.mubr.f32.mxu0 0.0
        %4988 = vmatmul.mubr.f32.gmra.mrb[0].mxu0 %v4767
        %v4989 = vpop.f32.mrb[0].mxu0
        %v4990 = vadd.f32 0.0, %v4989
        %v4991 = vpop.f32.mrb[0].mxu0
        %4992 = vmatprep.mubr.f32.mxu0 0.0
        %4993 = vmatmul.mubr.f32.gmra.mrb[0].mxu0 %v4770
        %v4994 = vpop.f32.mrb[0].mxu0
        %v4995 = vadd.f32 0.0, %v4994
        %v4996 = vpop.f32.mrb[0].mxu0
        %4997 = vmatprep.mubr.f32.mxu0 0.0
        %4998 = vmatmul.mubr.f32.gmra.mrb[0].mxu0 %v4773
        %v4999 = vpop.f32.mrb[0].mxu0
        %v5000 = vadd.f32 0.0, %v4999
        %v5001 = vpop.f32.mrb[0].mxu0
        %5002 = vdwg.mxu0
        %5035 = vrot.lane.b32.xlu0 %v2439, 8
        %v5036 = vpop.permute.xlu0 %5035
        %5037 = vrot.lane.b32.xlu0 %v2444, 8
        %v5038 = vpop.permute.xlu0 %5037
        %5039 = vrot.lane.b32.xlu0 %v2449, 8
        %v5040 = vpop.permute.xlu0 %5039
        %5041 = vrot.lane.b32.xlu0 %v2454, 8
        %v5042 = vpop.permute.xlu0 %5041
        %5043 = vrot.lane.b32.xlu0 %v2459, 8
        %v5044 = vpop.permute.xlu0 %5043
        %5045 = vrot.lane.b32.xlu0 %v2464, 8
        %v5046 = vpop.permute.xlu0 %5045
        %5047 = vrot.lane.b32.xlu0 %v2469, 8
        %v5048 = vpop.permute.xlu0 %5047
        %5049 = vrot.lane.b32.xlu0 %v2474, 8
        %v5050 = vpop.permute.xlu0 %5049
        %5051 = vrot.lane.b32.xlu0 %v2479, 8
        %v5052 = vpop.permute.xlu0 %5051
        %5053 = vrot.lane.b32.xlu0 %v2484, 8
        %v5054 = vpop.permute.xlu0 %5053
        %5055 = vrot.lane.b32.xlu0 %v2489, 8
        %v5056 = vpop.permute.xlu0 %5055
        %5057 = vrot.lane.b32.xlu0 %v2494, 8
        %v5058 = vpop.permute.xlu0 %5057
        %5059 = vrot.lane.b32.xlu0 %v2499, 8
        %v5060 = vpop.permute.xlu0 %5059
        %5061 = vrot.lane.b32.xlu0 %v2504, 8
        %v5062 = vpop.permute.xlu0 %5061
        %5063 = vrot.lane.b32.xlu0 %v2509, 8
        %v5064 = vpop.permute.xlu0 %5063
        %5065 = vrot.lane.b32.xlu0 %v2514, 8
        %v5066 = vpop.permute.xlu0 %5065
        %5067 = vrot.lane.b32.xlu0 %v2519, 8
        %v5068 = vpop.permute.xlu0 %5067
        %5069 = vrot.lane.b32.xlu0 %v2524, 8
        %v5070 = vpop.permute.xlu0 %5069
        %5071 = vrot.lane.b32.xlu0 %v2529, 8
        %v5072 = vpop.permute.xlu0 %5071
        %5073 = vrot.lane.b32.xlu0 %v2534, 8
        %v5074 = vpop.permute.xlu0 %5073
        %5075 = vrot.lane.b32.xlu0 %v2539, 8
        %v5076 = vpop.permute.xlu0 %5075
        %5077 = vrot.lane.b32.xlu0 %v2544, 8
        %v5078 = vpop.permute.xlu0 %5077
        %5079 = vrot.lane.b32.xlu0 %v2549, 8
        %v5080 = vpop.permute.xlu0 %5079
        %5081 = vrot.lane.b32.xlu0 %v2554, 8
        %v5082 = vpop.permute.xlu0 %5081
        %5083 = vrot.lane.b32.xlu0 %v2559, 8
        %v5084 = vpop.permute.xlu0 %5083
        %5085 = vrot.lane.b32.xlu0 %v2564, 8
        %v5086 = vpop.permute.xlu0 %5085
        %5087 = vrot.lane.b32.xlu0 %v2569, 8
        %v5088 = vpop.permute.xlu0 %5087
        %5089 = vrot.lane.b32.xlu0 %v2574, 8
        %v5090 = vpop.permute.xlu0 %5089
        %5091 = vrot.lane.b32.xlu0 %v2579, 8
        %v5092 = vpop.permute.xlu0 %5091
        %5093 = vrot.lane.b32.xlu0 %v2584, 8
        %v5094 = vpop.permute.xlu0 %5093
        %5095 = vrot.lane.b32.xlu0 %v2589, 8
        %v5096 = vpop.permute.xlu0 %5095
        %5097 = vrot.lane.b32.xlu0 %v2594, 8
        %v5098 = vpop.permute.xlu0 %5097
        %5163 = vrot.lane.b32.xlu0 %v4086, 16
        %v5164 = vpop.permute.xlu0 %5163
        %5165 = vrot.lane.b32.xlu0 %v4091, 16
        %v5166 = vpop.permute.xlu0 %5165
        %5167 = vrot.lane.b32.xlu0 %v4096, 16
        %v5168 = vpop.permute.xlu0 %5167
        %5169 = vrot.lane.b32.xlu0 %v4101, 16
        %v5170 = vpop.permute.xlu0 %5169
        %5171 = vrot.lane.b32.xlu0 %v4106, 16
        %v5172 = vpop.permute.xlu0 %5171
        %5173 = vrot.lane.b32.xlu0 %v4111, 16
        %v5174 = vpop.permute.xlu0 %5173
        %5175 = vrot.lane.b32.xlu0 %v4116, 16
        %v5176 = vpop.permute.xlu0 %5175
        %5177 = vrot.lane.b32.xlu0 %v4121, 16
        %v5178 = vpop.permute.xlu0 %5177
        %5179 = vrot.lane.b32.xlu0 %v4126, 16
        %v5180 = vpop.permute.xlu0 %5179
        %5181 = vrot.lane.b32.xlu0 %v4131, 16
        %v5182 = vpop.permute.xlu0 %5181
        %5183 = vrot.lane.b32.xlu0 %v4136, 16
        %v5184 = vpop.permute.xlu0 %5183
        %5185 = vrot.lane.b32.xlu0 %v4141, 16
        %v5186 = vpop.permute.xlu0 %5185
        %5187 = vrot.lane.b32.xlu0 %v4146, 16
        %v5188 = vpop.permute.xlu0 %5187
        %5189 = vrot.lane.b32.xlu0 %v4151, 16
        %v5190 = vpop.permute.xlu0 %5189
        %5191 = vrot.lane.b32.xlu0 %v4156, 16
        %v5192 = vpop.permute.xlu0 %5191
        %5193 = vrot.lane.b32.xlu0 %v4161, 16
        %v5194 = vpop.permute.xlu0 %5193
        %5195 = vrot.lane.b32.xlu0 %v4166, 16
        %v5196 = vpop.permute.xlu0 %5195
        %5197 = vrot.lane.b32.xlu0 %v4171, 16
        %v5198 = vpop.permute.xlu0 %5197
        %5199 = vrot.lane.b32.xlu0 %v4176, 16
        %v5200 = vpop.permute.xlu0 %5199
        %5201 = vrot.lane.b32.xlu0 %v4181, 16
        %v5202 = vpop.permute.xlu0 %5201
        %5203 = vrot.lane.b32.xlu0 %v4186, 16
        %v5204 = vpop.permute.xlu0 %5203
        %5205 = vrot.lane.b32.xlu0 %v4191, 16
        %v5206 = vpop.permute.xlu0 %5205
        %5207 = vrot.lane.b32.xlu0 %v4196, 16
        %v5208 = vpop.permute.xlu0 %5207
        %5209 = vrot.lane.b32.xlu0 %v4201, 16
        %v5210 = vpop.permute.xlu0 %5209
        %5211 = vrot.lane.b32.xlu0 %v4206, 16
        %v5212 = vpop.permute.xlu0 %5211
        %5213 = vrot.lane.b32.xlu0 %v4211, 16
        %v5214 = vpop.permute.xlu0 %5213
        %5215 = vrot.lane.b32.xlu0 %v4216, 16
        %v5216 = vpop.permute.xlu0 %5215
        %5217 = vrot.lane.b32.xlu0 %v4221, 16
        %v5218 = vpop.permute.xlu0 %5217
        %5219 = vrot.lane.b32.xlu0 %v4226, 16
        %v5220 = vpop.permute.xlu0 %5219
        %5221 = vrot.lane.b32.xlu0 %v4231, 16
        %v5222 = vpop.permute.xlu0 %5221
        %5223 = vrot.lane.b32.xlu0 %v4236, 16
        %v5224 = vpop.permute.xlu0 %5223
        %5225 = vrot.lane.b32.xlu0 %v4241, 16
        %v5226 = vpop.permute.xlu0 %5225
        %5291 = vrot.lane.b32.xlu0 %v4845, 24
        %v5292 = vpop.permute.xlu0 %5291
        %5293 = vrot.lane.b32.xlu0 %v4850, 24
        %v5294 = vpop.permute.xlu0 %5293
        %5295 = vrot.lane.b32.xlu0 %v4855, 24
        %v5296 = vpop.permute.xlu0 %5295
        %5297 = vrot.lane.b32.xlu0 %v4860, 24
        %v5298 = vpop.permute.xlu0 %5297
        %5299 = vrot.lane.b32.xlu0 %v4865, 24
        %v5300 = vpop.permute.xlu0 %5299
        %5301 = vrot.lane.b32.xlu0 %v4870, 24
        %v5302 = vpop.permute.xlu0 %5301
        %5303 = vrot.lane.b32.xlu0 %v4875, 24
        %v5304 = vpop.permute.xlu0 %5303
        %5305 = vrot.lane.b32.xlu0 %v4880, 24
        %v5306 = vpop.permute.xlu0 %5305
        %5307 = vrot.lane.b32.xlu0 %v4885, 24
        %v5308 = vpop.permute.xlu0 %5307
        %5309 = vrot.lane.b32.xlu0 %v4890, 24
        %v5310 = vpop.permute.xlu0 %5309
        %5311 = vrot.lane.b32.xlu0 %v4895, 24
        %v5312 = vpop.permute.xlu0 %5311
        %5313 = vrot.lane.b32.xlu0 %v4900, 24
        %v5314 = vpop.permute.xlu0 %5313
        %5315 = vrot.lane.b32.xlu0 %v4905, 24
        %v5316 = vpop.permute.xlu0 %5315
        %5317 = vrot.lane.b32.xlu0 %v4910, 24
        %v5318 = vpop.permute.xlu0 %5317
        %5319 = vrot.lane.b32.xlu0 %v4915, 24
        %v5320 = vpop.permute.xlu0 %5319
        %5321 = vrot.lane.b32.xlu0 %v4920, 24
        %v5322 = vpop.permute.xlu0 %5321
        %5323 = vrot.lane.b32.xlu0 %v4925, 24
        %v5324 = vpop.permute.xlu0 %5323
        %5325 = vrot.lane.b32.xlu0 %v4930, 24
        %v5326 = vpop.permute.xlu0 %5325
        %5327 = vrot.lane.b32.xlu0 %v4935, 24
        %v5328 = vpop.permute.xlu0 %5327
        %5329 = vrot.lane.b32.xlu0 %v4940, 24
        %v5330 = vpop.permute.xlu0 %5329
        %5331 = vrot.lane.b32.xlu0 %v4945, 24
        %v5332 = vpop.permute.xlu0 %5331
        %5333 = vrot.lane.b32.xlu0 %v4950, 24
        %v5334 = vpop.permute.xlu0 %5333
        %5335 = vrot.lane.b32.xlu0 %v4955, 24
        %v5336 = vpop.permute.xlu0 %5335
        %5337 = vrot.lane.b32.xlu0 %v4960, 24
        %v5338 = vpop.permute.xlu0 %5337
        %5339 = vrot.lane.b32.xlu0 %v4965, 24
        %v5340 = vpop.permute.xlu0 %5339
        %5341 = vrot.lane.b32.xlu0 %v4970, 24
        %v5342 = vpop.permute.xlu0 %5341
        %5343 = vrot.lane.b32.xlu0 %v4975, 24
        %v5344 = vpop.permute.xlu0 %5343
        %5345 = vrot.lane.b32.xlu0 %v4980, 24
        %v5346 = vpop.permute.xlu0 %5345
        %5347 = vrot.lane.b32.xlu0 %v4985, 24
        %v5348 = vpop.permute.xlu0 %5347
        %5349 = vrot.lane.b32.xlu0 %v4990, 24
        %v5350 = vpop.permute.xlu0 %5349
        %5351 = vrot.lane.b32.xlu0 %v4995, 24
        %v5352 = vpop.permute.xlu0 %5351
        %5353 = vrot.lane.b32.xlu0 %v5000, 24
        %v5354 = vpop.permute.xlu0 %5353
        %v5387 = vsel %vm2036, %v789, %v5036
        %v5388 = vsel %vm2036, %v794, %v5038
        %v5389 = vsel %vm2036, %v799, %v5040
        %v5390 = vsel %vm2036, %v804, %v5042
        %v5391 = vsel %vm2036, %v809, %v5044
        %v5392 = vsel %vm2036, %v814, %v5046
        %v5393 = vsel %vm2036, %v819, %v5048
        %v5394 = vsel %vm2036, %v824, %v5050
        %v5395 = vsel %vm2036, %v829, %v5052
        %v5396 = vsel %vm2036, %v834, %v5054
        %v5397 = vsel %vm2036, %v839, %v5056
        %v5398 = vsel %vm2036, %v844, %v5058
        %v5399 = vsel %vm2036, %v849, %v5060
        %v5400 = vsel %vm2036, %v854, %v5062
        %v5401 = vsel %vm2036, %v859, %v5064
        %v5402 = vsel %vm2036, %v864, %v5066
        %v5403 = vsel %vm2036, %v869, %v5068
        %v5404 = vsel %vm2036, %v874, %v5070
        %v5405 = vsel %vm2036, %v879, %v5072
        %v5406 = vsel %vm2036, %v884, %v5074
        %v5407 = vsel %vm2036, %v889, %v5076
        %v5408 = vsel %vm2036, %v894, %v5078
        %v5409 = vsel %vm2036, %v899, %v5080
        %v5410 = vsel %vm2036, %v904, %v5082
        %v5411 = vsel %vm2036, %v909, %v5084
        %v5412 = vsel %vm2036, %v914, %v5086
        %v5413 = vsel %vm2036, %v919, %v5088
        %v5414 = vsel %vm2036, %v924, %v5090
        %v5415 = vsel %vm2036, %v929, %v5092
        %v5416 = vsel %vm2036, %v934, %v5094
        %v5417 = vsel %vm2036, %v939, %v5096
        %v5418 = vsel %vm2036, %v944, %v5098
        %v5419 = vsel %vm2102, %v5387, %v5164
        %v5420 = vsel %vm2102, %v5388, %v5166
        %v5421 = vsel %vm2102, %v5389, %v5168
        %v5422 = vsel %vm2102, %v5390, %v5170
        %v5423 = vsel %vm2102, %v5391, %v5172
        %v5424 = vsel %vm2102, %v5392, %v5174
        %v5425 = vsel %vm2102, %v5393, %v5176
        %v5426 = vsel %vm2102, %v5394, %v5178
        %v5427 = vsel %vm2102, %v5395, %v5180
        %v5428 = vsel %vm2102, %v5396, %v5182
        %v5429 = vsel %vm2102, %v5397, %v5184
        %v5430 = vsel %vm2102, %v5398, %v5186
        %v5431 = vsel %vm2102, %v5399, %v5188
        %v5432 = vsel %vm2102, %v5400, %v5190
        %v5433 = vsel %vm2102, %v5401, %v5192
        %v5434 = vsel %vm2102, %v5402, %v5194
        %v5435 = vsel %vm2102, %v5403, %v5196
        %v5436 = vsel %vm2102, %v5404, %v5198
        %v5437 = vsel %vm2102, %v5405, %v5200
        %v5438 = vsel %vm2102, %v5406, %v5202
        %v5439 = vsel %vm2102, %v5407, %v5204
        %v5440 = vsel %vm2102, %v5408, %v5206
        %v5441 = vsel %vm2102, %v5409, %v5208
        %v5442 = vsel %vm2102, %v5410, %v5210
        %v5443 = vsel %vm2102, %v5411, %v5212
        %v5444 = vsel %vm2102, %v5412, %v5214
        %v5445 = vsel %vm2102, %v5413, %v5216
        %v5446 = vsel %vm2102, %v5414, %v5218
        %v5447 = vsel %vm2102, %v5415, %v5220
        %v5448 = vsel %vm2102, %v5416, %v5222
        %v5449 = vsel %vm2102, %v5417, %v5224
        %v5450 = vsel %vm2102, %v5418, %v5226
        %v5451 = vsel %vm2168, %v5419, %v5292
        %v5452 = vsel %vm2168, %v5420, %v5294
        %v5453 = vsel %vm2168, %v5421, %v5296
        %v5454 = vsel %vm2168, %v5422, %v5298
        %v5455 = vsel %vm2168, %v5423, %v5300
        %v5456 = vsel %vm2168, %v5424, %v5302
        %v5457 = vsel %vm2168, %v5425, %v5304
        %v5458 = vsel %vm2168, %v5426, %v5306
        %v5459 = vsel %vm2168, %v5427, %v5308
        %v5460 = vsel %vm2168, %v5428, %v5310
        %v5461 = vsel %vm2168, %v5429, %v5312
        %v5462 = vsel %vm2168, %v5430, %v5314
        %v5463 = vsel %vm2168, %v5431, %v5316
        %v5464 = vsel %vm2168, %v5432, %v5318
        %v5465 = vsel %vm2168, %v5433, %v5320
        %v5466 = vsel %vm2168, %v5434, %v5322
        %v5467 = vsel %vm2168, %v5435, %v5324
        %v5468 = vsel %vm2168, %v5436, %v5326
        %v5469 = vsel %vm2168, %v5437, %v5328
        %v5470 = vsel %vm2168, %v5438, %v5330
        %v5471 = vsel %vm2168, %v5439, %v5332
        %v5472 = vsel %vm2168, %v5440, %v5334
        %v5473 = vsel %vm2168, %v5441, %v5336
        %v5474 = vsel %vm2168, %v5442, %v5338
        %v5475 = vsel %vm2168, %v5443, %v5340
        %v5476 = vsel %vm2168, %v5444, %v5342
        %v5477 = vsel %vm2168, %v5445, %v5344
        %v5478 = vsel %vm2168, %v5446, %v5346
        %v5479 = vsel %vm2168, %v5447, %v5348
        %v5480 = vsel %vm2168, %v5448, %v5350
        %v5481 = vsel %vm2168, %v5449, %v5352
        %v5482 = vsel %vm2168, %v5450, %v5354
        %v5483 = vld [vmem:[#allocation14] sm:$0x1]
        %v5485 = vlaneseq
        %v5486 = vshrl.u32 %v5485, 7
        %v5487 = vsub.s32 0, %v5486
        %v5488 = vrot.slane %v5483, %v5487
        %v5490 = vadd.f32 %v5451, %v5488
        %v5491 = vadd.f32 %v5452, %v5488
        %v5492 = vadd.f32 %v5453, %v5488
        %v5493 = vadd.f32 %v5454, %v5488
        %v5494 = vadd.f32 %v5455, %v5488
        %v5495 = vadd.f32 %v5456, %v5488
        %v5496 = vadd.f32 %v5457, %v5488
        %v5497 = vadd.f32 %v5458, %v5488
        %v5498 = vadd.f32 %v5459, %v5488
        %v5499 = vadd.f32 %v5460, %v5488
        %v5500 = vadd.f32 %v5461, %v5488
        %v5501 = vadd.f32 %v5462, %v5488
        %v5502 = vadd.f32 %v5463, %v5488
        %v5503 = vadd.f32 %v5464, %v5488
        %v5504 = vadd.f32 %v5465, %v5488
        %v5505 = vadd.f32 %v5466, %v5488
        %v5506 = vadd.f32 %v5467, %v5488
        %v5507 = vadd.f32 %v5468, %v5488
        %v5508 = vadd.f32 %v5469, %v5488
        %v5509 = vadd.f32 %v5470, %v5488
        %v5510 = vadd.f32 %v5471, %v5488
        %v5511 = vadd.f32 %v5472, %v5488
        %v5512 = vadd.f32 %v5473, %v5488
        %v5513 = vadd.f32 %v5474, %v5488
        %v5514 = vadd.f32 %v5475, %v5488
        %v5515 = vadd.f32 %v5476, %v5488
        %v5516 = vadd.f32 %v5477, %v5488
        %v5517 = vadd.f32 %v5478, %v5488
        %v5518 = vadd.f32 %v5479, %v5488
        %v5519 = vadd.f32 %v5480, %v5488
        %v5520 = vadd.f32 %v5481, %v5488
        %v5521 = vadd.f32 %v5482, %v5488
        %v5522 = vmax.f32 %v5490, 0.0
        %v5523 = vmax.f32 %v5491, 0.0
        %v5524 = vmax.f32 %v5492, 0.0
        %v5525 = vmax.f32 %v5493, 0.0
        %v5526 = vmax.f32 %v5494, 0.0
        %v5527 = vmax.f32 %v5495, 0.0
        %v5528 = vmax.f32 %v5496, 0.0
        %v5529 = vmax.f32 %v5497, 0.0
        %v5530 = vmax.f32 %v5498, 0.0
        %v5531 = vmax.f32 %v5499, 0.0
        %v5532 = vmax.f32 %v5500, 0.0
        %v5533 = vmax.f32 %v5501, 0.0
        %v5534 = vmax.f32 %v5502, 0.0
        %v5535 = vmax.f32 %v5503, 0.0
        %v5536 = vmax.f32 %v5504, 0.0
        %v5537 = vmax.f32 %v5505, 0.0
        %v5538 = vmax.f32 %v5506, 0.0
        %v5539 = vmax.f32 %v5507, 0.0
        %v5540 = vmax.f32 %v5508, 0.0
        %v5541 = vmax.f32 %v5509, 0.0
        %v5542 = vmax.f32 %v5510, 0.0
        %v5543 = vmax.f32 %v5511, 0.0
        %v5544 = vmax.f32 %v5512, 0.0
        %v5545 = vmax.f32 %v5513, 0.0
        %v5546 = vmax.f32 %v5514, 0.0
        %v5547 = vmax.f32 %v5515, 0.0
        %v5548 = vmax.f32 %v5516, 0.0
        %v5549 = vmax.f32 %v5517, 0.0
        %v5550 = vmax.f32 %v5518, 0.0
        %v5551 = vmax.f32 %v5519, 0.0
        %v5552 = vmax.f32 %v5520, 0.0
        %v5553 = vmax.f32 %v5521, 0.0
        %5554 = vst.msk [vmem:[%s467] sm:$0xff] %vm2234, %v5522
        %5555 = vst.msk [vmem:[%s467 + $0x8] sm:$0xff] %vm2234, %v5523
        %5556 = vst.msk [vmem:[%s467 + $0x10] sm:$0xff] %vm2234, %v5524
        %5557 = vst.msk [vmem:[%s467 + $0x18] sm:$0xff] %vm2234, %v5525
        %5558 = vst.msk [vmem:[%s467 + $0x20] sm:$0xff] %vm2234, %v5526
        %5559 = vst.msk [vmem:[%s467 + $0x28] sm:$0xff] %vm2234, %v5527
        %5560 = vst.msk [vmem:[%s467 + $0x30] sm:$0xff] %vm2234, %v5528
        %5561 = vst.msk [vmem:[%s467 + $0x38] sm:$0xff] %vm2234, %v5529
        %5562 = vst.msk [vmem:[%s467 + $0x40] sm:$0xff] %vm2234, %v5530
        %5563 = vst.msk [vmem:[%s467 + $0x48] sm:$0xff] %vm2234, %v5531
        %5564 = vst.msk [vmem:[%s467 + $0x50] sm:$0xff] %vm2234, %v5532
        %5565 = vst.msk [vmem:[%s467 + $0x58] sm:$0xff] %vm2234, %v5533
        %5566 = vst.msk [vmem:[%s467 + $0x60] sm:$0xff] %vm2234, %v5534
        %5567 = vst.msk [vmem:[%s467 + $0x68] sm:$0xff] %vm2234, %v5535
        %5568 = vst.msk [vmem:[%s467 + $0x70] sm:$0xff] %vm2234, %v5536
        %5569 = vst.msk [vmem:[%s467 + $0x78] sm:$0xff] %vm2234, %v5537
        %5570 = vst.msk [vmem:[%s467 + $0x80] sm:$0xff] %vm2234, %v5538
        %5571 = vst.msk [vmem:[%s467 + $0x88] sm:$0xff] %vm2234, %v5539
        %5572 = vst.msk [vmem:[%s467 + $0x90] sm:$0xff] %vm2234, %v5540
        %5573 = vst.msk [vmem:[%s467 + $0x98] sm:$0xff] %vm2234, %v5541
        %5574 = vst.msk [vmem:[%s467 + $0xa0] sm:$0xff] %vm2234, %v5542
        %5575 = vst.msk [vmem:[%s467 + $0xa8] sm:$0xff] %vm2234, %v5543
        %5576 = vst.msk [vmem:[%s467 + $0xb0] sm:$0xff] %vm2234, %v5544
        %5577 = vst.msk [vmem:[%s467 + $0xb8] sm:$0xff] %vm2234, %v5545
        %5578 = vst.msk [vmem:[%s467 + $0xc0] sm:$0xff] %vm2234, %v5546
        %5579 = vst.msk [vmem:[%s467 + $0xc8] sm:$0xff] %vm2234, %v5547
        %5580 = vst.msk [vmem:[%s467 + $0xd0] sm:$0xff] %vm2234, %v5548
        %5581 = vst.msk [vmem:[%s467 + $0xd8] sm:$0xff] %vm2234, %v5549
        %5582 = vst.msk [vmem:[%s467 + $0xe0] sm:$0xff] %vm2234, %v5550
        %5583 = vst.msk [vmem:[%s467 + $0xe8] sm:$0xff] %vm2234, %v5551
        %5584 = vst.msk [vmem:[%s467 + $0xf0] sm:$0xff] %vm2234, %v5552
        %5585 = vst.msk [vmem:[%s467 + $0xf8] sm:$0xff] %vm2234, %v5553
        %s5586 = sand.u32 %s222, 1
        %s5587 = scalar_lea.sflag [#allocation4], %s5586
        %s5588 = sand.u32 %s222, 1
        %s5589 = smul.addr %s5588, 256
        %s5590 = scalar_lea.vmem [#allocation16], %s5589
        // Predicated region
        $region85: #{inception_forward.5} parent=51 // pred_check
          %p5591 = pneg %p232
        $region86: #{inception_forward.5} parent=51 // pred_check_branch
          %5593 = sbr.rel (%p5591) target = $region88
        $region87: #{inception_forward.5} parent=51 // pred_region
          %s5594 = smul.u32 32, %s31
          %s5596 = ssub.s32 4096, 4096
          %5597 = vsyncadd %s5587, %s5596
          %s5598 = smul.addr %s5594, 128
          %s5599 = scalar_lea.hbm %s8, %s5598
          %s5600 = sshll.u32 %s5590, 4
          %s5601 = int_to_ptr.vmem [resolvable:$true] %s5600
          %5606 = dma.vmem_to_hbm [thread:$0]  %s5601, 4096, %s5599, %s5587, 128, 128, 8
        $region88: #{inception_forward.5} parent=51 // pred_fallthru
          _
      $region52: #{inception_forward.5} parent=5 // pred_fallthru
        _
      %p5607 = scmp.le.s32.totalorder 2, %s26
      // Predicated region
      $region89: #{inception_forward.5} parent=5 // pred_check
        %p5608 = pneg %p5607
      $region90: #{inception_forward.5} parent=5 // pred_check_branch
        %5610 = sbr.rel (%p5608) target = $region92
      $region91: #{inception_forward.5} parent=5 // pred_region
        %s5611 = ssub.s32 %s26, 2
        // Predicated region
        $region93: #{inception_forward.5} parent=91 // pred_check
          %p5612 = pneg %p238
        $region94: #{inception_forward.5} parent=91 // pred_check_branch
          %5614 = sbr.rel (%p5612) target = $region96
        $region95: #{inception_forward.5} parent=91 // pred_region
          %s5615 = sand.u32 %s223, 1
          %s5616 = scalar_lea.sflag [#allocation4], %s5615
          %s5617 = sand.u32 %s223, 1
          %s5618 = smul.addr %s5617, 256
          %s5619 = scalar_lea.vmem [#allocation16], %s5618
          %5620 = dma.done %s5616, 4096
        $region96: #{inception_forward.5} parent=91 // pred_fallthru
          _
      $region92: #{inception_forward.5} parent=5 // pred_fallthru
        _
    $region6: #{inception_forward.5} parent=1 // loop_footer
      %s30 = sadd.s32 1, %s26
    $region7: #{inception_forward.5} parent=1 // loop_footer_branch
      %25 = sbr.rel target = $region3
    $region8: #{inception_forward.5} parent=1 // loop_exit
      _
    %5621 = vsyncpa [#allocation3], 1
    %s5622 = scalar_lea.sflag [#allocation3], 1
    %5623 = vsyncpa %s5622, 1
    %5624 = vsyncpa [#allocation6], 1
    %s5625 = scalar_lea.sflag [#allocation6], 1
    %5626 = vsyncpa %s5625, 1
    %5627 = vsyncpa [#allocation9], 1
    %5628 = vsyncpa [#allocation12], 1
    %5629 = vsyncpa [#allocation15], 1
    %5630 = vsyncpa [#allocation4], 1
    %s5631 = scalar_lea.sflag [#allocation4], 1
    %5632 = vsyncpa %s5631, 1

</llo_original>
